<compile_context>
chip_gen: v7x
topology: tpu7x:2x2x1
jax: 0.10.0
libtpu: 0.0.40
codegen_flags: <defaults>
</compile_context>

<pallas_src>
import jax
import jax.numpy as jnp
from jax.experimental import pallas as pl
from jax.experimental.pallas import tpu as pltpu


# ----------------------------------------------------------------------------
# Fused Pallas kernel: whole DNAModule forward.
# ----------------------------------------------------------------------------
def _dna_kernel(p_ref,
                w1, b1, w2, b2, w3, b3, w4, b4, w5, b5, w6, b6, w7, b7,
                f1w, f1b, f2w, f2b, f3w, f3b, f4w, f4b,
                out_ref):
    f32 = jnp.float32
    relu = lambda v: jnp.maximum(v, 0.0)

    def mm(x, w_ref, b_ref):
        # (W, Cin) @ (Cin, Cout) + b, ReLU, f32 accumulation on the MXU.
        return relu(jnp.dot(x, w_ref[...], preferred_element_type=f32) + b_ref[...])

    def conv1x3(x, wtap_ref, b_ref):
        # out[t] = W0 @ x[t-1] + W1 @ x[t] + W2 @ x[t+1]   (zero padded ends)
        z = jnp.zeros((1, x.shape[1]), f32)
        xl = jnp.concatenate([z, x[:-1, :]], axis=0)
        xr = jnp.concatenate([x[1:, :], z], axis=0)
        acc = (jnp.dot(xl, wtap_ref[0], preferred_element_type=f32)
               + jnp.dot(x, wtap_ref[1], preferred_element_type=f32)
               + jnp.dot(xr, wtap_ref[2], preferred_element_type=f32)
               + b_ref[...])
        return relu(acc)

    def pool_w2(x):
        # MaxPool over width pairs (floor behavior, drops trailing odd row).
        half = x.shape[0] // 2
        rows = [jnp.maximum(x[2 * i:2 * i + 1, :], x[2 * i + 1:2 * i + 2, :])
                for i in range(half)]
        return rows[0] if half == 1 else jnp.concatenate(rows, axis=0)

    def flat_rows(x):
        # (W, 128) -> (1, W*128), width-major (channel fastest, 128-aligned lanes).
        if x.shape[0] == 1:
            return x
        return jnp.concatenate([x[t:t + 1, :] for t in range(x.shape[0])], axis=1)

    n_batch = p_ref.shape[0]
    yflats = []
    for n in range(n_batch):
        c1 = mm(p_ref[n], w1, b1)            # (W1, 128)
        c2 = mm(c1, w2, b2)                  # (W1, 64)
        c3 = conv1x3(c2, w3, b3)             # (W1, 64)
        c4 = mm(c3, w4, b4)                  # (W1, 128)
        p1 = pool_w2(c4)                     # (W1//2, 128)
        c5 = conv1x3(p1, w5, b5)             # (W2, 64)
        c6 = conv1x3(c5, w6, b6)             # (W2, 64)
        c7 = mm(c6, w7, b7)                  # (W2, 128)
        p2 = pool_w2(c7)                     # (W2//2, 128)

        cc23 = jnp.concatenate([c2, c3], axis=1)     # channel concat -> 128 lanes
        cc56 = jnp.concatenate([c5, c6], axis=1)
        yflats.append(jnp.concatenate(
            [flat_rows(c1), flat_rows(cc23), flat_rows(cc56), flat_rows(p2)],
            axis=1))                                  # (1, 128*Wtot)

    y = jnp.concatenate(yflats, axis=0) if n_batch > 1 else yflats[0]   # (N, 128*Wtot)

    # fc1 (no activation) -> fc2+ReLU -> (dropout=identity) -> fc3+ReLU -> fc4+sigmoid
    h = jnp.dot(y.astype(jnp.bfloat16), f1w[...], preferred_element_type=f32) + f1b[...]
    h = relu(jnp.dot(h.astype(jnp.bfloat16), f2w[...], preferred_element_type=f32) + f2b[...])
    # TODO(synk): nn.Dropout(0.5) treated as identity (inference mode); training RNG mask omitted.
    h = relu(jnp.dot(h.astype(jnp.bfloat16), f3w[...], preferred_element_type=f32) + f3b[...])
    logit = jnp.sum(h * f4w[...], axis=-1, keepdims=True) + f4b[...]    # (N, 1)
    out_ref[...] = 1.0 / (1.0 + jnp.exp(-logit))


# ----------------------------------------------------------------------------
# Wrapper: im2col for conv1 (tiny) + single fused pallas_call.
# ----------------------------------------------------------------------------
def conv1_patches(x, kh=4, kw=8):
    """x: (N, 1, 4, W) NCHW -> (N, W1, kh*kw) patches, kh-major / kw-minor."""
    n, _, h, w = x.shape
    w1 = w - kw + 1
    cols = [x[:, 0, i, j:j + w1] for i in range(kh) for j in range(kw)]
    return jnp.stack(cols, axis=-1)            # (N, W1, 32)


@jax.jit
def dna_forward(x, params):
    patches = conv1_patches(x)
    args = (patches,
            params["w1"], params["b1"], params["w2"], params["b2"],
            params["w3"], params["b3"], params["w4"], params["b4"],
            params["w5"], params["b5"], params["w6"], params["b6"],
            params["w7"], params["b7"],
            params["fc1_w"], params["fc1_b"], params["fc2_w"], params["fc2_b"],
            params["fc3_w"], params["fc3_b"], params["fc4_w"], params["fc4_b"])
    vmem = pl.BlockSpec(memory_space=pltpu.MemorySpace.VMEM)
    return pl.pallas_call(
        _dna_kernel,
        out_shape=jax.ShapeDtypeStruct((x.shape[0], 1), jnp.float32),
        in_specs=[vmem] * len(args),
        out_specs=vmem,
    )(*args)


# ----------------------------------------------------------------------------
# Parameter construction (PyTorch shapes converted to the kernel's layouts).
# ----------------------------------------------------------------------------
def _k3_to_taps(w):
    """PyTorch (Cout, Cin, 1, 3) -> (3, Cin, Cout); tap j multiplies x[t + j - 1]."""
    return jnp.transpose(w[:, :, 0, :], (2, 1, 0))


def make_params(w_total):
    key = jax.random.PRNGKey(42)
    ks = jax.random.split(key, 24)
    s = 0.05

    def nrm(k, shape):
        return s * jax.random.normal(k, shape, dtype=jnp.float32)

    fc1_in = 128 * w_total
    # PyTorch-shaped weights.
    w1 = nrm(ks[0], (128, 1, 4, 8))
    w2 = nrm(ks[1], (64, 128, 1, 1))
    w3 = nrm(ks[2], (64, 64, 1, 3))
    w4 = nrm(ks[3], (128, 64, 1, 1))
    w5 = nrm(ks[4], (64, 128, 1, 3))
    w6 = nrm(ks[5], (64, 64, 1, 3))
    w7 = nrm(ks[6], (128, 64, 1, 1))
    fc1 = nrm(ks[7], (512, fc1_in))
    fc2 = nrm(ks[8], (256, 512))
    fc3 = nrm(ks[9], (128, 256))
    fc4 = nrm(ks[10], (1, 128))

    # Fold the PyTorch channel-major flatten into fc1: permute rows so fc1
    # directly consumes the kernel's width-major (w*128 + c) activation order.
    fc1_m = fc1.T.reshape(128, w_total, 512).transpose(1, 0, 2).reshape(fc1_in, 512)

    return {
        "w1": w1.reshape(128, 32).T,        "b1": nrm(ks[11], (1, 128)),
        "w2": w2.reshape(64, 128).T,        "b2": nrm(ks[12], (1, 64)),
        "w3": _k3_to_taps(w3),              "b3": nrm(ks[13], (1, 64)),
        "w4": w4.reshape(128, 64).T,        "b4": nrm(ks[14], (1, 128)),
        "w5": _k3_to_taps(w5),              "b5": nrm(ks[15], (1, 64)),
        "w6": _k3_to_taps(w6),              "b6": nrm(ks[16], (1, 64)),
        "w7": w7.reshape(128, 64).T,        "b7": nrm(ks[17], (1, 128)),
        "fc1_w": fc1_m.astype(jnp.bfloat16),  "fc1_b": nrm(ks[18], (1, 512)),
        "fc2_w": fc2.T.astype(jnp.bfloat16),  "fc2_b": nrm(ks[19], (1, 256)),
        "fc3_w": fc3.T.astype(jnp.bfloat16),  "fc3_b": nrm(ks[20], (1, 128)),
        "fc4_w": fc4,                         "fc4_b": nrm(ks[21], (1, 1)),
    }


# ----------------------------------------------------------------------------
if __name__ == "__main__":
    # Input: (N=2, C=1, H=4, W=16) NCHW, matching Conv2d(1, 128, kernel_size=(4, 8)).
    N, C, H, W = 2, 1, 4, 16
    x = jax.random.normal(jax.random.PRNGKey(0), (N, C, H, W), dtype=jnp.float32)

    W1 = W - 8 + 1          # 9
    W2 = W1 // 2            # 4
    W3 = W2 // 2            # 2
    Wtot = W1 + W1 + W2 + W3  # 24

    params = make_params(Wtot)

    out = jax.block_until_ready(dna_forward(x, params))
    assert out.shape == (N, 1), out.shape
    assert bool(jnp.all(jnp.isfinite(out)))
    print("KERNEL_OK")
</pallas_src>

<mosaic_0001>
module attributes {stable_mosaic.version = 11 : i64} {
  func.func @_dna_kernel(%arg0: memref<2x9x32xf32, #tpu.memory_space<vmem>>, %arg1: memref<32x128xf32, #tpu.memory_space<vmem>>, %arg2: memref<1x128xf32, #tpu.memory_space<vmem>>, %arg3: memref<128x64xf32, #tpu.memory_space<vmem>>, %arg4: memref<1x64xf32, #tpu.memory_space<vmem>>, %arg5: memref<3x64x64xf32, #tpu.memory_space<vmem>>, %arg6: memref<1x64xf32, #tpu.memory_space<vmem>>, %arg7: memref<64x128xf32, #tpu.memory_space<vmem>>, %arg8: memref<1x128xf32, #tpu.memory_space<vmem>>, %arg9: memref<3x128x64xf32, #tpu.memory_space<vmem>>, %arg10: memref<1x64xf32, #tpu.memory_space<vmem>>, %arg11: memref<3x64x64xf32, #tpu.memory_space<vmem>>, %arg12: memref<1x64xf32, #tpu.memory_space<vmem>>, %arg13: memref<64x128xf32, #tpu.memory_space<vmem>>, %arg14: memref<1x128xf32, #tpu.memory_space<vmem>>, %arg15: memref<3072x512xbf16, #tpu.memory_space<vmem>>, %arg16: memref<1x512xf32, #tpu.memory_space<vmem>>, %arg17: memref<512x256xbf16, #tpu.memory_space<vmem>>, %arg18: memref<1x256xf32, #tpu.memory_space<vmem>>, %arg19: memref<256x128xbf16, #tpu.memory_space<vmem>>, %arg20: memref<1x128xf32, #tpu.memory_space<vmem>>, %arg21: memref<1x128xf32, #tpu.memory_space<vmem>>, %arg22: memref<1x1xf32, #tpu.memory_space<vmem>>, %arg23: memref<2x1xf32, #tpu.memory_space<vmem>>) attributes {dimension_semantics = [], scalar_prefetch = 0 : i64, scratch_operands = 0 : i64, tpu.core_type = #tpu.core_type<tc>} {
    %c0 = arith.constant 0 : index
    %c0_0 = arith.constant 0 : index
    %c0_1 = arith.constant 0 : index
    %0 = vector.load %arg0[%c0, %c0_0, %c0_1] : memref<2x9x32xf32, #tpu.memory_space<vmem>>, vector<1x9x32xf32>
    %1 = vector.shape_cast %0 : vector<1x9x32xf32> to vector<9x32xf32>
    %c0_2 = arith.constant 0 : index
    %c0_3 = arith.constant 0 : index
    %2 = vector.load %arg1[%c0_2, %c0_3] : memref<32x128xf32, #tpu.memory_space<vmem>>, vector<32x128xf32>
    %cst = arith.constant dense<0.000000e+00> : vector<9x128xf32>
    %3 = tpu.matmul %1, %2, %cst {dimension_numbers = #tpu.dot_dimension_numbers<[1], [0], [0], [1], [0, 0, 1, 1], [], []>} : vector<9x32xf32>, vector<32x128xf32>, vector<9x128xf32> -> vector<9x128xf32>
    %c0_4 = arith.constant 0 : index
    %c0_5 = arith.constant 0 : index
    %4 = vector.load %arg2[%c0_4, %c0_5] : memref<1x128xf32, #tpu.memory_space<vmem>>, vector<1x128xf32>
    %5 = vector.broadcast %4 : vector<1x128xf32> to vector<9x128xf32>
    %6 = arith.addf %3, %5 : vector<9x128xf32>
    %cst_6 = arith.constant 0.000000e+00 : f32
    %7 = vector.broadcast %cst_6 : f32 to vector<9x128xf32>
    %8 = arith.maximumf %6, %7 : vector<9x128xf32>
    %c0_7 = arith.constant 0 : index
    %c0_8 = arith.constant 0 : index
    %9 = vector.load %arg3[%c0_7, %c0_8] : memref<128x64xf32, #tpu.memory_space<vmem>>, vector<128x64xf32>
    %cst_9 = arith.constant dense<0.000000e+00> : vector<9x64xf32>
    %10 = tpu.matmul %8, %9, %cst_9 {dimension_numbers = #tpu.dot_dimension_numbers<[1], [0], [0], [1], [0, 0, 1, 1], [], []>} : vector<9x128xf32>, vector<128x64xf32>, vector<9x64xf32> -> vector<9x64xf32>
    %c0_10 = arith.constant 0 : index
    %c0_11 = arith.constant 0 : index
    %11 = vector.load %arg4[%c0_10, %c0_11] : memref<1x64xf32, #tpu.memory_space<vmem>>, vector<1x64xf32>
    %12 = vector.broadcast %11 : vector<1x64xf32> to vector<9x64xf32>
    %13 = arith.addf %10, %12 : vector<9x64xf32>
    %cst_12 = arith.constant 0.000000e+00 : f32
    %14 = vector.broadcast %cst_12 : f32 to vector<9x64xf32>
    %15 = arith.maximumf %13, %14 : vector<9x64xf32>
    %cst_13 = arith.constant 0.000000e+00 : f32
    %16 = vector.broadcast %cst_13 : f32 to vector<1x64xf32>
    %17 = vector.extract_strided_slice %15 {offsets = [0, 0], sizes = [8, 64], strides = [1, 1]} : vector<9x64xf32> to vector<8x64xf32>
    %18 = tpu.concatenate %16, %17 in 0 : vector<1x64xf32>, vector<8x64xf32> -> vector<9x64xf32>
    %19 = vector.extract_strided_slice %15 {offsets = [1, 0], sizes = [8, 64], strides = [1, 1]} : vector<9x64xf32> to vector<8x64xf32>
    %20 = tpu.concatenate %19, %16 in 0 : vector<8x64xf32>, vector<1x64xf32> -> vector<9x64xf32>
    %c0_14 = arith.constant 0 : index
    %c0_15 = arith.constant 0 : index
    %c0_16 = arith.constant 0 : index
    %21 = vector.load %arg5[%c0_14, %c0_15, %c0_16] : memref<3x64x64xf32, #tpu.memory_space<vmem>>, vector<1x64x64xf32>
    %22 = vector.shape_cast %21 : vector<1x64x64xf32> to vector<64x64xf32>
    %cst_17 = arith.constant dense<0.000000e+00> : vector<9x64xf32>
    %23 = tpu.matmul %18, %22, %cst_17 {dimension_numbers = #tpu.dot_dimension_numbers<[1], [0], [0], [1], [0, 0, 1, 1], [], []>} : vector<9x64xf32>, vector<64x64xf32>, vector<9x64xf32> -> vector<9x64xf32>
    %c1 = arith.constant 1 : index
    %c0_18 = arith.constant 0 : index
    %c0_19 = arith.constant 0 : index
    %24 = vector.load %arg5[%c1, %c0_18, %c0_19] : memref<3x64x64xf32, #tpu.memory_space<vmem>>, vector<1x64x64xf32>
    %25 = vector.shape_cast %24 : vector<1x64x64xf32> to vector<64x64xf32>
    %cst_20 = arith.constant dense<0.000000e+00> : vector<9x64xf32>
    %26 = tpu.matmul %15, %25, %cst_20 {dimension_numbers = #tpu.dot_dimension_numbers<[1], [0], [0], [1], [0, 0, 1, 1], [], []>} : vector<9x64xf32>, vector<64x64xf32>, vector<9x64xf32> -> vector<9x64xf32>
    %27 = arith.addf %23, %26 : vector<9x64xf32>
    %c2 = arith.constant 2 : index
    %c0_21 = arith.constant 0 : index
    %c0_22 = arith.constant 0 : index
    %28 = vector.load %arg5[%c2, %c0_21, %c0_22] : memref<3x64x64xf32, #tpu.memory_space<vmem>>, vector<1x64x64xf32>
    %29 = vector.shape_cast %28 : vector<1x64x64xf32> to vector<64x64xf32>
    %cst_23 = arith.constant dense<0.000000e+00> : vector<9x64xf32>
    %30 = tpu.matmul %20, %29, %cst_23 {dimension_numbers = #tpu.dot_dimension_numbers<[1], [0], [0], [1], [0, 0, 1, 1], [], []>} : vector<9x64xf32>, vector<64x64xf32>, vector<9x64xf32> -> vector<9x64xf32>
    %31 = arith.addf %27, %30 : vector<9x64xf32>
    %c0_24 = arith.constant 0 : index
    %c0_25 = arith.constant 0 : index
    %32 = vector.load %arg6[%c0_24, %c0_25] : memref<1x64xf32, #tpu.memory_space<vmem>>, vector<1x64xf32>
    %33 = vector.broadcast %32 : vector<1x64xf32> to vector<9x64xf32>
    %34 = arith.addf %31, %33 : vector<9x64xf32>
    %cst_26 = arith.constant 0.000000e+00 : f32
    %35 = vector.broadcast %cst_26 : f32 to vector<9x64xf32>
    %36 = arith.maximumf %34, %35 : vector<9x64xf32>
    %c0_27 = arith.constant 0 : index
    %c0_28 = arith.constant 0 : index
    %37 = vector.load %arg7[%c0_27, %c0_28] : memref<64x128xf32, #tpu.memory_space<vmem>>, vector<64x128xf32>
    %cst_29 = arith.constant dense<0.000000e+00> : vector<9x128xf32>
    %38 = tpu.matmul %36, %37, %cst_29 {dimension_numbers = #tpu.dot_dimension_numbers<[1], [0], [0], [1], [0, 0, 1, 1], [], []>} : vector<9x64xf32>, vector<64x128xf32>, vector<9x128xf32> -> vector<9x128xf32>
    %c0_30 = arith.constant 0 : index
    %c0_31 = arith.constant 0 : index
    %39 = vector.load %arg8[%c0_30, %c0_31] : memref<1x128xf32, #tpu.memory_space<vmem>>, vector<1x128xf32>
    %40 = vector.broadcast %39 : vector<1x128xf32> to vector<9x128xf32>
    %41 = arith.addf %38, %40 : vector<9x128xf32>
    %cst_32 = arith.constant 0.000000e+00 : f32
    %42 = vector.broadcast %cst_32 : f32 to vector<9x128xf32>
    %43 = arith.maximumf %41, %42 : vector<9x128xf32>
    %44 = vector.extract_strided_slice %43 {offsets = [0, 0], sizes = [1, 128], strides = [1, 1]} : vector<9x128xf32> to vector<1x128xf32>
    %45 = vector.extract_strided_slice %43 {offsets = [1, 0], sizes = [1, 128], strides = [1, 1]} : vector<9x128xf32> to vector<1x128xf32>
    %46 = arith.maximumf %44, %45 : vector<1x128xf32>
    %47 = vector.extract_strided_slice %43 {offsets = [2, 0], sizes = [1, 128], strides = [1, 1]} : vector<9x128xf32> to vector<1x128xf32>
    %48 = vector.extract_strided_slice %43 {offsets = [3, 0], sizes = [1, 128], strides = [1, 1]} : vector<9x128xf32> to vector<1x128xf32>
    %49 = arith.maximumf %47, %48 : vector<1x128xf32>
    %50 = vector.extract_strided_slice %43 {offsets = [4, 0], sizes = [1, 128], strides = [1, 1]} : vector<9x128xf32> to vector<1x128xf32>
    %51 = vector.extract_strided_slice %43 {offsets = [5, 0], sizes = [1, 128], strides = [1, 1]} : vector<9x128xf32> to vector<1x128xf32>
    %52 = arith.maximumf %50, %51 : vector<1x128xf32>
    %53 = vector.extract_strided_slice %43 {offsets = [6, 0], sizes = [1, 128], strides = [1, 1]} : vector<9x128xf32> to vector<1x128xf32>
    %54 = vector.extract_strided_slice %43 {offsets = [7, 0], sizes = [1, 128], strides = [1, 1]} : vector<9x128xf32> to vector<1x128xf32>
    %55 = arith.maximumf %53, %54 : vector<1x128xf32>
    %56 = tpu.concatenate %46, %49, %52, %55 in 0 : vector<1x128xf32>, vector<1x128xf32>, vector<1x128xf32>, vector<1x128xf32> -> vector<4x128xf32>
    %cst_33 = arith.constant 0.000000e+00 : f32
    %57 = vector.broadcast %cst_33 : f32 to vector<1x128xf32>
    %58 = vector.extract_strided_slice %56 {offsets = [0, 0], sizes = [3, 128], strides = [1, 1]} : vector<4x128xf32> to vector<3x128xf32>
    %59 = tpu.concatenate %57, %58 in 0 : vector<1x128xf32>, vector<3x128xf32> -> vector<4x128xf32>
    %60 = vector.extract_strided_slice %56 {offsets = [1, 0], sizes = [3, 128], strides = [1, 1]} : vector<4x128xf32> to vector<3x128xf32>
    %61 = tpu.concatenate %60, %57 in 0 : vector<3x128xf32>, vector<1x128xf32> -> vector<4x128xf32>
    %c0_34 = arith.constant 0 : index
    %c0_35 = arith.constant 0 : index
    %c0_36 = arith.constant 0 : index
    %62 = vector.load %arg9[%c0_34, %c0_35, %c0_36] : memref<3x128x64xf32, #tpu.memory_space<vmem>>, vector<1x128x64xf32>
    %63 = vector.shape_cast %62 : vector<1x128x64xf32> to vector<128x64xf32>
    %cst_37 = arith.constant dense<0.000000e+00> : vector<4x64xf32>
    %64 = tpu.matmul %59, %63, %cst_37 {dimension_numbers = #tpu.dot_dimension_numbers<[1], [0], [0], [1], [0, 0, 1, 1], [], []>} : vector<4x128xf32>, vector<128x64xf32>, vector<4x64xf32> -> vector<4x64xf32>
    %c1_38 = arith.constant 1 : index
    %c0_39 = arith.constant 0 : index
    %c0_40 = arith.constant 0 : index
    %65 = vector.load %arg9[%c1_38, %c0_39, %c0_40] : memref<3x128x64xf32, #tpu.memory_space<vmem>>, vector<1x128x64xf32>
    %66 = vector.shape_cast %65 : vector<1x128x64xf32> to vector<128x64xf32>
    %cst_41 = arith.constant dense<0.000000e+00> : vector<4x64xf32>
    %67 = tpu.matmul %56, %66, %cst_41 {dimension_numbers = #tpu.dot_dimension_numbers<[1], [0], [0], [1], [0, 0, 1, 1], [], []>} : vector<4x128xf32>, vector<128x64xf32>, vector<4x64xf32> -> vector<4x64xf32>
    %68 = arith.addf %64, %67 : vector<4x64xf32>
    %c2_42 = arith.constant 2 : index
    %c0_43 = arith.constant 0 : index
    %c0_44 = arith.constant 0 : index
    %69 = vector.load %arg9[%c2_42, %c0_43, %c0_44] : memref<3x128x64xf32, #tpu.memory_space<vmem>>, vector<1x128x64xf32>
    %70 = vector.shape_cast %69 : vector<1x128x64xf32> to vector<128x64xf32>
    %cst_45 = arith.constant dense<0.000000e+00> : vector<4x64xf32>
    %71 = tpu.matmul %61, %70, %cst_45 {dimension_numbers = #tpu.dot_dimension_numbers<[1], [0], [0], [1], [0, 0, 1, 1], [], []>} : vector<4x128xf32>, vector<128x64xf32>, vector<4x64xf32> -> vector<4x64xf32>
    %72 = arith.addf %68, %71 : vector<4x64xf32>
    %c0_46 = arith.constant 0 : index
    %c0_47 = arith.constant 0 : index
    %73 = vector.load %arg10[%c0_46, %c0_47] : memref<1x64xf32, #tpu.memory_space<vmem>>, vector<1x64xf32>
    %74 = vector.broadcast %73 : vector<1x64xf32> to vector<4x64xf32>
    %75 = arith.addf %72, %74 : vector<4x64xf32>
    %cst_48 = arith.constant 0.000000e+00 : f32
    %76 = vector.broadcast %cst_48 : f32 to vector<4x64xf32>
    %77 = arith.maximumf %75, %76 : vector<4x64xf32>
    %cst_49 = arith.constant 0.000000e+00 : f32
    %78 = vector.broadcast %cst_49 : f32 to vector<1x64xf32>
    %79 = vector.extract_strided_slice %77 {offsets = [0, 0], sizes = [3, 64], strides = [1, 1]} : vector<4x64xf32> to vector<3x64xf32>
    %80 = tpu.concatenate %78, %79 in 0 : vector<1x64xf32>, vector<3x64xf32> -> vector<4x64xf32>
    %81 = vector.extract_strided_slice %77 {offsets = [1, 0], sizes = [3, 64], strides = [1, 1]} : vector<4x64xf32> to vector<3x64xf32>
    %82 = tpu.concatenate %81, %78 in 0 : vector<3x64xf32>, vector<1x64xf32> -> vector<4x64xf32>
    %c0_50 = arith.constant 0 : index
    %c0_51 = arith.constant 0 : index
    %c0_52 = arith.constant 0 : index
    %83 = vector.load %arg11[%c0_50, %c0_51, %c0_52] : memref<3x64x64xf32, #tpu.memory_space<vmem>>, vector<1x64x64xf32>
    %84 = vector.shape_cast %83 : vector<1x64x64xf32> to vector<64x64xf32>
    %cst_53 = arith.constant dense<0.000000e+00> : vector<4x64xf32>
    %85 = tpu.matmul %80, %84, %cst_53 {dimension_numbers = #tpu.dot_dimension_numbers<[1], [0], [0], [1], [0, 0, 1, 1], [], []>} : vector<4x64xf32>, vector<64x64xf32>, vector<4x64xf32> -> vector<4x64xf32>
    %c1_54 = arith.constant 1 : index
    %c0_55 = arith.constant 0 : index
    %c0_56 = arith.constant 0 : index
    %86 = vector.load %arg11[%c1_54, %c0_55, %c0_56] : memref<3x64x64xf32, #tpu.memory_space<vmem>>, vector<1x64x64xf32>
    %87 = vector.shape_cast %86 : vector<1x64x64xf32> to vector<64x64xf32>
    %cst_57 = arith.constant dense<0.000000e+00> : vector<4x64xf32>
    %88 = tpu.matmul %77, %87, %cst_57 {dimension_numbers = #tpu.dot_dimension_numbers<[1], [0], [0], [1], [0, 0, 1, 1], [], []>} : vector<4x64xf32>, vector<64x64xf32>, vector<4x64xf32> -> vector<4x64xf32>
    %89 = arith.addf %85, %88 : vector<4x64xf32>
    %c2_58 = arith.constant 2 : index
    %c0_59 = arith.constant 0 : index
    %c0_60 = arith.constant 0 : index
    %90 = vector.load %arg11[%c2_58, %c0_59, %c0_60] : memref<3x64x64xf32, #tpu.memory_space<vmem>>, vector<1x64x64xf32>
    %91 = vector.shape_cast %90 : vector<1x64x64xf32> to vector<64x64xf32>
    %cst_61 = arith.constant dense<0.000000e+00> : vector<4x64xf32>
    %92 = tpu.matmul %82, %91, %cst_61 {dimension_numbers = #tpu.dot_dimension_numbers<[1], [0], [0], [1], [0, 0, 1, 1], [], []>} : vector<4x64xf32>, vector<64x64xf32>, vector<4x64xf32> -> vector<4x64xf32>
    %93 = arith.addf %89, %92 : vector<4x64xf32>
    %c0_62 = arith.constant 0 : index
    %c0_63 = arith.constant 0 : index
    %94 = vector.load %arg12[%c0_62, %c0_63] : memref<1x64xf32, #tpu.memory_space<vmem>>, vector<1x64xf32>
    %95 = vector.broadcast %94 : vector<1x64xf32> to vector<4x64xf32>
    %96 = arith.addf %93, %95 : vector<4x64xf32>
    %cst_64 = arith.constant 0.000000e+00 : f32
    %97 = vector.broadcast %cst_64 : f32 to vector<4x64xf32>
    %98 = arith.maximumf %96, %97 : vector<4x64xf32>
    %c0_65 = arith.constant 0 : index
    %c0_66 = arith.constant 0 : index
    %99 = vector.load %arg13[%c0_65, %c0_66] : memref<64x128xf32, #tpu.memory_space<vmem>>, vector<64x128xf32>
    %cst_67 = arith.constant dense<0.000000e+00> : vector<4x128xf32>
    %100 = tpu.matmul %98, %99, %cst_67 {dimension_numbers = #tpu.dot_dimension_numbers<[1], [0], [0], [1], [0, 0, 1, 1], [], []>} : vector<4x64xf32>, vector<64x128xf32>, vector<4x128xf32> -> vector<4x128xf32>
    %c0_68 = arith.constant 0 : index
    %c0_69 = arith.constant 0 : index
    %101 = vector.load %arg14[%c0_68, %c0_69] : memref<1x128xf32, #tpu.memory_space<vmem>>, vector<1x128xf32>
    %102 = vector.broadcast %101 : vector<1x128xf32> to vector<4x128xf32>
    %103 = arith.addf %100, %102 : vector<4x128xf32>
    %cst_70 = arith.constant 0.000000e+00 : f32
    %104 = vector.broadcast %cst_70 : f32 to vector<4x128xf32>
    %105 = arith.maximumf %103, %104 : vector<4x128xf32>
    %106 = vector.extract_strided_slice %105 {offsets = [0, 0], sizes = [1, 128], strides = [1, 1]} : vector<4x128xf32> to vector<1x128xf32>
    %107 = vector.extract_strided_slice %105 {offsets = [1, 0], sizes = [1, 128], strides = [1, 1]} : vector<4x128xf32> to vector<1x128xf32>
    %108 = arith.maximumf %106, %107 : vector<1x128xf32>
    %109 = vector.extract_strided_slice %105 {offsets = [2, 0], sizes = [1, 128], strides = [1, 1]} : vector<4x128xf32> to vector<1x128xf32>
    %110 = vector.extract_strided_slice %105 {offsets = [3, 0], sizes = [1, 128], strides = [1, 1]} : vector<4x128xf32> to vector<1x128xf32>
    %111 = arith.maximumf %109, %110 : vector<1x128xf32>
    %112 = tpu.concatenate %108, %111 in 0 : vector<1x128xf32>, vector<1x128xf32> -> vector<2x128xf32>
    %113 = tpu.concatenate %15, %36 in 1 : vector<9x64xf32>, vector<9x64xf32> -> vector<9x128xf32>
    %114 = tpu.concatenate %77, %98 in 1 : vector<4x64xf32>, vector<4x64xf32> -> vector<4x128xf32>
    %115 = vector.extract_strided_slice %8 {offsets = [0, 0], sizes = [1, 128], strides = [1, 1]} : vector<9x128xf32> to vector<1x128xf32>
    %116 = vector.extract_strided_slice %8 {offsets = [1, 0], sizes = [1, 128], strides = [1, 1]} : vector<9x128xf32> to vector<1x128xf32>
    %117 = vector.extract_strided_slice %8 {offsets = [2, 0], sizes = [1, 128], strides = [1, 1]} : vector<9x128xf32> to vector<1x128xf32>
    %118 = vector.extract_strided_slice %8 {offsets = [3, 0], sizes = [1, 128], strides = [1, 1]} : vector<9x128xf32> to vector<1x128xf32>
    %119 = vector.extract_strided_slice %8 {offsets = [4, 0], sizes = [1, 128], strides = [1, 1]} : vector<9x128xf32> to vector<1x128xf32>
    %120 = vector.extract_strided_slice %8 {offsets = [5, 0], sizes = [1, 128], strides = [1, 1]} : vector<9x128xf32> to vector<1x128xf32>
    %121 = vector.extract_strided_slice %8 {offsets = [6, 0], sizes = [1, 128], strides = [1, 1]} : vector<9x128xf32> to vector<1x128xf32>
    %122 = vector.extract_strided_slice %8 {offsets = [7, 0], sizes = [1, 128], strides = [1, 1]} : vector<9x128xf32> to vector<1x128xf32>
    %123 = vector.extract_strided_slice %8 {offsets = [8, 0], sizes = [1, 128], strides = [1, 1]} : vector<9x128xf32> to vector<1x128xf32>
    %124 = tpu.concatenate %115, %116, %117, %118, %119, %120, %121, %122, %123 in 1 : vector<1x128xf32>, vector<1x128xf32>, vector<1x128xf32>, vector<1x128xf32>, vector<1x128xf32>, vector<1x128xf32>, vector<1x128xf32>, vector<1x128xf32>, vector<1x128xf32> -> vector<1x1152xf32>
    %125 = vector.extract_strided_slice %113 {offsets = [0, 0], sizes = [1, 128], strides = [1, 1]} : vector<9x128xf32> to vector<1x128xf32>
    %126 = vector.extract_strided_slice %113 {offsets = [1, 0], sizes = [1, 128], strides = [1, 1]} : vector<9x128xf32> to vector<1x128xf32>
    %127 = vector.extract_strided_slice %113 {offsets = [2, 0], sizes = [1, 128], strides = [1, 1]} : vector<9x128xf32> to vector<1x128xf32>
    %128 = vector.extract_strided_slice %113 {offsets = [3, 0], sizes = [1, 128], strides = [1, 1]} : vector<9x128xf32> to vector<1x128xf32>
    %129 = vector.extract_strided_slice %113 {offsets = [4, 0], sizes = [1, 128], strides = [1, 1]} : vector<9x128xf32> to vector<1x128xf32>
    %130 = vector.extract_strided_slice %113 {offsets = [5, 0], sizes = [1, 128], strides = [1, 1]} : vector<9x128xf32> to vector<1x128xf32>
    %131 = vector.extract_strided_slice %113 {offsets = [6, 0], sizes = [1, 128], strides = [1, 1]} : vector<9x128xf32> to vector<1x128xf32>
    %132 = vector.extract_strided_slice %113 {offsets = [7, 0], sizes = [1, 128], strides = [1, 1]} : vector<9x128xf32> to vector<1x128xf32>
    %133 = vector.extract_strided_slice %113 {offsets = [8, 0], sizes = [1, 128], strides = [1, 1]} : vector<9x128xf32> to vector<1x128xf32>
    %134 = tpu.concatenate %125, %126, %127, %128, %129, %130, %131, %132, %133 in 1 : vector<1x128xf32>, vector<1x128xf32>, vector<1x128xf32>, vector<1x128xf32>, vector<1x128xf32>, vector<1x128xf32>, vector<1x128xf32>, vector<1x128xf32>, vector<1x128xf32> -> vector<1x1152xf32>
    %135 = vector.extract_strided_slice %114 {offsets = [0, 0], sizes = [1, 128], strides = [1, 1]} : vector<4x128xf32> to vector<1x128xf32>
    %136 = vector.extract_strided_slice %114 {offsets = [1, 0], sizes = [1, 128], strides = [1, 1]} : vector<4x128xf32> to vector<1x128xf32>
    %137 = vector.extract_strided_slice %114 {offsets = [2, 0], sizes = [1, 128], strides = [1, 1]} : vector<4x128xf32> to vector<1x128xf32>
    %138 = vector.extract_strided_slice %114 {offsets = [3, 0], sizes = [1, 128], strides = [1, 1]} : vector<4x128xf32> to vector<1x128xf32>
    %139 = tpu.concatenate %135, %136, %137, %138 in 1 : vector<1x128xf32>, vector<1x128xf32>, vector<1x128xf32>, vector<1x128xf32> -> vector<1x512xf32>
    %140 = vector.extract_strided_slice %112 {offsets = [0, 0], sizes = [1, 128], strides = [1, 1]} : vector<2x128xf32> to vector<1x128xf32>
    %141 = vector.extract_strided_slice %112 {offsets = [1, 0], sizes = [1, 128], strides = [1, 1]} : vector<2x128xf32> to vector<1x128xf32>
    %142 = tpu.concatenate %140, %141 in 1 : vector<1x128xf32>, vector<1x128xf32> -> vector<1x256xf32>
    %143 = tpu.concatenate %124, %134, %139, %142 in 1 : vector<1x1152xf32>, vector<1x1152xf32>, vector<1x512xf32>, vector<1x256xf32> -> vector<1x3072xf32>
    %c1_71 = arith.constant 1 : index
    %c0_72 = arith.constant 0 : index
    %c0_73 = arith.constant 0 : index
    %144 = vector.load %arg0[%c1_71, %c0_72, %c0_73] : memref<2x9x32xf32, #tpu.memory_space<vmem>>, vector<1x9x32xf32>
    %145 = vector.shape_cast %144 : vector<1x9x32xf32> to vector<9x32xf32>
    %c0_74 = arith.constant 0 : index
    %c0_75 = arith.constant 0 : index
    %146 = vector.load %arg1[%c0_74, %c0_75] : memref<32x128xf32, #tpu.memory_space<vmem>>, vector<32x128xf32>
    %cst_76 = arith.constant dense<0.000000e+00> : vector<9x128xf32>
    %147 = tpu.matmul %145, %146, %cst_76 {dimension_numbers = #tpu.dot_dimension_numbers<[1], [0], [0], [1], [0, 0, 1, 1], [], []>} : vector<9x32xf32>, vector<32x128xf32>, vector<9x128xf32> -> vector<9x128xf32>
    %c0_77 = arith.constant 0 : index
    %c0_78 = arith.constant 0 : index
    %148 = vector.load %arg2[%c0_77, %c0_78] : memref<1x128xf32, #tpu.memory_space<vmem>>, vector<1x128xf32>
    %149 = vector.broadcast %148 : vector<1x128xf32> to vector<9x128xf32>
    %150 = arith.addf %147, %149 : vector<9x128xf32>
    %cst_79 = arith.constant 0.000000e+00 : f32
    %151 = vector.broadcast %cst_79 : f32 to vector<9x128xf32>
    %152 = arith.maximumf %150, %151 : vector<9x128xf32>
    %c0_80 = arith.constant 0 : index
    %c0_81 = arith.constant 0 : index
    %153 = vector.load %arg3[%c0_80, %c0_81] : memref<128x64xf32, #tpu.memory_space<vmem>>, vector<128x64xf32>
    %cst_82 = arith.constant dense<0.000000e+00> : vector<9x64xf32>
    %154 = tpu.matmul %152, %153, %cst_82 {dimension_numbers = #tpu.dot_dimension_numbers<[1], [0], [0], [1], [0, 0, 1, 1], [], []>} : vector<9x128xf32>, vector<128x64xf32>, vector<9x64xf32> -> vector<9x64xf32>
    %c0_83 = arith.constant 0 : index
    %c0_84 = arith.constant 0 : index
    %155 = vector.load %arg4[%c0_83, %c0_84] : memref<1x64xf32, #tpu.memory_space<vmem>>, vector<1x64xf32>
    %156 = vector.broadcast %155 : vector<1x64xf32> to vector<9x64xf32>
    %157 = arith.addf %154, %156 : vector<9x64xf32>
    %cst_85 = arith.constant 0.000000e+00 : f32
    %158 = vector.broadcast %cst_85 : f32 to vector<9x64xf32>
    %159 = arith.maximumf %157, %158 : vector<9x64xf32>
    %cst_86 = arith.constant 0.000000e+00 : f32
    %160 = vector.broadcast %cst_86 : f32 to vector<1x64xf32>
    %161 = vector.extract_strided_slice %159 {offsets = [0, 0], sizes = [8, 64], strides = [1, 1]} : vector<9x64xf32> to vector<8x64xf32>
    %162 = tpu.concatenate %160, %161 in 0 : vector<1x64xf32>, vector<8x64xf32> -> vector<9x64xf32>
    %163 = vector.extract_strided_slice %159 {offsets = [1, 0], sizes = [8, 64], strides = [1, 1]} : vector<9x64xf32> to vector<8x64xf32>
    %164 = tpu.concatenate %163, %160 in 0 : vector<8x64xf32>, vector<1x64xf32> -> vector<9x64xf32>
    %c0_87 = arith.constant 0 : index
    %c0_88 = arith.constant 0 : index
    %c0_89 = arith.constant 0 : index
    %165 = vector.load %arg5[%c0_87, %c0_88, %c0_89] : memref<3x64x64xf32, #tpu.memory_space<vmem>>, vector<1x64x64xf32>
    %166 = vector.shape_cast %165 : vector<1x64x64xf32> to vector<64x64xf32>
    %cst_90 = arith.constant dense<0.000000e+00> : vector<9x64xf32>
    %167 = tpu.matmul %162, %166, %cst_90 {dimension_numbers = #tpu.dot_dimension_numbers<[1], [0], [0], [1], [0, 0, 1, 1], [], []>} : vector<9x64xf32>, vector<64x64xf32>, vector<9x64xf32> -> vector<9x64xf32>
    %c1_91 = arith.constant 1 : index
    %c0_92 = arith.constant 0 : index
    %c0_93 = arith.constant 0 : index
    %168 = vector.load %arg5[%c1_91, %c0_92, %c0_93] : memref<3x64x64xf32, #tpu.memory_space<vmem>>, vector<1x64x64xf32>
    %169 = vector.shape_cast %168 : vector<1x64x64xf32> to vector<64x64xf32>
    %cst_94 = arith.constant dense<0.000000e+00> : vector<9x64xf32>
    %170 = tpu.matmul %159, %169, %cst_94 {dimension_numbers = #tpu.dot_dimension_numbers<[1], [0], [0], [1], [0, 0, 1, 1], [], []>} : vector<9x64xf32>, vector<64x64xf32>, vector<9x64xf32> -> vector<9x64xf32>
    %171 = arith.addf %167, %170 : vector<9x64xf32>
    %c2_95 = arith.constant 2 : index
    %c0_96 = arith.constant 0 : index
    %c0_97 = arith.constant 0 : index
    %172 = vector.load %arg5[%c2_95, %c0_96, %c0_97] : memref<3x64x64xf32, #tpu.memory_space<vmem>>, vector<1x64x64xf32>
    %173 = vector.shape_cast %172 : vector<1x64x64xf32> to vector<64x64xf32>
    %cst_98 = arith.constant dense<0.000000e+00> : vector<9x64xf32>
    %174 = tpu.matmul %164, %173, %cst_98 {dimension_numbers = #tpu.dot_dimension_numbers<[1], [0], [0], [1], [0, 0, 1, 1], [], []>} : vector<9x64xf32>, vector<64x64xf32>, vector<9x64xf32> -> vector<9x64xf32>
    %175 = arith.addf %171, %174 : vector<9x64xf32>
    %c0_99 = arith.constant 0 : index
    %c0_100 = arith.constant 0 : index
    %176 = vector.load %arg6[%c0_99, %c0_100] : memref<1x64xf32, #tpu.memory_space<vmem>>, vector<1x64xf32>
    %177 = vector.broadcast %176 : vector<1x64xf32> to vector<9x64xf32>
    %178 = arith.addf %175, %177 : vector<9x64xf32>
    %cst_101 = arith.constant 0.000000e+00 : f32
    %179 = vector.broadcast %cst_101 : f32 to vector<9x64xf32>
    %180 = arith.maximumf %178, %179 : vector<9x64xf32>
    %c0_102 = arith.constant 0 : index
    %c0_103 = arith.constant 0 : index
    %181 = vector.load %arg7[%c0_102, %c0_103] : memref<64x128xf32, #tpu.memory_space<vmem>>, vector<64x128xf32>
    %cst_104 = arith.constant dense<0.000000e+00> : vector<9x128xf32>
    %182 = tpu.matmul %180, %181, %cst_104 {dimension_numbers = #tpu.dot_dimension_numbers<[1], [0], [0], [1], [0, 0, 1, 1], [], []>} : vector<9x64xf32>, vector<64x128xf32>, vector<9x128xf32> -> vector<9x128xf32>
    %c0_105 = arith.constant 0 : index
    %c0_106 = arith.constant 0 : index
    %183 = vector.load %arg8[%c0_105, %c0_106] : memref<1x128xf32, #tpu.memory_space<vmem>>, vector<1x128xf32>
    %184 = vector.broadcast %183 : vector<1x128xf32> to vector<9x128xf32>
    %185 = arith.addf %182, %184 : vector<9x128xf32>
    %cst_107 = arith.constant 0.000000e+00 : f32
    %186 = vector.broadcast %cst_107 : f32 to vector<9x128xf32>
    %187 = arith.maximumf %185, %186 : vector<9x128xf32>
    %188 = vector.extract_strided_slice %187 {offsets = [0, 0], sizes = [1, 128], strides = [1, 1]} : vector<9x128xf32> to vector<1x128xf32>
    %189 = vector.extract_strided_slice %187 {offsets = [1, 0], sizes = [1, 128], strides = [1, 1]} : vector<9x128xf32> to vector<1x128xf32>
    %190 = arith.maximumf %188, %189 : vector<1x128xf32>
    %191 = vector.extract_strided_slice %187 {offsets = [2, 0], sizes = [1, 128], strides = [1, 1]} : vector<9x128xf32> to vector<1x128xf32>
    %192 = vector.extract_strided_slice %187 {offsets = [3, 0], sizes = [1, 128], strides = [1, 1]} : vector<9x128xf32> to vector<1x128xf32>
    %193 = arith.maximumf %191, %192 : vector<1x128xf32>
    %194 = vector.extract_strided_slice %187 {offsets = [4, 0], sizes = [1, 128], strides = [1, 1]} : vector<9x128xf32> to vector<1x128xf32>
    %195 = vector.extract_strided_slice %187 {offsets = [5, 0], sizes = [1, 128], strides = [1, 1]} : vector<9x128xf32> to vector<1x128xf32>
    %196 = arith.maximumf %194, %195 : vector<1x128xf32>
    %197 = vector.extract_strided_slice %187 {offsets = [6, 0], sizes = [1, 128], strides = [1, 1]} : vector<9x128xf32> to vector<1x128xf32>
    %198 = vector.extract_strided_slice %187 {offsets = [7, 0], sizes = [1, 128], strides = [1, 1]} : vector<9x128xf32> to vector<1x128xf32>
    %199 = arith.maximumf %197, %198 : vector<1x128xf32>
    %200 = tpu.concatenate %190, %193, %196, %199 in 0 : vector<1x128xf32>, vector<1x128xf32>, vector<1x128xf32>, vector<1x128xf32> -> vector<4x128xf32>
    %cst_108 = arith.constant 0.000000e+00 : f32
    %201 = vector.broadcast %cst_108 : f32 to vector<1x128xf32>
    %202 = vector.extract_strided_slice %200 {offsets = [0, 0], sizes = [3, 128], strides = [1, 1]} : vector<4x128xf32> to vector<3x128xf32>
    %203 = tpu.concatenate %201, %202 in 0 : vector<1x128xf32>, vector<3x128xf32> -> vector<4x128xf32>
    %204 = vector.extract_strided_slice %200 {offsets = [1, 0], sizes = [3, 128], strides = [1, 1]} : vector<4x128xf32> to vector<3x128xf32>
    %205 = tpu.concatenate %204, %201 in 0 : vector<3x128xf32>, vector<1x128xf32> -> vector<4x128xf32>
    %c0_109 = arith.constant 0 : index
    %c0_110 = arith.constant 0 : index
    %c0_111 = arith.constant 0 : index
    %206 = vector.load %arg9[%c0_109, %c0_110, %c0_111] : memref<3x128x64xf32, #tpu.memory_space<vmem>>, vector<1x128x64xf32>
    %207 = vector.shape_cast %206 : vector<1x128x64xf32> to vector<128x64xf32>
    %cst_112 = arith.constant dense<0.000000e+00> : vector<4x64xf32>
    %208 = tpu.matmul %203, %207, %cst_112 {dimension_numbers = #tpu.dot_dimension_numbers<[1], [0], [0], [1], [0, 0, 1, 1], [], []>} : vector<4x128xf32>, vector<128x64xf32>, vector<4x64xf32> -> vector<4x64xf32>
    %c1_113 = arith.constant 1 : index
    %c0_114 = arith.constant 0 : index
    %c0_115 = arith.constant 0 : index
    %209 = vector.load %arg9[%c1_113, %c0_114, %c0_115] : memref<3x128x64xf32, #tpu.memory_space<vmem>>, vector<1x128x64xf32>
    %210 = vector.shape_cast %209 : vector<1x128x64xf32> to vector<128x64xf32>
    %cst_116 = arith.constant dense<0.000000e+00> : vector<4x64xf32>
    %211 = tpu.matmul %200, %210, %cst_116 {dimension_numbers = #tpu.dot_dimension_numbers<[1], [0], [0], [1], [0, 0, 1, 1], [], []>} : vector<4x128xf32>, vector<128x64xf32>, vector<4x64xf32> -> vector<4x64xf32>
    %212 = arith.addf %208, %211 : vector<4x64xf32>
    %c2_117 = arith.constant 2 : index
    %c0_118 = arith.constant 0 : index
    %c0_119 = arith.constant 0 : index
    %213 = vector.load %arg9[%c2_117, %c0_118, %c0_119] : memref<3x128x64xf32, #tpu.memory_space<vmem>>, vector<1x128x64xf32>
    %214 = vector.shape_cast %213 : vector<1x128x64xf32> to vector<128x64xf32>
    %cst_120 = arith.constant dense<0.000000e+00> : vector<4x64xf32>
    %215 = tpu.matmul %205, %214, %cst_120 {dimension_numbers = #tpu.dot_dimension_numbers<[1], [0], [0], [1], [0, 0, 1, 1], [], []>} : vector<4x128xf32>, vector<128x64xf32>, vector<4x64xf32> -> vector<4x64xf32>
    %216 = arith.addf %212, %215 : vector<4x64xf32>
    %c0_121 = arith.constant 0 : index
    %c0_122 = arith.constant 0 : index
    %217 = vector.load %arg10[%c0_121, %c0_122] : memref<1x64xf32, #tpu.memory_space<vmem>>, vector<1x64xf32>
    %218 = vector.broadcast %217 : vector<1x64xf32> to vector<4x64xf32>
    %219 = arith.addf %216, %218 : vector<4x64xf32>
    %cst_123 = arith.constant 0.000000e+00 : f32
    %220 = vector.broadcast %cst_123 : f32 to vector<4x64xf32>
    %221 = arith.maximumf %219, %220 : vector<4x64xf32>
    %cst_124 = arith.constant 0.000000e+00 : f32
    %222 = vector.broadcast %cst_124 : f32 to vector<1x64xf32>
    %223 = vector.extract_strided_slice %221 {offsets = [0, 0], sizes = [3, 64], strides = [1, 1]} : vector<4x64xf32> to vector<3x64xf32>
    %224 = tpu.concatenate %222, %223 in 0 : vector<1x64xf32>, vector<3x64xf32> -> vector<4x64xf32>
    %225 = vector.extract_strided_slice %221 {offsets = [1, 0], sizes = [3, 64], strides = [1, 1]} : vector<4x64xf32> to vector<3x64xf32>
    %226 = tpu.concatenate %225, %222 in 0 : vector<3x64xf32>, vector<1x64xf32> -> vector<4x64xf32>
    %c0_125 = arith.constant 0 : index
    %c0_126 = arith.constant 0 : index
    %c0_127 = arith.constant 0 : index
    %227 = vector.load %arg11[%c0_125, %c0_126, %c0_127] : memref<3x64x64xf32, #tpu.memory_space<vmem>>, vector<1x64x64xf32>
    %228 = vector.shape_cast %227 : vector<1x64x64xf32> to vector<64x64xf32>
    %cst_128 = arith.constant dense<0.000000e+00> : vector<4x64xf32>
    %229 = tpu.matmul %224, %228, %cst_128 {dimension_numbers = #tpu.dot_dimension_numbers<[1], [0], [0], [1], [0, 0, 1, 1], [], []>} : vector<4x64xf32>, vector<64x64xf32>, vector<4x64xf32> -> vector<4x64xf32>
    %c1_129 = arith.constant 1 : index
    %c0_130 = arith.constant 0 : index
    %c0_131 = arith.constant 0 : index
    %230 = vector.load %arg11[%c1_129, %c0_130, %c0_131] : memref<3x64x64xf32, #tpu.memory_space<vmem>>, vector<1x64x64xf32>
    %231 = vector.shape_cast %230 : vector<1x64x64xf32> to vector<64x64xf32>
    %cst_132 = arith.constant dense<0.000000e+00> : vector<4x64xf32>
    %232 = tpu.matmul %221, %231, %cst_132 {dimension_numbers = #tpu.dot_dimension_numbers<[1], [0], [0], [1], [0, 0, 1, 1], [], []>} : vector<4x64xf32>, vector<64x64xf32>, vector<4x64xf32> -> vector<4x64xf32>
    %233 = arith.addf %229, %232 : vector<4x64xf32>
    %c2_133 = arith.constant 2 : index
    %c0_134 = arith.constant 0 : index
    %c0_135 = arith.constant 0 : index
    %234 = vector.load %arg11[%c2_133, %c0_134, %c0_135] : memref<3x64x64xf32, #tpu.memory_space<vmem>>, vector<1x64x64xf32>
    %235 = vector.shape_cast %234 : vector<1x64x64xf32> to vector<64x64xf32>
    %cst_136 = arith.constant dense<0.000000e+00> : vector<4x64xf32>
    %236 = tpu.matmul %226, %235, %cst_136 {dimension_numbers = #tpu.dot_dimension_numbers<[1], [0], [0], [1], [0, 0, 1, 1], [], []>} : vector<4x64xf32>, vector<64x64xf32>, vector<4x64xf32> -> vector<4x64xf32>
    %237 = arith.addf %233, %236 : vector<4x64xf32>
    %c0_137 = arith.constant 0 : index
    %c0_138 = arith.constant 0 : index
    %238 = vector.load %arg12[%c0_137, %c0_138] : memref<1x64xf32, #tpu.memory_space<vmem>>, vector<1x64xf32>
    %239 = vector.broadcast %238 : vector<1x64xf32> to vector<4x64xf32>
    %240 = arith.addf %237, %239 : vector<4x64xf32>
    %cst_139 = arith.constant 0.000000e+00 : f32
    %241 = vector.broadcast %cst_139 : f32 to vector<4x64xf32>
    %242 = arith.maximumf %240, %241 : vector<4x64xf32>
    %c0_140 = arith.constant 0 : index
    %c0_141 = arith.constant 0 : index
    %243 = vector.load %arg13[%c0_140, %c0_141] : memref<64x128xf32, #tpu.memory_space<vmem>>, vector<64x128xf32>
    %cst_142 = arith.constant dense<0.000000e+00> : vector<4x128xf32>
    %244 = tpu.matmul %242, %243, %cst_142 {dimension_numbers = #tpu.dot_dimension_numbers<[1], [0], [0], [1], [0, 0, 1, 1], [], []>} : vector<4x64xf32>, vector<64x128xf32>, vector<4x128xf32> -> vector<4x128xf32>
    %c0_143 = arith.constant 0 : index
    %c0_144 = arith.constant 0 : index
    %245 = vector.load %arg14[%c0_143, %c0_144] : memref<1x128xf32, #tpu.memory_space<vmem>>, vector<1x128xf32>
    %246 = vector.broadcast %245 : vector<1x128xf32> to vector<4x128xf32>
    %247 = arith.addf %244, %246 : vector<4x128xf32>
    %cst_145 = arith.constant 0.000000e+00 : f32
    %248 = vector.broadcast %cst_145 : f32 to vector<4x128xf32>
    %249 = arith.maximumf %247, %248 : vector<4x128xf32>
    %250 = vector.extract_strided_slice %249 {offsets = [0, 0], sizes = [1, 128], strides = [1, 1]} : vector<4x128xf32> to vector<1x128xf32>
    %251 = vector.extract_strided_slice %249 {offsets = [1, 0], sizes = [1, 128], strides = [1, 1]} : vector<4x128xf32> to vector<1x128xf32>
    %252 = arith.maximumf %250, %251 : vector<1x128xf32>
    %253 = vector.extract_strided_slice %249 {offsets = [2, 0], sizes = [1, 128], strides = [1, 1]} : vector<4x128xf32> to vector<1x128xf32>
    %254 = vector.extract_strided_slice %249 {offsets = [3, 0], sizes = [1, 128], strides = [1, 1]} : vector<4x128xf32> to vector<1x128xf32>
    %255 = arith.maximumf %253, %254 : vector<1x128xf32>
    %256 = tpu.concatenate %252, %255 in 0 : vector<1x128xf32>, vector<1x128xf32> -> vector<2x128xf32>
    %257 = tpu.concatenate %159, %180 in 1 : vector<9x64xf32>, vector<9x64xf32> -> vector<9x128xf32>
    %258 = tpu.concatenate %221, %242 in 1 : vector<4x64xf32>, vector<4x64xf32> -> vector<4x128xf32>
    %259 = vector.extract_strided_slice %152 {offsets = [0, 0], sizes = [1, 128], strides = [1, 1]} : vector<9x128xf32> to vector<1x128xf32>
    %260 = vector.extract_strided_slice %152 {offsets = [1, 0], sizes = [1, 128], strides = [1, 1]} : vector<9x128xf32> to vector<1x128xf32>
    %261 = vector.extract_strided_slice %152 {offsets = [2, 0], sizes = [1, 128], strides = [1, 1]} : vector<9x128xf32> to vector<1x128xf32>
    %262 = vector.extract_strided_slice %152 {offsets = [3, 0], sizes = [1, 128], strides = [1, 1]} : vector<9x128xf32> to vector<1x128xf32>
    %263 = vector.extract_strided_slice %152 {offsets = [4, 0], sizes = [1, 128], strides = [1, 1]} : vector<9x128xf32> to vector<1x128xf32>
    %264 = vector.extract_strided_slice %152 {offsets = [5, 0], sizes = [1, 128], strides = [1, 1]} : vector<9x128xf32> to vector<1x128xf32>
    %265 = vector.extract_strided_slice %152 {offsets = [6, 0], sizes = [1, 128], strides = [1, 1]} : vector<9x128xf32> to vector<1x128xf32>
    %266 = vector.extract_strided_slice %152 {offsets = [7, 0], sizes = [1, 128], strides = [1, 1]} : vector<9x128xf32> to vector<1x128xf32>
    %267 = vector.extract_strided_slice %152 {offsets = [8, 0], sizes = [1, 128], strides = [1, 1]} : vector<9x128xf32> to vector<1x128xf32>
    %268 = tpu.concatenate %259, %260, %261, %262, %263, %264, %265, %266, %267 in 1 : vector<1x128xf32>, vector<1x128xf32>, vector<1x128xf32>, vector<1x128xf32>, vector<1x128xf32>, vector<1x128xf32>, vector<1x128xf32>, vector<1x128xf32>, vector<1x128xf32> -> vector<1x1152xf32>
    %269 = vector.extract_strided_slice %257 {offsets = [0, 0], sizes = [1, 128], strides = [1, 1]} : vector<9x128xf32> to vector<1x128xf32>
    %270 = vector.extract_strided_slice %257 {offsets = [1, 0], sizes = [1, 128], strides = [1, 1]} : vector<9x128xf32> to vector<1x128xf32>
    %271 = vector.extract_strided_slice %257 {offsets = [2, 0], sizes = [1, 128], strides = [1, 1]} : vector<9x128xf32> to vector<1x128xf32>
    %272 = vector.extract_strided_slice %257 {offsets = [3, 0], sizes = [1, 128], strides = [1, 1]} : vector<9x128xf32> to vector<1x128xf32>
    %273 = vector.extract_strided_slice %257 {offsets = [4, 0], sizes = [1, 128], strides = [1, 1]} : vector<9x128xf32> to vector<1x128xf32>
    %274 = vector.extract_strided_slice %257 {offsets = [5, 0], sizes = [1, 128], strides = [1, 1]} : vector<9x128xf32> to vector<1x128xf32>
    %275 = vector.extract_strided_slice %257 {offsets = [6, 0], sizes = [1, 128], strides = [1, 1]} : vector<9x128xf32> to vector<1x128xf32>
    %276 = vector.extract_strided_slice %257 {offsets = [7, 0], sizes = [1, 128], strides = [1, 1]} : vector<9x128xf32> to vector<1x128xf32>
    %277 = vector.extract_strided_slice %257 {offsets = [8, 0], sizes = [1, 128], strides = [1, 1]} : vector<9x128xf32> to vector<1x128xf32>
    %278 = tpu.concatenate %269, %270, %271, %272, %273, %274, %275, %276, %277 in 1 : vector<1x128xf32>, vector<1x128xf32>, vector<1x128xf32>, vector<1x128xf32>, vector<1x128xf32>, vector<1x128xf32>, vector<1x128xf32>, vector<1x128xf32>, vector<1x128xf32> -> vector<1x1152xf32>
    %279 = vector.extract_strided_slice %258 {offsets = [0, 0], sizes = [1, 128], strides = [1, 1]} : vector<4x128xf32> to vector<1x128xf32>
    %280 = vector.extract_strided_slice %258 {offsets = [1, 0], sizes = [1, 128], strides = [1, 1]} : vector<4x128xf32> to vector<1x128xf32>
    %281 = vector.extract_strided_slice %258 {offsets = [2, 0], sizes = [1, 128], strides = [1, 1]} : vector<4x128xf32> to vector<1x128xf32>
    %282 = vector.extract_strided_slice %258 {offsets = [3, 0], sizes = [1, 128], strides = [1, 1]} : vector<4x128xf32> to vector<1x128xf32>
    %283 = tpu.concatenate %279, %280, %281, %282 in 1 : vector<1x128xf32>, vector<1x128xf32>, vector<1x128xf32>, vector<1x128xf32> -> vector<1x512xf32>
    %284 = vector.extract_strided_slice %256 {offsets = [0, 0], sizes = [1, 128], strides = [1, 1]} : vector<2x128xf32> to vector<1x128xf32>
    %285 = vector.extract_strided_slice %256 {offsets = [1, 0], sizes = [1, 128], strides = [1, 1]} : vector<2x128xf32> to vector<1x128xf32>
    %286 = tpu.concatenate %284, %285 in 1 : vector<1x128xf32>, vector<1x128xf32> -> vector<1x256xf32>
    %287 = tpu.concatenate %268, %278, %283, %286 in 1 : vector<1x1152xf32>, vector<1x1152xf32>, vector<1x512xf32>, vector<1x256xf32> -> vector<1x3072xf32>
    %288 = tpu.concatenate %143, %287 in 0 : vector<1x3072xf32>, vector<1x3072xf32> -> vector<2x3072xf32>
    %289 = arith.truncf %288 : vector<2x3072xf32> to vector<2x3072xbf16>
    %c0_146 = arith.constant 0 : index
    %c0_147 = arith.constant 0 : index
    %290 = vector.load %arg15[%c0_146, %c0_147] : memref<3072x512xbf16, #tpu.memory_space<vmem>>, vector<3072x512xbf16>
    %cst_148 = arith.constant dense<0.000000e+00> : vector<2x512xf32>
    %291 = tpu.matmul %289, %290, %cst_148 {dimension_numbers = #tpu.dot_dimension_numbers<[1], [0], [0], [1], [0, 0, 1, 1], [], []>} : vector<2x3072xbf16>, vector<3072x512xbf16>, vector<2x512xf32> -> vector<2x512xf32>
    %c0_149 = arith.constant 0 : index
    %c0_150 = arith.constant 0 : index
    %292 = vector.load %arg16[%c0_149, %c0_150] : memref<1x512xf32, #tpu.memory_space<vmem>>, vector<1x512xf32>
    %293 = vector.broadcast %292 : vector<1x512xf32> to vector<2x512xf32>
    %294 = arith.addf %291, %293 : vector<2x512xf32>
    %295 = arith.truncf %294 : vector<2x512xf32> to vector<2x512xbf16>
    %c0_151 = arith.constant 0 : index
    %c0_152 = arith.constant 0 : index
    %296 = vector.load %arg17[%c0_151, %c0_152] : memref<512x256xbf16, #tpu.memory_space<vmem>>, vector<512x256xbf16>
    %cst_153 = arith.constant dense<0.000000e+00> : vector<2x256xf32>
    %297 = tpu.matmul %295, %296, %cst_153 {dimension_numbers = #tpu.dot_dimension_numbers<[1], [0], [0], [1], [0, 0, 1, 1], [], []>} : vector<2x512xbf16>, vector<512x256xbf16>, vector<2x256xf32> -> vector<2x256xf32>
    %c0_154 = arith.constant 0 : index
    %c0_155 = arith.constant 0 : index
    %298 = vector.load %arg18[%c0_154, %c0_155] : memref<1x256xf32, #tpu.memory_space<vmem>>, vector<1x256xf32>
    %299 = vector.broadcast %298 : vector<1x256xf32> to vector<2x256xf32>
    %300 = arith.addf %297, %299 : vector<2x256xf32>
    %cst_156 = arith.constant 0.000000e+00 : f32
    %301 = vector.broadcast %cst_156 : f32 to vector<2x256xf32>
    %302 = arith.maximumf %300, %301 : vector<2x256xf32>
    %303 = arith.truncf %302 : vector<2x256xf32> to vector<2x256xbf16>
    %c0_157 = arith.constant 0 : index
    %c0_158 = arith.constant 0 : index
    %304 = vector.load %arg19[%c0_157, %c0_158] : memref<256x128xbf16, #tpu.memory_space<vmem>>, vector<256x128xbf16>
    %cst_159 = arith.constant dense<0.000000e+00> : vector<2x128xf32>
    %305 = tpu.matmul %303, %304, %cst_159 {dimension_numbers = #tpu.dot_dimension_numbers<[1], [0], [0], [1], [0, 0, 1, 1], [], []>} : vector<2x256xbf16>, vector<256x128xbf16>, vector<2x128xf32> -> vector<2x128xf32>
    %c0_160 = arith.constant 0 : index
    %c0_161 = arith.constant 0 : index
    %306 = vector.load %arg20[%c0_160, %c0_161] : memref<1x128xf32, #tpu.memory_space<vmem>>, vector<1x128xf32>
    %307 = vector.broadcast %306 : vector<1x128xf32> to vector<2x128xf32>
    %308 = arith.addf %305, %307 : vector<2x128xf32>
    %cst_162 = arith.constant 0.000000e+00 : f32
    %309 = vector.broadcast %cst_162 : f32 to vector<2x128xf32>
    %310 = arith.maximumf %308, %309 : vector<2x128xf32>
    %c0_163 = arith.constant 0 : index
    %c0_164 = arith.constant 0 : index
    %311 = vector.load %arg21[%c0_163, %c0_164] : memref<1x128xf32, #tpu.memory_space<vmem>>, vector<1x128xf32>
    %312 = vector.broadcast %311 : vector<1x128xf32> to vector<2x128xf32>
    %313 = arith.mulf %310, %312 : vector<2x128xf32>
    %cst_165 = arith.constant dense<0.000000e+00> : vector<2xf32>
    %314 = vector.multi_reduction <add>, %313, %cst_165 [1] : vector<2x128xf32> to vector<2xf32>
    %315 = vector.shape_cast %314 : vector<2xf32> to vector<2x1xf32>
    %c0_166 = arith.constant 0 : index
    %c0_167 = arith.constant 0 : index
    %316 = vector.load %arg22[%c0_166, %c0_167] : memref<1x1xf32, #tpu.memory_space<vmem>>, vector<1x1xf32>
    %317 = vector.broadcast %316 : vector<1x1xf32> to vector<2x1xf32>
    %318 = arith.addf %315, %317 : vector<2x1xf32>
    %cst_168 = arith.constant 0.000000e+00 : f32
    %319 = vector.broadcast %cst_168 : f32 to vector<2x1xf32>
    %320 = arith.subf %319, %318 : vector<2x1xf32>
    %321 = math.exp %320 : vector<2x1xf32>
    %cst_169 = arith.constant 1.000000e+00 : f32
    %322 = vector.broadcast %cst_169 : f32 to vector<2x1xf32>
    %323 = arith.addf %322, %321 : vector<2x1xf32>
    %cst_170 = arith.constant 1.000000e+00 : f32
    %324 = vector.broadcast %cst_170 : f32 to vector<2x1xf32>
    %325 = arith.divf %324, %323 : vector<2x1xf32>
    %c0_171 = arith.constant 0 : index
    %c0_172 = arith.constant 0 : index
    %326 = vector.load %arg23[%c0_171, %c0_172] : memref<2x1xf32, #tpu.memory_space<vmem>>, vector<2x1xf32>
    tpu.vector_store %arg23[%c0_171, %c0_172], %325 {strides = array<i32>} : memref<2x1xf32, #tpu.memory_space<vmem>>, vector<2x1xf32>,
    return
  }
}

</mosaic_0001>

<llo_original>
// kernel: dna_forward.1
$region0: #{dna_forward.1}
  #allocation0 [shape = 'u32[]', space=smem, size = 0x4, offset = 0x4, fixed_abs, tag = 'smem constant byte address 0x4 - core index']
  #allocation1 [shape = 'u32[144,128]{1,0:T(1,128)}', space=vmem, size = 0x12000, scoped, tag = 'internal scratch']
  #allocation2 [shape = 'f32[1,1]{1,0:T(1,128)S(1)}', space=vmem, size = 0x200, scoped, tag = 'scoped memory for dna_forward.1']
  %s0 = inlined_call_operand.vmem [shape: f32[2,9,32], index: 0, kind: input, shape index: {}]
  %s1 = inlined_call_operand.hbm [shape: f32[32,128], index: 1, kind: input, shape index: {}]
  %s2 = inlined_call_operand.hbm [shape: f32[1,128], index: 2, kind: input, shape index: {}]
  %s3 = inlined_call_operand.vmem [shape: f32[128,64], index: 3, kind: input, shape index: {}]
  %s4 = inlined_call_operand.hbm [shape: f32[1,64], index: 4, kind: input, shape index: {}]
  %s5 = inlined_call_operand.hbm [shape: f32[3,64,64], index: 5, kind: input, shape index: {}]
  %s6 = inlined_call_operand.hbm [shape: f32[1,64], index: 6, kind: input, shape index: {}]
  %s7 = inlined_call_operand.hbm [shape: f32[64,128], index: 7, kind: input, shape index: {}]
  %s8 = inlined_call_operand.hbm [shape: f32[1,128], index: 8, kind: input, shape index: {}]
  %s9 = inlined_call_operand.vmem [shape: f32[3,128,64], index: 9, kind: input, shape index: {}]
  %s10 = inlined_call_operand.hbm [shape: f32[1,64], index: 10, kind: input, shape index: {}]
  %s11 = inlined_call_operand.hbm [shape: f32[3,64,64], index: 11, kind: input, shape index: {}]
  %s12 = inlined_call_operand.hbm [shape: f32[1,64], index: 12, kind: input, shape index: {}]
  %s13 = inlined_call_operand.hbm [shape: f32[64,128], index: 13, kind: input, shape index: {}]
  %s14 = inlined_call_operand.hbm [shape: f32[1,128], index: 14, kind: input, shape index: {}]
  %s15 = inlined_call_operand.hbm [shape: bf16[3072,512], index: 15, kind: input, shape index: {}]
  %s16 = inlined_call_operand.hbm [shape: f32[1,512], index: 16, kind: input, shape index: {}]
  %s17 = inlined_call_operand.hbm [shape: bf16[512,256], index: 17, kind: input, shape index: {}]
  %s18 = inlined_call_operand.hbm [shape: f32[1,256], index: 18, kind: input, shape index: {}]
  %s19 = inlined_call_operand.hbm [shape: bf16[256,128], index: 19, kind: input, shape index: {}]
  %s20 = inlined_call_operand.hbm [shape: f32[1,128], index: 20, kind: input, shape index: {}]
  %s21 = inlined_call_operand.hbm [shape: f32[1,128], index: 21, kind: input, shape index: {}]
  %s22 = inlined_call_operand.<no memory space> [shape: f32[1,1], index: 22, kind: input, shape index: {}]
  %s23 = inlined_call_operand.vmem [shape: f32[2,1], index: 23, kind: output, shape index: {}]
  %s24 = sld [smem:[#allocation0]]
  $region178: #{dna_forward.1} parent=0
    _
  %s26 = ssub.s32 1, %s24
  %s27 = scalar_select 0, %s26, %s24
  %v28 = vstv %s22
  %29 = vst [vmem:[#allocation2] sm:$0x1] %v28
  $region1: #{dna_forward.1} parent=0
    #allocation3 [shape = 'u8[16384]{0}', space=vmem, size = 0x4000, scoped, tag = 'input window, operand 1, single buffered']
    #allocation4 [shape = 's32[1]{0}', space=sflag, size = 0x4, scoped, tag = 'scoped memory for dna_forward.1']
    #allocation5 [shape = 'u8[512]{0}', space=vmem, size = 0x400, scoped, tag = 'input window, operand 2, single buffered']
    #allocation6 [shape = 's32[1]{0}', space=sflag, size = 0x4, scoped, tag = 'scoped memory for dna_forward.1']
    #allocation7 [shape = 'u8[512]{0}', space=vmem, size = 0x400, scoped, tag = 'input window, operand 4, single buffered']
    #allocation8 [shape = 'u8[98304]{0}', space=vmem, size = 0x18000, scoped, tag = 'input window, operand 5, single buffered']
    #allocation9 [shape = 's32[1]{0}', space=sflag, size = 0x4, scoped, tag = 'scoped memory for dna_forward.1']
    #allocation10 [shape = 'u8[512]{0}', space=vmem, size = 0x400, scoped, tag = 'input window, operand 6, single buffered']
    #allocation11 [shape = 'u8[32768]{0}', space=vmem, size = 0x8000, scoped, tag = 'input window, operand 7, single buffered']
    #allocation12 [shape = 's32[1]{0}', space=sflag, size = 0x4, scoped, tag = 'scoped memory for dna_forward.1']
    #allocation13 [shape = 'u8[512]{0}', space=vmem, size = 0x400, scoped, tag = 'input window, operand 8, single buffered']
    #allocation14 [shape = 'u8[512]{0}', space=vmem, size = 0x400, scoped, tag = 'input window, operand 10, single buffered']
    #allocation15 [shape = 's32[1]{0}', space=sflag, size = 0x4, scoped, tag = 'scoped memory for dna_forward.1']
    #allocation16 [shape = 'u8[98304]{0}', space=vmem, size = 0x18000, scoped, tag = 'input window, operand 11, single buffered']
    #allocation17 [shape = 'u8[512]{0}', space=vmem, size = 0x400, scoped, tag = 'input window, operand 12, single buffered']
    #allocation18 [shape = 's32[1]{0}', space=sflag, size = 0x4, scoped, tag = 'scoped memory for dna_forward.1']
    #allocation19 [shape = 'u8[32768]{0}', space=vmem, size = 0x8000, scoped, tag = 'input window, operand 13, single buffered']
    #allocation20 [shape = 'u8[512]{0}', space=vmem, size = 0x400, scoped, tag = 'input window, operand 14, single buffered']
    #allocation21 [shape = 's32[1]{0}', space=sflag, size = 0x4, scoped, tag = 'scoped memory for dna_forward.1']
    #allocation22 [shape = 'u8[3145728]{0}', space=vmem, size = 0x300000, scoped, tag = 'input window, operand 15, single buffered']
    #allocation23 [shape = 'u8[2048]{0}', space=vmem, size = 0x800, scoped, tag = 'input window, operand 16, single buffered']
    #allocation24 [shape = 's32[1]{0}', space=sflag, size = 0x4, scoped, tag = 'scoped memory for dna_forward.1']
    #allocation25 [shape = 'u8[262144]{0}', space=vmem, size = 0x40000, scoped, tag = 'input window, operand 17, single buffered']
    #allocation26 [shape = 'u8[1024]{0}', space=vmem, size = 0x400, scoped, tag = 'input window, operand 18, single buffered']
    #allocation27 [shape = 's32[1]{0}', space=sflag, size = 0x4, scoped, tag = 'scoped memory for dna_forward.1']
    #allocation28 [shape = 'u8[65536]{0}', space=vmem, size = 0x10000, scoped, tag = 'input window, operand 19, single buffered']
    #allocation29 [shape = 'u8[512]{0}', space=vmem, size = 0x400, scoped, tag = 'input window, operand 20, single buffered']
    #allocation30 [shape = 's32[1]{0}', space=sflag, size = 0x4, scoped, tag = 'scoped memory for dna_forward.1']
    #allocation31 [shape = 'u8[512]{0}', space=vmem, size = 0x400, scoped, tag = 'input window, operand 21, single buffered']
    %30 = vsyncpa [#allocation4], 0
    %31 = vsyncpa [#allocation6], 0
    %32 = vsyncpa [#allocation9], 0
    %33 = vsyncpa [#allocation12], 0
    %34 = vsyncpa [#allocation15], 0
    %35 = vsyncpa [#allocation18], 0
    %36 = vsyncpa [#allocation21], 0
    %37 = vsyncpa [#allocation24], 0
    %38 = vsyncpa [#allocation27], 0
    %39 = vsyncpa [#allocation30], 0
    // Predicated region
    $region2: #{dna_forward.1} parent=1 // pred_check
      _
    $region3: #{dna_forward.1} parent=1 // pred_check_branch
      %41 = sbr.rel (0) target = $region5
    $region4: #{dna_forward.1} parent=1 // pred_region
      _
    $region5: #{dna_forward.1} parent=1 // pred_fallthru
      _
    // Predicated region
    $region6: #{dna_forward.1} parent=1 // pred_check
      _
    $region7: #{dna_forward.1} parent=1 // pred_check_branch
      %43 = sbr.rel (0) target = $region9
    $region8: #{dna_forward.1} parent=1 // pred_region
      %s45 = ssub.s32 512, 512
      %46 = vsyncadd [#allocation4], %s45
      %s47 = sshll.u32 [#allocation3], 4
      %s48 = int_to_ptr.vmem [resolvable:$true] %s47
      %53 = dma.hbm_to_vmem [thread:$0]  %s1, 512, %s48, [#allocation4], 128, 128, 8
    $region9: #{dna_forward.1} parent=1 // pred_fallthru
      _
    // Predicated region
    $region10: #{dna_forward.1} parent=1 // pred_check
      _
    $region11: #{dna_forward.1} parent=1 // pred_check_branch
      %55 = sbr.rel (0) target = $region13
    $region12: #{dna_forward.1} parent=1 // pred_region
      %s57 = ssub.s32 16, 16
      %58 = vsyncadd [#allocation6], %s57
      %s60 = sshll.u32 [#allocation5], 4
      %s61 = int_to_ptr.vmem [resolvable:$true] %s60
      %63 = dma.hbm_to_vmem [thread:$0]  %s2, 16, %s61, [#allocation6]
    $region13: #{dna_forward.1} parent=1 // pred_fallthru
      _
    // Predicated region
    $region14: #{dna_forward.1} parent=1 // pred_check
      _
    $region15: #{dna_forward.1} parent=1 // pred_check_branch
      %65 = sbr.rel (0) target = $region17
    $region16: #{dna_forward.1} parent=1 // pred_region
      _
    $region17: #{dna_forward.1} parent=1 // pred_fallthru
      _
    // Predicated region
    $region18: #{dna_forward.1} parent=1 // pred_check
      _
    $region19: #{dna_forward.1} parent=1 // pred_check_branch
      %67 = sbr.rel (0) target = $region21
    $region20: #{dna_forward.1} parent=1 // pred_region
      %s69 = ssub.s32 16, 16
      %70 = vsyncadd [#allocation6], %s69
      %s72 = sshll.u32 [#allocation7], 4
      %s73 = int_to_ptr.vmem [resolvable:$true] %s72
      %75 = dma.hbm_to_vmem [thread:$0]  %s4, 16, %s73, [#allocation6]
    $region21: #{dna_forward.1} parent=1 // pred_fallthru
      _
    // Predicated region
    $region22: #{dna_forward.1} parent=1 // pred_check
      _
    $region23: #{dna_forward.1} parent=1 // pred_check_branch
      %77 = sbr.rel (0) target = $region25
    $region24: #{dna_forward.1} parent=1 // pred_region
      %s79 = ssub.s32 3072, 3072
      %80 = vsyncadd [#allocation9], %s79
      %s81 = sshll.u32 [#allocation8], 4
      %s82 = int_to_ptr.vmem [resolvable:$true] %s81
      %87 = dma.hbm_to_vmem [thread:$0]  %s5, 3072, %s82, [#allocation9], 128, 128, 8
    $region25: #{dna_forward.1} parent=1 // pred_fallthru
      _
    // Predicated region
    $region26: #{dna_forward.1} parent=1 // pred_check
      _
    $region27: #{dna_forward.1} parent=1 // pred_check_branch
      %89 = sbr.rel (0) target = $region29
    $region28: #{dna_forward.1} parent=1 // pred_region
      %s91 = ssub.s32 16, 16
      %92 = vsyncadd [#allocation9], %s91
      %s94 = sshll.u32 [#allocation10], 4
      %s95 = int_to_ptr.vmem [resolvable:$true] %s94
      %97 = dma.hbm_to_vmem [thread:$0]  %s6, 16, %s95, [#allocation9]
    $region29: #{dna_forward.1} parent=1 // pred_fallthru
      _
    // Predicated region
    $region30: #{dna_forward.1} parent=1 // pred_check
      _
    $region31: #{dna_forward.1} parent=1 // pred_check_branch
      %99 = sbr.rel (0) target = $region33
    $region32: #{dna_forward.1} parent=1 // pred_region
      %s101 = ssub.s32 1024, 1024
      %102 = vsyncadd [#allocation12], %s101
      %s103 = sshll.u32 [#allocation11], 4
      %s104 = int_to_ptr.vmem [resolvable:$true] %s103
      %109 = dma.hbm_to_vmem [thread:$0]  %s7, 1024, %s104, [#allocation12], 128, 128, 8
    $region33: #{dna_forward.1} parent=1 // pred_fallthru
      _
    // Predicated region
    $region34: #{dna_forward.1} parent=1 // pred_check
      _
    $region35: #{dna_forward.1} parent=1 // pred_check_branch
      %111 = sbr.rel (0) target = $region37
    $region36: #{dna_forward.1} parent=1 // pred_region
      %s113 = ssub.s32 16, 16
      %114 = vsyncadd [#allocation12], %s113
      %s116 = sshll.u32 [#allocation13], 4
      %s117 = int_to_ptr.vmem [resolvable:$true] %s116
      %119 = dma.hbm_to_vmem [thread:$0]  %s8, 16, %s117, [#allocation12]
    $region37: #{dna_forward.1} parent=1 // pred_fallthru
      _
    // Predicated region
    $region38: #{dna_forward.1} parent=1 // pred_check
      _
    $region39: #{dna_forward.1} parent=1 // pred_check_branch
      %121 = sbr.rel (0) target = $region41
    $region40: #{dna_forward.1} parent=1 // pred_region
      _
    $region41: #{dna_forward.1} parent=1 // pred_fallthru
      _
    // Predicated region
    $region42: #{dna_forward.1} parent=1 // pred_check
      _
    $region43: #{dna_forward.1} parent=1 // pred_check_branch
      %123 = sbr.rel (0) target = $region45
    $region44: #{dna_forward.1} parent=1 // pred_region
      %s125 = ssub.s32 16, 16
      %126 = vsyncadd [#allocation15], %s125
      %s128 = sshll.u32 [#allocation14], 4
      %s129 = int_to_ptr.vmem [resolvable:$true] %s128
      %131 = dma.hbm_to_vmem [thread:$0]  %s10, 16, %s129, [#allocation15]
    $region45: #{dna_forward.1} parent=1 // pred_fallthru
      _
    // Predicated region
    $region46: #{dna_forward.1} parent=1 // pred_check
      _
    $region47: #{dna_forward.1} parent=1 // pred_check_branch
      %133 = sbr.rel (0) target = $region49
    $region48: #{dna_forward.1} parent=1 // pred_region
      %s135 = ssub.s32 3072, 3072
      %136 = vsyncadd [#allocation15], %s135
      %s137 = sshll.u32 [#allocation16], 4
      %s138 = int_to_ptr.vmem [resolvable:$true] %s137
      %143 = dma.hbm_to_vmem [thread:$0]  %s11, 3072, %s138, [#allocation15], 128, 128, 8
    $region49: #{dna_forward.1} parent=1 // pred_fallthru
      _
    // Predicated region
    $region50: #{dna_forward.1} parent=1 // pred_check
      _
    $region51: #{dna_forward.1} parent=1 // pred_check_branch
      %145 = sbr.rel (0) target = $region53
    $region52: #{dna_forward.1} parent=1 // pred_region
      %s147 = ssub.s32 16, 16
      %148 = vsyncadd [#allocation18], %s147
      %s150 = sshll.u32 [#allocation17], 4
      %s151 = int_to_ptr.vmem [resolvable:$true] %s150
      %153 = dma.hbm_to_vmem [thread:$0]  %s12, 16, %s151, [#allocation18]
    $region53: #{dna_forward.1} parent=1 // pred_fallthru
      _
    // Predicated region
    $region54: #{dna_forward.1} parent=1 // pred_check
      _
    $region55: #{dna_forward.1} parent=1 // pred_check_branch
      %155 = sbr.rel (0) target = $region57
    $region56: #{dna_forward.1} parent=1 // pred_region
      %s157 = ssub.s32 1024, 1024
      %158 = vsyncadd [#allocation18], %s157
      %s159 = sshll.u32 [#allocation19], 4
      %s160 = int_to_ptr.vmem [resolvable:$true] %s159
      %165 = dma.hbm_to_vmem [thread:$0]  %s13, 1024, %s160, [#allocation18], 128, 128, 8
    $region57: #{dna_forward.1} parent=1 // pred_fallthru
      _
    // Predicated region
    $region58: #{dna_forward.1} parent=1 // pred_check
      _
    $region59: #{dna_forward.1} parent=1 // pred_check_branch
      %167 = sbr.rel (0) target = $region61
    $region60: #{dna_forward.1} parent=1 // pred_region
      %s169 = ssub.s32 16, 16
      %170 = vsyncadd [#allocation21], %s169
      %s172 = sshll.u32 [#allocation20], 4
      %s173 = int_to_ptr.vmem [resolvable:$true] %s172
      %175 = dma.hbm_to_vmem [thread:$0]  %s14, 16, %s173, [#allocation21]
    $region61: #{dna_forward.1} parent=1 // pred_fallthru
      _
    // Predicated region
    $region62: #{dna_forward.1} parent=1 // pred_check
      _
    $region63: #{dna_forward.1} parent=1 // pred_check_branch
      %177 = sbr.rel (0) target = $region65
    $region64: #{dna_forward.1} parent=1 // pred_region
      %s179 = ssub.s32 98304, 98304
      %180 = vsyncadd [#allocation21], %s179
      %s181 = sshll.u32 [#allocation22], 4
      %s182 = int_to_ptr.vmem [resolvable:$true] %s181
      %187 = dma.hbm_to_vmem [thread:$0]  %s15, 98304, %s182, [#allocation21], 256, 256, 16
    $region65: #{dna_forward.1} parent=1 // pred_fallthru
      _
    // Predicated region
    $region66: #{dna_forward.1} parent=1 // pred_check
      _
    $region67: #{dna_forward.1} parent=1 // pred_check_branch
      %189 = sbr.rel (0) target = $region69
    $region68: #{dna_forward.1} parent=1 // pred_region
      %s191 = ssub.s32 64, 64
      %192 = vsyncadd [#allocation24], %s191
      %s194 = sshll.u32 [#allocation23], 4
      %s195 = int_to_ptr.vmem [resolvable:$true] %s194
      %197 = dma.hbm_to_vmem [thread:$0]  %s16, 64, %s195, [#allocation24]
    $region69: #{dna_forward.1} parent=1 // pred_fallthru
      _
    // Predicated region
    $region70: #{dna_forward.1} parent=1 // pred_check
      _
    $region71: #{dna_forward.1} parent=1 // pred_check_branch
      %199 = sbr.rel (0) target = $region73
    $region72: #{dna_forward.1} parent=1 // pred_region
      %s201 = ssub.s32 8192, 8192
      %202 = vsyncadd [#allocation24], %s201
      %s203 = sshll.u32 [#allocation25], 4
      %s204 = int_to_ptr.vmem [resolvable:$true] %s203
      %209 = dma.hbm_to_vmem [thread:$0]  %s17, 8192, %s204, [#allocation24], 128, 128, 8
    $region73: #{dna_forward.1} parent=1 // pred_fallthru
      _
    // Predicated region
    $region74: #{dna_forward.1} parent=1 // pred_check
      _
    $region75: #{dna_forward.1} parent=1 // pred_check_branch
      %211 = sbr.rel (0) target = $region77
    $region76: #{dna_forward.1} parent=1 // pred_region
      %s213 = ssub.s32 32, 32
      %214 = vsyncadd [#allocation27], %s213
      %s216 = sshll.u32 [#allocation26], 4
      %s217 = int_to_ptr.vmem [resolvable:$true] %s216
      %219 = dma.hbm_to_vmem [thread:$0]  %s18, 32, %s217, [#allocation27]
    $region77: #{dna_forward.1} parent=1 // pred_fallthru
      _
    // Predicated region
    $region78: #{dna_forward.1} parent=1 // pred_check
      _
    $region79: #{dna_forward.1} parent=1 // pred_check_branch
      %221 = sbr.rel (0) target = $region81
    $region80: #{dna_forward.1} parent=1 // pred_region
      %s223 = ssub.s32 2048, 2048
      %224 = vsyncadd [#allocation27], %s223
      %s225 = sshll.u32 [#allocation28], 4
      %s226 = int_to_ptr.vmem [resolvable:$true] %s225
      %231 = dma.hbm_to_vmem [thread:$0]  %s19, 2048, %s226, [#allocation27], 64, 64, 4
    $region81: #{dna_forward.1} parent=1 // pred_fallthru
      _
    // Predicated region
    $region82: #{dna_forward.1} parent=1 // pred_check
      _
    $region83: #{dna_forward.1} parent=1 // pred_check_branch
      %233 = sbr.rel (0) target = $region85
    $region84: #{dna_forward.1} parent=1 // pred_region
      %s235 = ssub.s32 16, 16
      %236 = vsyncadd [#allocation30], %s235
      %s238 = sshll.u32 [#allocation29], 4
      %s239 = int_to_ptr.vmem [resolvable:$true] %s238
      %241 = dma.hbm_to_vmem [thread:$0]  %s20, 16, %s239, [#allocation30]
    $region85: #{dna_forward.1} parent=1 // pred_fallthru
      _
    // Predicated region
    $region86: #{dna_forward.1} parent=1 // pred_check
      _
    $region87: #{dna_forward.1} parent=1 // pred_check_branch
      %243 = sbr.rel (0) target = $region89
    $region88: #{dna_forward.1} parent=1 // pred_region
      %s245 = ssub.s32 16, 16
      %246 = vsyncadd [#allocation30], %s245
      %s248 = sshll.u32 [#allocation31], 4
      %s249 = int_to_ptr.vmem [resolvable:$true] %s248
      %251 = dma.hbm_to_vmem [thread:$0]  %s21, 16, %s249, [#allocation30]
    $region89: #{dna_forward.1} parent=1 // pred_fallthru
      _
    // Predicated region
    $region90: #{dna_forward.1} parent=1 // pred_check
      _
    $region91: #{dna_forward.1} parent=1 // pred_check_branch
      %253 = sbr.rel (0) target = $region93
    $region92: #{dna_forward.1} parent=1 // pred_region
      _
    $region93: #{dna_forward.1} parent=1 // pred_fallthru
      _
    // Predicated region
    $region94: #{dna_forward.1} parent=1 // pred_check
      _
    $region95: #{dna_forward.1} parent=1 // pred_check_branch
      %255 = sbr.rel (0) target = $region97
    $region96: #{dna_forward.1} parent=1 // pred_region
      %256 = dma.done [#allocation4], 512
    $region97: #{dna_forward.1} parent=1 // pred_fallthru
      _
    // Predicated region
    $region98: #{dna_forward.1} parent=1 // pred_check
      _
    $region99: #{dna_forward.1} parent=1 // pred_check_branch
      %258 = sbr.rel (0) target = $region101
    $region100: #{dna_forward.1} parent=1 // pred_region
      %259 = dma.done [#allocation6], 16
    $region101: #{dna_forward.1} parent=1 // pred_fallthru
      _
    // Predicated region
    $region102: #{dna_forward.1} parent=1 // pred_check
      _
    $region103: #{dna_forward.1} parent=1 // pred_check_branch
      %261 = sbr.rel (0) target = $region105
    $region104: #{dna_forward.1} parent=1 // pred_region
      %262 = dma.done [#allocation6], 16
    $region105: #{dna_forward.1} parent=1 // pred_fallthru
      _
    // Predicated region
    $region106: #{dna_forward.1} parent=1 // pred_check
      _
    $region107: #{dna_forward.1} parent=1 // pred_check_branch
      %264 = sbr.rel (0) target = $region109
    $region108: #{dna_forward.1} parent=1 // pred_region
      %265 = dma.done [#allocation9], 3072
    $region109: #{dna_forward.1} parent=1 // pred_fallthru
      _
    // Predicated region
    $region110: #{dna_forward.1} parent=1 // pred_check
      _
    $region111: #{dna_forward.1} parent=1 // pred_check_branch
      %267 = sbr.rel (0) target = $region113
    $region112: #{dna_forward.1} parent=1 // pred_region
      %268 = dma.done [#allocation9], 16
    $region113: #{dna_forward.1} parent=1 // pred_fallthru
      _
    // Predicated region
    $region114: #{dna_forward.1} parent=1 // pred_check
      _
    $region115: #{dna_forward.1} parent=1 // pred_check_branch
      %270 = sbr.rel (0) target = $region117
    $region116: #{dna_forward.1} parent=1 // pred_region
      %271 = dma.done [#allocation12], 1024
    $region117: #{dna_forward.1} parent=1 // pred_fallthru
      _
    // Predicated region
    $region118: #{dna_forward.1} parent=1 // pred_check
      _
    $region119: #{dna_forward.1} parent=1 // pred_check_branch
      %273 = sbr.rel (0) target = $region121
    $region120: #{dna_forward.1} parent=1 // pred_region
      %274 = dma.done [#allocation12], 16
    $region121: #{dna_forward.1} parent=1 // pred_fallthru
      _
    // Predicated region
    $region122: #{dna_forward.1} parent=1 // pred_check
      _
    $region123: #{dna_forward.1} parent=1 // pred_check_branch
      %276 = sbr.rel (0) target = $region125
    $region124: #{dna_forward.1} parent=1 // pred_region
      %277 = dma.done [#allocation15], 16
    $region125: #{dna_forward.1} parent=1 // pred_fallthru
      _
    // Predicated region
    $region126: #{dna_forward.1} parent=1 // pred_check
      _
    $region127: #{dna_forward.1} parent=1 // pred_check_branch
      %279 = sbr.rel (0) target = $region129
    $region128: #{dna_forward.1} parent=1 // pred_region
      %280 = dma.done [#allocation15], 3072
    $region129: #{dna_forward.1} parent=1 // pred_fallthru
      _
    // Predicated region
    $region130: #{dna_forward.1} parent=1 // pred_check
      _
    $region131: #{dna_forward.1} parent=1 // pred_check_branch
      %282 = sbr.rel (0) target = $region133
    $region132: #{dna_forward.1} parent=1 // pred_region
      %283 = dma.done [#allocation18], 16
    $region133: #{dna_forward.1} parent=1 // pred_fallthru
      _
    // Predicated region
    $region134: #{dna_forward.1} parent=1 // pred_check
      _
    $region135: #{dna_forward.1} parent=1 // pred_check_branch
      %285 = sbr.rel (0) target = $region137
    $region136: #{dna_forward.1} parent=1 // pred_region
      %286 = dma.done [#allocation18], 1024
    $region137: #{dna_forward.1} parent=1 // pred_fallthru
      _
    // Predicated region
    $region138: #{dna_forward.1} parent=1 // pred_check
      _
    $region139: #{dna_forward.1} parent=1 // pred_check_branch
      %288 = sbr.rel (0) target = $region141
    $region140: #{dna_forward.1} parent=1 // pred_region
      %289 = dma.done [#allocation21], 16
    $region141: #{dna_forward.1} parent=1 // pred_fallthru
      _
    // Predicated region
    $region142: #{dna_forward.1} parent=1 // pred_check
      _
    $region143: #{dna_forward.1} parent=1 // pred_check_branch
      %291 = sbr.rel (0) target = $region145
    $region144: #{dna_forward.1} parent=1 // pred_region
      %292 = dma.done [#allocation21], 98304
    $region145: #{dna_forward.1} parent=1 // pred_fallthru
      _
    // Predicated region
    $region146: #{dna_forward.1} parent=1 // pred_check
      _
    $region147: #{dna_forward.1} parent=1 // pred_check_branch
      %294 = sbr.rel (0) target = $region149
    $region148: #{dna_forward.1} parent=1 // pred_region
      %295 = dma.done [#allocation24], 64
    $region149: #{dna_forward.1} parent=1 // pred_fallthru
      _
    // Predicated region
    $region150: #{dna_forward.1} parent=1 // pred_check
      _
    $region151: #{dna_forward.1} parent=1 // pred_check_branch
      %297 = sbr.rel (0) target = $region153
    $region152: #{dna_forward.1} parent=1 // pred_region
      %298 = dma.done [#allocation24], 8192
    $region153: #{dna_forward.1} parent=1 // pred_fallthru
      _
    // Predicated region
    $region154: #{dna_forward.1} parent=1 // pred_check
      _
    $region155: #{dna_forward.1} parent=1 // pred_check_branch
      %300 = sbr.rel (0) target = $region157
    $region156: #{dna_forward.1} parent=1 // pred_region
      %301 = dma.done [#allocation27], 32
    $region157: #{dna_forward.1} parent=1 // pred_fallthru
      _
    // Predicated region
    $region158: #{dna_forward.1} parent=1 // pred_check
      _
    $region159: #{dna_forward.1} parent=1 // pred_check_branch
      %303 = sbr.rel (0) target = $region161
    $region160: #{dna_forward.1} parent=1 // pred_region
      %304 = dma.done [#allocation27], 2048
    $region161: #{dna_forward.1} parent=1 // pred_fallthru
      _
    // Predicated region
    $region162: #{dna_forward.1} parent=1 // pred_check
      _
    $region163: #{dna_forward.1} parent=1 // pred_check_branch
      %306 = sbr.rel (0) target = $region165
    $region164: #{dna_forward.1} parent=1 // pred_region
      %307 = dma.done [#allocation30], 16
    $region165: #{dna_forward.1} parent=1 // pred_fallthru
      _
    // Predicated region
    $region166: #{dna_forward.1} parent=1 // pred_check
      _
    $region167: #{dna_forward.1} parent=1 // pred_check_branch
      %309 = sbr.rel (0) target = $region169
    $region168: #{dna_forward.1} parent=1 // pred_region
      %310 = dma.done [#allocation30], 16
    $region169: #{dna_forward.1} parent=1 // pred_fallthru
      _
    %v312 = vld [vmem:[%s0] sm:$0xff]
    %v313 = vld [vmem:[%s0 + $0x8] sm:$0x1]
    %v314 = vld [vmem:[#allocation3] sm:$0xff]
    %v315 = vld [vmem:[#allocation3 + $0x8] sm:$0xff]
    %v316 = vld [vmem:[#allocation3 + $0x10] sm:$0xff]
    %v317 = vld [vmem:[#allocation3 + $0x18] sm:$0xff]
    %v318 = vld [vmem:[#allocation5] sm:$0x1]
    %v320 = vlaneseq
    %v321 = vshrl.u32 %v320, 7
    %v322 = vsub.s32 0, %v321
    %v323 = vrot.slane %v318, %v322
    %vm325 = vcmask 261120
    %v327 = vsel %vm325, %v312, 0
    %v330 = vsel %vm325, %v313, 0
    %332 = vmatprep.subr.mxu0 0.0
    %333 = vmatpush1.msra.mxu0 %v314
    %334 = vmatprep.subr.mxu0 0.0
    %335 = vmatpush1.msra.mxu0 %v315
    %336 = vmatprep.subr.mxu0 0.0
    %337 = vmatpush1.msra.mxu0 %v316
    %338 = vmatprep.subr.mxu0 0.0
    %339 = vmatpush1.msra.mxu0 %v317
    %340 = vmatprep.subr.mxu0 0.0
    %341 = vmatpush1.msra.mxu0 0.0
    %342 = vmatprep.subr.mxu0 0.0
    %343 = vmatpush1.msra.mxu0 0.0
    %344 = vmatprep.subr.mxu0 0.0
    %345 = vmatpush1.msra.mxu0 0.0
    %346 = vmatprep.subr.mxu0 0.0
    %347 = vmatpush1.msra.mxu0 0.0
    %348 = vmatprep.subr.mxu0 0.0
    %349 = vmatpush1.msra.mxu0 0.0
    %350 = vmatprep.subr.mxu0 0.0
    %351 = vmatpush1.msra.mxu0 0.0
    %352 = vmatprep.subr.mxu0 0.0
    %353 = vmatpush1.msra.mxu0 0.0
    %354 = vmatprep.subr.mxu0 0.0
    %355 = vmatpush1.msra.mxu0 0.0
    %356 = vmatprep.subr.mxu0 0.0
    %357 = vmatpush1.msra.mxu0 0.0
    %358 = vmatprep.subr.mxu0 0.0
    %359 = vmatpush1.msra.mxu0 0.0
    %360 = vmatprep.subr.mxu0 0.0
    %361 = vmatpush1.msra.mxu0 0.0
    %362 = vmatprep.subr.mxu0 0.0
    %363 = vmatpush1.msra.mxu0 0.0
    %364 = vmatprep.subr.mxu0 0.0
    %365 = vmatpush1.msra.mxu0 0.0
    %366 = vmatprep.subr.mxu0 0.0
    %367 = vmatpush1.msra.mxu0 0.0
    %368 = vmatprep.subr.mxu0 0.0
    %369 = vmatpush1.msra.mxu0 0.0
    %370 = vmatprep.subr.mxu0 0.0
    %371 = vmatpush1.msra.mxu0 0.0
    %372 = vmatprep.subr.mxu0 0.0
    %373 = vmatpush1.msra.mxu0 0.0
    %374 = vmatprep.subr.mxu0 0.0
    %375 = vmatpush1.msra.mxu0 0.0
    %376 = vmatprep.subr.mxu0 0.0
    %377 = vmatpush1.msra.mxu0 0.0
    %378 = vmatprep.subr.mxu0 0.0
    %379 = vmatpush1.msra.mxu0 0.0
    %380 = vmatprep.subr.mxu0 0.0
    %381 = vmatpush1.msra.mxu0 0.0
    %382 = vmatprep.subr.mxu0 0.0
    %383 = vmatpush1.msra.mxu0 0.0
    %384 = vmatprep.subr.mxu0 0.0
    %385 = vmatpush1.msra.mxu0 0.0
    %386 = vmatprep.subr.mxu0 0.0
    %387 = vmatpush1.msra.mxu0 0.0
    %388 = vmatprep.subr.mxu0 0.0
    %389 = vmatpush1.msra.mxu0 0.0
    %390 = vmatprep.subr.mxu0 0.0
    %391 = vmatpush1.msra.mxu0 0.0
    %392 = vmatprep.subr.mxu0 0.0
    %393 = vmatpush1.msra.mxu0 0.0
    %394 = vmatprep.subr.mxu0 0.0
    %395 = vmatpush1.msra.mxu0 0.0
    %396 = vmatprep.mubr.f32.mxu0 0.0
    %397 = vmatmul.mubr.f32.gmra.mrb[0].mxu0 %v327
    %v398 = vpop.f32.mrb[0].mxu0
    %v399 = vadd.f32 %v323, %v398
    %v400 = vpop.f32.mrb[0].mxu0
    %401 = vmatprep.mubr.f32.mxu0 0.0
    %402 = vmatmul.mubr.f32.gmra.mrb[0].mxu0 %v330
    %v403 = vpop.f32.mrb[0].mxu0
    %v404 = vadd.f32 %v323, %v403
    %v405 = vpop.f32.mrb[0].mxu0
    %406 = vdwg.mxu0
    %v407 = vmax.f32 %v399, 0.0
    %v408 = vmax.f32 %v404, 0.0
    %v409 = vld [vmem:[%s3] sm:$0xff]
    %v410 = vld [vmem:[%s3 + $0x8] sm:$0xff]
    %v411 = vld [vmem:[%s3 + $0x10] sm:$0xff]
    %v412 = vld [vmem:[%s3 + $0x18] sm:$0xff]
    %v413 = vld [vmem:[%s3 + $0x20] sm:$0xff]
    %v414 = vld [vmem:[%s3 + $0x28] sm:$0xff]
    %v415 = vld [vmem:[%s3 + $0x30] sm:$0xff]
    %v416 = vld [vmem:[%s3 + $0x38] sm:$0xff]
    %v417 = vld [vmem:[%s3 + $0x40] sm:$0xff]
    %v418 = vld [vmem:[%s3 + $0x48] sm:$0xff]
    %v419 = vld [vmem:[%s3 + $0x50] sm:$0xff]
    %v420 = vld [vmem:[%s3 + $0x58] sm:$0xff]
    %v421 = vld [vmem:[%s3 + $0x60] sm:$0xff]
    %v422 = vld [vmem:[%s3 + $0x68] sm:$0xff]
    %v423 = vld [vmem:[%s3 + $0x70] sm:$0xff]
    %v424 = vld [vmem:[%s3 + $0x78] sm:$0xff]
    %v425 = vld [vmem:[#allocation7] sm:$0x1]
    %v427 = vlaneseq
    %v428 = vshrl.u32 %v427, 7
    %v429 = vsub.s32 0, %v428
    %v430 = vrot.slane %v425, %v429
    %432 = vmatprep.subr.mxu0 0.0
    %433 = vmatpush1.msra.mxu0 %v409
    %434 = vmatprep.subr.mxu0 0.0
    %435 = vmatpush1.msra.mxu0 %v410
    %436 = vmatprep.subr.mxu0 0.0
    %437 = vmatpush1.msra.mxu0 %v411
    %438 = vmatprep.subr.mxu0 0.0
    %439 = vmatpush1.msra.mxu0 %v412
    %440 = vmatprep.subr.mxu0 0.0
    %441 = vmatpush1.msra.mxu0 %v413
    %442 = vmatprep.subr.mxu0 0.0
    %443 = vmatpush1.msra.mxu0 %v414
    %444 = vmatprep.subr.mxu0 0.0
    %445 = vmatpush1.msra.mxu0 %v415
    %446 = vmatprep.subr.mxu0 0.0
    %447 = vmatpush1.msra.mxu0 %v416
    %448 = vmatprep.subr.mxu0 0.0
    %449 = vmatpush1.msra.mxu0 %v417
    %450 = vmatprep.subr.mxu0 0.0
    %451 = vmatpush1.msra.mxu0 %v418
    %452 = vmatprep.subr.mxu0 0.0
    %453 = vmatpush1.msra.mxu0 %v419
    %454 = vmatprep.subr.mxu0 0.0
    %455 = vmatpush1.msra.mxu0 %v420
    %456 = vmatprep.subr.mxu0 0.0
    %457 = vmatpush1.msra.mxu0 %v421
    %458 = vmatprep.subr.mxu0 0.0
    %459 = vmatpush1.msra.mxu0 %v422
    %460 = vmatprep.subr.mxu0 0.0
    %461 = vmatpush1.msra.mxu0 %v423
    %462 = vmatprep.subr.mxu0 0.0
    %463 = vmatpush1.msra.mxu0 %v424
    %464 = vmatprep.subr.mxu0 0.0
    %465 = vmatpush1.msra.mxu0 0.0
    %466 = vmatprep.subr.mxu0 0.0
    %467 = vmatpush1.msra.mxu0 0.0
    %468 = vmatprep.subr.mxu0 0.0
    %469 = vmatpush1.msra.mxu0 0.0
    %470 = vmatprep.subr.mxu0 0.0
    %471 = vmatpush1.msra.mxu0 0.0
    %472 = vmatprep.subr.mxu0 0.0
    %473 = vmatpush1.msra.mxu0 0.0
    %474 = vmatprep.subr.mxu0 0.0
    %475 = vmatpush1.msra.mxu0 0.0
    %476 = vmatprep.subr.mxu0 0.0
    %477 = vmatpush1.msra.mxu0 0.0
    %478 = vmatprep.subr.mxu0 0.0
    %479 = vmatpush1.msra.mxu0 0.0
    %480 = vmatprep.subr.mxu0 0.0
    %481 = vmatpush1.msra.mxu0 0.0
    %482 = vmatprep.subr.mxu0 0.0
    %483 = vmatpush1.msra.mxu0 0.0
    %484 = vmatprep.subr.mxu0 0.0
    %485 = vmatpush1.msra.mxu0 0.0
    %486 = vmatprep.subr.mxu0 0.0
    %487 = vmatpush1.msra.mxu0 0.0
    %488 = vmatprep.subr.mxu0 0.0
    %489 = vmatpush1.msra.mxu0 0.0
    %490 = vmatprep.subr.mxu0 0.0
    %491 = vmatpush1.msra.mxu0 0.0
    %492 = vmatprep.subr.mxu0 0.0
    %493 = vmatpush1.msra.mxu0 0.0
    %494 = vmatprep.subr.mxu0 0.0
    %495 = vmatpush1.msra.mxu0 0.0
    %496 = vmatprep.mubr.f32.mxu0 0.0
    %497 = vmatmul.mubr.f32.gmra.mrb[0].mxu0 %v407
    %v498 = vpop.f32.mrb[0].mxu0
    %v499 = vadd.f32 %v430, %v498
    %v500 = vpop.f32.mrb[0].mxu0
    %501 = vmatprep.mubr.f32.mxu0 0.0
    %502 = vmatmul.mubr.f32.gmra.mrb[0].mxu0 %v408
    %v503 = vpop.f32.mrb[0].mxu0
    %v504 = vadd.f32 %v430, %v503
    %v505 = vpop.f32.mrb[0].mxu0
    %506 = vdwg.mxu0
    %v507 = vmax.f32 %v499, 0.0
    %v508 = vmax.f32 %v504, 0.0
    %v510 = vrot.slane %v507, 7
    %vm512 = vcmask 1040384
    %v513 = vsel %vm512, 0.0, %v510
    %vm515 = vcmask 1046528
    %v516 = vrot.slane %v507, 1
    %v517 = vrot.slane %v508, 1
    %v518 = vsel %vm515, %v516, %v517
    %v519 = vld [vmem:[#allocation8] sm:$0xff]
    %v520 = vld [vmem:[#allocation8 + $0x8] sm:$0xff]
    %v521 = vld [vmem:[#allocation8 + $0x10] sm:$0xff]
    %v522 = vld [vmem:[#allocation8 + $0x18] sm:$0xff]
    %v523 = vld [vmem:[#allocation8 + $0x20] sm:$0xff]
    %v524 = vld [vmem:[#allocation8 + $0x28] sm:$0xff]
    %v525 = vld [vmem:[#allocation8 + $0x30] sm:$0xff]
    %v526 = vld [vmem:[#allocation8 + $0x38] sm:$0xff]
    %s527 = scalar_lea.vmem [#allocation8], 64
    %v528 = vld [vmem:[%s527] sm:$0xff]
    %v529 = vld [vmem:[%s527 + $0x8] sm:$0xff]
    %v530 = vld [vmem:[%s527 + $0x10] sm:$0xff]
    %v531 = vld [vmem:[%s527 + $0x18] sm:$0xff]
    %v532 = vld [vmem:[%s527 + $0x20] sm:$0xff]
    %v533 = vld [vmem:[%s527 + $0x28] sm:$0xff]
    %v534 = vld [vmem:[%s527 + $0x30] sm:$0xff]
    %v535 = vld [vmem:[%s527 + $0x38] sm:$0xff]
    %vm536 = vcmask 523264
    %v537 = vsel %vm536, %v507, 0
    %v539 = vsel %vm536, %v508, 0
    %541 = vmatprep.subr.mxu0 0.0
    %542 = vmatpush1.msra.mxu0 %v528
    %543 = vmatprep.subr.mxu0 0.0
    %544 = vmatpush1.msra.mxu0 %v529
    %545 = vmatprep.subr.mxu0 0.0
    %546 = vmatpush1.msra.mxu0 %v530
    %547 = vmatprep.subr.mxu0 0.0
    %548 = vmatpush1.msra.mxu0 %v531
    %549 = vmatprep.subr.mxu0 0.0
    %550 = vmatpush1.msra.mxu0 %v532
    %551 = vmatprep.subr.mxu0 0.0
    %552 = vmatpush1.msra.mxu0 %v533
    %553 = vmatprep.subr.mxu0 0.0
    %554 = vmatpush1.msra.mxu0 %v534
    %555 = vmatprep.subr.mxu0 0.0
    %556 = vmatpush1.msra.mxu0 %v535
    %557 = vmatprep.subr.mxu0 0.0
    %558 = vmatpush1.msra.mxu0 0.0
    %559 = vmatprep.subr.mxu0 0.0
    %560 = vmatpush1.msra.mxu0 0.0
    %561 = vmatprep.subr.mxu0 0.0
    %562 = vmatpush1.msra.mxu0 0.0
    %563 = vmatprep.subr.mxu0 0.0
    %564 = vmatpush1.msra.mxu0 0.0
    %565 = vmatprep.subr.mxu0 0.0
    %566 = vmatpush1.msra.mxu0 0.0
    %567 = vmatprep.subr.mxu0 0.0
    %568 = vmatpush1.msra.mxu0 0.0
    %569 = vmatprep.subr.mxu0 0.0
    %570 = vmatpush1.msra.mxu0 0.0
    %571 = vmatprep.subr.mxu0 0.0
    %572 = vmatpush1.msra.mxu0 0.0
    %573 = vmatprep.subr.mxu0 0.0
    %574 = vmatpush1.msra.mxu0 0.0
    %575 = vmatprep.subr.mxu0 0.0
    %576 = vmatpush1.msra.mxu0 0.0
    %577 = vmatprep.subr.mxu0 0.0
    %578 = vmatpush1.msra.mxu0 0.0
    %579 = vmatprep.subr.mxu0 0.0
    %580 = vmatpush1.msra.mxu0 0.0
    %581 = vmatprep.subr.mxu0 0.0
    %582 = vmatpush1.msra.mxu0 0.0
    %583 = vmatprep.subr.mxu0 0.0
    %584 = vmatpush1.msra.mxu0 0.0
    %585 = vmatprep.subr.mxu0 0.0
    %586 = vmatpush1.msra.mxu0 0.0
    %587 = vmatprep.subr.mxu0 0.0
    %588 = vmatpush1.msra.mxu0 0.0
    %589 = vmatprep.subr.mxu0 0.0
    %590 = vmatpush1.msra.mxu0 0.0
    %591 = vmatprep.subr.mxu0 0.0
    %592 = vmatpush1.msra.mxu0 0.0
    %593 = vmatprep.subr.mxu0 0.0
    %594 = vmatpush1.msra.mxu0 0.0
    %595 = vmatprep.subr.mxu0 0.0
    %596 = vmatpush1.msra.mxu0 0.0
    %597 = vmatprep.subr.mxu0 0.0
    %598 = vmatpush1.msra.mxu0 0.0
    %599 = vmatprep.subr.mxu0 0.0
    %600 = vmatpush1.msra.mxu0 0.0
    %601 = vmatprep.subr.mxu0 0.0
    %602 = vmatpush1.msra.mxu0 0.0
    %603 = vmatprep.subr.mxu0 0.0
    %604 = vmatpush1.msra.mxu0 0.0
    %605 = vmatprep.mubr.f32.mxu0 0.0
    %606 = vmatmul.mubr.f32.gmra.mrb[0].mxu0 %v537
    %v607 = vpop.f32.mrb[0].mxu0
    %v608 = vadd.f32 0.0, %v607
    %v609 = vpop.f32.mrb[0].mxu0
    %610 = vmatprep.mubr.f32.mxu0 0.0
    %611 = vmatmul.mubr.f32.gmra.mrb[0].mxu0 %v539
    %v612 = vpop.f32.mrb[0].mxu0
    %v613 = vadd.f32 0.0, %v612
    %v614 = vpop.f32.mrb[0].mxu0
    %615 = vdwg.mxu0
    %v617 = vsel %vm536, %v513, 0
    %v619 = vsel %vm536, %v510, 0
    %621 = vmatprep.subr.mxu0 0.0
    %622 = vmatpush1.msra.mxu0 %v519
    %623 = vmatprep.subr.mxu0 0.0
    %624 = vmatpush1.msra.mxu0 %v520
    %625 = vmatprep.subr.mxu0 0.0
    %626 = vmatpush1.msra.mxu0 %v521
    %627 = vmatprep.subr.mxu0 0.0
    %628 = vmatpush1.msra.mxu0 %v522
    %629 = vmatprep.subr.mxu0 0.0
    %630 = vmatpush1.msra.mxu0 %v523
    %631 = vmatprep.subr.mxu0 0.0
    %632 = vmatpush1.msra.mxu0 %v524
    %633 = vmatprep.subr.mxu0 0.0
    %634 = vmatpush1.msra.mxu0 %v525
    %635 = vmatprep.subr.mxu0 0.0
    %636 = vmatpush1.msra.mxu0 %v526
    %637 = vmatprep.subr.mxu0 0.0
    %638 = vmatpush1.msra.mxu0 0.0
    %639 = vmatprep.subr.mxu0 0.0
    %640 = vmatpush1.msra.mxu0 0.0
    %641 = vmatprep.subr.mxu0 0.0
    %642 = vmatpush1.msra.mxu0 0.0
    %643 = vmatprep.subr.mxu0 0.0
    %644 = vmatpush1.msra.mxu0 0.0
    %645 = vmatprep.subr.mxu0 0.0
    %646 = vmatpush1.msra.mxu0 0.0
    %647 = vmatprep.subr.mxu0 0.0
    %648 = vmatpush1.msra.mxu0 0.0
    %649 = vmatprep.subr.mxu0 0.0
    %650 = vmatpush1.msra.mxu0 0.0
    %651 = vmatprep.subr.mxu0 0.0
    %652 = vmatpush1.msra.mxu0 0.0
    %653 = vmatprep.subr.mxu0 0.0
    %654 = vmatpush1.msra.mxu0 0.0
    %655 = vmatprep.subr.mxu0 0.0
    %656 = vmatpush1.msra.mxu0 0.0
    %657 = vmatprep.subr.mxu0 0.0
    %658 = vmatpush1.msra.mxu0 0.0
    %659 = vmatprep.subr.mxu0 0.0
    %660 = vmatpush1.msra.mxu0 0.0
    %661 = vmatprep.subr.mxu0 0.0
    %662 = vmatpush1.msra.mxu0 0.0
    %663 = vmatprep.subr.mxu0 0.0
    %664 = vmatpush1.msra.mxu0 0.0
    %665 = vmatprep.subr.mxu0 0.0
    %666 = vmatpush1.msra.mxu0 0.0
    %667 = vmatprep.subr.mxu0 0.0
    %668 = vmatpush1.msra.mxu0 0.0
    %669 = vmatprep.subr.mxu0 0.0
    %670 = vmatpush1.msra.mxu0 0.0
    %671 = vmatprep.subr.mxu0 0.0
    %672 = vmatpush1.msra.mxu0 0.0
    %673 = vmatprep.subr.mxu0 0.0
    %674 = vmatpush1.msra.mxu0 0.0
    %675 = vmatprep.subr.mxu0 0.0
    %676 = vmatpush1.msra.mxu0 0.0
    %677 = vmatprep.subr.mxu0 0.0
    %678 = vmatpush1.msra.mxu0 0.0
    %679 = vmatprep.subr.mxu0 0.0
    %680 = vmatpush1.msra.mxu0 0.0
    %681 = vmatprep.subr.mxu0 0.0
    %682 = vmatpush1.msra.mxu0 0.0
    %683 = vmatprep.subr.mxu0 0.0
    %684 = vmatpush1.msra.mxu0 0.0
    %685 = vmatprep.mubr.f32.mxu0 0.0
    %686 = vmatmul.mubr.f32.gmra.mrb[0].mxu0 %v617
    %v687 = vpop.f32.mrb[0].mxu0
    %v688 = vadd.f32 %v608, %v687
    %v689 = vpop.f32.mrb[0].mxu0
    %690 = vmatprep.mubr.f32.mxu0 0.0
    %691 = vmatmul.mubr.f32.gmra.mrb[0].mxu0 %v619
    %v692 = vpop.f32.mrb[0].mxu0
    %v693 = vadd.f32 %v613, %v692
    %v694 = vpop.f32.mrb[0].mxu0
    %695 = vdwg.mxu0
    %s696 = scalar_lea.vmem [#allocation8], 128
    %v697 = vld [vmem:[%s696] sm:$0xff]
    %v698 = vld [vmem:[%s696 + $0x8] sm:$0xff]
    %v699 = vld [vmem:[%s696 + $0x10] sm:$0xff]
    %v700 = vld [vmem:[%s696 + $0x18] sm:$0xff]
    %v701 = vld [vmem:[%s696 + $0x20] sm:$0xff]
    %v702 = vld [vmem:[%s696 + $0x28] sm:$0xff]
    %v703 = vld [vmem:[%s696 + $0x30] sm:$0xff]
    %v704 = vld [vmem:[%s696 + $0x38] sm:$0xff]
    %v705 = vsel %vm536, %v518, 0
    %v708 = vsel %vm536, 0.0, 0
    %710 = vmatprep.subr.mxu0 0.0
    %711 = vmatpush1.msra.mxu0 %v697
    %712 = vmatprep.subr.mxu0 0.0
    %713 = vmatpush1.msra.mxu0 %v698
    %714 = vmatprep.subr.mxu0 0.0
    %715 = vmatpush1.msra.mxu0 %v699
    %716 = vmatprep.subr.mxu0 0.0
    %717 = vmatpush1.msra.mxu0 %v700
    %718 = vmatprep.subr.mxu0 0.0
    %719 = vmatpush1.msra.mxu0 %v701
    %720 = vmatprep.subr.mxu0 0.0
    %721 = vmatpush1.msra.mxu0 %v702
    %722 = vmatprep.subr.mxu0 0.0
    %723 = vmatpush1.msra.mxu0 %v703
    %724 = vmatprep.subr.mxu0 0.0
    %725 = vmatpush1.msra.mxu0 %v704
    %726 = vmatprep.subr.mxu0 0.0
    %727 = vmatpush1.msra.mxu0 0.0
    %728 = vmatprep.subr.mxu0 0.0
    %729 = vmatpush1.msra.mxu0 0.0
    %730 = vmatprep.subr.mxu0 0.0
    %731 = vmatpush1.msra.mxu0 0.0
    %732 = vmatprep.subr.mxu0 0.0
    %733 = vmatpush1.msra.mxu0 0.0
    %734 = vmatprep.subr.mxu0 0.0
    %735 = vmatpush1.msra.mxu0 0.0
    %736 = vmatprep.subr.mxu0 0.0
    %737 = vmatpush1.msra.mxu0 0.0
    %738 = vmatprep.subr.mxu0 0.0
    %739 = vmatpush1.msra.mxu0 0.0
    %740 = vmatprep.subr.mxu0 0.0
    %741 = vmatpush1.msra.mxu0 0.0
    %742 = vmatprep.subr.mxu0 0.0
    %743 = vmatpush1.msra.mxu0 0.0
    %744 = vmatprep.subr.mxu0 0.0
    %745 = vmatpush1.msra.mxu0 0.0
    %746 = vmatprep.subr.mxu0 0.0
    %747 = vmatpush1.msra.mxu0 0.0
    %748 = vmatprep.subr.mxu0 0.0
    %749 = vmatpush1.msra.mxu0 0.0
    %750 = vmatprep.subr.mxu0 0.0
    %751 = vmatpush1.msra.mxu0 0.0
    %752 = vmatprep.subr.mxu0 0.0
    %753 = vmatpush1.msra.mxu0 0.0
    %754 = vmatprep.subr.mxu0 0.0
    %755 = vmatpush1.msra.mxu0 0.0
    %756 = vmatprep.subr.mxu0 0.0
    %757 = vmatpush1.msra.mxu0 0.0
    %758 = vmatprep.subr.mxu0 0.0
    %759 = vmatpush1.msra.mxu0 0.0
    %760 = vmatprep.subr.mxu0 0.0
    %761 = vmatpush1.msra.mxu0 0.0
    %762 = vmatprep.subr.mxu0 0.0
    %763 = vmatpush1.msra.mxu0 0.0
    %764 = vmatprep.subr.mxu0 0.0
    %765 = vmatpush1.msra.mxu0 0.0
    %766 = vmatprep.subr.mxu0 0.0
    %767 = vmatpush1.msra.mxu0 0.0
    %768 = vmatprep.subr.mxu0 0.0
    %769 = vmatpush1.msra.mxu0 0.0
    %770 = vmatprep.subr.mxu0 0.0
    %771 = vmatpush1.msra.mxu0 0.0
    %772 = vmatprep.subr.mxu0 0.0
    %773 = vmatpush1.msra.mxu0 0.0
    %774 = vmatprep.mubr.f32.mxu0 0.0
    %775 = vmatmul.mubr.f32.gmra.mrb[0].mxu0 %v705
    %v776 = vpop.f32.mrb[0].mxu0
    %v777 = vadd.f32 0.0, %v776
    %v778 = vpop.f32.mrb[0].mxu0
    %779 = vmatprep.mubr.f32.mxu0 0.0
    %780 = vmatmul.mubr.f32.gmra.mrb[0].mxu0 %v708
    %v781 = vpop.f32.mrb[0].mxu0
    %v782 = vadd.f32 0.0, %v781
    %v783 = vpop.f32.mrb[0].mxu0
    %784 = vdwg.mxu0
    %v785 = vadd.f32 %v688, %v777
    %v786 = vadd.f32 %v693, %v782
    %v787 = vld [vmem:[#allocation10] sm:$0x1]
    %v789 = vlaneseq
    %v790 = vshrl.u32 %v789, 7
    %v791 = vsub.s32 0, %v790
    %v792 = vrot.slane %v787, %v791
    %v794 = vadd.f32 %v785, %v792
    %v795 = vadd.f32 %v786, %v792
    %v796 = vmax.f32 %v794, 0.0
    %v797 = vmax.f32 %v795, 0.0
    %v798 = vld [vmem:[#allocation11] sm:$0xff]
    %v799 = vld [vmem:[#allocation11 + $0x8] sm:$0xff]
    %v800 = vld [vmem:[#allocation11 + $0x10] sm:$0xff]
    %v801 = vld [vmem:[#allocation11 + $0x18] sm:$0xff]
    %v802 = vld [vmem:[#allocation11 + $0x20] sm:$0xff]
    %v803 = vld [vmem:[#allocation11 + $0x28] sm:$0xff]
    %v804 = vld [vmem:[#allocation11 + $0x30] sm:$0xff]
    %v805 = vld [vmem:[#allocation11 + $0x38] sm:$0xff]
    %v806 = vld [vmem:[#allocation13] sm:$0x1]
    %v808 = vlaneseq
    %v809 = vshrl.u32 %v808, 7
    %v810 = vsub.s32 0, %v809
    %v811 = vrot.slane %v806, %v810
    %v814 = vsel %vm536, %v796, 0
    %v817 = vsel %vm536, %v797, 0
    %819 = vmatprep.subr.mxu0 0.0
    %820 = vmatpush1.msra.mxu0 %v798
    %821 = vmatprep.subr.mxu0 0.0
    %822 = vmatpush1.msra.mxu0 %v799
    %823 = vmatprep.subr.mxu0 0.0
    %824 = vmatpush1.msra.mxu0 %v800
    %825 = vmatprep.subr.mxu0 0.0
    %826 = vmatpush1.msra.mxu0 %v801
    %827 = vmatprep.subr.mxu0 0.0
    %828 = vmatpush1.msra.mxu0 %v802
    %829 = vmatprep.subr.mxu0 0.0
    %830 = vmatpush1.msra.mxu0 %v803
    %831 = vmatprep.subr.mxu0 0.0
    %832 = vmatpush1.msra.mxu0 %v804
    %833 = vmatprep.subr.mxu0 0.0
    %834 = vmatpush1.msra.mxu0 %v805
    %835 = vmatprep.subr.mxu0 0.0
    %836 = vmatpush1.msra.mxu0 0.0
    %837 = vmatprep.subr.mxu0 0.0
    %838 = vmatpush1.msra.mxu0 0.0
    %839 = vmatprep.subr.mxu0 0.0
    %840 = vmatpush1.msra.mxu0 0.0
    %841 = vmatprep.subr.mxu0 0.0
    %842 = vmatpush1.msra.mxu0 0.0
    %843 = vmatprep.subr.mxu0 0.0
    %844 = vmatpush1.msra.mxu0 0.0
    %845 = vmatprep.subr.mxu0 0.0
    %846 = vmatpush1.msra.mxu0 0.0
    %847 = vmatprep.subr.mxu0 0.0
    %848 = vmatpush1.msra.mxu0 0.0
    %849 = vmatprep.subr.mxu0 0.0
    %850 = vmatpush1.msra.mxu0 0.0
    %851 = vmatprep.subr.mxu0 0.0
    %852 = vmatpush1.msra.mxu0 0.0
    %853 = vmatprep.subr.mxu0 0.0
    %854 = vmatpush1.msra.mxu0 0.0
    %855 = vmatprep.subr.mxu0 0.0
    %856 = vmatpush1.msra.mxu0 0.0
    %857 = vmatprep.subr.mxu0 0.0
    %858 = vmatpush1.msra.mxu0 0.0
    %859 = vmatprep.subr.mxu0 0.0
    %860 = vmatpush1.msra.mxu0 0.0
    %861 = vmatprep.subr.mxu0 0.0
    %862 = vmatpush1.msra.mxu0 0.0
    %863 = vmatprep.subr.mxu0 0.0
    %864 = vmatpush1.msra.mxu0 0.0
    %865 = vmatprep.subr.mxu0 0.0
    %866 = vmatpush1.msra.mxu0 0.0
    %867 = vmatprep.subr.mxu0 0.0
    %868 = vmatpush1.msra.mxu0 0.0
    %869 = vmatprep.subr.mxu0 0.0
    %870 = vmatpush1.msra.mxu0 0.0
    %871 = vmatprep.subr.mxu0 0.0
    %872 = vmatpush1.msra.mxu0 0.0
    %873 = vmatprep.subr.mxu0 0.0
    %874 = vmatpush1.msra.mxu0 0.0
    %875 = vmatprep.subr.mxu0 0.0
    %876 = vmatpush1.msra.mxu0 0.0
    %877 = vmatprep.subr.mxu0 0.0
    %878 = vmatpush1.msra.mxu0 0.0
    %879 = vmatprep.subr.mxu0 0.0
    %880 = vmatpush1.msra.mxu0 0.0
    %881 = vmatprep.subr.mxu0 0.0
    %882 = vmatpush1.msra.mxu0 0.0
    %883 = vmatprep.mubr.f32.mxu0 0.0
    %884 = vmatmul.mubr.f32.gmra.mrb[0].mxu0 %v814
    %v885 = vpop.f32.mrb[0].mxu0
    %v886 = vadd.f32 %v811, %v885
    %v887 = vpop.f32.mrb[0].mxu0
    %888 = vmatprep.mubr.f32.mxu0 0.0
    %889 = vmatmul.mubr.f32.gmra.mrb[0].mxu0 %v817
    %v890 = vpop.f32.mrb[0].mxu0
    %v891 = vpop.f32.mrb[0].mxu0
    %892 = vdwg.mxu0
    %v893 = vmax.f32 %v886, 0.0
    %v895 = vrot.slane %v893, 1
    %v897 = vmax.f32 %v893, %v895
    %v899 = vrot.slane %v897, 1
    %v901 = vrot.slane %v897, 2
    %v903 = vrot.slane %v897, 3
    %v905 = vsel %vm512, %v897, %v899
    %vm906 = vcmask 1041408
    %v907 = vsel %vm906, %v905, %v901
    %vm908 = vcmask 1042432
    %v909 = vsel %vm908, %v907, %v903
    %v911 = vrot.slane %v909, 7
    %v913 = vsel %vm512, 0.0, %v911
    %v914 = vrot.slane %v909, 1
    %v916 = vsel %vm908, %v914, 0.0
    %v917 = vld [vmem:[%s9] sm:$0xff]
    %v918 = vld [vmem:[%s9 + $0x8] sm:$0xff]
    %v919 = vld [vmem:[%s9 + $0x10] sm:$0xff]
    %v920 = vld [vmem:[%s9 + $0x18] sm:$0xff]
    %v921 = vld [vmem:[%s9 + $0x20] sm:$0xff]
    %v922 = vld [vmem:[%s9 + $0x28] sm:$0xff]
    %v923 = vld [vmem:[%s9 + $0x30] sm:$0xff]
    %v924 = vld [vmem:[%s9 + $0x38] sm:$0xff]
    %v925 = vld [vmem:[%s9 + $0x40] sm:$0xff]
    %v926 = vld [vmem:[%s9 + $0x48] sm:$0xff]
    %v927 = vld [vmem:[%s9 + $0x50] sm:$0xff]
    %v928 = vld [vmem:[%s9 + $0x58] sm:$0xff]
    %v929 = vld [vmem:[%s9 + $0x60] sm:$0xff]
    %v930 = vld [vmem:[%s9 + $0x68] sm:$0xff]
    %v931 = vld [vmem:[%s9 + $0x70] sm:$0xff]
    %v932 = vld [vmem:[%s9 + $0x78] sm:$0xff]
    %s933 = scalar_lea.vmem %s9, 128
    %v934 = vld [vmem:[%s933] sm:$0xff]
    %v935 = vld [vmem:[%s933 + $0x8] sm:$0xff]
    %v936 = vld [vmem:[%s933 + $0x10] sm:$0xff]
    %v937 = vld [vmem:[%s933 + $0x18] sm:$0xff]
    %v938 = vld [vmem:[%s933 + $0x20] sm:$0xff]
    %v939 = vld [vmem:[%s933 + $0x28] sm:$0xff]
    %v940 = vld [vmem:[%s933 + $0x30] sm:$0xff]
    %v941 = vld [vmem:[%s933 + $0x38] sm:$0xff]
    %v942 = vld [vmem:[%s933 + $0x40] sm:$0xff]
    %v943 = vld [vmem:[%s933 + $0x48] sm:$0xff]
    %v944 = vld [vmem:[%s933 + $0x50] sm:$0xff]
    %v945 = vld [vmem:[%s933 + $0x58] sm:$0xff]
    %v946 = vld [vmem:[%s933 + $0x60] sm:$0xff]
    %v947 = vld [vmem:[%s933 + $0x68] sm:$0xff]
    %v948 = vld [vmem:[%s933 + $0x70] sm:$0xff]
    %v949 = vld [vmem:[%s933 + $0x78] sm:$0xff]
    %950 = vmatprep.subr.mxu0 0.0
    %951 = vmatpush1.msra.mxu0 %v934
    %952 = vmatprep.subr.mxu0 0.0
    %953 = vmatpush1.msra.mxu0 %v935
    %954 = vmatprep.subr.mxu0 0.0
    %955 = vmatpush1.msra.mxu0 %v936
    %956 = vmatprep.subr.mxu0 0.0
    %957 = vmatpush1.msra.mxu0 %v937
    %958 = vmatprep.subr.mxu0 0.0
    %959 = vmatpush1.msra.mxu0 %v938
    %960 = vmatprep.subr.mxu0 0.0
    %961 = vmatpush1.msra.mxu0 %v939
    %962 = vmatprep.subr.mxu0 0.0
    %963 = vmatpush1.msra.mxu0 %v940
    %964 = vmatprep.subr.mxu0 0.0
    %965 = vmatpush1.msra.mxu0 %v941
    %966 = vmatprep.subr.mxu0 0.0
    %967 = vmatpush1.msra.mxu0 %v942
    %968 = vmatprep.subr.mxu0 0.0
    %969 = vmatpush1.msra.mxu0 %v943
    %970 = vmatprep.subr.mxu0 0.0
    %971 = vmatpush1.msra.mxu0 %v944
    %972 = vmatprep.subr.mxu0 0.0
    %973 = vmatpush1.msra.mxu0 %v945
    %974 = vmatprep.subr.mxu0 0.0
    %975 = vmatpush1.msra.mxu0 %v946
    %976 = vmatprep.subr.mxu0 0.0
    %977 = vmatpush1.msra.mxu0 %v947
    %978 = vmatprep.subr.mxu0 0.0
    %979 = vmatpush1.msra.mxu0 %v948
    %980 = vmatprep.subr.mxu0 0.0
    %981 = vmatpush1.msra.mxu0 %v949
    %982 = vmatprep.subr.mxu0 0.0
    %983 = vmatpush1.msra.mxu0 0.0
    %984 = vmatprep.subr.mxu0 0.0
    %985 = vmatpush1.msra.mxu0 0.0
    %986 = vmatprep.subr.mxu0 0.0
    %987 = vmatpush1.msra.mxu0 0.0
    %988 = vmatprep.subr.mxu0 0.0
    %989 = vmatpush1.msra.mxu0 0.0
    %990 = vmatprep.subr.mxu0 0.0
    %991 = vmatpush1.msra.mxu0 0.0
    %992 = vmatprep.subr.mxu0 0.0
    %993 = vmatpush1.msra.mxu0 0.0
    %994 = vmatprep.subr.mxu0 0.0
    %995 = vmatpush1.msra.mxu0 0.0
    %996 = vmatprep.subr.mxu0 0.0
    %997 = vmatpush1.msra.mxu0 0.0
    %998 = vmatprep.subr.mxu0 0.0
    %999 = vmatpush1.msra.mxu0 0.0
    %1000 = vmatprep.subr.mxu0 0.0
    %1001 = vmatpush1.msra.mxu0 0.0
    %1002 = vmatprep.subr.mxu0 0.0
    %1003 = vmatpush1.msra.mxu0 0.0
    %1004 = vmatprep.subr.mxu0 0.0
    %1005 = vmatpush1.msra.mxu0 0.0
    %1006 = vmatprep.subr.mxu0 0.0
    %1007 = vmatpush1.msra.mxu0 0.0
    %1008 = vmatprep.subr.mxu0 0.0
    %1009 = vmatpush1.msra.mxu0 0.0
    %1010 = vmatprep.subr.mxu0 0.0
    %1011 = vmatpush1.msra.mxu0 0.0
    %1012 = vmatprep.subr.mxu0 0.0
    %1013 = vmatpush1.msra.mxu0 0.0
    %1014 = vmatprep.mubr.f32.mxu0 0.0
    %1015 = vmatmul.mubr.f32.gmra.mrb[0].mxu0 %v909
    %v1016 = vpop.f32.mrb[0].mxu0
    %v1017 = vadd.f32 0.0, %v1016
    %v1018 = vpop.f32.mrb[0].mxu0
    %1019 = vdwg.mxu0
    %1020 = vmatprep.subr.mxu0 0.0
    %1021 = vmatpush1.msra.mxu0 %v917
    %1022 = vmatprep.subr.mxu0 0.0
    %1023 = vmatpush1.msra.mxu0 %v918
    %1024 = vmatprep.subr.mxu0 0.0
    %1025 = vmatpush1.msra.mxu0 %v919
    %1026 = vmatprep.subr.mxu0 0.0
    %1027 = vmatpush1.msra.mxu0 %v920
    %1028 = vmatprep.subr.mxu0 0.0
    %1029 = vmatpush1.msra.mxu0 %v921
    %1030 = vmatprep.subr.mxu0 0.0
    %1031 = vmatpush1.msra.mxu0 %v922
    %1032 = vmatprep.subr.mxu0 0.0
    %1033 = vmatpush1.msra.mxu0 %v923
    %1034 = vmatprep.subr.mxu0 0.0
    %1035 = vmatpush1.msra.mxu0 %v924
    %1036 = vmatprep.subr.mxu0 0.0
    %1037 = vmatpush1.msra.mxu0 %v925
    %1038 = vmatprep.subr.mxu0 0.0
    %1039 = vmatpush1.msra.mxu0 %v926
    %1040 = vmatprep.subr.mxu0 0.0
    %1041 = vmatpush1.msra.mxu0 %v927
    %1042 = vmatprep.subr.mxu0 0.0
    %1043 = vmatpush1.msra.mxu0 %v928
    %1044 = vmatprep.subr.mxu0 0.0
    %1045 = vmatpush1.msra.mxu0 %v929
    %1046 = vmatprep.subr.mxu0 0.0
    %1047 = vmatpush1.msra.mxu0 %v930
    %1048 = vmatprep.subr.mxu0 0.0
    %1049 = vmatpush1.msra.mxu0 %v931
    %1050 = vmatprep.subr.mxu0 0.0
    %1051 = vmatpush1.msra.mxu0 %v932
    %1052 = vmatprep.subr.mxu0 0.0
    %1053 = vmatpush1.msra.mxu0 0.0
    %1054 = vmatprep.subr.mxu0 0.0
    %1055 = vmatpush1.msra.mxu0 0.0
    %1056 = vmatprep.subr.mxu0 0.0
    %1057 = vmatpush1.msra.mxu0 0.0
    %1058 = vmatprep.subr.mxu0 0.0
    %1059 = vmatpush1.msra.mxu0 0.0
    %1060 = vmatprep.subr.mxu0 0.0
    %1061 = vmatpush1.msra.mxu0 0.0
    %1062 = vmatprep.subr.mxu0 0.0
    %1063 = vmatpush1.msra.mxu0 0.0
    %1064 = vmatprep.subr.mxu0 0.0
    %1065 = vmatpush1.msra.mxu0 0.0
    %1066 = vmatprep.subr.mxu0 0.0
    %1067 = vmatpush1.msra.mxu0 0.0
    %1068 = vmatprep.subr.mxu0 0.0
    %1069 = vmatpush1.msra.mxu0 0.0
    %1070 = vmatprep.subr.mxu0 0.0
    %1071 = vmatpush1.msra.mxu0 0.0
    %1072 = vmatprep.subr.mxu0 0.0
    %1073 = vmatpush1.msra.mxu0 0.0
    %1074 = vmatprep.subr.mxu0 0.0
    %1075 = vmatpush1.msra.mxu0 0.0
    %1076 = vmatprep.subr.mxu0 0.0
    %1077 = vmatpush1.msra.mxu0 0.0
    %1078 = vmatprep.subr.mxu0 0.0
    %1079 = vmatpush1.msra.mxu0 0.0
    %1080 = vmatprep.subr.mxu0 0.0
    %1081 = vmatpush1.msra.mxu0 0.0
    %1082 = vmatprep.subr.mxu0 0.0
    %1083 = vmatpush1.msra.mxu0 0.0
    %1084 = vmatprep.mubr.f32.mxu0 0.0
    %1085 = vmatmul.mubr.f32.gmra.mrb[0].mxu0 %v913
    %v1086 = vpop.f32.mrb[0].mxu0
    %v1087 = vadd.f32 %v1017, %v1086
    %v1088 = vpop.f32.mrb[0].mxu0
    %1089 = vdwg.mxu0
    %s1090 = scalar_lea.vmem %s9, 256
    %v1091 = vld [vmem:[%s1090] sm:$0xff]
    %v1092 = vld [vmem:[%s1090 + $0x8] sm:$0xff]
    %v1093 = vld [vmem:[%s1090 + $0x10] sm:$0xff]
    %v1094 = vld [vmem:[%s1090 + $0x18] sm:$0xff]
    %v1095 = vld [vmem:[%s1090 + $0x20] sm:$0xff]
    %v1096 = vld [vmem:[%s1090 + $0x28] sm:$0xff]
    %v1097 = vld [vmem:[%s1090 + $0x30] sm:$0xff]
    %v1098 = vld [vmem:[%s1090 + $0x38] sm:$0xff]
    %v1099 = vld [vmem:[%s1090 + $0x40] sm:$0xff]
    %v1100 = vld [vmem:[%s1090 + $0x48] sm:$0xff]
    %v1101 = vld [vmem:[%s1090 + $0x50] sm:$0xff]
    %v1102 = vld [vmem:[%s1090 + $0x58] sm:$0xff]
    %v1103 = vld [vmem:[%s1090 + $0x60] sm:$0xff]
    %v1104 = vld [vmem:[%s1090 + $0x68] sm:$0xff]
    %v1105 = vld [vmem:[%s1090 + $0x70] sm:$0xff]
    %v1106 = vld [vmem:[%s1090 + $0x78] sm:$0xff]
    %1107 = vmatprep.subr.mxu0 0.0
    %1108 = vmatpush1.msra.mxu0 %v1091
    %1109 = vmatprep.subr.mxu0 0.0
    %1110 = vmatpush1.msra.mxu0 %v1092
    %1111 = vmatprep.subr.mxu0 0.0
    %1112 = vmatpush1.msra.mxu0 %v1093
    %1113 = vmatprep.subr.mxu0 0.0
    %1114 = vmatpush1.msra.mxu0 %v1094
    %1115 = vmatprep.subr.mxu0 0.0
    %1116 = vmatpush1.msra.mxu0 %v1095
    %1117 = vmatprep.subr.mxu0 0.0
    %1118 = vmatpush1.msra.mxu0 %v1096
    %1119 = vmatprep.subr.mxu0 0.0
    %1120 = vmatpush1.msra.mxu0 %v1097
    %1121 = vmatprep.subr.mxu0 0.0
    %1122 = vmatpush1.msra.mxu0 %v1098
    %1123 = vmatprep.subr.mxu0 0.0
    %1124 = vmatpush1.msra.mxu0 %v1099
    %1125 = vmatprep.subr.mxu0 0.0
    %1126 = vmatpush1.msra.mxu0 %v1100
    %1127 = vmatprep.subr.mxu0 0.0
    %1128 = vmatpush1.msra.mxu0 %v1101
    %1129 = vmatprep.subr.mxu0 0.0
    %1130 = vmatpush1.msra.mxu0 %v1102
    %1131 = vmatprep.subr.mxu0 0.0
    %1132 = vmatpush1.msra.mxu0 %v1103
    %1133 = vmatprep.subr.mxu0 0.0
    %1134 = vmatpush1.msra.mxu0 %v1104
    %1135 = vmatprep.subr.mxu0 0.0
    %1136 = vmatpush1.msra.mxu0 %v1105
    %1137 = vmatprep.subr.mxu0 0.0
    %1138 = vmatpush1.msra.mxu0 %v1106
    %1139 = vmatprep.subr.mxu0 0.0
    %1140 = vmatpush1.msra.mxu0 0.0
    %1141 = vmatprep.subr.mxu0 0.0
    %1142 = vmatpush1.msra.mxu0 0.0
    %1143 = vmatprep.subr.mxu0 0.0
    %1144 = vmatpush1.msra.mxu0 0.0
    %1145 = vmatprep.subr.mxu0 0.0
    %1146 = vmatpush1.msra.mxu0 0.0
    %1147 = vmatprep.subr.mxu0 0.0
    %1148 = vmatpush1.msra.mxu0 0.0
    %1149 = vmatprep.subr.mxu0 0.0
    %1150 = vmatpush1.msra.mxu0 0.0
    %1151 = vmatprep.subr.mxu0 0.0
    %1152 = vmatpush1.msra.mxu0 0.0
    %1153 = vmatprep.subr.mxu0 0.0
    %1154 = vmatpush1.msra.mxu0 0.0
    %1155 = vmatprep.subr.mxu0 0.0
    %1156 = vmatpush1.msra.mxu0 0.0
    %1157 = vmatprep.subr.mxu0 0.0
    %1158 = vmatpush1.msra.mxu0 0.0
    %1159 = vmatprep.subr.mxu0 0.0
    %1160 = vmatpush1.msra.mxu0 0.0
    %1161 = vmatprep.subr.mxu0 0.0
    %1162 = vmatpush1.msra.mxu0 0.0
    %1163 = vmatprep.subr.mxu0 0.0
    %1164 = vmatpush1.msra.mxu0 0.0
    %1165 = vmatprep.subr.mxu0 0.0
    %1166 = vmatpush1.msra.mxu0 0.0
    %1167 = vmatprep.subr.mxu0 0.0
    %1168 = vmatpush1.msra.mxu0 0.0
    %1169 = vmatprep.subr.mxu0 0.0
    %1170 = vmatpush1.msra.mxu0 0.0
    %1171 = vmatprep.mubr.f32.mxu0 0.0
    %1172 = vmatmul.mubr.f32.gmra.mrb[0].mxu0 %v916
    %v1173 = vpop.f32.mrb[0].mxu0
    %v1174 = vadd.f32 0.0, %v1173
    %v1175 = vpop.f32.mrb[0].mxu0
    %1176 = vdwg.mxu0
    %v1177 = vadd.f32 %v1087, %v1174
    %v1178 = vld [vmem:[#allocation14] sm:$0x1]
    %v1180 = vlaneseq
    %v1181 = vshrl.u32 %v1180, 7
    %v1182 = vsub.s32 0, %v1181
    %v1183 = vrot.slane %v1178, %v1182
    %v1185 = vadd.f32 %v1177, %v1183
    %v1186 = vmax.f32 %v1185, 0.0
    %v1188 = vrot.slane %v1186, 7
    %v1190 = vsel %vm512, 0.0, %v1188
    %v1191 = vrot.slane %v1186, 1
    %v1193 = vsel %vm908, %v1191, 0.0
    %v1194 = vld [vmem:[#allocation16] sm:$0xff]
    %v1195 = vld [vmem:[#allocation16 + $0x8] sm:$0xff]
    %v1196 = vld [vmem:[#allocation16 + $0x10] sm:$0xff]
    %v1197 = vld [vmem:[#allocation16 + $0x18] sm:$0xff]
    %v1198 = vld [vmem:[#allocation16 + $0x20] sm:$0xff]
    %v1199 = vld [vmem:[#allocation16 + $0x28] sm:$0xff]
    %v1200 = vld [vmem:[#allocation16 + $0x30] sm:$0xff]
    %v1201 = vld [vmem:[#allocation16 + $0x38] sm:$0xff]
    %s1202 = scalar_lea.vmem [#allocation16], 64
    %v1203 = vld [vmem:[%s1202] sm:$0xff]
    %v1204 = vld [vmem:[%s1202 + $0x8] sm:$0xff]
    %v1205 = vld [vmem:[%s1202 + $0x10] sm:$0xff]
    %v1206 = vld [vmem:[%s1202 + $0x18] sm:$0xff]
    %v1207 = vld [vmem:[%s1202 + $0x20] sm:$0xff]
    %v1208 = vld [vmem:[%s1202 + $0x28] sm:$0xff]
    %v1209 = vld [vmem:[%s1202 + $0x30] sm:$0xff]
    %v1210 = vld [vmem:[%s1202 + $0x38] sm:$0xff]
    %v1211 = vsel %vm536, %v1186, 0
    %1213 = vmatprep.subr.mxu0 0.0
    %1214 = vmatpush1.msra.mxu0 %v1203
    %1215 = vmatprep.subr.mxu0 0.0
    %1216 = vmatpush1.msra.mxu0 %v1204
    %1217 = vmatprep.subr.mxu0 0.0
    %1218 = vmatpush1.msra.mxu0 %v1205
    %1219 = vmatprep.subr.mxu0 0.0
    %1220 = vmatpush1.msra.mxu0 %v1206
    %1221 = vmatprep.subr.mxu0 0.0
    %1222 = vmatpush1.msra.mxu0 %v1207
    %1223 = vmatprep.subr.mxu0 0.0
    %1224 = vmatpush1.msra.mxu0 %v1208
    %1225 = vmatprep.subr.mxu0 0.0
    %1226 = vmatpush1.msra.mxu0 %v1209
    %1227 = vmatprep.subr.mxu0 0.0
    %1228 = vmatpush1.msra.mxu0 %v1210
    %1229 = vmatprep.subr.mxu0 0.0
    %1230 = vmatpush1.msra.mxu0 0.0
    %1231 = vmatprep.subr.mxu0 0.0
    %1232 = vmatpush1.msra.mxu0 0.0
    %1233 = vmatprep.subr.mxu0 0.0
    %1234 = vmatpush1.msra.mxu0 0.0
    %1235 = vmatprep.subr.mxu0 0.0
    %1236 = vmatpush1.msra.mxu0 0.0
    %1237 = vmatprep.subr.mxu0 0.0
    %1238 = vmatpush1.msra.mxu0 0.0
    %1239 = vmatprep.subr.mxu0 0.0
    %1240 = vmatpush1.msra.mxu0 0.0
    %1241 = vmatprep.subr.mxu0 0.0
    %1242 = vmatpush1.msra.mxu0 0.0
    %1243 = vmatprep.subr.mxu0 0.0
    %1244 = vmatpush1.msra.mxu0 0.0
    %1245 = vmatprep.subr.mxu0 0.0
    %1246 = vmatpush1.msra.mxu0 0.0
    %1247 = vmatprep.subr.mxu0 0.0
    %1248 = vmatpush1.msra.mxu0 0.0
    %1249 = vmatprep.subr.mxu0 0.0
    %1250 = vmatpush1.msra.mxu0 0.0
    %1251 = vmatprep.subr.mxu0 0.0
    %1252 = vmatpush1.msra.mxu0 0.0
    %1253 = vmatprep.subr.mxu0 0.0
    %1254 = vmatpush1.msra.mxu0 0.0
    %1255 = vmatprep.subr.mxu0 0.0
    %1256 = vmatpush1.msra.mxu0 0.0
    %1257 = vmatprep.subr.mxu0 0.0
    %1258 = vmatpush1.msra.mxu0 0.0
    %1259 = vmatprep.subr.mxu0 0.0
    %1260 = vmatpush1.msra.mxu0 0.0
    %1261 = vmatprep.subr.mxu0 0.0
    %1262 = vmatpush1.msra.mxu0 0.0
    %1263 = vmatprep.subr.mxu0 0.0
    %1264 = vmatpush1.msra.mxu0 0.0
    %1265 = vmatprep.subr.mxu0 0.0
    %1266 = vmatpush1.msra.mxu0 0.0
    %1267 = vmatprep.subr.mxu0 0.0
    %1268 = vmatpush1.msra.mxu0 0.0
    %1269 = vmatprep.subr.mxu0 0.0
    %1270 = vmatpush1.msra.mxu0 0.0
    %1271 = vmatprep.subr.mxu0 0.0
    %1272 = vmatpush1.msra.mxu0 0.0
    %1273 = vmatprep.subr.mxu0 0.0
    %1274 = vmatpush1.msra.mxu0 0.0
    %1275 = vmatprep.subr.mxu0 0.0
    %1276 = vmatpush1.msra.mxu0 0.0
    %1277 = vmatprep.mubr.f32.mxu0 0.0
    %1278 = vmatmul.mubr.f32.gmra.mrb[0].mxu0 %v1211
    %v1279 = vpop.f32.mrb[0].mxu0
    %v1280 = vadd.f32 0.0, %v1279
    %v1281 = vpop.f32.mrb[0].mxu0
    %1282 = vdwg.mxu0
    %v1284 = vsel %vm536, %v1190, 0
    %1286 = vmatprep.subr.mxu0 0.0
    %1287 = vmatpush1.msra.mxu0 %v1194
    %1288 = vmatprep.subr.mxu0 0.0
    %1289 = vmatpush1.msra.mxu0 %v1195
    %1290 = vmatprep.subr.mxu0 0.0
    %1291 = vmatpush1.msra.mxu0 %v1196
    %1292 = vmatprep.subr.mxu0 0.0
    %1293 = vmatpush1.msra.mxu0 %v1197
    %1294 = vmatprep.subr.mxu0 0.0
    %1295 = vmatpush1.msra.mxu0 %v1198
    %1296 = vmatprep.subr.mxu0 0.0
    %1297 = vmatpush1.msra.mxu0 %v1199
    %1298 = vmatprep.subr.mxu0 0.0
    %1299 = vmatpush1.msra.mxu0 %v1200
    %1300 = vmatprep.subr.mxu0 0.0
    %1301 = vmatpush1.msra.mxu0 %v1201
    %1302 = vmatprep.subr.mxu0 0.0
    %1303 = vmatpush1.msra.mxu0 0.0
    %1304 = vmatprep.subr.mxu0 0.0
    %1305 = vmatpush1.msra.mxu0 0.0
    %1306 = vmatprep.subr.mxu0 0.0
    %1307 = vmatpush1.msra.mxu0 0.0
    %1308 = vmatprep.subr.mxu0 0.0
    %1309 = vmatpush1.msra.mxu0 0.0
    %1310 = vmatprep.subr.mxu0 0.0
    %1311 = vmatpush1.msra.mxu0 0.0
    %1312 = vmatprep.subr.mxu0 0.0
    %1313 = vmatpush1.msra.mxu0 0.0
    %1314 = vmatprep.subr.mxu0 0.0
    %1315 = vmatpush1.msra.mxu0 0.0
    %1316 = vmatprep.subr.mxu0 0.0
    %1317 = vmatpush1.msra.mxu0 0.0
    %1318 = vmatprep.subr.mxu0 0.0
    %1319 = vmatpush1.msra.mxu0 0.0
    %1320 = vmatprep.subr.mxu0 0.0
    %1321 = vmatpush1.msra.mxu0 0.0
    %1322 = vmatprep.subr.mxu0 0.0
    %1323 = vmatpush1.msra.mxu0 0.0
    %1324 = vmatprep.subr.mxu0 0.0
    %1325 = vmatpush1.msra.mxu0 0.0
    %1326 = vmatprep.subr.mxu0 0.0
    %1327 = vmatpush1.msra.mxu0 0.0
    %1328 = vmatprep.subr.mxu0 0.0
    %1329 = vmatpush1.msra.mxu0 0.0
    %1330 = vmatprep.subr.mxu0 0.0
    %1331 = vmatpush1.msra.mxu0 0.0
    %1332 = vmatprep.subr.mxu0 0.0
    %1333 = vmatpush1.msra.mxu0 0.0
    %1334 = vmatprep.subr.mxu0 0.0
    %1335 = vmatpush1.msra.mxu0 0.0
    %1336 = vmatprep.subr.mxu0 0.0
    %1337 = vmatpush1.msra.mxu0 0.0
    %1338 = vmatprep.subr.mxu0 0.0
    %1339 = vmatpush1.msra.mxu0 0.0
    %1340 = vmatprep.subr.mxu0 0.0
    %1341 = vmatpush1.msra.mxu0 0.0
    %1342 = vmatprep.subr.mxu0 0.0
    %1343 = vmatpush1.msra.mxu0 0.0
    %1344 = vmatprep.subr.mxu0 0.0
    %1345 = vmatpush1.msra.mxu0 0.0
    %1346 = vmatprep.subr.mxu0 0.0
    %1347 = vmatpush1.msra.mxu0 0.0
    %1348 = vmatprep.subr.mxu0 0.0
    %1349 = vmatpush1.msra.mxu0 0.0
    %1350 = vmatprep.mubr.f32.mxu0 0.0
    %1351 = vmatmul.mubr.f32.gmra.mrb[0].mxu0 %v1284
    %v1352 = vpop.f32.mrb[0].mxu0
    %v1353 = vadd.f32 %v1280, %v1352
    %v1354 = vpop.f32.mrb[0].mxu0
    %1355 = vdwg.mxu0
    %s1356 = scalar_lea.vmem [#allocation16], 128
    %v1357 = vld [vmem:[%s1356] sm:$0xff]
    %v1358 = vld [vmem:[%s1356 + $0x8] sm:$0xff]
    %v1359 = vld [vmem:[%s1356 + $0x10] sm:$0xff]
    %v1360 = vld [vmem:[%s1356 + $0x18] sm:$0xff]
    %v1361 = vld [vmem:[%s1356 + $0x20] sm:$0xff]
    %v1362 = vld [vmem:[%s1356 + $0x28] sm:$0xff]
    %v1363 = vld [vmem:[%s1356 + $0x30] sm:$0xff]
    %v1364 = vld [vmem:[%s1356 + $0x38] sm:$0xff]
    %v1366 = vsel %vm536, %v1193, 0
    %1368 = vmatprep.subr.mxu0 0.0
    %1369 = vmatpush1.msra.mxu0 %v1357
    %1370 = vmatprep.subr.mxu0 0.0
    %1371 = vmatpush1.msra.mxu0 %v1358
    %1372 = vmatprep.subr.mxu0 0.0
    %1373 = vmatpush1.msra.mxu0 %v1359
    %1374 = vmatprep.subr.mxu0 0.0
    %1375 = vmatpush1.msra.mxu0 %v1360
    %1376 = vmatprep.subr.mxu0 0.0
    %1377 = vmatpush1.msra.mxu0 %v1361
    %1378 = vmatprep.subr.mxu0 0.0
    %1379 = vmatpush1.msra.mxu0 %v1362
    %1380 = vmatprep.subr.mxu0 0.0
    %1381 = vmatpush1.msra.mxu0 %v1363
    %1382 = vmatprep.subr.mxu0 0.0
    %1383 = vmatpush1.msra.mxu0 %v1364
    %1384 = vmatprep.subr.mxu0 0.0
    %1385 = vmatpush1.msra.mxu0 0.0
    %1386 = vmatprep.subr.mxu0 0.0
    %1387 = vmatpush1.msra.mxu0 0.0
    %1388 = vmatprep.subr.mxu0 0.0
    %1389 = vmatpush1.msra.mxu0 0.0
    %1390 = vmatprep.subr.mxu0 0.0
    %1391 = vmatpush1.msra.mxu0 0.0
    %1392 = vmatprep.subr.mxu0 0.0
    %1393 = vmatpush1.msra.mxu0 0.0
    %1394 = vmatprep.subr.mxu0 0.0
    %1395 = vmatpush1.msra.mxu0 0.0
    %1396 = vmatprep.subr.mxu0 0.0
    %1397 = vmatpush1.msra.mxu0 0.0
    %1398 = vmatprep.subr.mxu0 0.0
    %1399 = vmatpush1.msra.mxu0 0.0
    %1400 = vmatprep.subr.mxu0 0.0
    %1401 = vmatpush1.msra.mxu0 0.0
    %1402 = vmatprep.subr.mxu0 0.0
    %1403 = vmatpush1.msra.mxu0 0.0
    %1404 = vmatprep.subr.mxu0 0.0
    %1405 = vmatpush1.msra.mxu0 0.0
    %1406 = vmatprep.subr.mxu0 0.0
    %1407 = vmatpush1.msra.mxu0 0.0
    %1408 = vmatprep.subr.mxu0 0.0
    %1409 = vmatpush1.msra.mxu0 0.0
    %1410 = vmatprep.subr.mxu0 0.0
    %1411 = vmatpush1.msra.mxu0 0.0
    %1412 = vmatprep.subr.mxu0 0.0
    %1413 = vmatpush1.msra.mxu0 0.0
    %1414 = vmatprep.subr.mxu0 0.0
    %1415 = vmatpush1.msra.mxu0 0.0
    %1416 = vmatprep.subr.mxu0 0.0
    %1417 = vmatpush1.msra.mxu0 0.0
    %1418 = vmatprep.subr.mxu0 0.0
    %1419 = vmatpush1.msra.mxu0 0.0
    %1420 = vmatprep.subr.mxu0 0.0
    %1421 = vmatpush1.msra.mxu0 0.0
    %1422 = vmatprep.subr.mxu0 0.0
    %1423 = vmatpush1.msra.mxu0 0.0
    %1424 = vmatprep.subr.mxu0 0.0
    %1425 = vmatpush1.msra.mxu0 0.0
    %1426 = vmatprep.subr.mxu0 0.0
    %1427 = vmatpush1.msra.mxu0 0.0
    %1428 = vmatprep.subr.mxu0 0.0
    %1429 = vmatpush1.msra.mxu0 0.0
    %1430 = vmatprep.subr.mxu0 0.0
    %1431 = vmatpush1.msra.mxu0 0.0
    %1432 = vmatprep.mubr.f32.mxu0 0.0
    %1433 = vmatmul.mubr.f32.gmra.mrb[0].mxu0 %v1366
    %v1434 = vpop.f32.mrb[0].mxu0
    %v1435 = vadd.f32 0.0, %v1434
    %v1436 = vpop.f32.mrb[0].mxu0
    %1437 = vdwg.mxu0
    %v1438 = vadd.f32 %v1353, %v1435
    %v1439 = vld [vmem:[#allocation17] sm:$0x1]
    %v1441 = vlaneseq
    %v1442 = vshrl.u32 %v1441, 7
    %v1443 = vsub.s32 0, %v1442
    %v1444 = vrot.slane %v1439, %v1443
    %v1446 = vadd.f32 %v1438, %v1444
    %v1447 = vmax.f32 %v1446, 0.0
    %v1448 = vld [vmem:[#allocation19] sm:$0xff]
    %v1449 = vld [vmem:[#allocation19 + $0x8] sm:$0xff]
    %v1450 = vld [vmem:[#allocation19 + $0x10] sm:$0xff]
    %v1451 = vld [vmem:[#allocation19 + $0x18] sm:$0xff]
    %v1452 = vld [vmem:[#allocation19 + $0x20] sm:$0xff]
    %v1453 = vld [vmem:[#allocation19 + $0x28] sm:$0xff]
    %v1454 = vld [vmem:[#allocation19 + $0x30] sm:$0xff]
    %v1455 = vld [vmem:[#allocation19 + $0x38] sm:$0xff]
    %v1456 = vld [vmem:[#allocation20] sm:$0x1]
    %v1458 = vlaneseq
    %v1459 = vshrl.u32 %v1458, 7
    %v1460 = vsub.s32 0, %v1459
    %v1461 = vrot.slane %v1456, %v1460
    %v1464 = vsel %vm536, %v1447, 0
    %1466 = vmatprep.subr.mxu0 0.0
    %1467 = vmatpush1.msra.mxu0 %v1448
    %1468 = vmatprep.subr.mxu0 0.0
    %1469 = vmatpush1.msra.mxu0 %v1449
    %1470 = vmatprep.subr.mxu0 0.0
    %1471 = vmatpush1.msra.mxu0 %v1450
    %1472 = vmatprep.subr.mxu0 0.0
    %1473 = vmatpush1.msra.mxu0 %v1451
    %1474 = vmatprep.subr.mxu0 0.0
    %1475 = vmatpush1.msra.mxu0 %v1452
    %1476 = vmatprep.subr.mxu0 0.0
    %1477 = vmatpush1.msra.mxu0 %v1453
    %1478 = vmatprep.subr.mxu0 0.0
    %1479 = vmatpush1.msra.mxu0 %v1454
    %1480 = vmatprep.subr.mxu0 0.0
    %1481 = vmatpush1.msra.mxu0 %v1455
    %1482 = vmatprep.subr.mxu0 0.0
    %1483 = vmatpush1.msra.mxu0 0.0
    %1484 = vmatprep.subr.mxu0 0.0
    %1485 = vmatpush1.msra.mxu0 0.0
    %1486 = vmatprep.subr.mxu0 0.0
    %1487 = vmatpush1.msra.mxu0 0.0
    %1488 = vmatprep.subr.mxu0 0.0
    %1489 = vmatpush1.msra.mxu0 0.0
    %1490 = vmatprep.subr.mxu0 0.0
    %1491 = vmatpush1.msra.mxu0 0.0
    %1492 = vmatprep.subr.mxu0 0.0
    %1493 = vmatpush1.msra.mxu0 0.0
    %1494 = vmatprep.subr.mxu0 0.0
    %1495 = vmatpush1.msra.mxu0 0.0
    %1496 = vmatprep.subr.mxu0 0.0
    %1497 = vmatpush1.msra.mxu0 0.0
    %1498 = vmatprep.subr.mxu0 0.0
    %1499 = vmatpush1.msra.mxu0 0.0
    %1500 = vmatprep.subr.mxu0 0.0
    %1501 = vmatpush1.msra.mxu0 0.0
    %1502 = vmatprep.subr.mxu0 0.0
    %1503 = vmatpush1.msra.mxu0 0.0
    %1504 = vmatprep.subr.mxu0 0.0
    %1505 = vmatpush1.msra.mxu0 0.0
    %1506 = vmatprep.subr.mxu0 0.0
    %1507 = vmatpush1.msra.mxu0 0.0
    %1508 = vmatprep.subr.mxu0 0.0
    %1509 = vmatpush1.msra.mxu0 0.0
    %1510 = vmatprep.subr.mxu0 0.0
    %1511 = vmatpush1.msra.mxu0 0.0
    %1512 = vmatprep.subr.mxu0 0.0
    %1513 = vmatpush1.msra.mxu0 0.0
    %1514 = vmatprep.subr.mxu0 0.0
    %1515 = vmatpush1.msra.mxu0 0.0
    %1516 = vmatprep.subr.mxu0 0.0
    %1517 = vmatpush1.msra.mxu0 0.0
    %1518 = vmatprep.subr.mxu0 0.0
    %1519 = vmatpush1.msra.mxu0 0.0
    %1520 = vmatprep.subr.mxu0 0.0
    %1521 = vmatpush1.msra.mxu0 0.0
    %1522 = vmatprep.subr.mxu0 0.0
    %1523 = vmatpush1.msra.mxu0 0.0
    %1524 = vmatprep.subr.mxu0 0.0
    %1525 = vmatpush1.msra.mxu0 0.0
    %1526 = vmatprep.subr.mxu0 0.0
    %1527 = vmatpush1.msra.mxu0 0.0
    %1528 = vmatprep.subr.mxu0 0.0
    %1529 = vmatpush1.msra.mxu0 0.0
    %1530 = vmatprep.mubr.f32.mxu0 0.0
    %1531 = vmatmul.mubr.f32.gmra.mrb[0].mxu0 %v1464
    %v1532 = vpop.f32.mrb[0].mxu0
    %v1533 = vadd.f32 %v1461, %v1532
    %v1534 = vpop.f32.mrb[0].mxu0
    %1535 = vdwg.mxu0
    %v1536 = vmax.f32 %v1533, 0.0
    %v1538 = vrot.slane %v1536, 1
    %v1540 = vmax.f32 %v1536, %v1538
    %v1542 = vrot.slane %v1540, 1
    %v1544 = vsel %vm512, %v1540, %v1542
    %1545 = vrot.lane.b32.xlu0 %v796, 64
    %v1546 = vpop.permute.xlu0 %1545
    %1547 = vrot.lane.b32.xlu0 %v797, 64
    %v1548 = vpop.permute.xlu0 %1547
    %v1551 = vsel %vm536, %v507, %v1546
    %v1552 = vsel %vm536, %v508, %v1548
    %1553 = vrot.lane.b32.xlu0 %v1447, 64
    %v1554 = vpop.permute.xlu0 %1553
    %v1556 = vsel %vm536, %v1186, %v1554
    %v1558 = vrot.slane %v407, 1
    %v1560 = vrot.slane %v407, 2
    %v1562 = vrot.slane %v407, 3
    %v1564 = vrot.slane %v407, 4
    %v1566 = vrot.slane %v407, 5
    %v1568 = vrot.slane %v407, 6
    %v1570 = vrot.slane %v407, 7
    %v1573 = vrot.slane %v1551, 1
    %v1575 = vrot.slane %v1551, 2
    %v1577 = vrot.slane %v1551, 3
    %v1579 = vrot.slane %v1551, 4
    %v1581 = vrot.slane %v1551, 5
    %v1583 = vrot.slane %v1551, 6
    %v1585 = vrot.slane %v1551, 7
    %v1588 = vrot.slane %v1556, 1
    %v1590 = vrot.slane %v1556, 2
    %v1592 = vrot.slane %v1556, 3
    %v1595 = vrot.slane %v1544, 1
    %s1597 = scalar_lea.vmem %s0, 16
    %v1598 = vld [vmem:[%s1597] sm:$0xff]
    %v1599 = vld [vmem:[%s1597 + $0x8] sm:$0x1]
    %v1601 = vsel %vm325, %v1598, 0
    %v1604 = vsel %vm325, %v1599, 0
    %1606 = vmatprep.subr.mxu0 0.0
    %1607 = vmatpush1.msra.mxu0 %v314
    %1608 = vmatprep.subr.mxu0 0.0
    %1609 = vmatpush1.msra.mxu0 %v315
    %1610 = vmatprep.subr.mxu0 0.0
    %1611 = vmatpush1.msra.mxu0 %v316
    %1612 = vmatprep.subr.mxu0 0.0
    %1613 = vmatpush1.msra.mxu0 %v317
    %1614 = vmatprep.subr.mxu0 0.0
    %1615 = vmatpush1.msra.mxu0 0.0
    %1616 = vmatprep.subr.mxu0 0.0
    %1617 = vmatpush1.msra.mxu0 0.0
    %1618 = vmatprep.subr.mxu0 0.0
    %1619 = vmatpush1.msra.mxu0 0.0
    %1620 = vmatprep.subr.mxu0 0.0
    %1621 = vmatpush1.msra.mxu0 0.0
    %1622 = vmatprep.subr.mxu0 0.0
    %1623 = vmatpush1.msra.mxu0 0.0
    %1624 = vmatprep.subr.mxu0 0.0
    %1625 = vmatpush1.msra.mxu0 0.0
    %1626 = vmatprep.subr.mxu0 0.0
    %1627 = vmatpush1.msra.mxu0 0.0
    %1628 = vmatprep.subr.mxu0 0.0
    %1629 = vmatpush1.msra.mxu0 0.0
    %1630 = vmatprep.subr.mxu0 0.0
    %1631 = vmatpush1.msra.mxu0 0.0
    %1632 = vmatprep.subr.mxu0 0.0
    %1633 = vmatpush1.msra.mxu0 0.0
    %1634 = vmatprep.subr.mxu0 0.0
    %1635 = vmatpush1.msra.mxu0 0.0
    %1636 = vmatprep.subr.mxu0 0.0
    %1637 = vmatpush1.msra.mxu0 0.0
    %1638 = vmatprep.subr.mxu0 0.0
    %1639 = vmatpush1.msra.mxu0 0.0
    %1640 = vmatprep.subr.mxu0 0.0
    %1641 = vmatpush1.msra.mxu0 0.0
    %1642 = vmatprep.subr.mxu0 0.0
    %1643 = vmatpush1.msra.mxu0 0.0
    %1644 = vmatprep.subr.mxu0 0.0
    %1645 = vmatpush1.msra.mxu0 0.0
    %1646 = vmatprep.subr.mxu0 0.0
    %1647 = vmatpush1.msra.mxu0 0.0
    %1648 = vmatprep.subr.mxu0 0.0
    %1649 = vmatpush1.msra.mxu0 0.0
    %1650 = vmatprep.subr.mxu0 0.0
    %1651 = vmatpush1.msra.mxu0 0.0
    %1652 = vmatprep.subr.mxu0 0.0
    %1653 = vmatpush1.msra.mxu0 0.0
    %1654 = vmatprep.subr.mxu0 0.0
    %1655 = vmatpush1.msra.mxu0 0.0
    %1656 = vmatprep.subr.mxu0 0.0
    %1657 = vmatpush1.msra.mxu0 0.0
    %1658 = vmatprep.subr.mxu0 0.0
    %1659 = vmatpush1.msra.mxu0 0.0
    %1660 = vmatprep.subr.mxu0 0.0
    %1661 = vmatpush1.msra.mxu0 0.0
    %1662 = vmatprep.subr.mxu0 0.0
    %1663 = vmatpush1.msra.mxu0 0.0
    %1664 = vmatprep.subr.mxu0 0.0
    %1665 = vmatpush1.msra.mxu0 0.0
    %1666 = vmatprep.subr.mxu0 0.0
    %1667 = vmatpush1.msra.mxu0 0.0
    %1668 = vmatprep.subr.mxu0 0.0
    %1669 = vmatpush1.msra.mxu0 0.0
    %1670 = vmatprep.mubr.f32.mxu0 0.0
    %1671 = vmatmul.mubr.f32.gmra.mrb[0].mxu0 %v1601
    %v1672 = vpop.f32.mrb[0].mxu0
    %v1673 = vadd.f32 %v323, %v1672
    %v1674 = vpop.f32.mrb[0].mxu0
    %1675 = vmatprep.mubr.f32.mxu0 0.0
    %1676 = vmatmul.mubr.f32.gmra.mrb[0].mxu0 %v1604
    %v1677 = vpop.f32.mrb[0].mxu0
    %v1678 = vadd.f32 %v323, %v1677
    %v1679 = vpop.f32.mrb[0].mxu0
    %1680 = vdwg.mxu0
    %v1681 = vmax.f32 %v1673, 0.0
    %v1682 = vmax.f32 %v1678, 0.0
    %1683 = vmatprep.subr.mxu0 0.0
    %1684 = vmatpush1.msra.mxu0 %v409
    %1685 = vmatprep.subr.mxu0 0.0
    %1686 = vmatpush1.msra.mxu0 %v410
    %1687 = vmatprep.subr.mxu0 0.0
    %1688 = vmatpush1.msra.mxu0 %v411
    %1689 = vmatprep.subr.mxu0 0.0
    %1690 = vmatpush1.msra.mxu0 %v412
    %1691 = vmatprep.subr.mxu0 0.0
    %1692 = vmatpush1.msra.mxu0 %v413
    %1693 = vmatprep.subr.mxu0 0.0
    %1694 = vmatpush1.msra.mxu0 %v414
    %1695 = vmatprep.subr.mxu0 0.0
    %1696 = vmatpush1.msra.mxu0 %v415
    %1697 = vmatprep.subr.mxu0 0.0
    %1698 = vmatpush1.msra.mxu0 %v416
    %1699 = vmatprep.subr.mxu0 0.0
    %1700 = vmatpush1.msra.mxu0 %v417
    %1701 = vmatprep.subr.mxu0 0.0
    %1702 = vmatpush1.msra.mxu0 %v418
    %1703 = vmatprep.subr.mxu0 0.0
    %1704 = vmatpush1.msra.mxu0 %v419
    %1705 = vmatprep.subr.mxu0 0.0
    %1706 = vmatpush1.msra.mxu0 %v420
    %1707 = vmatprep.subr.mxu0 0.0
    %1708 = vmatpush1.msra.mxu0 %v421
    %1709 = vmatprep.subr.mxu0 0.0
    %1710 = vmatpush1.msra.mxu0 %v422
    %1711 = vmatprep.subr.mxu0 0.0
    %1712 = vmatpush1.msra.mxu0 %v423
    %1713 = vmatprep.subr.mxu0 0.0
    %1714 = vmatpush1.msra.mxu0 %v424
    %1715 = vmatprep.subr.mxu0 0.0
    %1716 = vmatpush1.msra.mxu0 0.0
    %1717 = vmatprep.subr.mxu0 0.0
    %1718 = vmatpush1.msra.mxu0 0.0
    %1719 = vmatprep.subr.mxu0 0.0
    %1720 = vmatpush1.msra.mxu0 0.0
    %1721 = vmatprep.subr.mxu0 0.0
    %1722 = vmatpush1.msra.mxu0 0.0
    %1723 = vmatprep.subr.mxu0 0.0
    %1724 = vmatpush1.msra.mxu0 0.0
    %1725 = vmatprep.subr.mxu0 0.0
    %1726 = vmatpush1.msra.mxu0 0.0
    %1727 = vmatprep.subr.mxu0 0.0
    %1728 = vmatpush1.msra.mxu0 0.0
    %1729 = vmatprep.subr.mxu0 0.0
    %1730 = vmatpush1.msra.mxu0 0.0
    %1731 = vmatprep.subr.mxu0 0.0
    %1732 = vmatpush1.msra.mxu0 0.0
    %1733 = vmatprep.subr.mxu0 0.0
    %1734 = vmatpush1.msra.mxu0 0.0
    %1735 = vmatprep.subr.mxu0 0.0
    %1736 = vmatpush1.msra.mxu0 0.0
    %1737 = vmatprep.subr.mxu0 0.0
    %1738 = vmatpush1.msra.mxu0 0.0
    %1739 = vmatprep.subr.mxu0 0.0
    %1740 = vmatpush1.msra.mxu0 0.0
    %1741 = vmatprep.subr.mxu0 0.0
    %1742 = vmatpush1.msra.mxu0 0.0
    %1743 = vmatprep.subr.mxu0 0.0
    %1744 = vmatpush1.msra.mxu0 0.0
    %1745 = vmatprep.subr.mxu0 0.0
    %1746 = vmatpush1.msra.mxu0 0.0
    %1747 = vmatprep.mubr.f32.mxu0 0.0
    %1748 = vmatmul.mubr.f32.gmra.mrb[0].mxu0 %v1681
    %v1749 = vpop.f32.mrb[0].mxu0
    %v1750 = vadd.f32 %v430, %v1749
    %v1751 = vpop.f32.mrb[0].mxu0
    %1752 = vmatprep.mubr.f32.mxu0 0.0
    %1753 = vmatmul.mubr.f32.gmra.mrb[0].mxu0 %v1682
    %v1754 = vpop.f32.mrb[0].mxu0
    %v1755 = vadd.f32 %v430, %v1754
    %v1756 = vpop.f32.mrb[0].mxu0
    %1757 = vdwg.mxu0
    %v1758 = vmax.f32 %v1750, 0.0
    %v1759 = vmax.f32 %v1755, 0.0
    %v1761 = vrot.slane %v1758, 7
    %v1763 = vsel %vm512, 0.0, %v1761
    %v1765 = vrot.slane %v1758, 1
    %v1766 = vrot.slane %v1759, 1
    %v1767 = vsel %vm515, %v1765, %v1766
    %v1768 = vsel %vm536, %v1758, 0
    %v1770 = vsel %vm536, %v1759, 0
    %1772 = vmatprep.subr.mxu0 0.0
    %1773 = vmatpush1.msra.mxu0 %v528
    %1774 = vmatprep.subr.mxu0 0.0
    %1775 = vmatpush1.msra.mxu0 %v529
    %1776 = vmatprep.subr.mxu0 0.0
    %1777 = vmatpush1.msra.mxu0 %v530
    %1778 = vmatprep.subr.mxu0 0.0
    %1779 = vmatpush1.msra.mxu0 %v531
    %1780 = vmatprep.subr.mxu0 0.0
    %1781 = vmatpush1.msra.mxu0 %v532
    %1782 = vmatprep.subr.mxu0 0.0
    %1783 = vmatpush1.msra.mxu0 %v533
    %1784 = vmatprep.subr.mxu0 0.0
    %1785 = vmatpush1.msra.mxu0 %v534
    %1786 = vmatprep.subr.mxu0 0.0
    %1787 = vmatpush1.msra.mxu0 %v535
    %1788 = vmatprep.subr.mxu0 0.0
    %1789 = vmatpush1.msra.mxu0 0.0
    %1790 = vmatprep.subr.mxu0 0.0
    %1791 = vmatpush1.msra.mxu0 0.0
    %1792 = vmatprep.subr.mxu0 0.0
    %1793 = vmatpush1.msra.mxu0 0.0
    %1794 = vmatprep.subr.mxu0 0.0
    %1795 = vmatpush1.msra.mxu0 0.0
    %1796 = vmatprep.subr.mxu0 0.0
    %1797 = vmatpush1.msra.mxu0 0.0
    %1798 = vmatprep.subr.mxu0 0.0
    %1799 = vmatpush1.msra.mxu0 0.0
    %1800 = vmatprep.subr.mxu0 0.0
    %1801 = vmatpush1.msra.mxu0 0.0
    %1802 = vmatprep.subr.mxu0 0.0
    %1803 = vmatpush1.msra.mxu0 0.0
    %1804 = vmatprep.subr.mxu0 0.0
    %1805 = vmatpush1.msra.mxu0 0.0
    %1806 = vmatprep.subr.mxu0 0.0
    %1807 = vmatpush1.msra.mxu0 0.0
    %1808 = vmatprep.subr.mxu0 0.0
    %1809 = vmatpush1.msra.mxu0 0.0
    %1810 = vmatprep.subr.mxu0 0.0
    %1811 = vmatpush1.msra.mxu0 0.0
    %1812 = vmatprep.subr.mxu0 0.0
    %1813 = vmatpush1.msra.mxu0 0.0
    %1814 = vmatprep.subr.mxu0 0.0
    %1815 = vmatpush1.msra.mxu0 0.0
    %1816 = vmatprep.subr.mxu0 0.0
    %1817 = vmatpush1.msra.mxu0 0.0
    %1818 = vmatprep.subr.mxu0 0.0
    %1819 = vmatpush1.msra.mxu0 0.0
    %1820 = vmatprep.subr.mxu0 0.0
    %1821 = vmatpush1.msra.mxu0 0.0
    %1822 = vmatprep.subr.mxu0 0.0
    %1823 = vmatpush1.msra.mxu0 0.0
    %1824 = vmatprep.subr.mxu0 0.0
    %1825 = vmatpush1.msra.mxu0 0.0
    %1826 = vmatprep.subr.mxu0 0.0
    %1827 = vmatpush1.msra.mxu0 0.0
    %1828 = vmatprep.subr.mxu0 0.0
    %1829 = vmatpush1.msra.mxu0 0.0
    %1830 = vmatprep.subr.mxu0 0.0
    %1831 = vmatpush1.msra.mxu0 0.0
    %1832 = vmatprep.subr.mxu0 0.0
    %1833 = vmatpush1.msra.mxu0 0.0
    %1834 = vmatprep.subr.mxu0 0.0
    %1835 = vmatpush1.msra.mxu0 0.0
    %1836 = vmatprep.mubr.f32.mxu0 0.0
    %1837 = vmatmul.mubr.f32.gmra.mrb[0].mxu0 %v1768
    %v1838 = vpop.f32.mrb[0].mxu0
    %v1839 = vadd.f32 0.0, %v1838
    %v1840 = vpop.f32.mrb[0].mxu0
    %1841 = vmatprep.mubr.f32.mxu0 0.0
    %1842 = vmatmul.mubr.f32.gmra.mrb[0].mxu0 %v1770
    %v1843 = vpop.f32.mrb[0].mxu0
    %v1844 = vadd.f32 0.0, %v1843
    %v1845 = vpop.f32.mrb[0].mxu0
    %1846 = vdwg.mxu0
    %v1848 = vsel %vm536, %v1763, 0
    %v1850 = vsel %vm536, %v1761, 0
    %1852 = vmatprep.subr.mxu0 0.0
    %1853 = vmatpush1.msra.mxu0 %v519
    %1854 = vmatprep.subr.mxu0 0.0
    %1855 = vmatpush1.msra.mxu0 %v520
    %1856 = vmatprep.subr.mxu0 0.0
    %1857 = vmatpush1.msra.mxu0 %v521
    %1858 = vmatprep.subr.mxu0 0.0
    %1859 = vmatpush1.msra.mxu0 %v522
    %1860 = vmatprep.subr.mxu0 0.0
    %1861 = vmatpush1.msra.mxu0 %v523
    %1862 = vmatprep.subr.mxu0 0.0
    %1863 = vmatpush1.msra.mxu0 %v524
    %1864 = vmatprep.subr.mxu0 0.0
    %1865 = vmatpush1.msra.mxu0 %v525
    %1866 = vmatprep.subr.mxu0 0.0
    %1867 = vmatpush1.msra.mxu0 %v526
    %1868 = vmatprep.subr.mxu0 0.0
    %1869 = vmatpush1.msra.mxu0 0.0
    %1870 = vmatprep.subr.mxu0 0.0
    %1871 = vmatpush1.msra.mxu0 0.0
    %1872 = vmatprep.subr.mxu0 0.0
    %1873 = vmatpush1.msra.mxu0 0.0
    %1874 = vmatprep.subr.mxu0 0.0
    %1875 = vmatpush1.msra.mxu0 0.0
    %1876 = vmatprep.subr.mxu0 0.0
    %1877 = vmatpush1.msra.mxu0 0.0
    %1878 = vmatprep.subr.mxu0 0.0
    %1879 = vmatpush1.msra.mxu0 0.0
    %1880 = vmatprep.subr.mxu0 0.0
    %1881 = vmatpush1.msra.mxu0 0.0
    %1882 = vmatprep.subr.mxu0 0.0
    %1883 = vmatpush1.msra.mxu0 0.0
    %1884 = vmatprep.subr.mxu0 0.0
    %1885 = vmatpush1.msra.mxu0 0.0
    %1886 = vmatprep.subr.mxu0 0.0
    %1887 = vmatpush1.msra.mxu0 0.0
    %1888 = vmatprep.subr.mxu0 0.0
    %1889 = vmatpush1.msra.mxu0 0.0
    %1890 = vmatprep.subr.mxu0 0.0
    %1891 = vmatpush1.msra.mxu0 0.0
    %1892 = vmatprep.subr.mxu0 0.0
    %1893 = vmatpush1.msra.mxu0 0.0
    %1894 = vmatprep.subr.mxu0 0.0
    %1895 = vmatpush1.msra.mxu0 0.0
    %1896 = vmatprep.subr.mxu0 0.0
    %1897 = vmatpush1.msra.mxu0 0.0
    %1898 = vmatprep.subr.mxu0 0.0
    %1899 = vmatpush1.msra.mxu0 0.0
    %1900 = vmatprep.subr.mxu0 0.0
    %1901 = vmatpush1.msra.mxu0 0.0
    %1902 = vmatprep.subr.mxu0 0.0
    %1903 = vmatpush1.msra.mxu0 0.0
    %1904 = vmatprep.subr.mxu0 0.0
    %1905 = vmatpush1.msra.mxu0 0.0
    %1906 = vmatprep.subr.mxu0 0.0
    %1907 = vmatpush1.msra.mxu0 0.0
    %1908 = vmatprep.subr.mxu0 0.0
    %1909 = vmatpush1.msra.mxu0 0.0
    %1910 = vmatprep.subr.mxu0 0.0
    %1911 = vmatpush1.msra.mxu0 0.0
    %1912 = vmatprep.subr.mxu0 0.0
    %1913 = vmatpush1.msra.mxu0 0.0
    %1914 = vmatprep.subr.mxu0 0.0
    %1915 = vmatpush1.msra.mxu0 0.0
    %1916 = vmatprep.mubr.f32.mxu0 0.0
    %1917 = vmatmul.mubr.f32.gmra.mrb[0].mxu0 %v1848
    %v1918 = vpop.f32.mrb[0].mxu0
    %v1919 = vadd.f32 %v1839, %v1918
    %v1920 = vpop.f32.mrb[0].mxu0
    %1921 = vmatprep.mubr.f32.mxu0 0.0
    %1922 = vmatmul.mubr.f32.gmra.mrb[0].mxu0 %v1850
    %v1923 = vpop.f32.mrb[0].mxu0
    %v1924 = vadd.f32 %v1844, %v1923
    %v1925 = vpop.f32.mrb[0].mxu0
    %1926 = vdwg.mxu0
    %v1927 = vsel %vm536, %v1767, 0
    %1929 = vmatprep.subr.mxu0 0.0
    %1930 = vmatpush1.msra.mxu0 %v697
    %1931 = vmatprep.subr.mxu0 0.0
    %1932 = vmatpush1.msra.mxu0 %v698
    %1933 = vmatprep.subr.mxu0 0.0
    %1934 = vmatpush1.msra.mxu0 %v699
    %1935 = vmatprep.subr.mxu0 0.0
    %1936 = vmatpush1.msra.mxu0 %v700
    %1937 = vmatprep.subr.mxu0 0.0
    %1938 = vmatpush1.msra.mxu0 %v701
    %1939 = vmatprep.subr.mxu0 0.0
    %1940 = vmatpush1.msra.mxu0 %v702
    %1941 = vmatprep.subr.mxu0 0.0
    %1942 = vmatpush1.msra.mxu0 %v703
    %1943 = vmatprep.subr.mxu0 0.0
    %1944 = vmatpush1.msra.mxu0 %v704
    %1945 = vmatprep.subr.mxu0 0.0
    %1946 = vmatpush1.msra.mxu0 0.0
    %1947 = vmatprep.subr.mxu0 0.0
    %1948 = vmatpush1.msra.mxu0 0.0
    %1949 = vmatprep.subr.mxu0 0.0
    %1950 = vmatpush1.msra.mxu0 0.0
    %1951 = vmatprep.subr.mxu0 0.0
    %1952 = vmatpush1.msra.mxu0 0.0
    %1953 = vmatprep.subr.mxu0 0.0
    %1954 = vmatpush1.msra.mxu0 0.0
    %1955 = vmatprep.subr.mxu0 0.0
    %1956 = vmatpush1.msra.mxu0 0.0
    %1957 = vmatprep.subr.mxu0 0.0
    %1958 = vmatpush1.msra.mxu0 0.0
    %1959 = vmatprep.subr.mxu0 0.0
    %1960 = vmatpush1.msra.mxu0 0.0
    %1961 = vmatprep.subr.mxu0 0.0
    %1962 = vmatpush1.msra.mxu0 0.0
    %1963 = vmatprep.subr.mxu0 0.0
    %1964 = vmatpush1.msra.mxu0 0.0
    %1965 = vmatprep.subr.mxu0 0.0
    %1966 = vmatpush1.msra.mxu0 0.0
    %1967 = vmatprep.subr.mxu0 0.0
    %1968 = vmatpush1.msra.mxu0 0.0
    %1969 = vmatprep.subr.mxu0 0.0
    %1970 = vmatpush1.msra.mxu0 0.0
    %1971 = vmatprep.subr.mxu0 0.0
    %1972 = vmatpush1.msra.mxu0 0.0
    %1973 = vmatprep.subr.mxu0 0.0
    %1974 = vmatpush1.msra.mxu0 0.0
    %1975 = vmatprep.subr.mxu0 0.0
    %1976 = vmatpush1.msra.mxu0 0.0
    %1977 = vmatprep.subr.mxu0 0.0
    %1978 = vmatpush1.msra.mxu0 0.0
    %1979 = vmatprep.subr.mxu0 0.0
    %1980 = vmatpush1.msra.mxu0 0.0
    %1981 = vmatprep.subr.mxu0 0.0
    %1982 = vmatpush1.msra.mxu0 0.0
    %1983 = vmatprep.subr.mxu0 0.0
    %1984 = vmatpush1.msra.mxu0 0.0
    %1985 = vmatprep.subr.mxu0 0.0
    %1986 = vmatpush1.msra.mxu0 0.0
    %1987 = vmatprep.subr.mxu0 0.0
    %1988 = vmatpush1.msra.mxu0 0.0
    %1989 = vmatprep.subr.mxu0 0.0
    %1990 = vmatpush1.msra.mxu0 0.0
    %1991 = vmatprep.subr.mxu0 0.0
    %1992 = vmatpush1.msra.mxu0 0.0
    %1993 = vmatprep.mubr.f32.mxu0 0.0
    %1994 = vmatmul.mubr.f32.gmra.mrb[0].mxu0 %v1927
    %v1995 = vpop.f32.mrb[0].mxu0
    %v1996 = vadd.f32 0.0, %v1995
    %v1997 = vpop.f32.mrb[0].mxu0
    %1998 = vmatprep.mubr.f32.mxu0 0.0
    %1999 = vmatmul.mubr.f32.gmra.mrb[0].mxu0 %v708
    %v2000 = vpop.f32.mrb[0].mxu0
    %v2001 = vadd.f32 0.0, %v2000
    %v2002 = vpop.f32.mrb[0].mxu0
    %2003 = vdwg.mxu0
    %v2004 = vadd.f32 %v1919, %v1996
    %v2005 = vadd.f32 %v1924, %v2001
    %v2006 = vadd.f32 %v2004, %v792
    %v2007 = vadd.f32 %v2005, %v792
    %v2008 = vmax.f32 %v2006, 0.0
    %v2009 = vmax.f32 %v2007, 0.0
    %v2011 = vsel %vm536, %v2008, 0
    %v2014 = vsel %vm536, %v2009, 0
    %2016 = vmatprep.subr.mxu0 0.0
    %2017 = vmatpush1.msra.mxu0 %v798
    %2018 = vmatprep.subr.mxu0 0.0
    %2019 = vmatpush1.msra.mxu0 %v799
    %2020 = vmatprep.subr.mxu0 0.0
    %2021 = vmatpush1.msra.mxu0 %v800
    %2022 = vmatprep.subr.mxu0 0.0
    %2023 = vmatpush1.msra.mxu0 %v801
    %2024 = vmatprep.subr.mxu0 0.0
    %2025 = vmatpush1.msra.mxu0 %v802
    %2026 = vmatprep.subr.mxu0 0.0
    %2027 = vmatpush1.msra.mxu0 %v803
    %2028 = vmatprep.subr.mxu0 0.0
    %2029 = vmatpush1.msra.mxu0 %v804
    %2030 = vmatprep.subr.mxu0 0.0
    %2031 = vmatpush1.msra.mxu0 %v805
    %2032 = vmatprep.subr.mxu0 0.0
    %2033 = vmatpush1.msra.mxu0 0.0
    %2034 = vmatprep.subr.mxu0 0.0
    %2035 = vmatpush1.msra.mxu0 0.0
    %2036 = vmatprep.subr.mxu0 0.0
    %2037 = vmatpush1.msra.mxu0 0.0
    %2038 = vmatprep.subr.mxu0 0.0
    %2039 = vmatpush1.msra.mxu0 0.0
    %2040 = vmatprep.subr.mxu0 0.0
    %2041 = vmatpush1.msra.mxu0 0.0
    %2042 = vmatprep.subr.mxu0 0.0
    %2043 = vmatpush1.msra.mxu0 0.0
    %2044 = vmatprep.subr.mxu0 0.0
    %2045 = vmatpush1.msra.mxu0 0.0
    %2046 = vmatprep.subr.mxu0 0.0
    %2047 = vmatpush1.msra.mxu0 0.0
    %2048 = vmatprep.subr.mxu0 0.0
    %2049 = vmatpush1.msra.mxu0 0.0
    %2050 = vmatprep.subr.mxu0 0.0
    %2051 = vmatpush1.msra.mxu0 0.0
    %2052 = vmatprep.subr.mxu0 0.0
    %2053 = vmatpush1.msra.mxu0 0.0
    %2054 = vmatprep.subr.mxu0 0.0
    %2055 = vmatpush1.msra.mxu0 0.0
    %2056 = vmatprep.subr.mxu0 0.0
    %2057 = vmatpush1.msra.mxu0 0.0
    %2058 = vmatprep.subr.mxu0 0.0
    %2059 = vmatpush1.msra.mxu0 0.0
    %2060 = vmatprep.subr.mxu0 0.0
    %2061 = vmatpush1.msra.mxu0 0.0
    %2062 = vmatprep.subr.mxu0 0.0
    %2063 = vmatpush1.msra.mxu0 0.0
    %2064 = vmatprep.subr.mxu0 0.0
    %2065 = vmatpush1.msra.mxu0 0.0
    %2066 = vmatprep.subr.mxu0 0.0
    %2067 = vmatpush1.msra.mxu0 0.0
    %2068 = vmatprep.subr.mxu0 0.0
    %2069 = vmatpush1.msra.mxu0 0.0
    %2070 = vmatprep.subr.mxu0 0.0
    %2071 = vmatpush1.msra.mxu0 0.0
    %2072 = vmatprep.subr.mxu0 0.0
    %2073 = vmatpush1.msra.mxu0 0.0
    %2074 = vmatprep.subr.mxu0 0.0
    %2075 = vmatpush1.msra.mxu0 0.0
    %2076 = vmatprep.subr.mxu0 0.0
    %2077 = vmatpush1.msra.mxu0 0.0
    %2078 = vmatprep.subr.mxu0 0.0
    %2079 = vmatpush1.msra.mxu0 0.0
    %2080 = vmatprep.mubr.f32.mxu0 0.0
    %2081 = vmatmul.mubr.f32.gmra.mrb[0].mxu0 %v2011
    %v2082 = vpop.f32.mrb[0].mxu0
    %v2083 = vadd.f32 %v811, %v2082
    %v2084 = vpop.f32.mrb[0].mxu0
    %2085 = vmatprep.mubr.f32.mxu0 0.0
    %2086 = vmatmul.mubr.f32.gmra.mrb[0].mxu0 %v2014
    %v2087 = vpop.f32.mrb[0].mxu0
    %v2088 = vpop.f32.mrb[0].mxu0
    %2089 = vdwg.mxu0
    %v2090 = vmax.f32 %v2083, 0.0
    %v2092 = vrot.slane %v2090, 1
    %v2094 = vmax.f32 %v2090, %v2092
    %v2096 = vrot.slane %v2094, 1
    %v2098 = vrot.slane %v2094, 2
    %v2100 = vrot.slane %v2094, 3
    %v2102 = vsel %vm512, %v2094, %v2096
    %v2103 = vsel %vm906, %v2102, %v2098
    %v2104 = vsel %vm908, %v2103, %v2100
    %v2106 = vrot.slane %v2104, 7
    %v2108 = vsel %vm512, 0.0, %v2106
    %v2109 = vrot.slane %v2104, 1
    %v2111 = vsel %vm908, %v2109, 0.0
    %2112 = vmatprep.subr.mxu0 0.0
    %2113 = vmatpush1.msra.mxu0 %v934
    %2114 = vmatprep.subr.mxu0 0.0
    %2115 = vmatpush1.msra.mxu0 %v935
    %2116 = vmatprep.subr.mxu0 0.0
    %2117 = vmatpush1.msra.mxu0 %v936
    %2118 = vmatprep.subr.mxu0 0.0
    %2119 = vmatpush1.msra.mxu0 %v937
    %2120 = vmatprep.subr.mxu0 0.0
    %2121 = vmatpush1.msra.mxu0 %v938
    %2122 = vmatprep.subr.mxu0 0.0
    %2123 = vmatpush1.msra.mxu0 %v939
    %2124 = vmatprep.subr.mxu0 0.0
    %2125 = vmatpush1.msra.mxu0 %v940
    %2126 = vmatprep.subr.mxu0 0.0
    %2127 = vmatpush1.msra.mxu0 %v941
    %2128 = vmatprep.subr.mxu0 0.0
    %2129 = vmatpush1.msra.mxu0 %v942
    %2130 = vmatprep.subr.mxu0 0.0
    %2131 = vmatpush1.msra.mxu0 %v943
    %2132 = vmatprep.subr.mxu0 0.0
    %2133 = vmatpush1.msra.mxu0 %v944
    %2134 = vmatprep.subr.mxu0 0.0
    %2135 = vmatpush1.msra.mxu0 %v945
    %2136 = vmatprep.subr.mxu0 0.0
    %2137 = vmatpush1.msra.mxu0 %v946
    %2138 = vmatprep.subr.mxu0 0.0
    %2139 = vmatpush1.msra.mxu0 %v947
    %2140 = vmatprep.subr.mxu0 0.0
    %2141 = vmatpush1.msra.mxu0 %v948
    %2142 = vmatprep.subr.mxu0 0.0
    %2143 = vmatpush1.msra.mxu0 %v949
    %2144 = vmatprep.subr.mxu0 0.0
    %2145 = vmatpush1.msra.mxu0 0.0
    %2146 = vmatprep.subr.mxu0 0.0
    %2147 = vmatpush1.msra.mxu0 0.0
    %2148 = vmatprep.subr.mxu0 0.0
    %2149 = vmatpush1.msra.mxu0 0.0
    %2150 = vmatprep.subr.mxu0 0.0
    %2151 = vmatpush1.msra.mxu0 0.0
    %2152 = vmatprep.subr.mxu0 0.0
    %2153 = vmatpush1.msra.mxu0 0.0
    %2154 = vmatprep.subr.mxu0 0.0
    %2155 = vmatpush1.msra.mxu0 0.0
    %2156 = vmatprep.subr.mxu0 0.0
    %2157 = vmatpush1.msra.mxu0 0.0
    %2158 = vmatprep.subr.mxu0 0.0
    %2159 = vmatpush1.msra.mxu0 0.0
    %2160 = vmatprep.subr.mxu0 0.0
    %2161 = vmatpush1.msra.mxu0 0.0
    %2162 = vmatprep.subr.mxu0 0.0
    %2163 = vmatpush1.msra.mxu0 0.0
    %2164 = vmatprep.subr.mxu0 0.0
    %2165 = vmatpush1.msra.mxu0 0.0
    %2166 = vmatprep.subr.mxu0 0.0
    %2167 = vmatpush1.msra.mxu0 0.0
    %2168 = vmatprep.subr.mxu0 0.0
    %2169 = vmatpush1.msra.mxu0 0.0
    %2170 = vmatprep.subr.mxu0 0.0
    %2171 = vmatpush1.msra.mxu0 0.0
    %2172 = vmatprep.subr.mxu0 0.0
    %2173 = vmatpush1.msra.mxu0 0.0
    %2174 = vmatprep.subr.mxu0 0.0
    %2175 = vmatpush1.msra.mxu0 0.0
    %2176 = vmatprep.mubr.f32.mxu0 0.0
    %2177 = vmatmul.mubr.f32.gmra.mrb[0].mxu0 %v2104
    %v2178 = vpop.f32.mrb[0].mxu0
    %v2179 = vadd.f32 0.0, %v2178
    %v2180 = vpop.f32.mrb[0].mxu0
    %2181 = vdwg.mxu0
    %2182 = vmatprep.subr.mxu0 0.0
    %2183 = vmatpush1.msra.mxu0 %v917
    %2184 = vmatprep.subr.mxu0 0.0
    %2185 = vmatpush1.msra.mxu0 %v918
    %2186 = vmatprep.subr.mxu0 0.0
    %2187 = vmatpush1.msra.mxu0 %v919
    %2188 = vmatprep.subr.mxu0 0.0
    %2189 = vmatpush1.msra.mxu0 %v920
    %2190 = vmatprep.subr.mxu0 0.0
    %2191 = vmatpush1.msra.mxu0 %v921
    %2192 = vmatprep.subr.mxu0 0.0
    %2193 = vmatpush1.msra.mxu0 %v922
    %2194 = vmatprep.subr.mxu0 0.0
    %2195 = vmatpush1.msra.mxu0 %v923
    %2196 = vmatprep.subr.mxu0 0.0
    %2197 = vmatpush1.msra.mxu0 %v924
    %2198 = vmatprep.subr.mxu0 0.0
    %2199 = vmatpush1.msra.mxu0 %v925
    %2200 = vmatprep.subr.mxu0 0.0
    %2201 = vmatpush1.msra.mxu0 %v926
    %2202 = vmatprep.subr.mxu0 0.0
    %2203 = vmatpush1.msra.mxu0 %v927
    %2204 = vmatprep.subr.mxu0 0.0
    %2205 = vmatpush1.msra.mxu0 %v928
    %2206 = vmatprep.subr.mxu0 0.0
    %2207 = vmatpush1.msra.mxu0 %v929
    %2208 = vmatprep.subr.mxu0 0.0
    %2209 = vmatpush1.msra.mxu0 %v930
    %2210 = vmatprep.subr.mxu0 0.0
    %2211 = vmatpush1.msra.mxu0 %v931
    %2212 = vmatprep.subr.mxu0 0.0
    %2213 = vmatpush1.msra.mxu0 %v932
    %2214 = vmatprep.subr.mxu0 0.0
    %2215 = vmatpush1.msra.mxu0 0.0
    %2216 = vmatprep.subr.mxu0 0.0
    %2217 = vmatpush1.msra.mxu0 0.0
    %2218 = vmatprep.subr.mxu0 0.0
    %2219 = vmatpush1.msra.mxu0 0.0
    %2220 = vmatprep.subr.mxu0 0.0
    %2221 = vmatpush1.msra.mxu0 0.0
    %2222 = vmatprep.subr.mxu0 0.0
    %2223 = vmatpush1.msra.mxu0 0.0
    %2224 = vmatprep.subr.mxu0 0.0
    %2225 = vmatpush1.msra.mxu0 0.0
    %2226 = vmatprep.subr.mxu0 0.0
    %2227 = vmatpush1.msra.mxu0 0.0
    %2228 = vmatprep.subr.mxu0 0.0
    %2229 = vmatpush1.msra.mxu0 0.0
    %2230 = vmatprep.subr.mxu0 0.0
    %2231 = vmatpush1.msra.mxu0 0.0
    %2232 = vmatprep.subr.mxu0 0.0
    %2233 = vmatpush1.msra.mxu0 0.0
    %2234 = vmatprep.subr.mxu0 0.0
    %2235 = vmatpush1.msra.mxu0 0.0
    %2236 = vmatprep.subr.mxu0 0.0
    %2237 = vmatpush1.msra.mxu0 0.0
    %2238 = vmatprep.subr.mxu0 0.0
    %2239 = vmatpush1.msra.mxu0 0.0
    %2240 = vmatprep.subr.mxu0 0.0
    %2241 = vmatpush1.msra.mxu0 0.0
    %2242 = vmatprep.subr.mxu0 0.0
    %2243 = vmatpush1.msra.mxu0 0.0
    %2244 = vmatprep.subr.mxu0 0.0
    %2245 = vmatpush1.msra.mxu0 0.0
    %2246 = vmatprep.mubr.f32.mxu0 0.0
    %2247 = vmatmul.mubr.f32.gmra.mrb[0].mxu0 %v2108
    %v2248 = vpop.f32.mrb[0].mxu0
    %v2249 = vadd.f32 %v2179, %v2248
    %v2250 = vpop.f32.mrb[0].mxu0
    %2251 = vdwg.mxu0
    %2252 = vmatprep.subr.mxu0 0.0
    %2253 = vmatpush1.msra.mxu0 %v1091
    %2254 = vmatprep.subr.mxu0 0.0
    %2255 = vmatpush1.msra.mxu0 %v1092
    %2256 = vmatprep.subr.mxu0 0.0
    %2257 = vmatpush1.msra.mxu0 %v1093
    %2258 = vmatprep.subr.mxu0 0.0
    %2259 = vmatpush1.msra.mxu0 %v1094
    %2260 = vmatprep.subr.mxu0 0.0
    %2261 = vmatpush1.msra.mxu0 %v1095
    %2262 = vmatprep.subr.mxu0 0.0
    %2263 = vmatpush1.msra.mxu0 %v1096
    %2264 = vmatprep.subr.mxu0 0.0
    %2265 = vmatpush1.msra.mxu0 %v1097
    %2266 = vmatprep.subr.mxu0 0.0
    %2267 = vmatpush1.msra.mxu0 %v1098
    %2268 = vmatprep.subr.mxu0 0.0
    %2269 = vmatpush1.msra.mxu0 %v1099
    %2270 = vmatprep.subr.mxu0 0.0
    %2271 = vmatpush1.msra.mxu0 %v1100
    %2272 = vmatprep.subr.mxu0 0.0
    %2273 = vmatpush1.msra.mxu0 %v1101
    %2274 = vmatprep.subr.mxu0 0.0
    %2275 = vmatpush1.msra.mxu0 %v1102
    %2276 = vmatprep.subr.mxu0 0.0
    %2277 = vmatpush1.msra.mxu0 %v1103
    %2278 = vmatprep.subr.mxu0 0.0
    %2279 = vmatpush1.msra.mxu0 %v1104
    %2280 = vmatprep.subr.mxu0 0.0
    %2281 = vmatpush1.msra.mxu0 %v1105
    %2282 = vmatprep.subr.mxu0 0.0
    %2283 = vmatpush1.msra.mxu0 %v1106
    %2284 = vmatprep.subr.mxu0 0.0
    %2285 = vmatpush1.msra.mxu0 0.0
    %2286 = vmatprep.subr.mxu0 0.0
    %2287 = vmatpush1.msra.mxu0 0.0
    %2288 = vmatprep.subr.mxu0 0.0
    %2289 = vmatpush1.msra.mxu0 0.0
    %2290 = vmatprep.subr.mxu0 0.0
    %2291 = vmatpush1.msra.mxu0 0.0
    %2292 = vmatprep.subr.mxu0 0.0
    %2293 = vmatpush1.msra.mxu0 0.0
    %2294 = vmatprep.subr.mxu0 0.0
    %2295 = vmatpush1.msra.mxu0 0.0
    %2296 = vmatprep.subr.mxu0 0.0
    %2297 = vmatpush1.msra.mxu0 0.0
    %2298 = vmatprep.subr.mxu0 0.0
    %2299 = vmatpush1.msra.mxu0 0.0
    %2300 = vmatprep.subr.mxu0 0.0
    %2301 = vmatpush1.msra.mxu0 0.0
    %2302 = vmatprep.subr.mxu0 0.0
    %2303 = vmatpush1.msra.mxu0 0.0
    %2304 = vmatprep.subr.mxu0 0.0
    %2305 = vmatpush1.msra.mxu0 0.0
    %2306 = vmatprep.subr.mxu0 0.0
    %2307 = vmatpush1.msra.mxu0 0.0
    %2308 = vmatprep.subr.mxu0 0.0
    %2309 = vmatpush1.msra.mxu0 0.0
    %2310 = vmatprep.subr.mxu0 0.0
    %2311 = vmatpush1.msra.mxu0 0.0
    %2312 = vmatprep.subr.mxu0 0.0
    %2313 = vmatpush1.msra.mxu0 0.0
    %2314 = vmatprep.subr.mxu0 0.0
    %2315 = vmatpush1.msra.mxu0 0.0
    %2316 = vmatprep.mubr.f32.mxu0 0.0
    %2317 = vmatmul.mubr.f32.gmra.mrb[0].mxu0 %v2111
    %v2318 = vpop.f32.mrb[0].mxu0
    %v2319 = vadd.f32 0.0, %v2318
    %v2320 = vpop.f32.mrb[0].mxu0
    %2321 = vdwg.mxu0
    %v2322 = vadd.f32 %v2249, %v2319
    %v2323 = vadd.f32 %v2322, %v1183
    %v2324 = vmax.f32 %v2323, 0.0
    %v2326 = vrot.slane %v2324, 7
    %v2328 = vsel %vm512, 0.0, %v2326
    %v2329 = vrot.slane %v2324, 1
    %v2331 = vsel %vm908, %v2329, 0.0
    %v2332 = vsel %vm536, %v2324, 0
    %2334 = vmatprep.subr.mxu0 0.0
    %2335 = vmatpush1.msra.mxu0 %v1203
    %2336 = vmatprep.subr.mxu0 0.0
    %2337 = vmatpush1.msra.mxu0 %v1204
    %2338 = vmatprep.subr.mxu0 0.0
    %2339 = vmatpush1.msra.mxu0 %v1205
    %2340 = vmatprep.subr.mxu0 0.0
    %2341 = vmatpush1.msra.mxu0 %v1206
    %2342 = vmatprep.subr.mxu0 0.0
    %2343 = vmatpush1.msra.mxu0 %v1207
    %2344 = vmatprep.subr.mxu0 0.0
    %2345 = vmatpush1.msra.mxu0 %v1208
    %2346 = vmatprep.subr.mxu0 0.0
    %2347 = vmatpush1.msra.mxu0 %v1209
    %2348 = vmatprep.subr.mxu0 0.0
    %2349 = vmatpush1.msra.mxu0 %v1210
    %2350 = vmatprep.subr.mxu0 0.0
    %2351 = vmatpush1.msra.mxu0 0.0
    %2352 = vmatprep.subr.mxu0 0.0
    %2353 = vmatpush1.msra.mxu0 0.0
    %2354 = vmatprep.subr.mxu0 0.0
    %2355 = vmatpush1.msra.mxu0 0.0
    %2356 = vmatprep.subr.mxu0 0.0
    %2357 = vmatpush1.msra.mxu0 0.0
    %2358 = vmatprep.subr.mxu0 0.0
    %2359 = vmatpush1.msra.mxu0 0.0
    %2360 = vmatprep.subr.mxu0 0.0
    %2361 = vmatpush1.msra.mxu0 0.0
    %2362 = vmatprep.subr.mxu0 0.0
    %2363 = vmatpush1.msra.mxu0 0.0
    %2364 = vmatprep.subr.mxu0 0.0
    %2365 = vmatpush1.msra.mxu0 0.0
    %2366 = vmatprep.subr.mxu0 0.0
    %2367 = vmatpush1.msra.mxu0 0.0
    %2368 = vmatprep.subr.mxu0 0.0
    %2369 = vmatpush1.msra.mxu0 0.0
    %2370 = vmatprep.subr.mxu0 0.0
    %2371 = vmatpush1.msra.mxu0 0.0
    %2372 = vmatprep.subr.mxu0 0.0
    %2373 = vmatpush1.msra.mxu0 0.0
    %2374 = vmatprep.subr.mxu0 0.0
    %2375 = vmatpush1.msra.mxu0 0.0
    %2376 = vmatprep.subr.mxu0 0.0
    %2377 = vmatpush1.msra.mxu0 0.0
    %2378 = vmatprep.subr.mxu0 0.0
    %2379 = vmatpush1.msra.mxu0 0.0
    %2380 = vmatprep.subr.mxu0 0.0
    %2381 = vmatpush1.msra.mxu0 0.0
    %2382 = vmatprep.subr.mxu0 0.0
    %2383 = vmatpush1.msra.mxu0 0.0
    %2384 = vmatprep.subr.mxu0 0.0
    %2385 = vmatpush1.msra.mxu0 0.0
    %2386 = vmatprep.subr.mxu0 0.0
    %2387 = vmatpush1.msra.mxu0 0.0
    %2388 = vmatprep.subr.mxu0 0.0
    %2389 = vmatpush1.msra.mxu0 0.0
    %2390 = vmatprep.subr.mxu0 0.0
    %2391 = vmatpush1.msra.mxu0 0.0
    %2392 = vmatprep.subr.mxu0 0.0
    %2393 = vmatpush1.msra.mxu0 0.0
    %2394 = vmatprep.subr.mxu0 0.0
    %2395 = vmatpush1.msra.mxu0 0.0
    %2396 = vmatprep.subr.mxu0 0.0
    %2397 = vmatpush1.msra.mxu0 0.0
    %2398 = vmatprep.mubr.f32.mxu0 0.0
    %2399 = vmatmul.mubr.f32.gmra.mrb[0].mxu0 %v2332
    %v2400 = vpop.f32.mrb[0].mxu0
    %v2401 = vadd.f32 0.0, %v2400
    %v2402 = vpop.f32.mrb[0].mxu0
    %2403 = vdwg.mxu0
    %v2405 = vsel %vm536, %v2328, 0
    %2407 = vmatprep.subr.mxu0 0.0
    %2408 = vmatpush1.msra.mxu0 %v1194
    %2409 = vmatprep.subr.mxu0 0.0
    %2410 = vmatpush1.msra.mxu0 %v1195
    %2411 = vmatprep.subr.mxu0 0.0
    %2412 = vmatpush1.msra.mxu0 %v1196
    %2413 = vmatprep.subr.mxu0 0.0
    %2414 = vmatpush1.msra.mxu0 %v1197
    %2415 = vmatprep.subr.mxu0 0.0
    %2416 = vmatpush1.msra.mxu0 %v1198
    %2417 = vmatprep.subr.mxu0 0.0
    %2418 = vmatpush1.msra.mxu0 %v1199
    %2419 = vmatprep.subr.mxu0 0.0
    %2420 = vmatpush1.msra.mxu0 %v1200
    %2421 = vmatprep.subr.mxu0 0.0
    %2422 = vmatpush1.msra.mxu0 %v1201
    %2423 = vmatprep.subr.mxu0 0.0
    %2424 = vmatpush1.msra.mxu0 0.0
    %2425 = vmatprep.subr.mxu0 0.0
    %2426 = vmatpush1.msra.mxu0 0.0
    %2427 = vmatprep.subr.mxu0 0.0
    %2428 = vmatpush1.msra.mxu0 0.0
    %2429 = vmatprep.subr.mxu0 0.0
    %2430 = vmatpush1.msra.mxu0 0.0
    %2431 = vmatprep.subr.mxu0 0.0
    %2432 = vmatpush1.msra.mxu0 0.0
    %2433 = vmatprep.subr.mxu0 0.0
    %2434 = vmatpush1.msra.mxu0 0.0
    %2435 = vmatprep.subr.mxu0 0.0
    %2436 = vmatpush1.msra.mxu0 0.0
    %2437 = vmatprep.subr.mxu0 0.0
    %2438 = vmatpush1.msra.mxu0 0.0
    %2439 = vmatprep.subr.mxu0 0.0
    %2440 = vmatpush1.msra.mxu0 0.0
    %2441 = vmatprep.subr.mxu0 0.0
    %2442 = vmatpush1.msra.mxu0 0.0
    %2443 = vmatprep.subr.mxu0 0.0
    %2444 = vmatpush1.msra.mxu0 0.0
    %2445 = vmatprep.subr.mxu0 0.0
    %2446 = vmatpush1.msra.mxu0 0.0
    %2447 = vmatprep.subr.mxu0 0.0
    %2448 = vmatpush1.msra.mxu0 0.0
    %2449 = vmatprep.subr.mxu0 0.0
    %2450 = vmatpush1.msra.mxu0 0.0
    %2451 = vmatprep.subr.mxu0 0.0
    %2452 = vmatpush1.msra.mxu0 0.0
    %2453 = vmatprep.subr.mxu0 0.0
    %2454 = vmatpush1.msra.mxu0 0.0
    %2455 = vmatprep.subr.mxu0 0.0
    %2456 = vmatpush1.msra.mxu0 0.0
    %2457 = vmatprep.subr.mxu0 0.0
    %2458 = vmatpush1.msra.mxu0 0.0
    %2459 = vmatprep.subr.mxu0 0.0
    %2460 = vmatpush1.msra.mxu0 0.0
    %2461 = vmatprep.subr.mxu0 0.0
    %2462 = vmatpush1.msra.mxu0 0.0
    %2463 = vmatprep.subr.mxu0 0.0
    %2464 = vmatpush1.msra.mxu0 0.0
    %2465 = vmatprep.subr.mxu0 0.0
    %2466 = vmatpush1.msra.mxu0 0.0
    %2467 = vmatprep.subr.mxu0 0.0
    %2468 = vmatpush1.msra.mxu0 0.0
    %2469 = vmatprep.subr.mxu0 0.0
    %2470 = vmatpush1.msra.mxu0 0.0
    %2471 = vmatprep.mubr.f32.mxu0 0.0
    %2472 = vmatmul.mubr.f32.gmra.mrb[0].mxu0 %v2405
    %v2473 = vpop.f32.mrb[0].mxu0
    %v2474 = vadd.f32 %v2401, %v2473
    %v2475 = vpop.f32.mrb[0].mxu0
    %2476 = vdwg.mxu0
    %v2478 = vsel %vm536, %v2331, 0
    %2480 = vmatprep.subr.mxu0 0.0
    %2481 = vmatpush1.msra.mxu0 %v1357
    %2482 = vmatprep.subr.mxu0 0.0
    %2483 = vmatpush1.msra.mxu0 %v1358
    %2484 = vmatprep.subr.mxu0 0.0
    %2485 = vmatpush1.msra.mxu0 %v1359
    %2486 = vmatprep.subr.mxu0 0.0
    %2487 = vmatpush1.msra.mxu0 %v1360
    %2488 = vmatprep.subr.mxu0 0.0
    %2489 = vmatpush1.msra.mxu0 %v1361
    %2490 = vmatprep.subr.mxu0 0.0
    %2491 = vmatpush1.msra.mxu0 %v1362
    %2492 = vmatprep.subr.mxu0 0.0
    %2493 = vmatpush1.msra.mxu0 %v1363
    %2494 = vmatprep.subr.mxu0 0.0
    %2495 = vmatpush1.msra.mxu0 %v1364
    %2496 = vmatprep.subr.mxu0 0.0
    %2497 = vmatpush1.msra.mxu0 0.0
    %2498 = vmatprep.subr.mxu0 0.0
    %2499 = vmatpush1.msra.mxu0 0.0
    %2500 = vmatprep.subr.mxu0 0.0
    %2501 = vmatpush1.msra.mxu0 0.0
    %2502 = vmatprep.subr.mxu0 0.0
    %2503 = vmatpush1.msra.mxu0 0.0
    %2504 = vmatprep.subr.mxu0 0.0
    %2505 = vmatpush1.msra.mxu0 0.0
    %2506 = vmatprep.subr.mxu0 0.0
    %2507 = vmatpush1.msra.mxu0 0.0
    %2508 = vmatprep.subr.mxu0 0.0
    %2509 = vmatpush1.msra.mxu0 0.0
    %2510 = vmatprep.subr.mxu0 0.0
    %2511 = vmatpush1.msra.mxu0 0.0
    %2512 = vmatprep.subr.mxu0 0.0
    %2513 = vmatpush1.msra.mxu0 0.0
    %2514 = vmatprep.subr.mxu0 0.0
    %2515 = vmatpush1.msra.mxu0 0.0
    %2516 = vmatprep.subr.mxu0 0.0
    %2517 = vmatpush1.msra.mxu0 0.0
    %2518 = vmatprep.subr.mxu0 0.0
    %2519 = vmatpush1.msra.mxu0 0.0
    %2520 = vmatprep.subr.mxu0 0.0
    %2521 = vmatpush1.msra.mxu0 0.0
    %2522 = vmatprep.subr.mxu0 0.0
    %2523 = vmatpush1.msra.mxu0 0.0
    %2524 = vmatprep.subr.mxu0 0.0
    %2525 = vmatpush1.msra.mxu0 0.0
    %2526 = vmatprep.subr.mxu0 0.0
    %2527 = vmatpush1.msra.mxu0 0.0
    %2528 = vmatprep.subr.mxu0 0.0
    %2529 = vmatpush1.msra.mxu0 0.0
    %2530 = vmatprep.subr.mxu0 0.0
    %2531 = vmatpush1.msra.mxu0 0.0
    %2532 = vmatprep.subr.mxu0 0.0
    %2533 = vmatpush1.msra.mxu0 0.0
    %2534 = vmatprep.subr.mxu0 0.0
    %2535 = vmatpush1.msra.mxu0 0.0
    %2536 = vmatprep.subr.mxu0 0.0
    %2537 = vmatpush1.msra.mxu0 0.0
    %2538 = vmatprep.subr.mxu0 0.0
    %2539 = vmatpush1.msra.mxu0 0.0
    %2540 = vmatprep.subr.mxu0 0.0
    %2541 = vmatpush1.msra.mxu0 0.0
    %2542 = vmatprep.subr.mxu0 0.0
    %2543 = vmatpush1.msra.mxu0 0.0
    %2544 = vmatprep.mubr.f32.mxu0 0.0
    %2545 = vmatmul.mubr.f32.gmra.mrb[0].mxu0 %v2478
    %v2546 = vpop.f32.mrb[0].mxu0
    %v2547 = vadd.f32 0.0, %v2546
    %v2548 = vpop.f32.mrb[0].mxu0
    %2549 = vdwg.mxu0
    %v2550 = vadd.f32 %v2474, %v2547
    %v2551 = vadd.f32 %v2550, %v1444
    %v2552 = vmax.f32 %v2551, 0.0
    %v2554 = vsel %vm536, %v2552, 0
    %2556 = vmatprep.subr.mxu0 0.0
    %2557 = vmatpush1.msra.mxu0 %v1448
    %2558 = vmatprep.subr.mxu0 0.0
    %2559 = vmatpush1.msra.mxu0 %v1449
    %2560 = vmatprep.subr.mxu0 0.0
    %2561 = vmatpush1.msra.mxu0 %v1450
    %2562 = vmatprep.subr.mxu0 0.0
    %2563 = vmatpush1.msra.mxu0 %v1451
    %2564 = vmatprep.subr.mxu0 0.0
    %2565 = vmatpush1.msra.mxu0 %v1452
    %2566 = vmatprep.subr.mxu0 0.0
    %2567 = vmatpush1.msra.mxu0 %v1453
    %2568 = vmatprep.subr.mxu0 0.0
    %2569 = vmatpush1.msra.mxu0 %v1454
    %2570 = vmatprep.subr.mxu0 0.0
    %2571 = vmatpush1.msra.mxu0 %v1455
    %2572 = vmatprep.subr.mxu0 0.0
    %2573 = vmatpush1.msra.mxu0 0.0
    %2574 = vmatprep.subr.mxu0 0.0
    %2575 = vmatpush1.msra.mxu0 0.0
    %2576 = vmatprep.subr.mxu0 0.0
    %2577 = vmatpush1.msra.mxu0 0.0
    %2578 = vmatprep.subr.mxu0 0.0
    %2579 = vmatpush1.msra.mxu0 0.0
    %2580 = vmatprep.subr.mxu0 0.0
    %2581 = vmatpush1.msra.mxu0 0.0
    %2582 = vmatprep.subr.mxu0 0.0
    %2583 = vmatpush1.msra.mxu0 0.0
    %2584 = vmatprep.subr.mxu0 0.0
    %2585 = vmatpush1.msra.mxu0 0.0
    %2586 = vmatprep.subr.mxu0 0.0
    %2587 = vmatpush1.msra.mxu0 0.0
    %2588 = vmatprep.subr.mxu0 0.0
    %2589 = vmatpush1.msra.mxu0 0.0
    %2590 = vmatprep.subr.mxu0 0.0
    %2591 = vmatpush1.msra.mxu0 0.0
    %2592 = vmatprep.subr.mxu0 0.0
    %2593 = vmatpush1.msra.mxu0 0.0
    %2594 = vmatprep.subr.mxu0 0.0
    %2595 = vmatpush1.msra.mxu0 0.0
    %2596 = vmatprep.subr.mxu0 0.0
    %2597 = vmatpush1.msra.mxu0 0.0
    %2598 = vmatprep.subr.mxu0 0.0
    %2599 = vmatpush1.msra.mxu0 0.0
    %2600 = vmatprep.subr.mxu0 0.0
    %2601 = vmatpush1.msra.mxu0 0.0
    %2602 = vmatprep.subr.mxu0 0.0
    %2603 = vmatpush1.msra.mxu0 0.0
    %2604 = vmatprep.subr.mxu0 0.0
    %2605 = vmatpush1.msra.mxu0 0.0
    %2606 = vmatprep.subr.mxu0 0.0
    %2607 = vmatpush1.msra.mxu0 0.0
    %2608 = vmatprep.subr.mxu0 0.0
    %2609 = vmatpush1.msra.mxu0 0.0
    %2610 = vmatprep.subr.mxu0 0.0
    %2611 = vmatpush1.msra.mxu0 0.0
    %2612 = vmatprep.subr.mxu0 0.0
    %2613 = vmatpush1.msra.mxu0 0.0
    %2614 = vmatprep.subr.mxu0 0.0
    %2615 = vmatpush1.msra.mxu0 0.0
    %2616 = vmatprep.subr.mxu0 0.0
    %2617 = vmatpush1.msra.mxu0 0.0
    %2618 = vmatprep.subr.mxu0 0.0
    %2619 = vmatpush1.msra.mxu0 0.0
    %2620 = vmatprep.mubr.f32.mxu0 0.0
    %2621 = vmatmul.mubr.f32.gmra.mrb[0].mxu0 %v2554
    %v2622 = vpop.f32.mrb[0].mxu0
    %v2623 = vadd.f32 %v1461, %v2622
    %v2624 = vpop.f32.mrb[0].mxu0
    %2625 = vdwg.mxu0
    %v2626 = vmax.f32 %v2623, 0.0
    %v2628 = vrot.slane %v2626, 1
    %v2630 = vmax.f32 %v2626, %v2628
    %v2632 = vrot.slane %v2630, 1
    %v2634 = vsel %vm512, %v2630, %v2632
    %2635 = vrot.lane.b32.xlu0 %v2008, 64
    %v2636 = vpop.permute.xlu0 %2635
    %2637 = vrot.lane.b32.xlu0 %v2009, 64
    %v2638 = vpop.permute.xlu0 %2637
    %v2641 = vsel %vm536, %v1758, %v2636
    %v2642 = vsel %vm536, %v1759, %v2638
    %2643 = vrot.lane.b32.xlu0 %v2552, 64
    %v2644 = vpop.permute.xlu0 %2643
    %v2646 = vsel %vm536, %v2324, %v2644
    %v2648 = vrot.slane %v1681, 1
    %v2649 = vrot.slane %v1681, 2
    %v2650 = vrot.slane %v1681, 3
    %v2651 = vrot.slane %v1681, 4
    %v2652 = vrot.slane %v1681, 5
    %v2653 = vrot.slane %v1681, 6
    %v2654 = vrot.slane %v1681, 7
    %v2656 = vrot.slane %v2641, 1
    %v2657 = vrot.slane %v2641, 2
    %v2658 = vrot.slane %v2641, 3
    %v2659 = vrot.slane %v2641, 4
    %v2660 = vrot.slane %v2641, 5
    %v2661 = vrot.slane %v2641, 6
    %v2662 = vrot.slane %v2641, 7
    %v2664 = vrot.slane %v2646, 1
    %v2665 = vrot.slane %v2646, 2
    %v2666 = vrot.slane %v2646, 3
    %v2668 = vrot.slane %v2634, 1
    %v2671 = vrot.slane %v2648, 7
    %v2672 = vrot.slane %v2649, 7
    %v2673 = vrot.slane %v2650, 7
    %v2674 = vrot.slane %v2651, 7
    %v2675 = vrot.slane %v2652, 7
    %v2676 = vrot.slane %v2653, 7
    %v2677 = vrot.slane %v2654, 7
    %v2678 = vrot.slane %v1682, 7
    %v2679 = vrot.slane %v2656, 7
    %v2680 = vrot.slane %v2657, 7
    %v2681 = vrot.slane %v2658, 7
    %v2682 = vrot.slane %v2659, 7
    %v2683 = vrot.slane %v2660, 7
    %v2684 = vrot.slane %v2661, 7
    %v2685 = vrot.slane %v2662, 7
    %v2686 = vrot.slane %v2642, 7
    %v2687 = vrot.slane %v2646, 7
    %v2688 = vrot.slane %v2664, 7
    %v2689 = vrot.slane %v2665, 7
    %v2690 = vrot.slane %v2666, 7
    %v2691 = vrot.slane %v2634, 7
    %v2692 = vrot.slane %v2668, 7
    %v2717 = vsel %vm512, %v407, %v2654
    %v2718 = vsel %vm512, %v1558, %v2671
    %v2719 = vsel %vm512, %v1560, %v2672
    %v2720 = vsel %vm512, %v1562, %v2673
    %v2721 = vsel %vm512, %v1564, %v2674
    %v2722 = vsel %vm512, %v1566, %v2675
    %v2723 = vsel %vm512, %v1568, %v2676
    %v2724 = vsel %vm512, %v1570, %v2677
    %v2725 = vsel %vm512, %v408, %v2678
    %v2726 = vsel %vm512, %v1551, %v2662
    %v2727 = vsel %vm512, %v1573, %v2679
    %v2728 = vsel %vm512, %v1575, %v2680
    %v2729 = vsel %vm512, %v1577, %v2681
    %v2730 = vsel %vm512, %v1579, %v2682
    %v2731 = vsel %vm512, %v1581, %v2683
    %v2732 = vsel %vm512, %v1583, %v2684
    %v2733 = vsel %vm512, %v1585, %v2685
    %v2734 = vsel %vm512, %v1552, %v2686
    %v2735 = vsel %vm512, %v1556, %v2687
    %v2736 = vsel %vm512, %v1588, %v2688
    %v2737 = vsel %vm512, %v1590, %v2689
    %v2738 = vsel %vm512, %v1592, %v2690
    %v2739 = vsel %vm512, %v1544, %v2691
    %v2740 = vsel %vm512, %v1595, %v2692
    %v2741 = vpack.c.bf16 %v2717, %v2717
    %v2742 = vpack.c.bf16 %v2718, %v2718
    %v2743 = vpack.c.bf16 %v2719, %v2719
    %v2744 = vpack.c.bf16 %v2720, %v2720
    %v2745 = vpack.c.bf16 %v2721, %v2721
    %v2746 = vpack.c.bf16 %v2722, %v2722
    %v2747 = vpack.c.bf16 %v2723, %v2723
    %v2748 = vpack.c.bf16 %v2724, %v2724
    %v2749 = vpack.c.bf16 %v2725, %v2725
    %v2750 = vpack.c.bf16 %v2726, %v2726
    %v2751 = vpack.c.bf16 %v2727, %v2727
    %v2752 = vpack.c.bf16 %v2728, %v2728
    %v2753 = vpack.c.bf16 %v2729, %v2729
    %v2754 = vpack.c.bf16 %v2730, %v2730
    %v2755 = vpack.c.bf16 %v2731, %v2731
    %v2756 = vpack.c.bf16 %v2732, %v2732
    %v2757 = vpack.c.bf16 %v2733, %v2733
    %v2758 = vpack.c.bf16 %v2734, %v2734
    %v2759 = vpack.c.bf16 %v2735, %v2735
    %v2760 = vpack.c.bf16 %v2736, %v2736
    %v2761 = vpack.c.bf16 %v2737, %v2737
    %v2762 = vpack.c.bf16 %v2738, %v2738
    %v2763 = vpack.c.bf16 %v2739, %v2739
    %v2764 = vpack.c.bf16 %v2740, %v2740
    %v2765 = vld [vmem:[#allocation22] sm:$0xff]
    %v2766 = vld [vmem:[#allocation22 + $0x8] sm:$0xff]
    %v2767 = vld [vmem:[#allocation22 + $0x10] sm:$0xff]
    %v2768 = vld [vmem:[#allocation22 + $0x18] sm:$0xff]
    %v2769 = vld [vmem:[#allocation22 + $0x20] sm:$0xff]
    %v2770 = vld [vmem:[#allocation22 + $0x28] sm:$0xff]
    %v2771 = vld [vmem:[#allocation22 + $0x30] sm:$0xff]
    %v2772 = vld [vmem:[#allocation22 + $0x38] sm:$0xff]
    %v2773 = vld [vmem:[#allocation22 + $0x40] sm:$0xff]
    %v2774 = vld [vmem:[#allocation22 + $0x48] sm:$0xff]
    %v2775 = vld [vmem:[#allocation22 + $0x50] sm:$0xff]
    %v2776 = vld [vmem:[#allocation22 + $0x58] sm:$0xff]
    %v2777 = vld [vmem:[#allocation22 + $0x60] sm:$0xff]
    %v2778 = vld [vmem:[#allocation22 + $0x68] sm:$0xff]
    %v2779 = vld [vmem:[#allocation22 + $0x70] sm:$0xff]
    %v2780 = vld [vmem:[#allocation22 + $0x78] sm:$0xff]
    %v2781 = vld [vmem:[#allocation22 + $0x80] sm:$0xff]
    %v2782 = vld [vmem:[#allocation22 + $0x88] sm:$0xff]
    %v2783 = vld [vmem:[#allocation22 + $0x90] sm:$0xff]
    %v2784 = vld [vmem:[#allocation22 + $0x98] sm:$0xff]
    %v2785 = vld [vmem:[#allocation22 + $0xa0] sm:$0xff]
    %v2786 = vld [vmem:[#allocation22 + $0xa8] sm:$0xff]
    %v2787 = vld [vmem:[#allocation22 + $0xb0] sm:$0xff]
    %v2788 = vld [vmem:[#allocation22 + $0xb8] sm:$0xff]
    %v2789 = vld [vmem:[#allocation22 + $0xc0] sm:$0xff]
    %v2790 = vld [vmem:[#allocation22 + $0xc8] sm:$0xff]
    %v2791 = vld [vmem:[#allocation22 + $0xd0] sm:$0xff]
    %v2792 = vld [vmem:[#allocation22 + $0xd8] sm:$0xff]
    %v2793 = vld [vmem:[#allocation22 + $0xe0] sm:$0xff]
    %v2794 = vld [vmem:[#allocation22 + $0xe8] sm:$0xff]
    %v2795 = vld [vmem:[#allocation22 + $0xf0] sm:$0xff]
    %v2796 = vld [vmem:[#allocation22 + $0xf8] sm:$0xff]
    %v2797 = vld [vmem:[#allocation22 + $0x100] sm:$0xff]
    %v2798 = vld [vmem:[#allocation22 + $0x108] sm:$0xff]
    %v2799 = vld [vmem:[#allocation22 + $0x110] sm:$0xff]
    %v2800 = vld [vmem:[#allocation22 + $0x118] sm:$0xff]
    %v2801 = vld [vmem:[#allocation22 + $0x120] sm:$0xff]
    %v2802 = vld [vmem:[#allocation22 + $0x128] sm:$0xff]
    %v2803 = vld [vmem:[#allocation22 + $0x130] sm:$0xff]
    %v2804 = vld [vmem:[#allocation22 + $0x138] sm:$0xff]
    %v2805 = vld [vmem:[#allocation22 + $0x140] sm:$0xff]
    %v2806 = vld [vmem:[#allocation22 + $0x148] sm:$0xff]
    %v2807 = vld [vmem:[#allocation22 + $0x150] sm:$0xff]
    %v2808 = vld [vmem:[#allocation22 + $0x158] sm:$0xff]
    %v2809 = vld [vmem:[#allocation22 + $0x160] sm:$0xff]
    %v2810 = vld [vmem:[#allocation22 + $0x168] sm:$0xff]
    %v2811 = vld [vmem:[#allocation22 + $0x170] sm:$0xff]
    %v2812 = vld [vmem:[#allocation22 + $0x178] sm:$0xff]
    %v2813 = vld [vmem:[#allocation22 + $0x180] sm:$0xff]
    %v2814 = vld [vmem:[#allocation22 + $0x188] sm:$0xff]
    %v2815 = vld [vmem:[#allocation22 + $0x190] sm:$0xff]
    %v2816 = vld [vmem:[#allocation22 + $0x198] sm:$0xff]
    %v2817 = vld [vmem:[#allocation22 + $0x1a0] sm:$0xff]
    %v2818 = vld [vmem:[#allocation22 + $0x1a8] sm:$0xff]
    %v2819 = vld [vmem:[#allocation22 + $0x1b0] sm:$0xff]
    %v2820 = vld [vmem:[#allocation22 + $0x1b8] sm:$0xff]
    %v2821 = vld [vmem:[#allocation22 + $0x1c0] sm:$0xff]
    %v2822 = vld [vmem:[#allocation22 + $0x1c8] sm:$0xff]
    %v2823 = vld [vmem:[#allocation22 + $0x1d0] sm:$0xff]
    %v2824 = vld [vmem:[#allocation22 + $0x1d8] sm:$0xff]
    %v2825 = vld [vmem:[#allocation22 + $0x1e0] sm:$0xff]
    %v2826 = vld [vmem:[#allocation22 + $0x1e8] sm:$0xff]
    %v2827 = vld [vmem:[#allocation22 + $0x1f0] sm:$0xff]
    %v2828 = vld [vmem:[#allocation22 + $0x1f8] sm:$0xff]
    %v2829 = vld [vmem:[#allocation22 + $0x200] sm:$0xff]
    %v2830 = vld [vmem:[#allocation22 + $0x208] sm:$0xff]
    %v2831 = vld [vmem:[#allocation22 + $0x210] sm:$0xff]
    %v2832 = vld [vmem:[#allocation22 + $0x218] sm:$0xff]
    %v2833 = vld [vmem:[#allocation22 + $0x220] sm:$0xff]
    %v2834 = vld [vmem:[#allocation22 + $0x228] sm:$0xff]
    %v2835 = vld [vmem:[#allocation22 + $0x230] sm:$0xff]
    %v2836 = vld [vmem:[#allocation22 + $0x238] sm:$0xff]
    %v2837 = vld [vmem:[#allocation22 + $0x240] sm:$0xff]
    %v2838 = vld [vmem:[#allocation22 + $0x248] sm:$0xff]
    %v2839 = vld [vmem:[#allocation22 + $0x250] sm:$0xff]
    %v2840 = vld [vmem:[#allocation22 + $0x258] sm:$0xff]
    %v2841 = vld [vmem:[#allocation22 + $0x260] sm:$0xff]
    %v2842 = vld [vmem:[#allocation22 + $0x268] sm:$0xff]
    %v2843 = vld [vmem:[#allocation22 + $0x270] sm:$0xff]
    %v2844 = vld [vmem:[#allocation22 + $0x278] sm:$0xff]
    %v2845 = vld [vmem:[#allocation22 + $0x280] sm:$0xff]
    %v2846 = vld [vmem:[#allocation22 + $0x288] sm:$0xff]
    %v2847 = vld [vmem:[#allocation22 + $0x290] sm:$0xff]
    %v2848 = vld [vmem:[#allocation22 + $0x298] sm:$0xff]
    %v2849 = vld [vmem:[#allocation22 + $0x2a0] sm:$0xff]
    %v2850 = vld [vmem:[#allocation22 + $0x2a8] sm:$0xff]
    %v2851 = vld [vmem:[#allocation22 + $0x2b0] sm:$0xff]
    %v2852 = vld [vmem:[#allocation22 + $0x2b8] sm:$0xff]
    %v2853 = vld [vmem:[#allocation22 + $0x2c0] sm:$0xff]
    %v2854 = vld [vmem:[#allocation22 + $0x2c8] sm:$0xff]
    %v2855 = vld [vmem:[#allocation22 + $0x2d0] sm:$0xff]
    %v2856 = vld [vmem:[#allocation22 + $0x2d8] sm:$0xff]
    %v2857 = vld [vmem:[#allocation22 + $0x2e0] sm:$0xff]
    %v2858 = vld [vmem:[#allocation22 + $0x2e8] sm:$0xff]
    %v2859 = vld [vmem:[#allocation22 + $0x2f0] sm:$0xff]
    %v2860 = vld [vmem:[#allocation22 + $0x2f8] sm:$0xff]
    %v2861 = vld [vmem:[#allocation22 + $0x300] sm:$0xff]
    %v2862 = vld [vmem:[#allocation22 + $0x308] sm:$0xff]
    %v2863 = vld [vmem:[#allocation22 + $0x310] sm:$0xff]
    %v2864 = vld [vmem:[#allocation22 + $0x318] sm:$0xff]
    %v2865 = vld [vmem:[#allocation22 + $0x320] sm:$0xff]
    %v2866 = vld [vmem:[#allocation22 + $0x328] sm:$0xff]
    %v2867 = vld [vmem:[#allocation22 + $0x330] sm:$0xff]
    %v2868 = vld [vmem:[#allocation22 + $0x338] sm:$0xff]
    %v2869 = vld [vmem:[#allocation22 + $0x340] sm:$0xff]
    %v2870 = vld [vmem:[#allocation22 + $0x348] sm:$0xff]
    %v2871 = vld [vmem:[#allocation22 + $0x350] sm:$0xff]
    %v2872 = vld [vmem:[#allocation22 + $0x358] sm:$0xff]
    %v2873 = vld [vmem:[#allocation22 + $0x360] sm:$0xff]
    %v2874 = vld [vmem:[#allocation22 + $0x368] sm:$0xff]
    %v2875 = vld [vmem:[#allocation22 + $0x370] sm:$0xff]
    %v2876 = vld [vmem:[#allocation22 + $0x378] sm:$0xff]
    %v2877 = vld [vmem:[#allocation22 + $0x380] sm:$0xff]
    %v2878 = vld [vmem:[#allocation22 + $0x388] sm:$0xff]
    %v2879 = vld [vmem:[#allocation22 + $0x390] sm:$0xff]
    %v2880 = vld [vmem:[#allocation22 + $0x398] sm:$0xff]
    %v2881 = vld [vmem:[#allocation22 + $0x3a0] sm:$0xff]
    %v2882 = vld [vmem:[#allocation22 + $0x3a8] sm:$0xff]
    %v2883 = vld [vmem:[#allocation22 + $0x3b0] sm:$0xff]
    %v2884 = vld [vmem:[#allocation22 + $0x3b8] sm:$0xff]
    %v2885 = vld [vmem:[#allocation22 + $0x3c0] sm:$0xff]
    %v2886 = vld [vmem:[#allocation22 + $0x3c8] sm:$0xff]
    %v2887 = vld [vmem:[#allocation22 + $0x3d0] sm:$0xff]
    %v2888 = vld [vmem:[#allocation22 + $0x3d8] sm:$0xff]
    %v2889 = vld [vmem:[#allocation22 + $0x3e0] sm:$0xff]
    %v2890 = vld [vmem:[#allocation22 + $0x3e8] sm:$0xff]
    %v2891 = vld [vmem:[#allocation22 + $0x3f0] sm:$0xff]
    %v2892 = vld [vmem:[#allocation22 + $0x3f8] sm:$0xff]
    %v2893 = vld [vmem:[#allocation22 + $0x400] sm:$0xff]
    %v2894 = vld [vmem:[#allocation22 + $0x408] sm:$0xff]
    %v2895 = vld [vmem:[#allocation22 + $0x410] sm:$0xff]
    %v2896 = vld [vmem:[#allocation22 + $0x418] sm:$0xff]
    %v2897 = vld [vmem:[#allocation22 + $0x420] sm:$0xff]
    %v2898 = vld [vmem:[#allocation22 + $0x428] sm:$0xff]
    %v2899 = vld [vmem:[#allocation22 + $0x430] sm:$0xff]
    %v2900 = vld [vmem:[#allocation22 + $0x438] sm:$0xff]
    %v2901 = vld [vmem:[#allocation22 + $0x440] sm:$0xff]
    %v2902 = vld [vmem:[#allocation22 + $0x448] sm:$0xff]
    %v2903 = vld [vmem:[#allocation22 + $0x450] sm:$0xff]
    %v2904 = vld [vmem:[#allocation22 + $0x458] sm:$0xff]
    %v2905 = vld [vmem:[#allocation22 + $0x460] sm:$0xff]
    %v2906 = vld [vmem:[#allocation22 + $0x468] sm:$0xff]
    %v2907 = vld [vmem:[#allocation22 + $0x470] sm:$0xff]
    %v2908 = vld [vmem:[#allocation22 + $0x478] sm:$0xff]
    %v2909 = vld [vmem:[#allocation22 + $0x480] sm:$0xff]
    %v2910 = vld [vmem:[#allocation22 + $0x488] sm:$0xff]
    %v2911 = vld [vmem:[#allocation22 + $0x490] sm:$0xff]
    %v2912 = vld [vmem:[#allocation22 + $0x498] sm:$0xff]
    %v2913 = vld [vmem:[#allocation22 + $0x4a0] sm:$0xff]
    %v2914 = vld [vmem:[#allocation22 + $0x4a8] sm:$0xff]
    %v2915 = vld [vmem:[#allocation22 + $0x4b0] sm:$0xff]
    %v2916 = vld [vmem:[#allocation22 + $0x4b8] sm:$0xff]
    %v2917 = vld [vmem:[#allocation22 + $0x4c0] sm:$0xff]
    %v2918 = vld [vmem:[#allocation22 + $0x4c8] sm:$0xff]
    %v2919 = vld [vmem:[#allocation22 + $0x4d0] sm:$0xff]
    %v2920 = vld [vmem:[#allocation22 + $0x4d8] sm:$0xff]
    %v2921 = vld [vmem:[#allocation22 + $0x4e0] sm:$0xff]
    %v2922 = vld [vmem:[#allocation22 + $0x4e8] sm:$0xff]
    %v2923 = vld [vmem:[#allocation22 + $0x4f0] sm:$0xff]
    %v2924 = vld [vmem:[#allocation22 + $0x4f8] sm:$0xff]
    %v2925 = vld [vmem:[#allocation22 + $0x500] sm:$0xff]
    %v2926 = vld [vmem:[#allocation22 + $0x508] sm:$0xff]
    %v2927 = vld [vmem:[#allocation22 + $0x510] sm:$0xff]
    %v2928 = vld [vmem:[#allocation22 + $0x518] sm:$0xff]
    %v2929 = vld [vmem:[#allocation22 + $0x520] sm:$0xff]
    %v2930 = vld [vmem:[#allocation22 + $0x528] sm:$0xff]
    %v2931 = vld [vmem:[#allocation22 + $0x530] sm:$0xff]
    %v2932 = vld [vmem:[#allocation22 + $0x538] sm:$0xff]
    %v2933 = vld [vmem:[#allocation22 + $0x540] sm:$0xff]
    %v2934 = vld [vmem:[#allocation22 + $0x548] sm:$0xff]
    %v2935 = vld [vmem:[#allocation22 + $0x550] sm:$0xff]
    %v2936 = vld [vmem:[#allocation22 + $0x558] sm:$0xff]
    %v2937 = vld [vmem:[#allocation22 + $0x560] sm:$0xff]
    %v2938 = vld [vmem:[#allocation22 + $0x568] sm:$0xff]
    %v2939 = vld [vmem:[#allocation22 + $0x570] sm:$0xff]
    %v2940 = vld [vmem:[#allocation22 + $0x578] sm:$0xff]
    %v2941 = vld [vmem:[#allocation22 + $0x580] sm:$0xff]
    %v2942 = vld [vmem:[#allocation22 + $0x588] sm:$0xff]
    %v2943 = vld [vmem:[#allocation22 + $0x590] sm:$0xff]
    %v2944 = vld [vmem:[#allocation22 + $0x598] sm:$0xff]
    %v2945 = vld [vmem:[#allocation22 + $0x5a0] sm:$0xff]
    %v2946 = vld [vmem:[#allocation22 + $0x5a8] sm:$0xff]
    %v2947 = vld [vmem:[#allocation22 + $0x5b0] sm:$0xff]
    %v2948 = vld [vmem:[#allocation22 + $0x5b8] sm:$0xff]
    %v2949 = vld [vmem:[#allocation22 + $0x5c0] sm:$0xff]
    %v2950 = vld [vmem:[#allocation22 + $0x5c8] sm:$0xff]
    %v2951 = vld [vmem:[#allocation22 + $0x5d0] sm:$0xff]
    %v2952 = vld [vmem:[#allocation22 + $0x5d8] sm:$0xff]
    %v2953 = vld [vmem:[#allocation22 + $0x5e0] sm:$0xff]
    %v2954 = vld [vmem:[#allocation22 + $0x5e8] sm:$0xff]
    %v2955 = vld [vmem:[#allocation22 + $0x5f0] sm:$0xff]
    %v2956 = vld [vmem:[#allocation22 + $0x5f8] sm:$0xff]
    %v2957 = vld [vmem:[#allocation22 + $0x600] sm:$0xff]
    %v2958 = vld [vmem:[#allocation22 + $0x608] sm:$0xff]
    %v2959 = vld [vmem:[#allocation22 + $0x610] sm:$0xff]
    %v2960 = vld [vmem:[#allocation22 + $0x618] sm:$0xff]
    %v2961 = vld [vmem:[#allocation22 + $0x620] sm:$0xff]
    %v2962 = vld [vmem:[#allocation22 + $0x628] sm:$0xff]
    %v2963 = vld [vmem:[#allocation22 + $0x630] sm:$0xff]
    %v2964 = vld [vmem:[#allocation22 + $0x638] sm:$0xff]
    %v2965 = vld [vmem:[#allocation22 + $0x640] sm:$0xff]
    %v2966 = vld [vmem:[#allocation22 + $0x648] sm:$0xff]
    %v2967 = vld [vmem:[#allocation22 + $0x650] sm:$0xff]
    %v2968 = vld [vmem:[#allocation22 + $0x658] sm:$0xff]
    %v2969 = vld [vmem:[#allocation22 + $0x660] sm:$0xff]
    %v2970 = vld [vmem:[#allocation22 + $0x668] sm:$0xff]
    %v2971 = vld [vmem:[#allocation22 + $0x670] sm:$0xff]
    %v2972 = vld [vmem:[#allocation22 + $0x678] sm:$0xff]
    %v2973 = vld [vmem:[#allocation22 + $0x680] sm:$0xff]
    %v2974 = vld [vmem:[#allocation22 + $0x688] sm:$0xff]
    %v2975 = vld [vmem:[#allocation22 + $0x690] sm:$0xff]
    %v2976 = vld [vmem:[#allocation22 + $0x698] sm:$0xff]
    %v2977 = vld [vmem:[#allocation22 + $0x6a0] sm:$0xff]
    %v2978 = vld [vmem:[#allocation22 + $0x6a8] sm:$0xff]
    %v2979 = vld [vmem:[#allocation22 + $0x6b0] sm:$0xff]
    %v2980 = vld [vmem:[#allocation22 + $0x6b8] sm:$0xff]
    %v2981 = vld [vmem:[#allocation22 + $0x6c0] sm:$0xff]
    %v2982 = vld [vmem:[#allocation22 + $0x6c8] sm:$0xff]
    %v2983 = vld [vmem:[#allocation22 + $0x6d0] sm:$0xff]
    %v2984 = vld [vmem:[#allocation22 + $0x6d8] sm:$0xff]
    %v2985 = vld [vmem:[#allocation22 + $0x6e0] sm:$0xff]
    %v2986 = vld [vmem:[#allocation22 + $0x6e8] sm:$0xff]
    %v2987 = vld [vmem:[#allocation22 + $0x6f0] sm:$0xff]
    %v2988 = vld [vmem:[#allocation22 + $0x6f8] sm:$0xff]
    %v2989 = vld [vmem:[#allocation22 + $0x700] sm:$0xff]
    %v2990 = vld [vmem:[#allocation22 + $0x708] sm:$0xff]
    %v2991 = vld [vmem:[#allocation22 + $0x710] sm:$0xff]
    %v2992 = vld [vmem:[#allocation22 + $0x718] sm:$0xff]
    %v2993 = vld [vmem:[#allocation22 + $0x720] sm:$0xff]
    %v2994 = vld [vmem:[#allocation22 + $0x728] sm:$0xff]
    %v2995 = vld [vmem:[#allocation22 + $0x730] sm:$0xff]
    %v2996 = vld [vmem:[#allocation22 + $0x738] sm:$0xff]
    %v2997 = vld [vmem:[#allocation22 + $0x740] sm:$0xff]
    %v2998 = vld [vmem:[#allocation22 + $0x748] sm:$0xff]
    %v2999 = vld [vmem:[#allocation22 + $0x750] sm:$0xff]
    %v3000 = vld [vmem:[#allocation22 + $0x758] sm:$0xff]
    %v3001 = vld [vmem:[#allocation22 + $0x760] sm:$0xff]
    %v3002 = vld [vmem:[#allocation22 + $0x768] sm:$0xff]
    %v3003 = vld [vmem:[#allocation22 + $0x770] sm:$0xff]
    %v3004 = vld [vmem:[#allocation22 + $0x778] sm:$0xff]
    %v3005 = vld [vmem:[#allocation22 + $0x780] sm:$0xff]
    %v3006 = vld [vmem:[#allocation22 + $0x788] sm:$0xff]
    %v3007 = vld [vmem:[#allocation22 + $0x790] sm:$0xff]
    %v3008 = vld [vmem:[#allocation22 + $0x798] sm:$0xff]
    %v3009 = vld [vmem:[#allocation22 + $0x7a0] sm:$0xff]
    %v3010 = vld [vmem:[#allocation22 + $0x7a8] sm:$0xff]
    %v3011 = vld [vmem:[#allocation22 + $0x7b0] sm:$0xff]
    %v3012 = vld [vmem:[#allocation22 + $0x7b8] sm:$0xff]
    %v3013 = vld [vmem:[#allocation22 + $0x7c0] sm:$0xff]
    %v3014 = vld [vmem:[#allocation22 + $0x7c8] sm:$0xff]
    %v3015 = vld [vmem:[#allocation22 + $0x7d0] sm:$0xff]
    %v3016 = vld [vmem:[#allocation22 + $0x7d8] sm:$0xff]
    %v3017 = vld [vmem:[#allocation22 + $0x7e0] sm:$0xff]
    %v3018 = vld [vmem:[#allocation22 + $0x7e8] sm:$0xff]
    %v3019 = vld [vmem:[#allocation22 + $0x7f0] sm:$0xff]
    %v3020 = vld [vmem:[#allocation22 + $0x7f8] sm:$0xff]
    %v3021 = vld [vmem:[#allocation22 + $0x800] sm:$0xff]
    %v3022 = vld [vmem:[#allocation22 + $0x808] sm:$0xff]
    %v3023 = vld [vmem:[#allocation22 + $0x810] sm:$0xff]
    %v3024 = vld [vmem:[#allocation22 + $0x818] sm:$0xff]
    %v3025 = vld [vmem:[#allocation22 + $0x820] sm:$0xff]
    %v3026 = vld [vmem:[#allocation22 + $0x828] sm:$0xff]
    %v3027 = vld [vmem:[#allocation22 + $0x830] sm:$0xff]
    %v3028 = vld [vmem:[#allocation22 + $0x838] sm:$0xff]
    %v3029 = vld [vmem:[#allocation22 + $0x840] sm:$0xff]
    %v3030 = vld [vmem:[#allocation22 + $0x848] sm:$0xff]
    %v3031 = vld [vmem:[#allocation22 + $0x850] sm:$0xff]
    %v3032 = vld [vmem:[#allocation22 + $0x858] sm:$0xff]
    %v3033 = vld [vmem:[#allocation22 + $0x860] sm:$0xff]
    %v3034 = vld [vmem:[#allocation22 + $0x868] sm:$0xff]
    %v3035 = vld [vmem:[#allocation22 + $0x870] sm:$0xff]
    %v3036 = vld [vmem:[#allocation22 + $0x878] sm:$0xff]
    %v3037 = vld [vmem:[#allocation22 + $0x880] sm:$0xff]
    %v3038 = vld [vmem:[#allocation22 + $0x888] sm:$0xff]
    %v3039 = vld [vmem:[#allocation22 + $0x890] sm:$0xff]
    %v3040 = vld [vmem:[#allocation22 + $0x898] sm:$0xff]
    %v3041 = vld [vmem:[#allocation22 + $0x8a0] sm:$0xff]
    %v3042 = vld [vmem:[#allocation22 + $0x8a8] sm:$0xff]
    %v3043 = vld [vmem:[#allocation22 + $0x8b0] sm:$0xff]
    %v3044 = vld [vmem:[#allocation22 + $0x8b8] sm:$0xff]
    %v3045 = vld [vmem:[#allocation22 + $0x8c0] sm:$0xff]
    %v3046 = vld [vmem:[#allocation22 + $0x8c8] sm:$0xff]
    %v3047 = vld [vmem:[#allocation22 + $0x8d0] sm:$0xff]
    %v3048 = vld [vmem:[#allocation22 + $0x8d8] sm:$0xff]
    %v3049 = vld [vmem:[#allocation22 + $0x8e0] sm:$0xff]
    %v3050 = vld [vmem:[#allocation22 + $0x8e8] sm:$0xff]
    %v3051 = vld [vmem:[#allocation22 + $0x8f0] sm:$0xff]
    %v3052 = vld [vmem:[#allocation22 + $0x8f8] sm:$0xff]
    %v3053 = vld [vmem:[#allocation22 + $0x900] sm:$0xff]
    %v3054 = vld [vmem:[#allocation22 + $0x908] sm:$0xff]
    %v3055 = vld [vmem:[#allocation22 + $0x910] sm:$0xff]
    %v3056 = vld [vmem:[#allocation22 + $0x918] sm:$0xff]
    %v3057 = vld [vmem:[#allocation22 + $0x920] sm:$0xff]
    %v3058 = vld [vmem:[#allocation22 + $0x928] sm:$0xff]
    %v3059 = vld [vmem:[#allocation22 + $0x930] sm:$0xff]
    %v3060 = vld [vmem:[#allocation22 + $0x938] sm:$0xff]
    %v3061 = vld [vmem:[#allocation22 + $0x940] sm:$0xff]
    %v3062 = vld [vmem:[#allocation22 + $0x948] sm:$0xff]
    %v3063 = vld [vmem:[#allocation22 + $0x950] sm:$0xff]
    %v3064 = vld [vmem:[#allocation22 + $0x958] sm:$0xff]
    %v3065 = vld [vmem:[#allocation22 + $0x960] sm:$0xff]
    %v3066 = vld [vmem:[#allocation22 + $0x968] sm:$0xff]
    %v3067 = vld [vmem:[#allocation22 + $0x970] sm:$0xff]
    %v3068 = vld [vmem:[#allocation22 + $0x978] sm:$0xff]
    %v3069 = vld [vmem:[#allocation22 + $0x980] sm:$0xff]
    %v3070 = vld [vmem:[#allocation22 + $0x988] sm:$0xff]
    %v3071 = vld [vmem:[#allocation22 + $0x990] sm:$0xff]
    %v3072 = vld [vmem:[#allocation22 + $0x998] sm:$0xff]
    %v3073 = vld [vmem:[#allocation22 + $0x9a0] sm:$0xff]
    %v3074 = vld [vmem:[#allocation22 + $0x9a8] sm:$0xff]
    %v3075 = vld [vmem:[#allocation22 + $0x9b0] sm:$0xff]
    %v3076 = vld [vmem:[#allocation22 + $0x9b8] sm:$0xff]
    %v3077 = vld [vmem:[#allocation22 + $0x9c0] sm:$0xff]
    %v3078 = vld [vmem:[#allocation22 + $0x9c8] sm:$0xff]
    %v3079 = vld [vmem:[#allocation22 + $0x9d0] sm:$0xff]
    %v3080 = vld [vmem:[#allocation22 + $0x9d8] sm:$0xff]
    %v3081 = vld [vmem:[#allocation22 + $0x9e0] sm:$0xff]
    %v3082 = vld [vmem:[#allocation22 + $0x9e8] sm:$0xff]
    %v3083 = vld [vmem:[#allocation22 + $0x9f0] sm:$0xff]
    %v3084 = vld [vmem:[#allocation22 + $0x9f8] sm:$0xff]
    %v3085 = vld [vmem:[#allocation22 + $0xa00] sm:$0xff]
    %v3086 = vld [vmem:[#allocation22 + $0xa08] sm:$0xff]
    %v3087 = vld [vmem:[#allocation22 + $0xa10] sm:$0xff]
    %v3088 = vld [vmem:[#allocation22 + $0xa18] sm:$0xff]
    %v3089 = vld [vmem:[#allocation22 + $0xa20] sm:$0xff]
    %v3090 = vld [vmem:[#allocation22 + $0xa28] sm:$0xff]
    %v3091 = vld [vmem:[#allocation22 + $0xa30] sm:$0xff]
    %v3092 = vld [vmem:[#allocation22 + $0xa38] sm:$0xff]
    %v3093 = vld [vmem:[#allocation22 + $0xa40] sm:$0xff]
    %v3094 = vld [vmem:[#allocation22 + $0xa48] sm:$0xff]
    %v3095 = vld [vmem:[#allocation22 + $0xa50] sm:$0xff]
    %v3096 = vld [vmem:[#allocation22 + $0xa58] sm:$0xff]
    %v3097 = vld [vmem:[#allocation22 + $0xa60] sm:$0xff]
    %v3098 = vld [vmem:[#allocation22 + $0xa68] sm:$0xff]
    %v3099 = vld [vmem:[#allocation22 + $0xa70] sm:$0xff]
    %v3100 = vld [vmem:[#allocation22 + $0xa78] sm:$0xff]
    %v3101 = vld [vmem:[#allocation22 + $0xa80] sm:$0xff]
    %v3102 = vld [vmem:[#allocation22 + $0xa88] sm:$0xff]
    %v3103 = vld [vmem:[#allocation22 + $0xa90] sm:$0xff]
    %v3104 = vld [vmem:[#allocation22 + $0xa98] sm:$0xff]
    %v3105 = vld [vmem:[#allocation22 + $0xaa0] sm:$0xff]
    %v3106 = vld [vmem:[#allocation22 + $0xaa8] sm:$0xff]
    %v3107 = vld [vmem:[#allocation22 + $0xab0] sm:$0xff]
    %v3108 = vld [vmem:[#allocation22 + $0xab8] sm:$0xff]
    %v3109 = vld [vmem:[#allocation22 + $0xac0] sm:$0xff]
    %v3110 = vld [vmem:[#allocation22 + $0xac8] sm:$0xff]
    %v3111 = vld [vmem:[#allocation22 + $0xad0] sm:$0xff]
    %v3112 = vld [vmem:[#allocation22 + $0xad8] sm:$0xff]
    %v3113 = vld [vmem:[#allocation22 + $0xae0] sm:$0xff]
    %v3114 = vld [vmem:[#allocation22 + $0xae8] sm:$0xff]
    %v3115 = vld [vmem:[#allocation22 + $0xaf0] sm:$0xff]
    %v3116 = vld [vmem:[#allocation22 + $0xaf8] sm:$0xff]
    %v3117 = vld [vmem:[#allocation22 + $0xb00] sm:$0xff]
    %v3118 = vld [vmem:[#allocation22 + $0xb08] sm:$0xff]
    %v3119 = vld [vmem:[#allocation22 + $0xb10] sm:$0xff]
    %v3120 = vld [vmem:[#allocation22 + $0xb18] sm:$0xff]
    %v3121 = vld [vmem:[#allocation22 + $0xb20] sm:$0xff]
    %v3122 = vld [vmem:[#allocation22 + $0xb28] sm:$0xff]
    %v3123 = vld [vmem:[#allocation22 + $0xb30] sm:$0xff]
    %v3124 = vld [vmem:[#allocation22 + $0xb38] sm:$0xff]
    %v3125 = vld [vmem:[#allocation22 + $0xb40] sm:$0xff]
    %v3126 = vld [vmem:[#allocation22 + $0xb48] sm:$0xff]
    %v3127 = vld [vmem:[#allocation22 + $0xb50] sm:$0xff]
    %v3128 = vld [vmem:[#allocation22 + $0xb58] sm:$0xff]
    %v3129 = vld [vmem:[#allocation22 + $0xb60] sm:$0xff]
    %v3130 = vld [vmem:[#allocation22 + $0xb68] sm:$0xff]
    %v3131 = vld [vmem:[#allocation22 + $0xb70] sm:$0xff]
    %v3132 = vld [vmem:[#allocation22 + $0xb78] sm:$0xff]
    %v3133 = vld [vmem:[#allocation22 + $0xb80] sm:$0xff]
    %v3134 = vld [vmem:[#allocation22 + $0xb88] sm:$0xff]
    %v3135 = vld [vmem:[#allocation22 + $0xb90] sm:$0xff]
    %v3136 = vld [vmem:[#allocation22 + $0xb98] sm:$0xff]
    %v3137 = vld [vmem:[#allocation22 + $0xba0] sm:$0xff]
    %v3138 = vld [vmem:[#allocation22 + $0xba8] sm:$0xff]
    %v3139 = vld [vmem:[#allocation22 + $0xbb0] sm:$0xff]
    %v3140 = vld [vmem:[#allocation22 + $0xbb8] sm:$0xff]
    %v3141 = vld [vmem:[#allocation22 + $0xbc0] sm:$0xff]
    %v3142 = vld [vmem:[#allocation22 + $0xbc8] sm:$0xff]
    %v3143 = vld [vmem:[#allocation22 + $0xbd0] sm:$0xff]
    %v3144 = vld [vmem:[#allocation22 + $0xbd8] sm:$0xff]
    %v3145 = vld [vmem:[#allocation22 + $0xbe0] sm:$0xff]
    %v3146 = vld [vmem:[#allocation22 + $0xbe8] sm:$0xff]
    %v3147 = vld [vmem:[#allocation22 + $0xbf0] sm:$0xff]
    %v3148 = vld [vmem:[#allocation22 + $0xbf8] sm:$0xff]
    %v3149 = vld [vmem:[#allocation22 + $0xc00] sm:$0xff]
    %v3150 = vld [vmem:[#allocation22 + $0xc08] sm:$0xff]
    %v3151 = vld [vmem:[#allocation22 + $0xc10] sm:$0xff]
    %v3152 = vld [vmem:[#allocation22 + $0xc18] sm:$0xff]
    %v3153 = vld [vmem:[#allocation22 + $0xc20] sm:$0xff]
    %v3154 = vld [vmem:[#allocation22 + $0xc28] sm:$0xff]
    %v3155 = vld [vmem:[#allocation22 + $0xc30] sm:$0xff]
    %v3156 = vld [vmem:[#allocation22 + $0xc38] sm:$0xff]
    %v3157 = vld [vmem:[#allocation22 + $0xc40] sm:$0xff]
    %v3158 = vld [vmem:[#allocation22 + $0xc48] sm:$0xff]
    %v3159 = vld [vmem:[#allocation22 + $0xc50] sm:$0xff]
    %v3160 = vld [vmem:[#allocation22 + $0xc58] sm:$0xff]
    %v3161 = vld [vmem:[#allocation22 + $0xc60] sm:$0xff]
    %v3162 = vld [vmem:[#allocation22 + $0xc68] sm:$0xff]
    %v3163 = vld [vmem:[#allocation22 + $0xc70] sm:$0xff]
    %v3164 = vld [vmem:[#allocation22 + $0xc78] sm:$0xff]
    %v3165 = vld [vmem:[#allocation22 + $0xc80] sm:$0xff]
    %v3166 = vld [vmem:[#allocation22 + $0xc88] sm:$0xff]
    %v3167 = vld [vmem:[#allocation22 + $0xc90] sm:$0xff]
    %v3168 = vld [vmem:[#allocation22 + $0xc98] sm:$0xff]
    %v3169 = vld [vmem:[#allocation22 + $0xca0] sm:$0xff]
    %v3170 = vld [vmem:[#allocation22 + $0xca8] sm:$0xff]
    %v3171 = vld [vmem:[#allocation22 + $0xcb0] sm:$0xff]
    %v3172 = vld [vmem:[#allocation22 + $0xcb8] sm:$0xff]
    %v3173 = vld [vmem:[#allocation22 + $0xcc0] sm:$0xff]
    %v3174 = vld [vmem:[#allocation22 + $0xcc8] sm:$0xff]
    %v3175 = vld [vmem:[#allocation22 + $0xcd0] sm:$0xff]
    %v3176 = vld [vmem:[#allocation22 + $0xcd8] sm:$0xff]
    %v3177 = vld [vmem:[#allocation22 + $0xce0] sm:$0xff]
    %v3178 = vld [vmem:[#allocation22 + $0xce8] sm:$0xff]
    %v3179 = vld [vmem:[#allocation22 + $0xcf0] sm:$0xff]
    %v3180 = vld [vmem:[#allocation22 + $0xcf8] sm:$0xff]
    %v3181 = vld [vmem:[#allocation22 + $0xd00] sm:$0xff]
    %v3182 = vld [vmem:[#allocation22 + $0xd08] sm:$0xff]
    %v3183 = vld [vmem:[#allocation22 + $0xd10] sm:$0xff]
    %v3184 = vld [vmem:[#allocation22 + $0xd18] sm:$0xff]
    %v3185 = vld [vmem:[#allocation22 + $0xd20] sm:$0xff]
    %v3186 = vld [vmem:[#allocation22 + $0xd28] sm:$0xff]
    %v3187 = vld [vmem:[#allocation22 + $0xd30] sm:$0xff]
    %v3188 = vld [vmem:[#allocation22 + $0xd38] sm:$0xff]
    %v3189 = vld [vmem:[#allocation22 + $0xd40] sm:$0xff]
    %v3190 = vld [vmem:[#allocation22 + $0xd48] sm:$0xff]
    %v3191 = vld [vmem:[#allocation22 + $0xd50] sm:$0xff]
    %v3192 = vld [vmem:[#allocation22 + $0xd58] sm:$0xff]
    %v3193 = vld [vmem:[#allocation22 + $0xd60] sm:$0xff]
    %v3194 = vld [vmem:[#allocation22 + $0xd68] sm:$0xff]
    %v3195 = vld [vmem:[#allocation22 + $0xd70] sm:$0xff]
    %v3196 = vld [vmem:[#allocation22 + $0xd78] sm:$0xff]
    %v3197 = vld [vmem:[#allocation22 + $0xd80] sm:$0xff]
    %v3198 = vld [vmem:[#allocation22 + $0xd88] sm:$0xff]
    %v3199 = vld [vmem:[#allocation22 + $0xd90] sm:$0xff]
    %v3200 = vld [vmem:[#allocation22 + $0xd98] sm:$0xff]
    %v3201 = vld [vmem:[#allocation22 + $0xda0] sm:$0xff]
    %v3202 = vld [vmem:[#allocation22 + $0xda8] sm:$0xff]
    %v3203 = vld [vmem:[#allocation22 + $0xdb0] sm:$0xff]
    %v3204 = vld [vmem:[#allocation22 + $0xdb8] sm:$0xff]
    %v3205 = vld [vmem:[#allocation22 + $0xdc0] sm:$0xff]
    %v3206 = vld [vmem:[#allocation22 + $0xdc8] sm:$0xff]
    %v3207 = vld [vmem:[#allocation22 + $0xdd0] sm:$0xff]
    %v3208 = vld [vmem:[#allocation22 + $0xdd8] sm:$0xff]
    %v3209 = vld [vmem:[#allocation22 + $0xde0] sm:$0xff]
    %v3210 = vld [vmem:[#allocation22 + $0xde8] sm:$0xff]
    %v3211 = vld [vmem:[#allocation22 + $0xdf0] sm:$0xff]
    %v3212 = vld [vmem:[#allocation22 + $0xdf8] sm:$0xff]
    %v3213 = vld [vmem:[#allocation22 + $0xe00] sm:$0xff]
    %v3214 = vld [vmem:[#allocation22 + $0xe08] sm:$0xff]
    %v3215 = vld [vmem:[#allocation22 + $0xe10] sm:$0xff]
    %v3216 = vld [vmem:[#allocation22 + $0xe18] sm:$0xff]
    %v3217 = vld [vmem:[#allocation22 + $0xe20] sm:$0xff]
    %v3218 = vld [vmem:[#allocation22 + $0xe28] sm:$0xff]
    %v3219 = vld [vmem:[#allocation22 + $0xe30] sm:$0xff]
    %v3220 = vld [vmem:[#allocation22 + $0xe38] sm:$0xff]
    %v3221 = vld [vmem:[#allocation22 + $0xe40] sm:$0xff]
    %v3222 = vld [vmem:[#allocation22 + $0xe48] sm:$0xff]
    %v3223 = vld [vmem:[#allocation22 + $0xe50] sm:$0xff]
    %v3224 = vld [vmem:[#allocation22 + $0xe58] sm:$0xff]
    %v3225 = vld [vmem:[#allocation22 + $0xe60] sm:$0xff]
    %v3226 = vld [vmem:[#allocation22 + $0xe68] sm:$0xff]
    %v3227 = vld [vmem:[#allocation22 + $0xe70] sm:$0xff]
    %v3228 = vld [vmem:[#allocation22 + $0xe78] sm:$0xff]
    %v3229 = vld [vmem:[#allocation22 + $0xe80] sm:$0xff]
    %v3230 = vld [vmem:[#allocation22 + $0xe88] sm:$0xff]
    %v3231 = vld [vmem:[#allocation22 + $0xe90] sm:$0xff]
    %v3232 = vld [vmem:[#allocation22 + $0xe98] sm:$0xff]
    %v3233 = vld [vmem:[#allocation22 + $0xea0] sm:$0xff]
    %v3234 = vld [vmem:[#allocation22 + $0xea8] sm:$0xff]
    %v3235 = vld [vmem:[#allocation22 + $0xeb0] sm:$0xff]
    %v3236 = vld [vmem:[#allocation22 + $0xeb8] sm:$0xff]
    %v3237 = vld [vmem:[#allocation22 + $0xec0] sm:$0xff]
    %v3238 = vld [vmem:[#allocation22 + $0xec8] sm:$0xff]
    %v3239 = vld [vmem:[#allocation22 + $0xed0] sm:$0xff]
    %v3240 = vld [vmem:[#allocation22 + $0xed8] sm:$0xff]
    %v3241 = vld [vmem:[#allocation22 + $0xee0] sm:$0xff]
    %v3242 = vld [vmem:[#allocation22 + $0xee8] sm:$0xff]
    %v3243 = vld [vmem:[#allocation22 + $0xef0] sm:$0xff]
    %v3244 = vld [vmem:[#allocation22 + $0xef8] sm:$0xff]
    %v3245 = vld [vmem:[#allocation22 + $0xf00] sm:$0xff]
    %v3246 = vld [vmem:[#allocation22 + $0xf08] sm:$0xff]
    %v3247 = vld [vmem:[#allocation22 + $0xf10] sm:$0xff]
    %v3248 = vld [vmem:[#allocation22 + $0xf18] sm:$0xff]
    %v3249 = vld [vmem:[#allocation22 + $0xf20] sm:$0xff]
    %v3250 = vld [vmem:[#allocation22 + $0xf28] sm:$0xff]
    %v3251 = vld [vmem:[#allocation22 + $0xf30] sm:$0xff]
    %v3252 = vld [vmem:[#allocation22 + $0xf38] sm:$0xff]
    %v3253 = vld [vmem:[#allocation22 + $0xf40] sm:$0xff]
    %v3254 = vld [vmem:[#allocation22 + $0xf48] sm:$0xff]
    %v3255 = vld [vmem:[#allocation22 + $0xf50] sm:$0xff]
    %v3256 = vld [vmem:[#allocation22 + $0xf58] sm:$0xff]
    %v3257 = vld [vmem:[#allocation22 + $0xf60] sm:$0xff]
    %v3258 = vld [vmem:[#allocation22 + $0xf68] sm:$0xff]
    %v3259 = vld [vmem:[#allocation22 + $0xf70] sm:$0xff]
    %v3260 = vld [vmem:[#allocation22 + $0xf78] sm:$0xff]
    %v3261 = vld [vmem:[#allocation22 + $0xf80] sm:$0xff]
    %v3262 = vld [vmem:[#allocation22 + $0xf88] sm:$0xff]
    %v3263 = vld [vmem:[#allocation22 + $0xf90] sm:$0xff]
    %v3264 = vld [vmem:[#allocation22 + $0xf98] sm:$0xff]
    %v3265 = vld [vmem:[#allocation22 + $0xfa0] sm:$0xff]
    %v3266 = vld [vmem:[#allocation22 + $0xfa8] sm:$0xff]
    %v3267 = vld [vmem:[#allocation22 + $0xfb0] sm:$0xff]
    %v3268 = vld [vmem:[#allocation22 + $0xfb8] sm:$0xff]
    %v3269 = vld [vmem:[#allocation22 + $0xfc0] sm:$0xff]
    %v3270 = vld [vmem:[#allocation22 + $0xfc8] sm:$0xff]
    %v3271 = vld [vmem:[#allocation22 + $0xfd0] sm:$0xff]
    %v3272 = vld [vmem:[#allocation22 + $0xfd8] sm:$0xff]
    %v3273 = vld [vmem:[#allocation22 + $0xfe0] sm:$0xff]
    %v3274 = vld [vmem:[#allocation22 + $0xfe8] sm:$0xff]
    %v3275 = vld [vmem:[#allocation22 + $0xff0] sm:$0xff]
    %v3276 = vld [vmem:[#allocation22 + $0xff8] sm:$0xff]
    %v3277 = vld [vmem:[#allocation22 + $0x1000] sm:$0xff]
    %v3278 = vld [vmem:[#allocation22 + $0x1008] sm:$0xff]
    %v3279 = vld [vmem:[#allocation22 + $0x1010] sm:$0xff]
    %v3280 = vld [vmem:[#allocation22 + $0x1018] sm:$0xff]
    %v3281 = vld [vmem:[#allocation22 + $0x1020] sm:$0xff]
    %v3282 = vld [vmem:[#allocation22 + $0x1028] sm:$0xff]
    %v3283 = vld [vmem:[#allocation22 + $0x1030] sm:$0xff]
    %v3284 = vld [vmem:[#allocation22 + $0x1038] sm:$0xff]
    %v3285 = vld [vmem:[#allocation22 + $0x1040] sm:$0xff]
    %v3286 = vld [vmem:[#allocation22 + $0x1048] sm:$0xff]
    %v3287 = vld [vmem:[#allocation22 + $0x1050] sm:$0xff]
    %v3288 = vld [vmem:[#allocation22 + $0x1058] sm:$0xff]
    %v3289 = vld [vmem:[#allocation22 + $0x1060] sm:$0xff]
    %v3290 = vld [vmem:[#allocation22 + $0x1068] sm:$0xff]
    %v3291 = vld [vmem:[#allocation22 + $0x1070] sm:$0xff]
    %v3292 = vld [vmem:[#allocation22 + $0x1078] sm:$0xff]
    %v3293 = vld [vmem:[#allocation22 + $0x1080] sm:$0xff]
    %v3294 = vld [vmem:[#allocation22 + $0x1088] sm:$0xff]
    %v3295 = vld [vmem:[#allocation22 + $0x1090] sm:$0xff]
    %v3296 = vld [vmem:[#allocation22 + $0x1098] sm:$0xff]
    %v3297 = vld [vmem:[#allocation22 + $0x10a0] sm:$0xff]
    %v3298 = vld [vmem:[#allocation22 + $0x10a8] sm:$0xff]
    %v3299 = vld [vmem:[#allocation22 + $0x10b0] sm:$0xff]
    %v3300 = vld [vmem:[#allocation22 + $0x10b8] sm:$0xff]
    %v3301 = vld [vmem:[#allocation22 + $0x10c0] sm:$0xff]
    %v3302 = vld [vmem:[#allocation22 + $0x10c8] sm:$0xff]
    %v3303 = vld [vmem:[#allocation22 + $0x10d0] sm:$0xff]
    %v3304 = vld [vmem:[#allocation22 + $0x10d8] sm:$0xff]
    %v3305 = vld [vmem:[#allocation22 + $0x10e0] sm:$0xff]
    %v3306 = vld [vmem:[#allocation22 + $0x10e8] sm:$0xff]
    %v3307 = vld [vmem:[#allocation22 + $0x10f0] sm:$0xff]
    %v3308 = vld [vmem:[#allocation22 + $0x10f8] sm:$0xff]
    %v3309 = vld [vmem:[#allocation22 + $0x1100] sm:$0xff]
    %v3310 = vld [vmem:[#allocation22 + $0x1108] sm:$0xff]
    %v3311 = vld [vmem:[#allocation22 + $0x1110] sm:$0xff]
    %v3312 = vld [vmem:[#allocation22 + $0x1118] sm:$0xff]
    %v3313 = vld [vmem:[#allocation22 + $0x1120] sm:$0xff]
    %v3314 = vld [vmem:[#allocation22 + $0x1128] sm:$0xff]
    %v3315 = vld [vmem:[#allocation22 + $0x1130] sm:$0xff]
    %v3316 = vld [vmem:[#allocation22 + $0x1138] sm:$0xff]
    %v3317 = vld [vmem:[#allocation22 + $0x1140] sm:$0xff]
    %v3318 = vld [vmem:[#allocation22 + $0x1148] sm:$0xff]
    %v3319 = vld [vmem:[#allocation22 + $0x1150] sm:$0xff]
    %v3320 = vld [vmem:[#allocation22 + $0x1158] sm:$0xff]
    %v3321 = vld [vmem:[#allocation22 + $0x1160] sm:$0xff]
    %v3322 = vld [vmem:[#allocation22 + $0x1168] sm:$0xff]
    %v3323 = vld [vmem:[#allocation22 + $0x1170] sm:$0xff]
    %v3324 = vld [vmem:[#allocation22 + $0x1178] sm:$0xff]
    %v3325 = vld [vmem:[#allocation22 + $0x1180] sm:$0xff]
    %v3326 = vld [vmem:[#allocation22 + $0x1188] sm:$0xff]
    %v3327 = vld [vmem:[#allocation22 + $0x1190] sm:$0xff]
    %v3328 = vld [vmem:[#allocation22 + $0x1198] sm:$0xff]
    %v3329 = vld [vmem:[#allocation22 + $0x11a0] sm:$0xff]
    %v3330 = vld [vmem:[#allocation22 + $0x11a8] sm:$0xff]
    %v3331 = vld [vmem:[#allocation22 + $0x11b0] sm:$0xff]
    %v3332 = vld [vmem:[#allocation22 + $0x11b8] sm:$0xff]
    %v3333 = vld [vmem:[#allocation22 + $0x11c0] sm:$0xff]
    %v3334 = vld [vmem:[#allocation22 + $0x11c8] sm:$0xff]
    %v3335 = vld [vmem:[#allocation22 + $0x11d0] sm:$0xff]
    %v3336 = vld [vmem:[#allocation22 + $0x11d8] sm:$0xff]
    %v3337 = vld [vmem:[#allocation22 + $0x11e0] sm:$0xff]
    %v3338 = vld [vmem:[#allocation22 + $0x11e8] sm:$0xff]
    %v3339 = vld [vmem:[#allocation22 + $0x11f0] sm:$0xff]
    %v3340 = vld [vmem:[#allocation22 + $0x11f8] sm:$0xff]
    %v3341 = vld [vmem:[#allocation22 + $0x1200] sm:$0xff]
    %v3342 = vld [vmem:[#allocation22 + $0x1208] sm:$0xff]
    %v3343 = vld [vmem:[#allocation22 + $0x1210] sm:$0xff]
    %v3344 = vld [vmem:[#allocation22 + $0x1218] sm:$0xff]
    %v3345 = vld [vmem:[#allocation22 + $0x1220] sm:$0xff]
    %v3346 = vld [vmem:[#allocation22 + $0x1228] sm:$0xff]
    %v3347 = vld [vmem:[#allocation22 + $0x1230] sm:$0xff]
    %v3348 = vld [vmem:[#allocation22 + $0x1238] sm:$0xff]
    %v3349 = vld [vmem:[#allocation22 + $0x1240] sm:$0xff]
    %v3350 = vld [vmem:[#allocation22 + $0x1248] sm:$0xff]
    %v3351 = vld [vmem:[#allocation22 + $0x1250] sm:$0xff]
    %v3352 = vld [vmem:[#allocation22 + $0x1258] sm:$0xff]
    %v3353 = vld [vmem:[#allocation22 + $0x1260] sm:$0xff]
    %v3354 = vld [vmem:[#allocation22 + $0x1268] sm:$0xff]
    %v3355 = vld [vmem:[#allocation22 + $0x1270] sm:$0xff]
    %v3356 = vld [vmem:[#allocation22 + $0x1278] sm:$0xff]
    %v3357 = vld [vmem:[#allocation22 + $0x1280] sm:$0xff]
    %v3358 = vld [vmem:[#allocation22 + $0x1288] sm:$0xff]
    %v3359 = vld [vmem:[#allocation22 + $0x1290] sm:$0xff]
    %v3360 = vld [vmem:[#allocation22 + $0x1298] sm:$0xff]
    %v3361 = vld [vmem:[#allocation22 + $0x12a0] sm:$0xff]
    %v3362 = vld [vmem:[#allocation22 + $0x12a8] sm:$0xff]
    %v3363 = vld [vmem:[#allocation22 + $0x12b0] sm:$0xff]
    %v3364 = vld [vmem:[#allocation22 + $0x12b8] sm:$0xff]
    %v3365 = vld [vmem:[#allocation22 + $0x12c0] sm:$0xff]
    %v3366 = vld [vmem:[#allocation22 + $0x12c8] sm:$0xff]
    %v3367 = vld [vmem:[#allocation22 + $0x12d0] sm:$0xff]
    %v3368 = vld [vmem:[#allocation22 + $0x12d8] sm:$0xff]
    %v3369 = vld [vmem:[#allocation22 + $0x12e0] sm:$0xff]
    %v3370 = vld [vmem:[#allocation22 + $0x12e8] sm:$0xff]
    %v3371 = vld [vmem:[#allocation22 + $0x12f0] sm:$0xff]
    %v3372 = vld [vmem:[#allocation22 + $0x12f8] sm:$0xff]
    %v3373 = vld [vmem:[#allocation22 + $0x1300] sm:$0xff]
    %v3374 = vld [vmem:[#allocation22 + $0x1308] sm:$0xff]
    %v3375 = vld [vmem:[#allocation22 + $0x1310] sm:$0xff]
    %v3376 = vld [vmem:[#allocation22 + $0x1318] sm:$0xff]
    %v3377 = vld [vmem:[#allocation22 + $0x1320] sm:$0xff]
    %v3378 = vld [vmem:[#allocation22 + $0x1328] sm:$0xff]
    %v3379 = vld [vmem:[#allocation22 + $0x1330] sm:$0xff]
    %v3380 = vld [vmem:[#allocation22 + $0x1338] sm:$0xff]
    %v3381 = vld [vmem:[#allocation22 + $0x1340] sm:$0xff]
    %v3382 = vld [vmem:[#allocation22 + $0x1348] sm:$0xff]
    %v3383 = vld [vmem:[#allocation22 + $0x1350] sm:$0xff]
    %v3384 = vld [vmem:[#allocation22 + $0x1358] sm:$0xff]
    %v3385 = vld [vmem:[#allocation22 + $0x1360] sm:$0xff]
    %v3386 = vld [vmem:[#allocation22 + $0x1368] sm:$0xff]
    %v3387 = vld [vmem:[#allocation22 + $0x1370] sm:$0xff]
    %v3388 = vld [vmem:[#allocation22 + $0x1378] sm:$0xff]
    %v3389 = vld [vmem:[#allocation22 + $0x1380] sm:$0xff]
    %v3390 = vld [vmem:[#allocation22 + $0x1388] sm:$0xff]
    %v3391 = vld [vmem:[#allocation22 + $0x1390] sm:$0xff]
    %v3392 = vld [vmem:[#allocation22 + $0x1398] sm:$0xff]
    %v3393 = vld [vmem:[#allocation22 + $0x13a0] sm:$0xff]
    %v3394 = vld [vmem:[#allocation22 + $0x13a8] sm:$0xff]
    %v3395 = vld [vmem:[#allocation22 + $0x13b0] sm:$0xff]
    %v3396 = vld [vmem:[#allocation22 + $0x13b8] sm:$0xff]
    %v3397 = vld [vmem:[#allocation22 + $0x13c0] sm:$0xff]
    %v3398 = vld [vmem:[#allocation22 + $0x13c8] sm:$0xff]
    %v3399 = vld [vmem:[#allocation22 + $0x13d0] sm:$0xff]
    %v3400 = vld [vmem:[#allocation22 + $0x13d8] sm:$0xff]
    %v3401 = vld [vmem:[#allocation22 + $0x13e0] sm:$0xff]
    %v3402 = vld [vmem:[#allocation22 + $0x13e8] sm:$0xff]
    %v3403 = vld [vmem:[#allocation22 + $0x13f0] sm:$0xff]
    %v3404 = vld [vmem:[#allocation22 + $0x13f8] sm:$0xff]
    %v3405 = vld [vmem:[#allocation22 + $0x1400] sm:$0xff]
    %v3406 = vld [vmem:[#allocation22 + $0x1408] sm:$0xff]
    %v3407 = vld [vmem:[#allocation22 + $0x1410] sm:$0xff]
    %v3408 = vld [vmem:[#allocation22 + $0x1418] sm:$0xff]
    %v3409 = vld [vmem:[#allocation22 + $0x1420] sm:$0xff]
    %v3410 = vld [vmem:[#allocation22 + $0x1428] sm:$0xff]
    %v3411 = vld [vmem:[#allocation22 + $0x1430] sm:$0xff]
    %v3412 = vld [vmem:[#allocation22 + $0x1438] sm:$0xff]
    %v3413 = vld [vmem:[#allocation22 + $0x1440] sm:$0xff]
    %v3414 = vld [vmem:[#allocation22 + $0x1448] sm:$0xff]
    %v3415 = vld [vmem:[#allocation22 + $0x1450] sm:$0xff]
    %v3416 = vld [vmem:[#allocation22 + $0x1458] sm:$0xff]
    %v3417 = vld [vmem:[#allocation22 + $0x1460] sm:$0xff]
    %v3418 = vld [vmem:[#allocation22 + $0x1468] sm:$0xff]
    %v3419 = vld [vmem:[#allocation22 + $0x1470] sm:$0xff]
    %v3420 = vld [vmem:[#allocation22 + $0x1478] sm:$0xff]
    %v3421 = vld [vmem:[#allocation22 + $0x1480] sm:$0xff]
    %v3422 = vld [vmem:[#allocation22 + $0x1488] sm:$0xff]
    %v3423 = vld [vmem:[#allocation22 + $0x1490] sm:$0xff]
    %v3424 = vld [vmem:[#allocation22 + $0x1498] sm:$0xff]
    %v3425 = vld [vmem:[#allocation22 + $0x14a0] sm:$0xff]
    %v3426 = vld [vmem:[#allocation22 + $0x14a8] sm:$0xff]
    %v3427 = vld [vmem:[#allocation22 + $0x14b0] sm:$0xff]
    %v3428 = vld [vmem:[#allocation22 + $0x14b8] sm:$0xff]
    %v3429 = vld [vmem:[#allocation22 + $0x14c0] sm:$0xff]
    %v3430 = vld [vmem:[#allocation22 + $0x14c8] sm:$0xff]
    %v3431 = vld [vmem:[#allocation22 + $0x14d0] sm:$0xff]
    %v3432 = vld [vmem:[#allocation22 + $0x14d8] sm:$0xff]
    %v3433 = vld [vmem:[#allocation22 + $0x14e0] sm:$0xff]
    %v3434 = vld [vmem:[#allocation22 + $0x14e8] sm:$0xff]
    %v3435 = vld [vmem:[#allocation22 + $0x14f0] sm:$0xff]
    %v3436 = vld [vmem:[#allocation22 + $0x14f8] sm:$0xff]
    %v3437 = vld [vmem:[#allocation22 + $0x1500] sm:$0xff]
    %v3438 = vld [vmem:[#allocation22 + $0x1508] sm:$0xff]
    %v3439 = vld [vmem:[#allocation22 + $0x1510] sm:$0xff]
    %v3440 = vld [vmem:[#allocation22 + $0x1518] sm:$0xff]
    %v3441 = vld [vmem:[#allocation22 + $0x1520] sm:$0xff]
    %v3442 = vld [vmem:[#allocation22 + $0x1528] sm:$0xff]
    %v3443 = vld [vmem:[#allocation22 + $0x1530] sm:$0xff]
    %v3444 = vld [vmem:[#allocation22 + $0x1538] sm:$0xff]
    %v3445 = vld [vmem:[#allocation22 + $0x1540] sm:$0xff]
    %v3446 = vld [vmem:[#allocation22 + $0x1548] sm:$0xff]
    %v3447 = vld [vmem:[#allocation22 + $0x1550] sm:$0xff]
    %v3448 = vld [vmem:[#allocation22 + $0x1558] sm:$0xff]
    %v3449 = vld [vmem:[#allocation22 + $0x1560] sm:$0xff]
    %v3450 = vld [vmem:[#allocation22 + $0x1568] sm:$0xff]
    %v3451 = vld [vmem:[#allocation22 + $0x1570] sm:$0xff]
    %v3452 = vld [vmem:[#allocation22 + $0x1578] sm:$0xff]
    %v3453 = vld [vmem:[#allocation22 + $0x1580] sm:$0xff]
    %v3454 = vld [vmem:[#allocation22 + $0x1588] sm:$0xff]
    %v3455 = vld [vmem:[#allocation22 + $0x1590] sm:$0xff]
    %v3456 = vld [vmem:[#allocation22 + $0x1598] sm:$0xff]
    %v3457 = vld [vmem:[#allocation22 + $0x15a0] sm:$0xff]
    %v3458 = vld [vmem:[#allocation22 + $0x15a8] sm:$0xff]
    %v3459 = vld [vmem:[#allocation22 + $0x15b0] sm:$0xff]
    %v3460 = vld [vmem:[#allocation22 + $0x15b8] sm:$0xff]
    %v3461 = vld [vmem:[#allocation22 + $0x15c0] sm:$0xff]
    %v3462 = vld [vmem:[#allocation22 + $0x15c8] sm:$0xff]
    %v3463 = vld [vmem:[#allocation22 + $0x15d0] sm:$0xff]
    %v3464 = vld [vmem:[#allocation22 + $0x15d8] sm:$0xff]
    %v3465 = vld [vmem:[#allocation22 + $0x15e0] sm:$0xff]
    %v3466 = vld [vmem:[#allocation22 + $0x15e8] sm:$0xff]
    %v3467 = vld [vmem:[#allocation22 + $0x15f0] sm:$0xff]
    %v3468 = vld [vmem:[#allocation22 + $0x15f8] sm:$0xff]
    %v3469 = vld [vmem:[#allocation22 + $0x1600] sm:$0xff]
    %v3470 = vld [vmem:[#allocation22 + $0x1608] sm:$0xff]
    %v3471 = vld [vmem:[#allocation22 + $0x1610] sm:$0xff]
    %v3472 = vld [vmem:[#allocation22 + $0x1618] sm:$0xff]
    %v3473 = vld [vmem:[#allocation22 + $0x1620] sm:$0xff]
    %v3474 = vld [vmem:[#allocation22 + $0x1628] sm:$0xff]
    %v3475 = vld [vmem:[#allocation22 + $0x1630] sm:$0xff]
    %v3476 = vld [vmem:[#allocation22 + $0x1638] sm:$0xff]
    %v3477 = vld [vmem:[#allocation22 + $0x1640] sm:$0xff]
    %v3478 = vld [vmem:[#allocation22 + $0x1648] sm:$0xff]
    %v3479 = vld [vmem:[#allocation22 + $0x1650] sm:$0xff]
    %v3480 = vld [vmem:[#allocation22 + $0x1658] sm:$0xff]
    %v3481 = vld [vmem:[#allocation22 + $0x1660] sm:$0xff]
    %v3482 = vld [vmem:[#allocation22 + $0x1668] sm:$0xff]
    %v3483 = vld [vmem:[#allocation22 + $0x1670] sm:$0xff]
    %v3484 = vld [vmem:[#allocation22 + $0x1678] sm:$0xff]
    %v3485 = vld [vmem:[#allocation22 + $0x1680] sm:$0xff]
    %v3486 = vld [vmem:[#allocation22 + $0x1688] sm:$0xff]
    %v3487 = vld [vmem:[#allocation22 + $0x1690] sm:$0xff]
    %v3488 = vld [vmem:[#allocation22 + $0x1698] sm:$0xff]
    %v3489 = vld [vmem:[#allocation22 + $0x16a0] sm:$0xff]
    %v3490 = vld [vmem:[#allocation22 + $0x16a8] sm:$0xff]
    %v3491 = vld [vmem:[#allocation22 + $0x16b0] sm:$0xff]
    %v3492 = vld [vmem:[#allocation22 + $0x16b8] sm:$0xff]
    %v3493 = vld [vmem:[#allocation22 + $0x16c0] sm:$0xff]
    %v3494 = vld [vmem:[#allocation22 + $0x16c8] sm:$0xff]
    %v3495 = vld [vmem:[#allocation22 + $0x16d0] sm:$0xff]
    %v3496 = vld [vmem:[#allocation22 + $0x16d8] sm:$0xff]
    %v3497 = vld [vmem:[#allocation22 + $0x16e0] sm:$0xff]
    %v3498 = vld [vmem:[#allocation22 + $0x16e8] sm:$0xff]
    %v3499 = vld [vmem:[#allocation22 + $0x16f0] sm:$0xff]
    %v3500 = vld [vmem:[#allocation22 + $0x16f8] sm:$0xff]
    %v3501 = vld [vmem:[#allocation22 + $0x1700] sm:$0xff]
    %v3502 = vld [vmem:[#allocation22 + $0x1708] sm:$0xff]
    %v3503 = vld [vmem:[#allocation22 + $0x1710] sm:$0xff]
    %v3504 = vld [vmem:[#allocation22 + $0x1718] sm:$0xff]
    %v3505 = vld [vmem:[#allocation22 + $0x1720] sm:$0xff]
    %v3506 = vld [vmem:[#allocation22 + $0x1728] sm:$0xff]
    %v3507 = vld [vmem:[#allocation22 + $0x1730] sm:$0xff]
    %v3508 = vld [vmem:[#allocation22 + $0x1738] sm:$0xff]
    %v3509 = vld [vmem:[#allocation22 + $0x1740] sm:$0xff]
    %v3510 = vld [vmem:[#allocation22 + $0x1748] sm:$0xff]
    %v3511 = vld [vmem:[#allocation22 + $0x1750] sm:$0xff]
    %v3512 = vld [vmem:[#allocation22 + $0x1758] sm:$0xff]
    %v3513 = vld [vmem:[#allocation22 + $0x1760] sm:$0xff]
    %v3514 = vld [vmem:[#allocation22 + $0x1768] sm:$0xff]
    %v3515 = vld [vmem:[#allocation22 + $0x1770] sm:$0xff]
    %v3516 = vld [vmem:[#allocation22 + $0x1778] sm:$0xff]
    %v3517 = vld [vmem:[#allocation22 + $0x1780] sm:$0xff]
    %v3518 = vld [vmem:[#allocation22 + $0x1788] sm:$0xff]
    %v3519 = vld [vmem:[#allocation22 + $0x1790] sm:$0xff]
    %v3520 = vld [vmem:[#allocation22 + $0x1798] sm:$0xff]
    %v3521 = vld [vmem:[#allocation22 + $0x17a0] sm:$0xff]
    %v3522 = vld [vmem:[#allocation22 + $0x17a8] sm:$0xff]
    %v3523 = vld [vmem:[#allocation22 + $0x17b0] sm:$0xff]
    %v3524 = vld [vmem:[#allocation22 + $0x17b8] sm:$0xff]
    %v3525 = vld [vmem:[#allocation22 + $0x17c0] sm:$0xff]
    %v3526 = vld [vmem:[#allocation22 + $0x17c8] sm:$0xff]
    %v3527 = vld [vmem:[#allocation22 + $0x17d0] sm:$0xff]
    %v3528 = vld [vmem:[#allocation22 + $0x17d8] sm:$0xff]
    %v3529 = vld [vmem:[#allocation22 + $0x17e0] sm:$0xff]
    %v3530 = vld [vmem:[#allocation22 + $0x17e8] sm:$0xff]
    %v3531 = vld [vmem:[#allocation22 + $0x17f0] sm:$0xff]
    %v3532 = vld [vmem:[#allocation22 + $0x17f8] sm:$0xff]
    %v3533 = vld [vmem:[#allocation23] sm:$0xf]
    %v3535 = vlaneseq
    %v3536 = vshrl.u32 %v3535, 7
    %v3537 = vsub.s32 0, %v3536
    %v3538 = vrot.slane %v3533, %v3537
    %v3539 = vlaneseq
    %v3540 = vshrl.u32 %v3539, 7
    %v3541 = vsub.s32 1, %v3540
    %v3542 = vrot.slane %v3533, %v3541
    %v3543 = vlaneseq
    %v3544 = vshrl.u32 %v3543, 7
    %v3545 = vsub.s32 2, %v3544
    %v3546 = vrot.slane %v3533, %v3545
    %v3547 = vlaneseq
    %v3548 = vshrl.u32 %v3547, 7
    %v3549 = vsub.s32 3, %v3548
    %v3550 = vrot.slane %v3533, %v3549
    %v4323 = vunpack.c.l.b16 %v2765
    %v4324 = vunpack.c.h.b16 %v2765
    %v4325 = vunpack.c.l.b16 %v2766
    %v4326 = vunpack.c.h.b16 %v2766
    %v4327 = vunpack.c.l.b16 %v2767
    %v4328 = vunpack.c.h.b16 %v2767
    %v4329 = vunpack.c.l.b16 %v2768
    %v4330 = vunpack.c.h.b16 %v2768
    %v4331 = vunpack.c.l.b16 %v2769
    %v4332 = vunpack.c.h.b16 %v2769
    %v4333 = vunpack.c.l.b16 %v2770
    %v4334 = vunpack.c.h.b16 %v2770
    %v4335 = vunpack.c.l.b16 %v2771
    %v4336 = vunpack.c.h.b16 %v2771
    %v4337 = vunpack.c.l.b16 %v2772
    %v4338 = vunpack.c.h.b16 %v2772
    %v4339 = vunpack.c.l.b16 %v2773
    %v4340 = vunpack.c.h.b16 %v2773
    %v4341 = vunpack.c.l.b16 %v2774
    %v4342 = vunpack.c.h.b16 %v2774
    %v4343 = vunpack.c.l.b16 %v2775
    %v4344 = vunpack.c.h.b16 %v2775
    %v4345 = vunpack.c.l.b16 %v2776
    %v4346 = vunpack.c.h.b16 %v2776
    %v4347 = vunpack.c.l.b16 %v2777
    %v4348 = vunpack.c.h.b16 %v2777
    %v4349 = vunpack.c.l.b16 %v2778
    %v4350 = vunpack.c.h.b16 %v2778
    %v4351 = vunpack.c.l.b16 %v2779
    %v4352 = vunpack.c.h.b16 %v2779
    %v4353 = vunpack.c.l.b16 %v2780
    %v4354 = vunpack.c.h.b16 %v2780
    %v4355 = vunpack.c.l.b16 %v2781
    %v4356 = vunpack.c.h.b16 %v2781
    %v4357 = vunpack.c.l.b16 %v2782
    %v4358 = vunpack.c.h.b16 %v2782
    %v4359 = vunpack.c.l.b16 %v2783
    %v4360 = vunpack.c.h.b16 %v2783
    %v4361 = vunpack.c.l.b16 %v2784
    %v4362 = vunpack.c.h.b16 %v2784
    %v4363 = vunpack.c.l.b16 %v2785
    %v4364 = vunpack.c.h.b16 %v2785
    %v4365 = vunpack.c.l.b16 %v2786
    %v4366 = vunpack.c.h.b16 %v2786
    %v4367 = vunpack.c.l.b16 %v2787
    %v4368 = vunpack.c.h.b16 %v2787
    %v4369 = vunpack.c.l.b16 %v2788
    %v4370 = vunpack.c.h.b16 %v2788
    %v4371 = vunpack.c.l.b16 %v2789
    %v4372 = vunpack.c.h.b16 %v2789
    %v4373 = vunpack.c.l.b16 %v2790
    %v4374 = vunpack.c.h.b16 %v2790
    %v4375 = vunpack.c.l.b16 %v2791
    %v4376 = vunpack.c.h.b16 %v2791
    %v4377 = vunpack.c.l.b16 %v2792
    %v4378 = vunpack.c.h.b16 %v2792
    %v4379 = vunpack.c.l.b16 %v2793
    %v4380 = vunpack.c.h.b16 %v2793
    %v4381 = vunpack.c.l.b16 %v2794
    %v4382 = vunpack.c.h.b16 %v2794
    %v4383 = vunpack.c.l.b16 %v2795
    %v4384 = vunpack.c.h.b16 %v2795
    %v4385 = vunpack.c.l.b16 %v2796
    %v4386 = vunpack.c.h.b16 %v2796
    %v4387 = vunpack.c.l.b16 %v2797
    %v4388 = vunpack.c.h.b16 %v2797
    %v4389 = vunpack.c.l.b16 %v2798
    %v4390 = vunpack.c.h.b16 %v2798
    %v4391 = vunpack.c.l.b16 %v2799
    %v4392 = vunpack.c.h.b16 %v2799
    %v4393 = vunpack.c.l.b16 %v2800
    %v4394 = vunpack.c.h.b16 %v2800
    %v4395 = vunpack.c.l.b16 %v2801
    %v4396 = vunpack.c.h.b16 %v2801
    %v4397 = vunpack.c.l.b16 %v2802
    %v4398 = vunpack.c.h.b16 %v2802
    %v4399 = vunpack.c.l.b16 %v2803
    %v4400 = vunpack.c.h.b16 %v2803
    %v4401 = vunpack.c.l.b16 %v2804
    %v4402 = vunpack.c.h.b16 %v2804
    %v4403 = vunpack.c.l.b16 %v2805
    %v4404 = vunpack.c.h.b16 %v2805
    %v4405 = vunpack.c.l.b16 %v2806
    %v4406 = vunpack.c.h.b16 %v2806
    %v4407 = vunpack.c.l.b16 %v2807
    %v4408 = vunpack.c.h.b16 %v2807
    %v4409 = vunpack.c.l.b16 %v2808
    %v4410 = vunpack.c.h.b16 %v2808
    %v4411 = vunpack.c.l.b16 %v2809
    %v4412 = vunpack.c.h.b16 %v2809
    %v4413 = vunpack.c.l.b16 %v2810
    %v4414 = vunpack.c.h.b16 %v2810
    %v4415 = vunpack.c.l.b16 %v2811
    %v4416 = vunpack.c.h.b16 %v2811
    %v4417 = vunpack.c.l.b16 %v2812
    %v4418 = vunpack.c.h.b16 %v2812
    %v4419 = vunpack.c.l.b16 %v2813
    %v4420 = vunpack.c.h.b16 %v2813
    %v4421 = vunpack.c.l.b16 %v2814
    %v4422 = vunpack.c.h.b16 %v2814
    %v4423 = vunpack.c.l.b16 %v2815
    %v4424 = vunpack.c.h.b16 %v2815
    %v4425 = vunpack.c.l.b16 %v2816
    %v4426 = vunpack.c.h.b16 %v2816
    %v4427 = vunpack.c.l.b16 %v2817
    %v4428 = vunpack.c.h.b16 %v2817
    %v4429 = vunpack.c.l.b16 %v2818
    %v4430 = vunpack.c.h.b16 %v2818
    %v4431 = vunpack.c.l.b16 %v2819
    %v4432 = vunpack.c.h.b16 %v2819
    %v4433 = vunpack.c.l.b16 %v2820
    %v4434 = vunpack.c.h.b16 %v2820
    %v4435 = vunpack.c.l.b16 %v2821
    %v4436 = vunpack.c.h.b16 %v2821
    %v4437 = vunpack.c.l.b16 %v2822
    %v4438 = vunpack.c.h.b16 %v2822
    %v4439 = vunpack.c.l.b16 %v2823
    %v4440 = vunpack.c.h.b16 %v2823
    %v4441 = vunpack.c.l.b16 %v2824
    %v4442 = vunpack.c.h.b16 %v2824
    %v4443 = vunpack.c.l.b16 %v2825
    %v4444 = vunpack.c.h.b16 %v2825
    %v4445 = vunpack.c.l.b16 %v2826
    %v4446 = vunpack.c.h.b16 %v2826
    %v4447 = vunpack.c.l.b16 %v2827
    %v4448 = vunpack.c.h.b16 %v2827
    %v4449 = vunpack.c.l.b16 %v2828
    %v4450 = vunpack.c.h.b16 %v2828
    %v4451 = vunpack.c.l.b16 %v2829
    %v4452 = vunpack.c.h.b16 %v2829
    %v4453 = vunpack.c.l.b16 %v2830
    %v4454 = vunpack.c.h.b16 %v2830
    %v4455 = vunpack.c.l.b16 %v2831
    %v4456 = vunpack.c.h.b16 %v2831
    %v4457 = vunpack.c.l.b16 %v2832
    %v4458 = vunpack.c.h.b16 %v2832
    %v4459 = vunpack.c.l.b16 %v2833
    %v4460 = vunpack.c.h.b16 %v2833
    %v4461 = vunpack.c.l.b16 %v2834
    %v4462 = vunpack.c.h.b16 %v2834
    %v4463 = vunpack.c.l.b16 %v2835
    %v4464 = vunpack.c.h.b16 %v2835
    %v4465 = vunpack.c.l.b16 %v2836
    %v4466 = vunpack.c.h.b16 %v2836
    %v4467 = vunpack.c.l.b16 %v2837
    %v4468 = vunpack.c.h.b16 %v2837
    %v4469 = vunpack.c.l.b16 %v2838
    %v4470 = vunpack.c.h.b16 %v2838
    %v4471 = vunpack.c.l.b16 %v2839
    %v4472 = vunpack.c.h.b16 %v2839
    %v4473 = vunpack.c.l.b16 %v2840
    %v4474 = vunpack.c.h.b16 %v2840
    %v4475 = vunpack.c.l.b16 %v2841
    %v4476 = vunpack.c.h.b16 %v2841
    %v4477 = vunpack.c.l.b16 %v2842
    %v4478 = vunpack.c.h.b16 %v2842
    %v4479 = vunpack.c.l.b16 %v2843
    %v4480 = vunpack.c.h.b16 %v2843
    %v4481 = vunpack.c.l.b16 %v2844
    %v4482 = vunpack.c.h.b16 %v2844
    %v4483 = vunpack.c.l.b16 %v2845
    %v4484 = vunpack.c.h.b16 %v2845
    %v4485 = vunpack.c.l.b16 %v2846
    %v4486 = vunpack.c.h.b16 %v2846
    %v4487 = vunpack.c.l.b16 %v2847
    %v4488 = vunpack.c.h.b16 %v2847
    %v4489 = vunpack.c.l.b16 %v2848
    %v4490 = vunpack.c.h.b16 %v2848
    %v4491 = vunpack.c.l.b16 %v2849
    %v4492 = vunpack.c.h.b16 %v2849
    %v4493 = vunpack.c.l.b16 %v2850
    %v4494 = vunpack.c.h.b16 %v2850
    %v4495 = vunpack.c.l.b16 %v2851
    %v4496 = vunpack.c.h.b16 %v2851
    %v4497 = vunpack.c.l.b16 %v2852
    %v4498 = vunpack.c.h.b16 %v2852
    %v4499 = vunpack.c.l.b16 %v2853
    %v4500 = vunpack.c.h.b16 %v2853
    %v4501 = vunpack.c.l.b16 %v2854
    %v4502 = vunpack.c.h.b16 %v2854
    %v4503 = vunpack.c.l.b16 %v2855
    %v4504 = vunpack.c.h.b16 %v2855
    %v4505 = vunpack.c.l.b16 %v2856
    %v4506 = vunpack.c.h.b16 %v2856
    %v4507 = vunpack.c.l.b16 %v2857
    %v4508 = vunpack.c.h.b16 %v2857
    %v4509 = vunpack.c.l.b16 %v2858
    %v4510 = vunpack.c.h.b16 %v2858
    %v4511 = vunpack.c.l.b16 %v2859
    %v4512 = vunpack.c.h.b16 %v2859
    %v4513 = vunpack.c.l.b16 %v2860
    %v4514 = vunpack.c.h.b16 %v2860
    %v4515 = vunpack.c.l.b16 %v2861
    %v4516 = vunpack.c.h.b16 %v2861
    %v4517 = vunpack.c.l.b16 %v2862
    %v4518 = vunpack.c.h.b16 %v2862
    %v4519 = vunpack.c.l.b16 %v2863
    %v4520 = vunpack.c.h.b16 %v2863
    %v4521 = vunpack.c.l.b16 %v2864
    %v4522 = vunpack.c.h.b16 %v2864
    %v4523 = vunpack.c.l.b16 %v2865
    %v4524 = vunpack.c.h.b16 %v2865
    %v4525 = vunpack.c.l.b16 %v2866
    %v4526 = vunpack.c.h.b16 %v2866
    %v4527 = vunpack.c.l.b16 %v2867
    %v4528 = vunpack.c.h.b16 %v2867
    %v4529 = vunpack.c.l.b16 %v2868
    %v4530 = vunpack.c.h.b16 %v2868
    %v4531 = vunpack.c.l.b16 %v2869
    %v4532 = vunpack.c.h.b16 %v2869
    %v4533 = vunpack.c.l.b16 %v2870
    %v4534 = vunpack.c.h.b16 %v2870
    %v4535 = vunpack.c.l.b16 %v2871
    %v4536 = vunpack.c.h.b16 %v2871
    %v4537 = vunpack.c.l.b16 %v2872
    %v4538 = vunpack.c.h.b16 %v2872
    %v4539 = vunpack.c.l.b16 %v2873
    %v4540 = vunpack.c.h.b16 %v2873
    %v4541 = vunpack.c.l.b16 %v2874
    %v4542 = vunpack.c.h.b16 %v2874
    %v4543 = vunpack.c.l.b16 %v2875
    %v4544 = vunpack.c.h.b16 %v2875
    %v4545 = vunpack.c.l.b16 %v2876
    %v4546 = vunpack.c.h.b16 %v2876
    %v4547 = vunpack.c.l.b16 %v2877
    %v4548 = vunpack.c.h.b16 %v2877
    %v4549 = vunpack.c.l.b16 %v2878
    %v4550 = vunpack.c.h.b16 %v2878
    %v4551 = vunpack.c.l.b16 %v2879
    %v4552 = vunpack.c.h.b16 %v2879
    %v4553 = vunpack.c.l.b16 %v2880
    %v4554 = vunpack.c.h.b16 %v2880
    %v4555 = vunpack.c.l.b16 %v2881
    %v4556 = vunpack.c.h.b16 %v2881
    %v4557 = vunpack.c.l.b16 %v2882
    %v4558 = vunpack.c.h.b16 %v2882
    %v4559 = vunpack.c.l.b16 %v2883
    %v4560 = vunpack.c.h.b16 %v2883
    %v4561 = vunpack.c.l.b16 %v2884
    %v4562 = vunpack.c.h.b16 %v2884
    %v4563 = vunpack.c.l.b16 %v2885
    %v4564 = vunpack.c.h.b16 %v2885
    %v4565 = vunpack.c.l.b16 %v2886
    %v4566 = vunpack.c.h.b16 %v2886
    %v4567 = vunpack.c.l.b16 %v2887
    %v4568 = vunpack.c.h.b16 %v2887
    %v4569 = vunpack.c.l.b16 %v2888
    %v4570 = vunpack.c.h.b16 %v2888
    %v4571 = vunpack.c.l.b16 %v2889
    %v4572 = vunpack.c.h.b16 %v2889
    %v4573 = vunpack.c.l.b16 %v2890
    %v4574 = vunpack.c.h.b16 %v2890
    %v4575 = vunpack.c.l.b16 %v2891
    %v4576 = vunpack.c.h.b16 %v2891
    %v4577 = vunpack.c.l.b16 %v2892
    %v4578 = vunpack.c.h.b16 %v2892
    %v4579 = vunpack.c.l.b16 %v2893
    %v4580 = vunpack.c.h.b16 %v2893
    %v4581 = vunpack.c.l.b16 %v2894
    %v4582 = vunpack.c.h.b16 %v2894
    %v4583 = vunpack.c.l.b16 %v2895
    %v4584 = vunpack.c.h.b16 %v2895
    %v4585 = vunpack.c.l.b16 %v2896
    %v4586 = vunpack.c.h.b16 %v2896
    %v4587 = vunpack.c.l.b16 %v2897
    %v4588 = vunpack.c.h.b16 %v2897
    %v4589 = vunpack.c.l.b16 %v2898
    %v4590 = vunpack.c.h.b16 %v2898
    %v4591 = vunpack.c.l.b16 %v2899
    %v4592 = vunpack.c.h.b16 %v2899
    %v4593 = vunpack.c.l.b16 %v2900
    %v4594 = vunpack.c.h.b16 %v2900
    %v4595 = vunpack.c.l.b16 %v2901
    %v4596 = vunpack.c.h.b16 %v2901
    %v4597 = vunpack.c.l.b16 %v2902
    %v4598 = vunpack.c.h.b16 %v2902
    %v4599 = vunpack.c.l.b16 %v2903
    %v4600 = vunpack.c.h.b16 %v2903
    %v4601 = vunpack.c.l.b16 %v2904
    %v4602 = vunpack.c.h.b16 %v2904
    %v4603 = vunpack.c.l.b16 %v2905
    %v4604 = vunpack.c.h.b16 %v2905
    %v4605 = vunpack.c.l.b16 %v2906
    %v4606 = vunpack.c.h.b16 %v2906
    %v4607 = vunpack.c.l.b16 %v2907
    %v4608 = vunpack.c.h.b16 %v2907
    %v4609 = vunpack.c.l.b16 %v2908
    %v4610 = vunpack.c.h.b16 %v2908
    %v4611 = vunpack.c.l.b16 %v2909
    %v4612 = vunpack.c.h.b16 %v2909
    %v4613 = vunpack.c.l.b16 %v2910
    %v4614 = vunpack.c.h.b16 %v2910
    %v4615 = vunpack.c.l.b16 %v2911
    %v4616 = vunpack.c.h.b16 %v2911
    %v4617 = vunpack.c.l.b16 %v2912
    %v4618 = vunpack.c.h.b16 %v2912
    %v4619 = vunpack.c.l.b16 %v2913
    %v4620 = vunpack.c.h.b16 %v2913
    %v4621 = vunpack.c.l.b16 %v2914
    %v4622 = vunpack.c.h.b16 %v2914
    %v4623 = vunpack.c.l.b16 %v2915
    %v4624 = vunpack.c.h.b16 %v2915
    %v4625 = vunpack.c.l.b16 %v2916
    %v4626 = vunpack.c.h.b16 %v2916
    %v4627 = vunpack.c.l.b16 %v2917
    %v4628 = vunpack.c.h.b16 %v2917
    %v4629 = vunpack.c.l.b16 %v2918
    %v4630 = vunpack.c.h.b16 %v2918
    %v4631 = vunpack.c.l.b16 %v2919
    %v4632 = vunpack.c.h.b16 %v2919
    %v4633 = vunpack.c.l.b16 %v2920
    %v4634 = vunpack.c.h.b16 %v2920
    %v4635 = vunpack.c.l.b16 %v2921
    %v4636 = vunpack.c.h.b16 %v2921
    %v4637 = vunpack.c.l.b16 %v2922
    %v4638 = vunpack.c.h.b16 %v2922
    %v4639 = vunpack.c.l.b16 %v2923
    %v4640 = vunpack.c.h.b16 %v2923
    %v4641 = vunpack.c.l.b16 %v2924
    %v4642 = vunpack.c.h.b16 %v2924
    %v4643 = vunpack.c.l.b16 %v2925
    %v4644 = vunpack.c.h.b16 %v2925
    %v4645 = vunpack.c.l.b16 %v2926
    %v4646 = vunpack.c.h.b16 %v2926
    %v4647 = vunpack.c.l.b16 %v2927
    %v4648 = vunpack.c.h.b16 %v2927
    %v4649 = vunpack.c.l.b16 %v2928
    %v4650 = vunpack.c.h.b16 %v2928
    %v4651 = vunpack.c.l.b16 %v2929
    %v4652 = vunpack.c.h.b16 %v2929
    %v4653 = vunpack.c.l.b16 %v2930
    %v4654 = vunpack.c.h.b16 %v2930
    %v4655 = vunpack.c.l.b16 %v2931
    %v4656 = vunpack.c.h.b16 %v2931
    %v4657 = vunpack.c.l.b16 %v2932
    %v4658 = vunpack.c.h.b16 %v2932
    %v4659 = vunpack.c.l.b16 %v2933
    %v4660 = vunpack.c.h.b16 %v2933
    %v4661 = vunpack.c.l.b16 %v2934
    %v4662 = vunpack.c.h.b16 %v2934
    %v4663 = vunpack.c.l.b16 %v2935
    %v4664 = vunpack.c.h.b16 %v2935
    %v4665 = vunpack.c.l.b16 %v2936
    %v4666 = vunpack.c.h.b16 %v2936
    %v4667 = vunpack.c.l.b16 %v2937
    %v4668 = vunpack.c.h.b16 %v2937
    %v4669 = vunpack.c.l.b16 %v2938
    %v4670 = vunpack.c.h.b16 %v2938
    %v4671 = vunpack.c.l.b16 %v2939
    %v4672 = vunpack.c.h.b16 %v2939
    %v4673 = vunpack.c.l.b16 %v2940
    %v4674 = vunpack.c.h.b16 %v2940
    %v4675 = vunpack.c.l.b16 %v2941
    %v4676 = vunpack.c.h.b16 %v2941
    %v4677 = vunpack.c.l.b16 %v2942
    %v4678 = vunpack.c.h.b16 %v2942
    %v4679 = vunpack.c.l.b16 %v2943
    %v4680 = vunpack.c.h.b16 %v2943
    %v4681 = vunpack.c.l.b16 %v2944
    %v4682 = vunpack.c.h.b16 %v2944
    %v4683 = vunpack.c.l.b16 %v2945
    %v4684 = vunpack.c.h.b16 %v2945
    %v4685 = vunpack.c.l.b16 %v2946
    %v4686 = vunpack.c.h.b16 %v2946
    %v4687 = vunpack.c.l.b16 %v2947
    %v4688 = vunpack.c.h.b16 %v2947
    %v4689 = vunpack.c.l.b16 %v2948
    %v4690 = vunpack.c.h.b16 %v2948
    %v4691 = vunpack.c.l.b16 %v2949
    %v4692 = vunpack.c.h.b16 %v2949
    %v4693 = vunpack.c.l.b16 %v2950
    %v4694 = vunpack.c.h.b16 %v2950
    %v4695 = vunpack.c.l.b16 %v2951
    %v4696 = vunpack.c.h.b16 %v2951
    %v4697 = vunpack.c.l.b16 %v2952
    %v4698 = vunpack.c.h.b16 %v2952
    %v4699 = vunpack.c.l.b16 %v2953
    %v4700 = vunpack.c.h.b16 %v2953
    %v4701 = vunpack.c.l.b16 %v2954
    %v4702 = vunpack.c.h.b16 %v2954
    %v4703 = vunpack.c.l.b16 %v2955
    %v4704 = vunpack.c.h.b16 %v2955
    %v4705 = vunpack.c.l.b16 %v2956
    %v4706 = vunpack.c.h.b16 %v2956
    %v4707 = vunpack.c.l.b16 %v2957
    %v4708 = vunpack.c.h.b16 %v2957
    %v4709 = vunpack.c.l.b16 %v2958
    %v4710 = vunpack.c.h.b16 %v2958
    %v4711 = vunpack.c.l.b16 %v2959
    %v4712 = vunpack.c.h.b16 %v2959
    %v4713 = vunpack.c.l.b16 %v2960
    %v4714 = vunpack.c.h.b16 %v2960
    %v4715 = vunpack.c.l.b16 %v2961
    %v4716 = vunpack.c.h.b16 %v2961
    %v4717 = vunpack.c.l.b16 %v2962
    %v4718 = vunpack.c.h.b16 %v2962
    %v4719 = vunpack.c.l.b16 %v2963
    %v4720 = vunpack.c.h.b16 %v2963
    %v4721 = vunpack.c.l.b16 %v2964
    %v4722 = vunpack.c.h.b16 %v2964
    %v4723 = vunpack.c.l.b16 %v2965
    %v4724 = vunpack.c.h.b16 %v2965
    %v4725 = vunpack.c.l.b16 %v2966
    %v4726 = vunpack.c.h.b16 %v2966
    %v4727 = vunpack.c.l.b16 %v2967
    %v4728 = vunpack.c.h.b16 %v2967
    %v4729 = vunpack.c.l.b16 %v2968
    %v4730 = vunpack.c.h.b16 %v2968
    %v4731 = vunpack.c.l.b16 %v2969
    %v4732 = vunpack.c.h.b16 %v2969
    %v4733 = vunpack.c.l.b16 %v2970
    %v4734 = vunpack.c.h.b16 %v2970
    %v4735 = vunpack.c.l.b16 %v2971
    %v4736 = vunpack.c.h.b16 %v2971
    %v4737 = vunpack.c.l.b16 %v2972
    %v4738 = vunpack.c.h.b16 %v2972
    %v4739 = vunpack.c.l.b16 %v2973
    %v4740 = vunpack.c.h.b16 %v2973
    %v4741 = vunpack.c.l.b16 %v2974
    %v4742 = vunpack.c.h.b16 %v2974
    %v4743 = vunpack.c.l.b16 %v2975
    %v4744 = vunpack.c.h.b16 %v2975
    %v4745 = vunpack.c.l.b16 %v2976
    %v4746 = vunpack.c.h.b16 %v2976
    %v4747 = vunpack.c.l.b16 %v2977
    %v4748 = vunpack.c.h.b16 %v2977
    %v4749 = vunpack.c.l.b16 %v2978
    %v4750 = vunpack.c.h.b16 %v2978
    %v4751 = vunpack.c.l.b16 %v2979
    %v4752 = vunpack.c.h.b16 %v2979
    %v4753 = vunpack.c.l.b16 %v2980
    %v4754 = vunpack.c.h.b16 %v2980
    %v4755 = vunpack.c.l.b16 %v2981
    %v4756 = vunpack.c.h.b16 %v2981
    %v4757 = vunpack.c.l.b16 %v2982
    %v4758 = vunpack.c.h.b16 %v2982
    %v4759 = vunpack.c.l.b16 %v2983
    %v4760 = vunpack.c.h.b16 %v2983
    %v4761 = vunpack.c.l.b16 %v2984
    %v4762 = vunpack.c.h.b16 %v2984
    %v4763 = vunpack.c.l.b16 %v2985
    %v4764 = vunpack.c.h.b16 %v2985
    %v4765 = vunpack.c.l.b16 %v2986
    %v4766 = vunpack.c.h.b16 %v2986
    %v4767 = vunpack.c.l.b16 %v2987
    %v4768 = vunpack.c.h.b16 %v2987
    %v4769 = vunpack.c.l.b16 %v2988
    %v4770 = vunpack.c.h.b16 %v2988
    %v4771 = vunpack.c.l.b16 %v2989
    %v4772 = vunpack.c.h.b16 %v2989
    %v4773 = vunpack.c.l.b16 %v2990
    %v4774 = vunpack.c.h.b16 %v2990
    %v4775 = vunpack.c.l.b16 %v2991
    %v4776 = vunpack.c.h.b16 %v2991
    %v4777 = vunpack.c.l.b16 %v2992
    %v4778 = vunpack.c.h.b16 %v2992
    %v4779 = vunpack.c.l.b16 %v2993
    %v4780 = vunpack.c.h.b16 %v2993
    %v4781 = vunpack.c.l.b16 %v2994
    %v4782 = vunpack.c.h.b16 %v2994
    %v4783 = vunpack.c.l.b16 %v2995
    %v4784 = vunpack.c.h.b16 %v2995
    %v4785 = vunpack.c.l.b16 %v2996
    %v4786 = vunpack.c.h.b16 %v2996
    %v4787 = vunpack.c.l.b16 %v2997
    %v4788 = vunpack.c.h.b16 %v2997
    %v4789 = vunpack.c.l.b16 %v2998
    %v4790 = vunpack.c.h.b16 %v2998
    %v4791 = vunpack.c.l.b16 %v2999
    %v4792 = vunpack.c.h.b16 %v2999
    %v4793 = vunpack.c.l.b16 %v3000
    %v4794 = vunpack.c.h.b16 %v3000
    %v4795 = vunpack.c.l.b16 %v3001
    %v4796 = vunpack.c.h.b16 %v3001
    %v4797 = vunpack.c.l.b16 %v3002
    %v4798 = vunpack.c.h.b16 %v3002
    %v4799 = vunpack.c.l.b16 %v3003
    %v4800 = vunpack.c.h.b16 %v3003
    %v4801 = vunpack.c.l.b16 %v3004
    %v4802 = vunpack.c.h.b16 %v3004
    %v4803 = vunpack.c.l.b16 %v3005
    %v4804 = vunpack.c.h.b16 %v3005
    %v4805 = vunpack.c.l.b16 %v3006
    %v4806 = vunpack.c.h.b16 %v3006
    %v4807 = vunpack.c.l.b16 %v3007
    %v4808 = vunpack.c.h.b16 %v3007
    %v4809 = vunpack.c.l.b16 %v3008
    %v4810 = vunpack.c.h.b16 %v3008
    %v4811 = vunpack.c.l.b16 %v3009
    %v4812 = vunpack.c.h.b16 %v3009
    %v4813 = vunpack.c.l.b16 %v3010
    %v4814 = vunpack.c.h.b16 %v3010
    %v4815 = vunpack.c.l.b16 %v3011
    %v4816 = vunpack.c.h.b16 %v3011
    %v4817 = vunpack.c.l.b16 %v3012
    %v4818 = vunpack.c.h.b16 %v3012
    %v4819 = vunpack.c.l.b16 %v3013
    %v4820 = vunpack.c.h.b16 %v3013
    %v4821 = vunpack.c.l.b16 %v3014
    %v4822 = vunpack.c.h.b16 %v3014
    %v4823 = vunpack.c.l.b16 %v3015
    %v4824 = vunpack.c.h.b16 %v3015
    %v4825 = vunpack.c.l.b16 %v3016
    %v4826 = vunpack.c.h.b16 %v3016
    %v4827 = vunpack.c.l.b16 %v3017
    %v4828 = vunpack.c.h.b16 %v3017
    %v4829 = vunpack.c.l.b16 %v3018
    %v4830 = vunpack.c.h.b16 %v3018
    %v4831 = vunpack.c.l.b16 %v3019
    %v4832 = vunpack.c.h.b16 %v3019
    %v4833 = vunpack.c.l.b16 %v3020
    %v4834 = vunpack.c.h.b16 %v3020
    %v4835 = vunpack.c.l.b16 %v3021
    %v4836 = vunpack.c.h.b16 %v3021
    %v4837 = vunpack.c.l.b16 %v3022
    %v4838 = vunpack.c.h.b16 %v3022
    %v4839 = vunpack.c.l.b16 %v3023
    %v4840 = vunpack.c.h.b16 %v3023
    %v4841 = vunpack.c.l.b16 %v3024
    %v4842 = vunpack.c.h.b16 %v3024
    %v4843 = vunpack.c.l.b16 %v3025
    %v4844 = vunpack.c.h.b16 %v3025
    %v4845 = vunpack.c.l.b16 %v3026
    %v4846 = vunpack.c.h.b16 %v3026
    %v4847 = vunpack.c.l.b16 %v3027
    %v4848 = vunpack.c.h.b16 %v3027
    %v4849 = vunpack.c.l.b16 %v3028
    %v4850 = vunpack.c.h.b16 %v3028
    %v4851 = vunpack.c.l.b16 %v3029
    %v4852 = vunpack.c.h.b16 %v3029
    %v4853 = vunpack.c.l.b16 %v3030
    %v4854 = vunpack.c.h.b16 %v3030
    %v4855 = vunpack.c.l.b16 %v3031
    %v4856 = vunpack.c.h.b16 %v3031
    %v4857 = vunpack.c.l.b16 %v3032
    %v4858 = vunpack.c.h.b16 %v3032
    %v4859 = vunpack.c.l.b16 %v3033
    %v4860 = vunpack.c.h.b16 %v3033
    %v4861 = vunpack.c.l.b16 %v3034
    %v4862 = vunpack.c.h.b16 %v3034
    %v4863 = vunpack.c.l.b16 %v3035
    %v4864 = vunpack.c.h.b16 %v3035
    %v4865 = vunpack.c.l.b16 %v3036
    %v4866 = vunpack.c.h.b16 %v3036
    %v4867 = vunpack.c.l.b16 %v3037
    %v4868 = vunpack.c.h.b16 %v3037
    %v4869 = vunpack.c.l.b16 %v3038
    %v4870 = vunpack.c.h.b16 %v3038
    %v4871 = vunpack.c.l.b16 %v3039
    %v4872 = vunpack.c.h.b16 %v3039
    %v4873 = vunpack.c.l.b16 %v3040
    %v4874 = vunpack.c.h.b16 %v3040
    %v4875 = vunpack.c.l.b16 %v3041
    %v4876 = vunpack.c.h.b16 %v3041
    %v4877 = vunpack.c.l.b16 %v3042
    %v4878 = vunpack.c.h.b16 %v3042
    %v4879 = vunpack.c.l.b16 %v3043
    %v4880 = vunpack.c.h.b16 %v3043
    %v4881 = vunpack.c.l.b16 %v3044
    %v4882 = vunpack.c.h.b16 %v3044
    %v4883 = vunpack.c.l.b16 %v3045
    %v4884 = vunpack.c.h.b16 %v3045
    %v4885 = vunpack.c.l.b16 %v3046
    %v4886 = vunpack.c.h.b16 %v3046
    %v4887 = vunpack.c.l.b16 %v3047
    %v4888 = vunpack.c.h.b16 %v3047
    %v4889 = vunpack.c.l.b16 %v3048
    %v4890 = vunpack.c.h.b16 %v3048
    %v4891 = vunpack.c.l.b16 %v3049
    %v4892 = vunpack.c.h.b16 %v3049
    %v4893 = vunpack.c.l.b16 %v3050
    %v4894 = vunpack.c.h.b16 %v3050
    %v4895 = vunpack.c.l.b16 %v3051
    %v4896 = vunpack.c.h.b16 %v3051
    %v4897 = vunpack.c.l.b16 %v3052
    %v4898 = vunpack.c.h.b16 %v3052
    %v4899 = vunpack.c.l.b16 %v3053
    %v4900 = vunpack.c.h.b16 %v3053
    %v4901 = vunpack.c.l.b16 %v3054
    %v4902 = vunpack.c.h.b16 %v3054
    %v4903 = vunpack.c.l.b16 %v3055
    %v4904 = vunpack.c.h.b16 %v3055
    %v4905 = vunpack.c.l.b16 %v3056
    %v4906 = vunpack.c.h.b16 %v3056
    %v4907 = vunpack.c.l.b16 %v3057
    %v4908 = vunpack.c.h.b16 %v3057
    %v4909 = vunpack.c.l.b16 %v3058
    %v4910 = vunpack.c.h.b16 %v3058
    %v4911 = vunpack.c.l.b16 %v3059
    %v4912 = vunpack.c.h.b16 %v3059
    %v4913 = vunpack.c.l.b16 %v3060
    %v4914 = vunpack.c.h.b16 %v3060
    %v4915 = vunpack.c.l.b16 %v3061
    %v4916 = vunpack.c.h.b16 %v3061
    %v4917 = vunpack.c.l.b16 %v3062
    %v4918 = vunpack.c.h.b16 %v3062
    %v4919 = vunpack.c.l.b16 %v3063
    %v4920 = vunpack.c.h.b16 %v3063
    %v4921 = vunpack.c.l.b16 %v3064
    %v4922 = vunpack.c.h.b16 %v3064
    %v4923 = vunpack.c.l.b16 %v3065
    %v4924 = vunpack.c.h.b16 %v3065
    %v4925 = vunpack.c.l.b16 %v3066
    %v4926 = vunpack.c.h.b16 %v3066
    %v4927 = vunpack.c.l.b16 %v3067
    %v4928 = vunpack.c.h.b16 %v3067
    %v4929 = vunpack.c.l.b16 %v3068
    %v4930 = vunpack.c.h.b16 %v3068
    %v4931 = vunpack.c.l.b16 %v3069
    %v4932 = vunpack.c.h.b16 %v3069
    %v4933 = vunpack.c.l.b16 %v3070
    %v4934 = vunpack.c.h.b16 %v3070
    %v4935 = vunpack.c.l.b16 %v3071
    %v4936 = vunpack.c.h.b16 %v3071
    %v4937 = vunpack.c.l.b16 %v3072
    %v4938 = vunpack.c.h.b16 %v3072
    %v4939 = vunpack.c.l.b16 %v3073
    %v4940 = vunpack.c.h.b16 %v3073
    %v4941 = vunpack.c.l.b16 %v3074
    %v4942 = vunpack.c.h.b16 %v3074
    %v4943 = vunpack.c.l.b16 %v3075
    %v4944 = vunpack.c.h.b16 %v3075
    %v4945 = vunpack.c.l.b16 %v3076
    %v4946 = vunpack.c.h.b16 %v3076
    %v4947 = vunpack.c.l.b16 %v3077
    %v4948 = vunpack.c.h.b16 %v3077
    %v4949 = vunpack.c.l.b16 %v3078
    %v4950 = vunpack.c.h.b16 %v3078
    %v4951 = vunpack.c.l.b16 %v3079
    %v4952 = vunpack.c.h.b16 %v3079
    %v4953 = vunpack.c.l.b16 %v3080
    %v4954 = vunpack.c.h.b16 %v3080
    %v4955 = vunpack.c.l.b16 %v3081
    %v4956 = vunpack.c.h.b16 %v3081
    %v4957 = vunpack.c.l.b16 %v3082
    %v4958 = vunpack.c.h.b16 %v3082
    %v4959 = vunpack.c.l.b16 %v3083
    %v4960 = vunpack.c.h.b16 %v3083
    %v4961 = vunpack.c.l.b16 %v3084
    %v4962 = vunpack.c.h.b16 %v3084
    %v4963 = vunpack.c.l.b16 %v3085
    %v4964 = vunpack.c.h.b16 %v3085
    %v4965 = vunpack.c.l.b16 %v3086
    %v4966 = vunpack.c.h.b16 %v3086
    %v4967 = vunpack.c.l.b16 %v3087
    %v4968 = vunpack.c.h.b16 %v3087
    %v4969 = vunpack.c.l.b16 %v3088
    %v4970 = vunpack.c.h.b16 %v3088
    %v4971 = vunpack.c.l.b16 %v3089
    %v4972 = vunpack.c.h.b16 %v3089
    %v4973 = vunpack.c.l.b16 %v3090
    %v4974 = vunpack.c.h.b16 %v3090
    %v4975 = vunpack.c.l.b16 %v3091
    %v4976 = vunpack.c.h.b16 %v3091
    %v4977 = vunpack.c.l.b16 %v3092
    %v4978 = vunpack.c.h.b16 %v3092
    %v4979 = vunpack.c.l.b16 %v3093
    %v4980 = vunpack.c.h.b16 %v3093
    %v4981 = vunpack.c.l.b16 %v3094
    %v4982 = vunpack.c.h.b16 %v3094
    %v4983 = vunpack.c.l.b16 %v3095
    %v4984 = vunpack.c.h.b16 %v3095
    %v4985 = vunpack.c.l.b16 %v3096
    %v4986 = vunpack.c.h.b16 %v3096
    %v4987 = vunpack.c.l.b16 %v3097
    %v4988 = vunpack.c.h.b16 %v3097
    %v4989 = vunpack.c.l.b16 %v3098
    %v4990 = vunpack.c.h.b16 %v3098
    %v4991 = vunpack.c.l.b16 %v3099
    %v4992 = vunpack.c.h.b16 %v3099
    %v4993 = vunpack.c.l.b16 %v3100
    %v4994 = vunpack.c.h.b16 %v3100
    %v4995 = vunpack.c.l.b16 %v3101
    %v4996 = vunpack.c.h.b16 %v3101
    %v4997 = vunpack.c.l.b16 %v3102
    %v4998 = vunpack.c.h.b16 %v3102
    %v4999 = vunpack.c.l.b16 %v3103
    %v5000 = vunpack.c.h.b16 %v3103
    %v5001 = vunpack.c.l.b16 %v3104
    %v5002 = vunpack.c.h.b16 %v3104
    %v5003 = vunpack.c.l.b16 %v3105
    %v5004 = vunpack.c.h.b16 %v3105
    %v5005 = vunpack.c.l.b16 %v3106
    %v5006 = vunpack.c.h.b16 %v3106
    %v5007 = vunpack.c.l.b16 %v3107
    %v5008 = vunpack.c.h.b16 %v3107
    %v5009 = vunpack.c.l.b16 %v3108
    %v5010 = vunpack.c.h.b16 %v3108
    %v5011 = vunpack.c.l.b16 %v3109
    %v5012 = vunpack.c.h.b16 %v3109
    %v5013 = vunpack.c.l.b16 %v3110
    %v5014 = vunpack.c.h.b16 %v3110
    %v5015 = vunpack.c.l.b16 %v3111
    %v5016 = vunpack.c.h.b16 %v3111
    %v5017 = vunpack.c.l.b16 %v3112
    %v5018 = vunpack.c.h.b16 %v3112
    %v5019 = vunpack.c.l.b16 %v3113
    %v5020 = vunpack.c.h.b16 %v3113
    %v5021 = vunpack.c.l.b16 %v3114
    %v5022 = vunpack.c.h.b16 %v3114
    %v5023 = vunpack.c.l.b16 %v3115
    %v5024 = vunpack.c.h.b16 %v3115
    %v5025 = vunpack.c.l.b16 %v3116
    %v5026 = vunpack.c.h.b16 %v3116
    %v5027 = vunpack.c.l.b16 %v3117
    %v5028 = vunpack.c.h.b16 %v3117
    %v5029 = vunpack.c.l.b16 %v3118
    %v5030 = vunpack.c.h.b16 %v3118
    %v5031 = vunpack.c.l.b16 %v3119
    %v5032 = vunpack.c.h.b16 %v3119
    %v5033 = vunpack.c.l.b16 %v3120
    %v5034 = vunpack.c.h.b16 %v3120
    %v5035 = vunpack.c.l.b16 %v3121
    %v5036 = vunpack.c.h.b16 %v3121
    %v5037 = vunpack.c.l.b16 %v3122
    %v5038 = vunpack.c.h.b16 %v3122
    %v5039 = vunpack.c.l.b16 %v3123
    %v5040 = vunpack.c.h.b16 %v3123
    %v5041 = vunpack.c.l.b16 %v3124
    %v5042 = vunpack.c.h.b16 %v3124
    %v5043 = vunpack.c.l.b16 %v3125
    %v5044 = vunpack.c.h.b16 %v3125
    %v5045 = vunpack.c.l.b16 %v3126
    %v5046 = vunpack.c.h.b16 %v3126
    %v5047 = vunpack.c.l.b16 %v3127
    %v5048 = vunpack.c.h.b16 %v3127
    %v5049 = vunpack.c.l.b16 %v3128
    %v5050 = vunpack.c.h.b16 %v3128
    %v5051 = vunpack.c.l.b16 %v3129
    %v5052 = vunpack.c.h.b16 %v3129
    %v5053 = vunpack.c.l.b16 %v3130
    %v5054 = vunpack.c.h.b16 %v3130
    %v5055 = vunpack.c.l.b16 %v3131
    %v5056 = vunpack.c.h.b16 %v3131
    %v5057 = vunpack.c.l.b16 %v3132
    %v5058 = vunpack.c.h.b16 %v3132
    %v5059 = vunpack.c.l.b16 %v3133
    %v5060 = vunpack.c.h.b16 %v3133
    %v5061 = vunpack.c.l.b16 %v3134
    %v5062 = vunpack.c.h.b16 %v3134
    %v5063 = vunpack.c.l.b16 %v3135
    %v5064 = vunpack.c.h.b16 %v3135
    %v5065 = vunpack.c.l.b16 %v3136
    %v5066 = vunpack.c.h.b16 %v3136
    %v5067 = vunpack.c.l.b16 %v3137
    %v5068 = vunpack.c.h.b16 %v3137
    %v5069 = vunpack.c.l.b16 %v3138
    %v5070 = vunpack.c.h.b16 %v3138
    %v5071 = vunpack.c.l.b16 %v3139
    %v5072 = vunpack.c.h.b16 %v3139
    %v5073 = vunpack.c.l.b16 %v3140
    %v5074 = vunpack.c.h.b16 %v3140
    %v5075 = vunpack.c.l.b16 %v3141
    %v5076 = vunpack.c.h.b16 %v3141
    %v5077 = vunpack.c.l.b16 %v3142
    %v5078 = vunpack.c.h.b16 %v3142
    %v5079 = vunpack.c.l.b16 %v3143
    %v5080 = vunpack.c.h.b16 %v3143
    %v5081 = vunpack.c.l.b16 %v3144
    %v5082 = vunpack.c.h.b16 %v3144
    %v5083 = vunpack.c.l.b16 %v3145
    %v5084 = vunpack.c.h.b16 %v3145
    %v5085 = vunpack.c.l.b16 %v3146
    %v5086 = vunpack.c.h.b16 %v3146
    %v5087 = vunpack.c.l.b16 %v3147
    %v5088 = vunpack.c.h.b16 %v3147
    %v5089 = vunpack.c.l.b16 %v3148
    %v5090 = vunpack.c.h.b16 %v3148
    %v5091 = vunpack.c.l.b16 %v3149
    %v5092 = vunpack.c.h.b16 %v3149
    %v5093 = vunpack.c.l.b16 %v3150
    %v5094 = vunpack.c.h.b16 %v3150
    %v5095 = vunpack.c.l.b16 %v3151
    %v5096 = vunpack.c.h.b16 %v3151
    %v5097 = vunpack.c.l.b16 %v3152
    %v5098 = vunpack.c.h.b16 %v3152
    %v5099 = vunpack.c.l.b16 %v3153
    %v5100 = vunpack.c.h.b16 %v3153
    %v5101 = vunpack.c.l.b16 %v3154
    %v5102 = vunpack.c.h.b16 %v3154
    %v5103 = vunpack.c.l.b16 %v3155
    %v5104 = vunpack.c.h.b16 %v3155
    %v5105 = vunpack.c.l.b16 %v3156
    %v5106 = vunpack.c.h.b16 %v3156
    %v5107 = vunpack.c.l.b16 %v3157
    %v5108 = vunpack.c.h.b16 %v3157
    %v5109 = vunpack.c.l.b16 %v3158
    %v5110 = vunpack.c.h.b16 %v3158
    %v5111 = vunpack.c.l.b16 %v3159
    %v5112 = vunpack.c.h.b16 %v3159
    %v5113 = vunpack.c.l.b16 %v3160
    %v5114 = vunpack.c.h.b16 %v3160
    %v5115 = vunpack.c.l.b16 %v3161
    %v5116 = vunpack.c.h.b16 %v3161
    %v5117 = vunpack.c.l.b16 %v3162
    %v5118 = vunpack.c.h.b16 %v3162
    %v5119 = vunpack.c.l.b16 %v3163
    %v5120 = vunpack.c.h.b16 %v3163
    %v5121 = vunpack.c.l.b16 %v3164
    %v5122 = vunpack.c.h.b16 %v3164
    %v5123 = vunpack.c.l.b16 %v3165
    %v5124 = vunpack.c.h.b16 %v3165
    %v5125 = vunpack.c.l.b16 %v3166
    %v5126 = vunpack.c.h.b16 %v3166
    %v5127 = vunpack.c.l.b16 %v3167
    %v5128 = vunpack.c.h.b16 %v3167
    %v5129 = vunpack.c.l.b16 %v3168
    %v5130 = vunpack.c.h.b16 %v3168
    %v5131 = vunpack.c.l.b16 %v3169
    %v5132 = vunpack.c.h.b16 %v3169
    %v5133 = vunpack.c.l.b16 %v3170
    %v5134 = vunpack.c.h.b16 %v3170
    %v5135 = vunpack.c.l.b16 %v3171
    %v5136 = vunpack.c.h.b16 %v3171
    %v5137 = vunpack.c.l.b16 %v3172
    %v5138 = vunpack.c.h.b16 %v3172
    %v5139 = vunpack.c.l.b16 %v3173
    %v5140 = vunpack.c.h.b16 %v3173
    %v5141 = vunpack.c.l.b16 %v3174
    %v5142 = vunpack.c.h.b16 %v3174
    %v5143 = vunpack.c.l.b16 %v3175
    %v5144 = vunpack.c.h.b16 %v3175
    %v5145 = vunpack.c.l.b16 %v3176
    %v5146 = vunpack.c.h.b16 %v3176
    %v5147 = vunpack.c.l.b16 %v3177
    %v5148 = vunpack.c.h.b16 %v3177
    %v5149 = vunpack.c.l.b16 %v3178
    %v5150 = vunpack.c.h.b16 %v3178
    %v5151 = vunpack.c.l.b16 %v3179
    %v5152 = vunpack.c.h.b16 %v3179
    %v5153 = vunpack.c.l.b16 %v3180
    %v5154 = vunpack.c.h.b16 %v3180
    %v5155 = vunpack.c.l.b16 %v3181
    %v5156 = vunpack.c.h.b16 %v3181
    %v5157 = vunpack.c.l.b16 %v3182
    %v5158 = vunpack.c.h.b16 %v3182
    %v5159 = vunpack.c.l.b16 %v3183
    %v5160 = vunpack.c.h.b16 %v3183
    %v5161 = vunpack.c.l.b16 %v3184
    %v5162 = vunpack.c.h.b16 %v3184
    %v5163 = vunpack.c.l.b16 %v3185
    %v5164 = vunpack.c.h.b16 %v3185
    %v5165 = vunpack.c.l.b16 %v3186
    %v5166 = vunpack.c.h.b16 %v3186
    %v5167 = vunpack.c.l.b16 %v3187
    %v5168 = vunpack.c.h.b16 %v3187
    %v5169 = vunpack.c.l.b16 %v3188
    %v5170 = vunpack.c.h.b16 %v3188
    %v5171 = vunpack.c.l.b16 %v3189
    %v5172 = vunpack.c.h.b16 %v3189
    %v5173 = vunpack.c.l.b16 %v3190
    %v5174 = vunpack.c.h.b16 %v3190
    %v5175 = vunpack.c.l.b16 %v3191
    %v5176 = vunpack.c.h.b16 %v3191
    %v5177 = vunpack.c.l.b16 %v3192
    %v5178 = vunpack.c.h.b16 %v3192
    %v5179 = vunpack.c.l.b16 %v3193
    %v5180 = vunpack.c.h.b16 %v3193
    %v5181 = vunpack.c.l.b16 %v3194
    %v5182 = vunpack.c.h.b16 %v3194
    %v5183 = vunpack.c.l.b16 %v3195
    %v5184 = vunpack.c.h.b16 %v3195
    %v5185 = vunpack.c.l.b16 %v3196
    %v5186 = vunpack.c.h.b16 %v3196
    %v5187 = vunpack.c.l.b16 %v3197
    %v5188 = vunpack.c.h.b16 %v3197
    %v5189 = vunpack.c.l.b16 %v3198
    %v5190 = vunpack.c.h.b16 %v3198
    %v5191 = vunpack.c.l.b16 %v3199
    %v5192 = vunpack.c.h.b16 %v3199
    %v5193 = vunpack.c.l.b16 %v3200
    %v5194 = vunpack.c.h.b16 %v3200
    %v5195 = vunpack.c.l.b16 %v3201
    %v5196 = vunpack.c.h.b16 %v3201
    %v5197 = vunpack.c.l.b16 %v3202
    %v5198 = vunpack.c.h.b16 %v3202
    %v5199 = vunpack.c.l.b16 %v3203
    %v5200 = vunpack.c.h.b16 %v3203
    %v5201 = vunpack.c.l.b16 %v3204
    %v5202 = vunpack.c.h.b16 %v3204
    %v5203 = vunpack.c.l.b16 %v3205
    %v5204 = vunpack.c.h.b16 %v3205
    %v5205 = vunpack.c.l.b16 %v3206
    %v5206 = vunpack.c.h.b16 %v3206
    %v5207 = vunpack.c.l.b16 %v3207
    %v5208 = vunpack.c.h.b16 %v3207
    %v5209 = vunpack.c.l.b16 %v3208
    %v5210 = vunpack.c.h.b16 %v3208
    %v5211 = vunpack.c.l.b16 %v3209
    %v5212 = vunpack.c.h.b16 %v3209
    %v5213 = vunpack.c.l.b16 %v3210
    %v5214 = vunpack.c.h.b16 %v3210
    %v5215 = vunpack.c.l.b16 %v3211
    %v5216 = vunpack.c.h.b16 %v3211
    %v5217 = vunpack.c.l.b16 %v3212
    %v5218 = vunpack.c.h.b16 %v3212
    %v5219 = vunpack.c.l.b16 %v3213
    %v5220 = vunpack.c.h.b16 %v3213
    %v5221 = vunpack.c.l.b16 %v3214
    %v5222 = vunpack.c.h.b16 %v3214
    %v5223 = vunpack.c.l.b16 %v3215
    %v5224 = vunpack.c.h.b16 %v3215
    %v5225 = vunpack.c.l.b16 %v3216
    %v5226 = vunpack.c.h.b16 %v3216
    %v5227 = vunpack.c.l.b16 %v3217
    %v5228 = vunpack.c.h.b16 %v3217
    %v5229 = vunpack.c.l.b16 %v3218
    %v5230 = vunpack.c.h.b16 %v3218
    %v5231 = vunpack.c.l.b16 %v3219
    %v5232 = vunpack.c.h.b16 %v3219
    %v5233 = vunpack.c.l.b16 %v3220
    %v5234 = vunpack.c.h.b16 %v3220
    %v5235 = vunpack.c.l.b16 %v3221
    %v5236 = vunpack.c.h.b16 %v3221
    %v5237 = vunpack.c.l.b16 %v3222
    %v5238 = vunpack.c.h.b16 %v3222
    %v5239 = vunpack.c.l.b16 %v3223
    %v5240 = vunpack.c.h.b16 %v3223
    %v5241 = vunpack.c.l.b16 %v3224
    %v5242 = vunpack.c.h.b16 %v3224
    %v5243 = vunpack.c.l.b16 %v3225
    %v5244 = vunpack.c.h.b16 %v3225
    %v5245 = vunpack.c.l.b16 %v3226
    %v5246 = vunpack.c.h.b16 %v3226
    %v5247 = vunpack.c.l.b16 %v3227
    %v5248 = vunpack.c.h.b16 %v3227
    %v5249 = vunpack.c.l.b16 %v3228
    %v5250 = vunpack.c.h.b16 %v3228
    %v5251 = vunpack.c.l.b16 %v3229
    %v5252 = vunpack.c.h.b16 %v3229
    %v5253 = vunpack.c.l.b16 %v3230
    %v5254 = vunpack.c.h.b16 %v3230
    %v5255 = vunpack.c.l.b16 %v3231
    %v5256 = vunpack.c.h.b16 %v3231
    %v5257 = vunpack.c.l.b16 %v3232
    %v5258 = vunpack.c.h.b16 %v3232
    %v5259 = vunpack.c.l.b16 %v3233
    %v5260 = vunpack.c.h.b16 %v3233
    %v5261 = vunpack.c.l.b16 %v3234
    %v5262 = vunpack.c.h.b16 %v3234
    %v5263 = vunpack.c.l.b16 %v3235
    %v5264 = vunpack.c.h.b16 %v3235
    %v5265 = vunpack.c.l.b16 %v3236
    %v5266 = vunpack.c.h.b16 %v3236
    %v5267 = vunpack.c.l.b16 %v3237
    %v5268 = vunpack.c.h.b16 %v3237
    %v5269 = vunpack.c.l.b16 %v3238
    %v5270 = vunpack.c.h.b16 %v3238
    %v5271 = vunpack.c.l.b16 %v3239
    %v5272 = vunpack.c.h.b16 %v3239
    %v5273 = vunpack.c.l.b16 %v3240
    %v5274 = vunpack.c.h.b16 %v3240
    %v5275 = vunpack.c.l.b16 %v3241
    %v5276 = vunpack.c.h.b16 %v3241
    %v5277 = vunpack.c.l.b16 %v3242
    %v5278 = vunpack.c.h.b16 %v3242
    %v5279 = vunpack.c.l.b16 %v3243
    %v5280 = vunpack.c.h.b16 %v3243
    %v5281 = vunpack.c.l.b16 %v3244
    %v5282 = vunpack.c.h.b16 %v3244
    %v5283 = vunpack.c.l.b16 %v3245
    %v5284 = vunpack.c.h.b16 %v3245
    %v5285 = vunpack.c.l.b16 %v3246
    %v5286 = vunpack.c.h.b16 %v3246
    %v5287 = vunpack.c.l.b16 %v3247
    %v5288 = vunpack.c.h.b16 %v3247
    %v5289 = vunpack.c.l.b16 %v3248
    %v5290 = vunpack.c.h.b16 %v3248
    %v5291 = vunpack.c.l.b16 %v3249
    %v5292 = vunpack.c.h.b16 %v3249
    %v5293 = vunpack.c.l.b16 %v3250
    %v5294 = vunpack.c.h.b16 %v3250
    %v5295 = vunpack.c.l.b16 %v3251
    %v5296 = vunpack.c.h.b16 %v3251
    %v5297 = vunpack.c.l.b16 %v3252
    %v5298 = vunpack.c.h.b16 %v3252
    %v5299 = vunpack.c.l.b16 %v3253
    %v5300 = vunpack.c.h.b16 %v3253
    %v5301 = vunpack.c.l.b16 %v3254
    %v5302 = vunpack.c.h.b16 %v3254
    %v5303 = vunpack.c.l.b16 %v3255
    %v5304 = vunpack.c.h.b16 %v3255
    %v5305 = vunpack.c.l.b16 %v3256
    %v5306 = vunpack.c.h.b16 %v3256
    %v5307 = vunpack.c.l.b16 %v3257
    %v5308 = vunpack.c.h.b16 %v3257
    %v5309 = vunpack.c.l.b16 %v3258
    %v5310 = vunpack.c.h.b16 %v3258
    %v5311 = vunpack.c.l.b16 %v3259
    %v5312 = vunpack.c.h.b16 %v3259
    %v5313 = vunpack.c.l.b16 %v3260
    %v5314 = vunpack.c.h.b16 %v3260
    %v5315 = vunpack.c.l.b16 %v3261
    %v5316 = vunpack.c.h.b16 %v3261
    %v5317 = vunpack.c.l.b16 %v3262
    %v5318 = vunpack.c.h.b16 %v3262
    %v5319 = vunpack.c.l.b16 %v3263
    %v5320 = vunpack.c.h.b16 %v3263
    %v5321 = vunpack.c.l.b16 %v3264
    %v5322 = vunpack.c.h.b16 %v3264
    %v5323 = vunpack.c.l.b16 %v3265
    %v5324 = vunpack.c.h.b16 %v3265
    %v5325 = vunpack.c.l.b16 %v3266
    %v5326 = vunpack.c.h.b16 %v3266
    %v5327 = vunpack.c.l.b16 %v3267
    %v5328 = vunpack.c.h.b16 %v3267
    %v5329 = vunpack.c.l.b16 %v3268
    %v5330 = vunpack.c.h.b16 %v3268
    %v5331 = vunpack.c.l.b16 %v3269
    %v5332 = vunpack.c.h.b16 %v3269
    %v5333 = vunpack.c.l.b16 %v3270
    %v5334 = vunpack.c.h.b16 %v3270
    %v5335 = vunpack.c.l.b16 %v3271
    %v5336 = vunpack.c.h.b16 %v3271
    %v5337 = vunpack.c.l.b16 %v3272
    %v5338 = vunpack.c.h.b16 %v3272
    %v5339 = vunpack.c.l.b16 %v3273
    %v5340 = vunpack.c.h.b16 %v3273
    %v5341 = vunpack.c.l.b16 %v3274
    %v5342 = vunpack.c.h.b16 %v3274
    %v5343 = vunpack.c.l.b16 %v3275
    %v5344 = vunpack.c.h.b16 %v3275
    %v5345 = vunpack.c.l.b16 %v3276
    %v5346 = vunpack.c.h.b16 %v3276
    %v5347 = vunpack.c.l.b16 %v3277
    %v5348 = vunpack.c.h.b16 %v3277
    %v5349 = vunpack.c.l.b16 %v3278
    %v5350 = vunpack.c.h.b16 %v3278
    %v5351 = vunpack.c.l.b16 %v3279
    %v5352 = vunpack.c.h.b16 %v3279
    %v5353 = vunpack.c.l.b16 %v3280
    %v5354 = vunpack.c.h.b16 %v3280
    %v5355 = vunpack.c.l.b16 %v3281
    %v5356 = vunpack.c.h.b16 %v3281
    %v5357 = vunpack.c.l.b16 %v3282
    %v5358 = vunpack.c.h.b16 %v3282
    %v5359 = vunpack.c.l.b16 %v3283
    %v5360 = vunpack.c.h.b16 %v3283
    %v5361 = vunpack.c.l.b16 %v3284
    %v5362 = vunpack.c.h.b16 %v3284
    %v5363 = vunpack.c.l.b16 %v3285
    %v5364 = vunpack.c.h.b16 %v3285
    %v5365 = vunpack.c.l.b16 %v3286
    %v5366 = vunpack.c.h.b16 %v3286
    %v5367 = vunpack.c.l.b16 %v3287
    %v5368 = vunpack.c.h.b16 %v3287
    %v5369 = vunpack.c.l.b16 %v3288
    %v5370 = vunpack.c.h.b16 %v3288
    %v5371 = vunpack.c.l.b16 %v3289
    %v5372 = vunpack.c.h.b16 %v3289
    %v5373 = vunpack.c.l.b16 %v3290
    %v5374 = vunpack.c.h.b16 %v3290
    %v5375 = vunpack.c.l.b16 %v3291
    %v5376 = vunpack.c.h.b16 %v3291
    %v5377 = vunpack.c.l.b16 %v3292
    %v5378 = vunpack.c.h.b16 %v3292
    %v5379 = vunpack.c.l.b16 %v3293
    %v5380 = vunpack.c.h.b16 %v3293
    %v5381 = vunpack.c.l.b16 %v3294
    %v5382 = vunpack.c.h.b16 %v3294
    %v5383 = vunpack.c.l.b16 %v3295
    %v5384 = vunpack.c.h.b16 %v3295
    %v5385 = vunpack.c.l.b16 %v3296
    %v5386 = vunpack.c.h.b16 %v3296
    %v5387 = vunpack.c.l.b16 %v3297
    %v5388 = vunpack.c.h.b16 %v3297
    %v5389 = vunpack.c.l.b16 %v3298
    %v5390 = vunpack.c.h.b16 %v3298
    %v5391 = vunpack.c.l.b16 %v3299
    %v5392 = vunpack.c.h.b16 %v3299
    %v5393 = vunpack.c.l.b16 %v3300
    %v5394 = vunpack.c.h.b16 %v3300
    %v5395 = vunpack.c.l.b16 %v3301
    %v5396 = vunpack.c.h.b16 %v3301
    %v5397 = vunpack.c.l.b16 %v3302
    %v5398 = vunpack.c.h.b16 %v3302
    %v5399 = vunpack.c.l.b16 %v3303
    %v5400 = vunpack.c.h.b16 %v3303
    %v5401 = vunpack.c.l.b16 %v3304
    %v5402 = vunpack.c.h.b16 %v3304
    %v5403 = vunpack.c.l.b16 %v3305
    %v5404 = vunpack.c.h.b16 %v3305
    %v5405 = vunpack.c.l.b16 %v3306
    %v5406 = vunpack.c.h.b16 %v3306
    %v5407 = vunpack.c.l.b16 %v3307
    %v5408 = vunpack.c.h.b16 %v3307
    %v5409 = vunpack.c.l.b16 %v3308
    %v5410 = vunpack.c.h.b16 %v3308
    %v5411 = vunpack.c.l.b16 %v3309
    %v5412 = vunpack.c.h.b16 %v3309
    %v5413 = vunpack.c.l.b16 %v3310
    %v5414 = vunpack.c.h.b16 %v3310
    %v5415 = vunpack.c.l.b16 %v3311
    %v5416 = vunpack.c.h.b16 %v3311
    %v5417 = vunpack.c.l.b16 %v3312
    %v5418 = vunpack.c.h.b16 %v3312
    %v5419 = vunpack.c.l.b16 %v3313
    %v5420 = vunpack.c.h.b16 %v3313
    %v5421 = vunpack.c.l.b16 %v3314
    %v5422 = vunpack.c.h.b16 %v3314
    %v5423 = vunpack.c.l.b16 %v3315
    %v5424 = vunpack.c.h.b16 %v3315
    %v5425 = vunpack.c.l.b16 %v3316
    %v5426 = vunpack.c.h.b16 %v3316
    %v5427 = vunpack.c.l.b16 %v3317
    %v5428 = vunpack.c.h.b16 %v3317
    %v5429 = vunpack.c.l.b16 %v3318
    %v5430 = vunpack.c.h.b16 %v3318
    %v5431 = vunpack.c.l.b16 %v3319
    %v5432 = vunpack.c.h.b16 %v3319
    %v5433 = vunpack.c.l.b16 %v3320
    %v5434 = vunpack.c.h.b16 %v3320
    %v5435 = vunpack.c.l.b16 %v3321
    %v5436 = vunpack.c.h.b16 %v3321
    %v5437 = vunpack.c.l.b16 %v3322
    %v5438 = vunpack.c.h.b16 %v3322
    %v5439 = vunpack.c.l.b16 %v3323
    %v5440 = vunpack.c.h.b16 %v3323
    %v5441 = vunpack.c.l.b16 %v3324
    %v5442 = vunpack.c.h.b16 %v3324
    %v5443 = vunpack.c.l.b16 %v3325
    %v5444 = vunpack.c.h.b16 %v3325
    %v5445 = vunpack.c.l.b16 %v3326
    %v5446 = vunpack.c.h.b16 %v3326
    %v5447 = vunpack.c.l.b16 %v3327
    %v5448 = vunpack.c.h.b16 %v3327
    %v5449 = vunpack.c.l.b16 %v3328
    %v5450 = vunpack.c.h.b16 %v3328
    %v5451 = vunpack.c.l.b16 %v3329
    %v5452 = vunpack.c.h.b16 %v3329
    %v5453 = vunpack.c.l.b16 %v3330
    %v5454 = vunpack.c.h.b16 %v3330
    %v5455 = vunpack.c.l.b16 %v3331
    %v5456 = vunpack.c.h.b16 %v3331
    %v5457 = vunpack.c.l.b16 %v3332
    %v5458 = vunpack.c.h.b16 %v3332
    %v5459 = vunpack.c.l.b16 %v3333
    %v5460 = vunpack.c.h.b16 %v3333
    %v5461 = vunpack.c.l.b16 %v3334
    %v5462 = vunpack.c.h.b16 %v3334
    %v5463 = vunpack.c.l.b16 %v3335
    %v5464 = vunpack.c.h.b16 %v3335
    %v5465 = vunpack.c.l.b16 %v3336
    %v5466 = vunpack.c.h.b16 %v3336
    %v5467 = vunpack.c.l.b16 %v3337
    %v5468 = vunpack.c.h.b16 %v3337
    %v5469 = vunpack.c.l.b16 %v3338
    %v5470 = vunpack.c.h.b16 %v3338
    %v5471 = vunpack.c.l.b16 %v3339
    %v5472 = vunpack.c.h.b16 %v3339
    %v5473 = vunpack.c.l.b16 %v3340
    %v5474 = vunpack.c.h.b16 %v3340
    %v5475 = vunpack.c.l.b16 %v3341
    %v5476 = vunpack.c.h.b16 %v3341
    %v5477 = vunpack.c.l.b16 %v3342
    %v5478 = vunpack.c.h.b16 %v3342
    %v5479 = vunpack.c.l.b16 %v3343
    %v5480 = vunpack.c.h.b16 %v3343
    %v5481 = vunpack.c.l.b16 %v3344
    %v5482 = vunpack.c.h.b16 %v3344
    %v5483 = vunpack.c.l.b16 %v3345
    %v5484 = vunpack.c.h.b16 %v3345
    %v5485 = vunpack.c.l.b16 %v3346
    %v5486 = vunpack.c.h.b16 %v3346
    %v5487 = vunpack.c.l.b16 %v3347
    %v5488 = vunpack.c.h.b16 %v3347
    %v5489 = vunpack.c.l.b16 %v3348
    %v5490 = vunpack.c.h.b16 %v3348
    %v5491 = vunpack.c.l.b16 %v3349
    %v5492 = vunpack.c.h.b16 %v3349
    %v5493 = vunpack.c.l.b16 %v3350
    %v5494 = vunpack.c.h.b16 %v3350
    %v5495 = vunpack.c.l.b16 %v3351
    %v5496 = vunpack.c.h.b16 %v3351
    %v5497 = vunpack.c.l.b16 %v3352
    %v5498 = vunpack.c.h.b16 %v3352
    %v5499 = vunpack.c.l.b16 %v3353
    %v5500 = vunpack.c.h.b16 %v3353
    %v5501 = vunpack.c.l.b16 %v3354
    %v5502 = vunpack.c.h.b16 %v3354
    %v5503 = vunpack.c.l.b16 %v3355
    %v5504 = vunpack.c.h.b16 %v3355
    %v5505 = vunpack.c.l.b16 %v3356
    %v5506 = vunpack.c.h.b16 %v3356
    %v5507 = vunpack.c.l.b16 %v3357
    %v5508 = vunpack.c.h.b16 %v3357
    %v5509 = vunpack.c.l.b16 %v3358
    %v5510 = vunpack.c.h.b16 %v3358
    %v5511 = vunpack.c.l.b16 %v3359
    %v5512 = vunpack.c.h.b16 %v3359
    %v5513 = vunpack.c.l.b16 %v3360
    %v5514 = vunpack.c.h.b16 %v3360
    %v5515 = vunpack.c.l.b16 %v3361
    %v5516 = vunpack.c.h.b16 %v3361
    %v5517 = vunpack.c.l.b16 %v3362
    %v5518 = vunpack.c.h.b16 %v3362
    %v5519 = vunpack.c.l.b16 %v3363
    %v5520 = vunpack.c.h.b16 %v3363
    %v5521 = vunpack.c.l.b16 %v3364
    %v5522 = vunpack.c.h.b16 %v3364
    %v5523 = vunpack.c.l.b16 %v3365
    %v5524 = vunpack.c.h.b16 %v3365
    %v5525 = vunpack.c.l.b16 %v3366
    %v5526 = vunpack.c.h.b16 %v3366
    %v5527 = vunpack.c.l.b16 %v3367
    %v5528 = vunpack.c.h.b16 %v3367
    %v5529 = vunpack.c.l.b16 %v3368
    %v5530 = vunpack.c.h.b16 %v3368
    %v5531 = vunpack.c.l.b16 %v3369
    %v5532 = vunpack.c.h.b16 %v3369
    %v5533 = vunpack.c.l.b16 %v3370
    %v5534 = vunpack.c.h.b16 %v3370
    %v5535 = vunpack.c.l.b16 %v3371
    %v5536 = vunpack.c.h.b16 %v3371
    %v5537 = vunpack.c.l.b16 %v3372
    %v5538 = vunpack.c.h.b16 %v3372
    %v5539 = vunpack.c.l.b16 %v3373
    %v5540 = vunpack.c.h.b16 %v3373
    %v5541 = vunpack.c.l.b16 %v3374
    %v5542 = vunpack.c.h.b16 %v3374
    %v5543 = vunpack.c.l.b16 %v3375
    %v5544 = vunpack.c.h.b16 %v3375
    %v5545 = vunpack.c.l.b16 %v3376
    %v5546 = vunpack.c.h.b16 %v3376
    %v5547 = vunpack.c.l.b16 %v3377
    %v5548 = vunpack.c.h.b16 %v3377
    %v5549 = vunpack.c.l.b16 %v3378
    %v5550 = vunpack.c.h.b16 %v3378
    %v5551 = vunpack.c.l.b16 %v3379
    %v5552 = vunpack.c.h.b16 %v3379
    %v5553 = vunpack.c.l.b16 %v3380
    %v5554 = vunpack.c.h.b16 %v3380
    %v5555 = vunpack.c.l.b16 %v3381
    %v5556 = vunpack.c.h.b16 %v3381
    %v5557 = vunpack.c.l.b16 %v3382
    %v5558 = vunpack.c.h.b16 %v3382
    %v5559 = vunpack.c.l.b16 %v3383
    %v5560 = vunpack.c.h.b16 %v3383
    %v5561 = vunpack.c.l.b16 %v3384
    %v5562 = vunpack.c.h.b16 %v3384
    %v5563 = vunpack.c.l.b16 %v3385
    %v5564 = vunpack.c.h.b16 %v3385
    %v5565 = vunpack.c.l.b16 %v3386
    %v5566 = vunpack.c.h.b16 %v3386
    %v5567 = vunpack.c.l.b16 %v3387
    %v5568 = vunpack.c.h.b16 %v3387
    %v5569 = vunpack.c.l.b16 %v3388
    %v5570 = vunpack.c.h.b16 %v3388
    %v5571 = vunpack.c.l.b16 %v3389
    %v5572 = vunpack.c.h.b16 %v3389
    %v5573 = vunpack.c.l.b16 %v3390
    %v5574 = vunpack.c.h.b16 %v3390
    %v5575 = vunpack.c.l.b16 %v3391
    %v5576 = vunpack.c.h.b16 %v3391
    %v5577 = vunpack.c.l.b16 %v3392
    %v5578 = vunpack.c.h.b16 %v3392
    %v5579 = vunpack.c.l.b16 %v3393
    %v5580 = vunpack.c.h.b16 %v3393
    %v5581 = vunpack.c.l.b16 %v3394
    %v5582 = vunpack.c.h.b16 %v3394
    %v5583 = vunpack.c.l.b16 %v3395
    %v5584 = vunpack.c.h.b16 %v3395
    %v5585 = vunpack.c.l.b16 %v3396
    %v5586 = vunpack.c.h.b16 %v3396
    %v5587 = vunpack.c.l.b16 %v3397
    %v5588 = vunpack.c.h.b16 %v3397
    %v5589 = vunpack.c.l.b16 %v3398
    %v5590 = vunpack.c.h.b16 %v3398
    %v5591 = vunpack.c.l.b16 %v3399
    %v5592 = vunpack.c.h.b16 %v3399
    %v5593 = vunpack.c.l.b16 %v3400
    %v5594 = vunpack.c.h.b16 %v3400
    %v5595 = vunpack.c.l.b16 %v3401
    %v5596 = vunpack.c.h.b16 %v3401
    %v5597 = vunpack.c.l.b16 %v3402
    %v5598 = vunpack.c.h.b16 %v3402
    %v5599 = vunpack.c.l.b16 %v3403
    %v5600 = vunpack.c.h.b16 %v3403
    %v5601 = vunpack.c.l.b16 %v3404
    %v5602 = vunpack.c.h.b16 %v3404
    %v5603 = vunpack.c.l.b16 %v3405
    %v5604 = vunpack.c.h.b16 %v3405
    %v5605 = vunpack.c.l.b16 %v3406
    %v5606 = vunpack.c.h.b16 %v3406
    %v5607 = vunpack.c.l.b16 %v3407
    %v5608 = vunpack.c.h.b16 %v3407
    %v5609 = vunpack.c.l.b16 %v3408
    %v5610 = vunpack.c.h.b16 %v3408
    %v5611 = vunpack.c.l.b16 %v3409
    %v5612 = vunpack.c.h.b16 %v3409
    %v5613 = vunpack.c.l.b16 %v3410
    %v5614 = vunpack.c.h.b16 %v3410
    %v5615 = vunpack.c.l.b16 %v3411
    %v5616 = vunpack.c.h.b16 %v3411
    %v5617 = vunpack.c.l.b16 %v3412
    %v5618 = vunpack.c.h.b16 %v3412
    %v5619 = vunpack.c.l.b16 %v3413
    %v5620 = vunpack.c.h.b16 %v3413
    %v5621 = vunpack.c.l.b16 %v3414
    %v5622 = vunpack.c.h.b16 %v3414
    %v5623 = vunpack.c.l.b16 %v3415
    %v5624 = vunpack.c.h.b16 %v3415
    %v5625 = vunpack.c.l.b16 %v3416
    %v5626 = vunpack.c.h.b16 %v3416
    %v5627 = vunpack.c.l.b16 %v3417
    %v5628 = vunpack.c.h.b16 %v3417
    %v5629 = vunpack.c.l.b16 %v3418
    %v5630 = vunpack.c.h.b16 %v3418
    %v5631 = vunpack.c.l.b16 %v3419
    %v5632 = vunpack.c.h.b16 %v3419
    %v5633 = vunpack.c.l.b16 %v3420
    %v5634 = vunpack.c.h.b16 %v3420
    %v5635 = vunpack.c.l.b16 %v3421
    %v5636 = vunpack.c.h.b16 %v3421
    %v5637 = vunpack.c.l.b16 %v3422
    %v5638 = vunpack.c.h.b16 %v3422
    %v5639 = vunpack.c.l.b16 %v3423
    %v5640 = vunpack.c.h.b16 %v3423
    %v5641 = vunpack.c.l.b16 %v3424
    %v5642 = vunpack.c.h.b16 %v3424
    %v5643 = vunpack.c.l.b16 %v3425
    %v5644 = vunpack.c.h.b16 %v3425
    %v5645 = vunpack.c.l.b16 %v3426
    %v5646 = vunpack.c.h.b16 %v3426
    %v5647 = vunpack.c.l.b16 %v3427
    %v5648 = vunpack.c.h.b16 %v3427
    %v5649 = vunpack.c.l.b16 %v3428
    %v5650 = vunpack.c.h.b16 %v3428
    %v5651 = vunpack.c.l.b16 %v3429
    %v5652 = vunpack.c.h.b16 %v3429
    %v5653 = vunpack.c.l.b16 %v3430
    %v5654 = vunpack.c.h.b16 %v3430
    %v5655 = vunpack.c.l.b16 %v3431
    %v5656 = vunpack.c.h.b16 %v3431
    %v5657 = vunpack.c.l.b16 %v3432
    %v5658 = vunpack.c.h.b16 %v3432
    %v5659 = vunpack.c.l.b16 %v3433
    %v5660 = vunpack.c.h.b16 %v3433
    %v5661 = vunpack.c.l.b16 %v3434
    %v5662 = vunpack.c.h.b16 %v3434
    %v5663 = vunpack.c.l.b16 %v3435
    %v5664 = vunpack.c.h.b16 %v3435
    %v5665 = vunpack.c.l.b16 %v3436
    %v5666 = vunpack.c.h.b16 %v3436
    %v5667 = vunpack.c.l.b16 %v3437
    %v5668 = vunpack.c.h.b16 %v3437
    %v5669 = vunpack.c.l.b16 %v3438
    %v5670 = vunpack.c.h.b16 %v3438
    %v5671 = vunpack.c.l.b16 %v3439
    %v5672 = vunpack.c.h.b16 %v3439
    %v5673 = vunpack.c.l.b16 %v3440
    %v5674 = vunpack.c.h.b16 %v3440
    %v5675 = vunpack.c.l.b16 %v3441
    %v5676 = vunpack.c.h.b16 %v3441
    %v5677 = vunpack.c.l.b16 %v3442
    %v5678 = vunpack.c.h.b16 %v3442
    %v5679 = vunpack.c.l.b16 %v3443
    %v5680 = vunpack.c.h.b16 %v3443
    %v5681 = vunpack.c.l.b16 %v3444
    %v5682 = vunpack.c.h.b16 %v3444
    %v5683 = vunpack.c.l.b16 %v3445
    %v5684 = vunpack.c.h.b16 %v3445
    %v5685 = vunpack.c.l.b16 %v3446
    %v5686 = vunpack.c.h.b16 %v3446
    %v5687 = vunpack.c.l.b16 %v3447
    %v5688 = vunpack.c.h.b16 %v3447
    %v5689 = vunpack.c.l.b16 %v3448
    %v5690 = vunpack.c.h.b16 %v3448
    %v5691 = vunpack.c.l.b16 %v3449
    %v5692 = vunpack.c.h.b16 %v3449
    %v5693 = vunpack.c.l.b16 %v3450
    %v5694 = vunpack.c.h.b16 %v3450
    %v5695 = vunpack.c.l.b16 %v3451
    %v5696 = vunpack.c.h.b16 %v3451
    %v5697 = vunpack.c.l.b16 %v3452
    %v5698 = vunpack.c.h.b16 %v3452
    %v5699 = vunpack.c.l.b16 %v3453
    %v5700 = vunpack.c.h.b16 %v3453
    %v5701 = vunpack.c.l.b16 %v3454
    %v5702 = vunpack.c.h.b16 %v3454
    %v5703 = vunpack.c.l.b16 %v3455
    %v5704 = vunpack.c.h.b16 %v3455
    %v5705 = vunpack.c.l.b16 %v3456
    %v5706 = vunpack.c.h.b16 %v3456
    %v5707 = vunpack.c.l.b16 %v3457
    %v5708 = vunpack.c.h.b16 %v3457
    %v5709 = vunpack.c.l.b16 %v3458
    %v5710 = vunpack.c.h.b16 %v3458
    %v5711 = vunpack.c.l.b16 %v3459
    %v5712 = vunpack.c.h.b16 %v3459
    %v5713 = vunpack.c.l.b16 %v3460
    %v5714 = vunpack.c.h.b16 %v3460
    %v5715 = vunpack.c.l.b16 %v3461
    %v5716 = vunpack.c.h.b16 %v3461
    %v5717 = vunpack.c.l.b16 %v3462
    %v5718 = vunpack.c.h.b16 %v3462
    %v5719 = vunpack.c.l.b16 %v3463
    %v5720 = vunpack.c.h.b16 %v3463
    %v5721 = vunpack.c.l.b16 %v3464
    %v5722 = vunpack.c.h.b16 %v3464
    %v5723 = vunpack.c.l.b16 %v3465
    %v5724 = vunpack.c.h.b16 %v3465
    %v5725 = vunpack.c.l.b16 %v3466
    %v5726 = vunpack.c.h.b16 %v3466
    %v5727 = vunpack.c.l.b16 %v3467
    %v5728 = vunpack.c.h.b16 %v3467
    %v5729 = vunpack.c.l.b16 %v3468
    %v5730 = vunpack.c.h.b16 %v3468
    %v5731 = vunpack.c.l.b16 %v3469
    %v5732 = vunpack.c.h.b16 %v3469
    %v5733 = vunpack.c.l.b16 %v3470
    %v5734 = vunpack.c.h.b16 %v3470
    %v5735 = vunpack.c.l.b16 %v3471
    %v5736 = vunpack.c.h.b16 %v3471
    %v5737 = vunpack.c.l.b16 %v3472
    %v5738 = vunpack.c.h.b16 %v3472
    %v5739 = vunpack.c.l.b16 %v3473
    %v5740 = vunpack.c.h.b16 %v3473
    %v5741 = vunpack.c.l.b16 %v3474
    %v5742 = vunpack.c.h.b16 %v3474
    %v5743 = vunpack.c.l.b16 %v3475
    %v5744 = vunpack.c.h.b16 %v3475
    %v5745 = vunpack.c.l.b16 %v3476
    %v5746 = vunpack.c.h.b16 %v3476
    %v5747 = vunpack.c.l.b16 %v3477
    %v5748 = vunpack.c.h.b16 %v3477
    %v5749 = vunpack.c.l.b16 %v3478
    %v5750 = vunpack.c.h.b16 %v3478
    %v5751 = vunpack.c.l.b16 %v3479
    %v5752 = vunpack.c.h.b16 %v3479
    %v5753 = vunpack.c.l.b16 %v3480
    %v5754 = vunpack.c.h.b16 %v3480
    %v5755 = vunpack.c.l.b16 %v3481
    %v5756 = vunpack.c.h.b16 %v3481
    %v5757 = vunpack.c.l.b16 %v3482
    %v5758 = vunpack.c.h.b16 %v3482
    %v5759 = vunpack.c.l.b16 %v3483
    %v5760 = vunpack.c.h.b16 %v3483
    %v5761 = vunpack.c.l.b16 %v3484
    %v5762 = vunpack.c.h.b16 %v3484
    %v5763 = vunpack.c.l.b16 %v3485
    %v5764 = vunpack.c.h.b16 %v3485
    %v5765 = vunpack.c.l.b16 %v3486
    %v5766 = vunpack.c.h.b16 %v3486
    %v5767 = vunpack.c.l.b16 %v3487
    %v5768 = vunpack.c.h.b16 %v3487
    %v5769 = vunpack.c.l.b16 %v3488
    %v5770 = vunpack.c.h.b16 %v3488
    %v5771 = vunpack.c.l.b16 %v3489
    %v5772 = vunpack.c.h.b16 %v3489
    %v5773 = vunpack.c.l.b16 %v3490
    %v5774 = vunpack.c.h.b16 %v3490
    %v5775 = vunpack.c.l.b16 %v3491
    %v5776 = vunpack.c.h.b16 %v3491
    %v5777 = vunpack.c.l.b16 %v3492
    %v5778 = vunpack.c.h.b16 %v3492
    %v5779 = vunpack.c.l.b16 %v3493
    %v5780 = vunpack.c.h.b16 %v3493
    %v5781 = vunpack.c.l.b16 %v3494
    %v5782 = vunpack.c.h.b16 %v3494
    %v5783 = vunpack.c.l.b16 %v3495
    %v5784 = vunpack.c.h.b16 %v3495
    %v5785 = vunpack.c.l.b16 %v3496
    %v5786 = vunpack.c.h.b16 %v3496
    %v5787 = vunpack.c.l.b16 %v3497
    %v5788 = vunpack.c.h.b16 %v3497
    %v5789 = vunpack.c.l.b16 %v3498
    %v5790 = vunpack.c.h.b16 %v3498
    %v5791 = vunpack.c.l.b16 %v3499
    %v5792 = vunpack.c.h.b16 %v3499
    %v5793 = vunpack.c.l.b16 %v3500
    %v5794 = vunpack.c.h.b16 %v3500
    %v5795 = vunpack.c.l.b16 %v3501
    %v5796 = vunpack.c.h.b16 %v3501
    %v5797 = vunpack.c.l.b16 %v3502
    %v5798 = vunpack.c.h.b16 %v3502
    %v5799 = vunpack.c.l.b16 %v3503
    %v5800 = vunpack.c.h.b16 %v3503
    %v5801 = vunpack.c.l.b16 %v3504
    %v5802 = vunpack.c.h.b16 %v3504
    %v5803 = vunpack.c.l.b16 %v3505
    %v5804 = vunpack.c.h.b16 %v3505
    %v5805 = vunpack.c.l.b16 %v3506
    %v5806 = vunpack.c.h.b16 %v3506
    %v5807 = vunpack.c.l.b16 %v3507
    %v5808 = vunpack.c.h.b16 %v3507
    %v5809 = vunpack.c.l.b16 %v3508
    %v5810 = vunpack.c.h.b16 %v3508
    %v5811 = vunpack.c.l.b16 %v3509
    %v5812 = vunpack.c.h.b16 %v3509
    %v5813 = vunpack.c.l.b16 %v3510
    %v5814 = vunpack.c.h.b16 %v3510
    %v5815 = vunpack.c.l.b16 %v3511
    %v5816 = vunpack.c.h.b16 %v3511
    %v5817 = vunpack.c.l.b16 %v3512
    %v5818 = vunpack.c.h.b16 %v3512
    %v5819 = vunpack.c.l.b16 %v3513
    %v5820 = vunpack.c.h.b16 %v3513
    %v5821 = vunpack.c.l.b16 %v3514
    %v5822 = vunpack.c.h.b16 %v3514
    %v5823 = vunpack.c.l.b16 %v3515
    %v5824 = vunpack.c.h.b16 %v3515
    %v5825 = vunpack.c.l.b16 %v3516
    %v5826 = vunpack.c.h.b16 %v3516
    %v5827 = vunpack.c.l.b16 %v3517
    %v5828 = vunpack.c.h.b16 %v3517
    %v5829 = vunpack.c.l.b16 %v3518
    %v5830 = vunpack.c.h.b16 %v3518
    %v5831 = vunpack.c.l.b16 %v3519
    %v5832 = vunpack.c.h.b16 %v3519
    %v5833 = vunpack.c.l.b16 %v3520
    %v5834 = vunpack.c.h.b16 %v3520
    %v5835 = vunpack.c.l.b16 %v3521
    %v5836 = vunpack.c.h.b16 %v3521
    %v5837 = vunpack.c.l.b16 %v3522
    %v5838 = vunpack.c.h.b16 %v3522
    %v5839 = vunpack.c.l.b16 %v3523
    %v5840 = vunpack.c.h.b16 %v3523
    %v5841 = vunpack.c.l.b16 %v3524
    %v5842 = vunpack.c.h.b16 %v3524
    %v5843 = vunpack.c.l.b16 %v3525
    %v5844 = vunpack.c.h.b16 %v3525
    %v5845 = vunpack.c.l.b16 %v3526
    %v5846 = vunpack.c.h.b16 %v3526
    %v5847 = vunpack.c.l.b16 %v3527
    %v5848 = vunpack.c.h.b16 %v3527
    %v5849 = vunpack.c.l.b16 %v3528
    %v5850 = vunpack.c.h.b16 %v3528
    %v5851 = vunpack.c.l.b16 %v3529
    %v5852 = vunpack.c.h.b16 %v3529
    %v5853 = vunpack.c.l.b16 %v3530
    %v5854 = vunpack.c.h.b16 %v3530
    %v5855 = vunpack.c.l.b16 %v3531
    %v5856 = vunpack.c.h.b16 %v3531
    %v5857 = vunpack.c.l.b16 %v3532
    %v5858 = vunpack.c.h.b16 %v3532
    %v5859 = vpack.c.b16 %v4327, %v4323
    %v5860 = vpack.c.b16 %v4328, %v4324
    %v5861 = vpack.c.b16 %v4329, %v4325
    %v5862 = vpack.c.b16 %v4330, %v4326
    %v5863 = vpack.c.b16 %v4335, %v4331
    %v5864 = vpack.c.b16 %v4336, %v4332
    %v5865 = vpack.c.b16 %v4337, %v4333
    %v5866 = vpack.c.b16 %v4338, %v4334
    %v5867 = vpack.c.b16 %v4343, %v4339
    %v5868 = vpack.c.b16 %v4344, %v4340
    %v5869 = vpack.c.b16 %v4345, %v4341
    %v5870 = vpack.c.b16 %v4346, %v4342
    %v5871 = vpack.c.b16 %v4351, %v4347
    %v5872 = vpack.c.b16 %v4352, %v4348
    %v5873 = vpack.c.b16 %v4353, %v4349
    %v5874 = vpack.c.b16 %v4354, %v4350
    %v5875 = vpack.c.b16 %v4359, %v4355
    %v5876 = vpack.c.b16 %v4360, %v4356
    %v5877 = vpack.c.b16 %v4361, %v4357
    %v5878 = vpack.c.b16 %v4362, %v4358
    %v5879 = vpack.c.b16 %v4367, %v4363
    %v5880 = vpack.c.b16 %v4368, %v4364
    %v5881 = vpack.c.b16 %v4369, %v4365
    %v5882 = vpack.c.b16 %v4370, %v4366
    %v5883 = vpack.c.b16 %v4375, %v4371
    %v5884 = vpack.c.b16 %v4376, %v4372
    %v5885 = vpack.c.b16 %v4377, %v4373
    %v5886 = vpack.c.b16 %v4378, %v4374
    %v5887 = vpack.c.b16 %v4383, %v4379
    %v5888 = vpack.c.b16 %v4384, %v4380
    %v5889 = vpack.c.b16 %v4385, %v4381
    %v5890 = vpack.c.b16 %v4386, %v4382
    %v5891 = vpack.c.b16 %v4391, %v4387
    %v5892 = vpack.c.b16 %v4392, %v4388
    %v5893 = vpack.c.b16 %v4393, %v4389
    %v5894 = vpack.c.b16 %v4394, %v4390
    %v5895 = vpack.c.b16 %v4399, %v4395
    %v5896 = vpack.c.b16 %v4400, %v4396
    %v5897 = vpack.c.b16 %v4401, %v4397
    %v5898 = vpack.c.b16 %v4402, %v4398
    %v5899 = vpack.c.b16 %v4407, %v4403
    %v5900 = vpack.c.b16 %v4408, %v4404
    %v5901 = vpack.c.b16 %v4409, %v4405
    %v5902 = vpack.c.b16 %v4410, %v4406
    %v5903 = vpack.c.b16 %v4415, %v4411
    %v5904 = vpack.c.b16 %v4416, %v4412
    %v5905 = vpack.c.b16 %v4417, %v4413
    %v5906 = vpack.c.b16 %v4418, %v4414
    %v5907 = vpack.c.b16 %v4423, %v4419
    %v5908 = vpack.c.b16 %v4424, %v4420
    %v5909 = vpack.c.b16 %v4425, %v4421
    %v5910 = vpack.c.b16 %v4426, %v4422
    %v5911 = vpack.c.b16 %v4431, %v4427
    %v5912 = vpack.c.b16 %v4432, %v4428
    %v5913 = vpack.c.b16 %v4433, %v4429
    %v5914 = vpack.c.b16 %v4434, %v4430
    %v5915 = vpack.c.b16 %v4439, %v4435
    %v5916 = vpack.c.b16 %v4440, %v4436
    %v5917 = vpack.c.b16 %v4441, %v4437
    %v5918 = vpack.c.b16 %v4442, %v4438
    %v5919 = vpack.c.b16 %v4447, %v4443
    %v5920 = vpack.c.b16 %v4448, %v4444
    %v5921 = vpack.c.b16 %v4449, %v4445
    %v5922 = vpack.c.b16 %v4450, %v4446
    %v5923 = vpack.c.b16 %v4455, %v4451
    %v5924 = vpack.c.b16 %v4456, %v4452
    %v5925 = vpack.c.b16 %v4457, %v4453
    %v5926 = vpack.c.b16 %v4458, %v4454
    %v5927 = vpack.c.b16 %v4463, %v4459
    %v5928 = vpack.c.b16 %v4464, %v4460
    %v5929 = vpack.c.b16 %v4465, %v4461
    %v5930 = vpack.c.b16 %v4466, %v4462
    %v5931 = vpack.c.b16 %v4471, %v4467
    %v5932 = vpack.c.b16 %v4472, %v4468
    %v5933 = vpack.c.b16 %v4473, %v4469
    %v5934 = vpack.c.b16 %v4474, %v4470
    %v5935 = vpack.c.b16 %v4479, %v4475
    %v5936 = vpack.c.b16 %v4480, %v4476
    %v5937 = vpack.c.b16 %v4481, %v4477
    %v5938 = vpack.c.b16 %v4482, %v4478
    %v5939 = vpack.c.b16 %v4487, %v4483
    %v5940 = vpack.c.b16 %v4488, %v4484
    %v5941 = vpack.c.b16 %v4489, %v4485
    %v5942 = vpack.c.b16 %v4490, %v4486
    %v5943 = vpack.c.b16 %v4495, %v4491
    %v5944 = vpack.c.b16 %v4496, %v4492
    %v5945 = vpack.c.b16 %v4497, %v4493
    %v5946 = vpack.c.b16 %v4498, %v4494
    %v5947 = vpack.c.b16 %v4503, %v4499
    %v5948 = vpack.c.b16 %v4504, %v4500
    %v5949 = vpack.c.b16 %v4505, %v4501
    %v5950 = vpack.c.b16 %v4506, %v4502
    %v5951 = vpack.c.b16 %v4511, %v4507
    %v5952 = vpack.c.b16 %v4512, %v4508
    %v5953 = vpack.c.b16 %v4513, %v4509
    %v5954 = vpack.c.b16 %v4514, %v4510
    %v5955 = vpack.c.b16 %v4519, %v4515
    %v5956 = vpack.c.b16 %v4520, %v4516
    %v5957 = vpack.c.b16 %v4521, %v4517
    %v5958 = vpack.c.b16 %v4522, %v4518
    %v5959 = vpack.c.b16 %v4527, %v4523
    %v5960 = vpack.c.b16 %v4528, %v4524
    %v5961 = vpack.c.b16 %v4529, %v4525
    %v5962 = vpack.c.b16 %v4530, %v4526
    %v5963 = vpack.c.b16 %v4535, %v4531
    %v5964 = vpack.c.b16 %v4536, %v4532
    %v5965 = vpack.c.b16 %v4537, %v4533
    %v5966 = vpack.c.b16 %v4538, %v4534
    %v5967 = vpack.c.b16 %v4543, %v4539
    %v5968 = vpack.c.b16 %v4544, %v4540
    %v5969 = vpack.c.b16 %v4545, %v4541
    %v5970 = vpack.c.b16 %v4546, %v4542
    %v5971 = vpack.c.b16 %v4551, %v4547
    %v5972 = vpack.c.b16 %v4552, %v4548
    %v5973 = vpack.c.b16 %v4553, %v4549
    %v5974 = vpack.c.b16 %v4554, %v4550
    %v5975 = vpack.c.b16 %v4559, %v4555
    %v5976 = vpack.c.b16 %v4560, %v4556
    %v5977 = vpack.c.b16 %v4561, %v4557
    %v5978 = vpack.c.b16 %v4562, %v4558
    %v5979 = vpack.c.b16 %v4567, %v4563
    %v5980 = vpack.c.b16 %v4568, %v4564
    %v5981 = vpack.c.b16 %v4569, %v4565
    %v5982 = vpack.c.b16 %v4570, %v4566
    %v5983 = vpack.c.b16 %v4575, %v4571
    %v5984 = vpack.c.b16 %v4576, %v4572
    %v5985 = vpack.c.b16 %v4577, %v4573
    %v5986 = vpack.c.b16 %v4578, %v4574
    %v5987 = vpack.c.b16 %v4583, %v4579
    %v5988 = vpack.c.b16 %v4584, %v4580
    %v5989 = vpack.c.b16 %v4585, %v4581
    %v5990 = vpack.c.b16 %v4586, %v4582
    %v5991 = vpack.c.b16 %v4591, %v4587
    %v5992 = vpack.c.b16 %v4592, %v4588
    %v5993 = vpack.c.b16 %v4593, %v4589
    %v5994 = vpack.c.b16 %v4594, %v4590
    %v5995 = vpack.c.b16 %v4599, %v4595
    %v5996 = vpack.c.b16 %v4600, %v4596
    %v5997 = vpack.c.b16 %v4601, %v4597
    %v5998 = vpack.c.b16 %v4602, %v4598
    %v5999 = vpack.c.b16 %v4607, %v4603
    %v6000 = vpack.c.b16 %v4608, %v4604
    %v6001 = vpack.c.b16 %v4609, %v4605
    %v6002 = vpack.c.b16 %v4610, %v4606
    %v6003 = vpack.c.b16 %v4615, %v4611
    %v6004 = vpack.c.b16 %v4616, %v4612
    %v6005 = vpack.c.b16 %v4617, %v4613
    %v6006 = vpack.c.b16 %v4618, %v4614
    %v6007 = vpack.c.b16 %v4623, %v4619
    %v6008 = vpack.c.b16 %v4624, %v4620
    %v6009 = vpack.c.b16 %v4625, %v4621
    %v6010 = vpack.c.b16 %v4626, %v4622
    %v6011 = vpack.c.b16 %v4631, %v4627
    %v6012 = vpack.c.b16 %v4632, %v4628
    %v6013 = vpack.c.b16 %v4633, %v4629
    %v6014 = vpack.c.b16 %v4634, %v4630
    %v6015 = vpack.c.b16 %v4639, %v4635
    %v6016 = vpack.c.b16 %v4640, %v4636
    %v6017 = vpack.c.b16 %v4641, %v4637
    %v6018 = vpack.c.b16 %v4642, %v4638
    %v6019 = vpack.c.b16 %v4647, %v4643
    %v6020 = vpack.c.b16 %v4648, %v4644
    %v6021 = vpack.c.b16 %v4649, %v4645
    %v6022 = vpack.c.b16 %v4650, %v4646
    %v6023 = vpack.c.b16 %v4655, %v4651
    %v6024 = vpack.c.b16 %v4656, %v4652
    %v6025 = vpack.c.b16 %v4657, %v4653
    %v6026 = vpack.c.b16 %v4658, %v4654
    %v6027 = vpack.c.b16 %v4663, %v4659
    %v6028 = vpack.c.b16 %v4664, %v4660
    %v6029 = vpack.c.b16 %v4665, %v4661
    %v6030 = vpack.c.b16 %v4666, %v4662
    %v6031 = vpack.c.b16 %v4671, %v4667
    %v6032 = vpack.c.b16 %v4672, %v4668
    %v6033 = vpack.c.b16 %v4673, %v4669
    %v6034 = vpack.c.b16 %v4674, %v4670
    %v6035 = vpack.c.b16 %v4679, %v4675
    %v6036 = vpack.c.b16 %v4680, %v4676
    %v6037 = vpack.c.b16 %v4681, %v4677
    %v6038 = vpack.c.b16 %v4682, %v4678
    %v6039 = vpack.c.b16 %v4687, %v4683
    %v6040 = vpack.c.b16 %v4688, %v4684
    %v6041 = vpack.c.b16 %v4689, %v4685
    %v6042 = vpack.c.b16 %v4690, %v4686
    %v6043 = vpack.c.b16 %v4695, %v4691
    %v6044 = vpack.c.b16 %v4696, %v4692
    %v6045 = vpack.c.b16 %v4697, %v4693
    %v6046 = vpack.c.b16 %v4698, %v4694
    %v6047 = vpack.c.b16 %v4703, %v4699
    %v6048 = vpack.c.b16 %v4704, %v4700
    %v6049 = vpack.c.b16 %v4705, %v4701
    %v6050 = vpack.c.b16 %v4706, %v4702
    %v6051 = vpack.c.b16 %v4711, %v4707
    %v6052 = vpack.c.b16 %v4712, %v4708
    %v6053 = vpack.c.b16 %v4713, %v4709
    %v6054 = vpack.c.b16 %v4714, %v4710
    %v6055 = vpack.c.b16 %v4719, %v4715
    %v6056 = vpack.c.b16 %v4720, %v4716
    %v6057 = vpack.c.b16 %v4721, %v4717
    %v6058 = vpack.c.b16 %v4722, %v4718
    %v6059 = vpack.c.b16 %v4727, %v4723
    %v6060 = vpack.c.b16 %v4728, %v4724
    %v6061 = vpack.c.b16 %v4729, %v4725
    %v6062 = vpack.c.b16 %v4730, %v4726
    %v6063 = vpack.c.b16 %v4735, %v4731
    %v6064 = vpack.c.b16 %v4736, %v4732
    %v6065 = vpack.c.b16 %v4737, %v4733
    %v6066 = vpack.c.b16 %v4738, %v4734
    %v6067 = vpack.c.b16 %v4743, %v4739
    %v6068 = vpack.c.b16 %v4744, %v4740
    %v6069 = vpack.c.b16 %v4745, %v4741
    %v6070 = vpack.c.b16 %v4746, %v4742
    %v6071 = vpack.c.b16 %v4751, %v4747
    %v6072 = vpack.c.b16 %v4752, %v4748
    %v6073 = vpack.c.b16 %v4753, %v4749
    %v6074 = vpack.c.b16 %v4754, %v4750
    %v6075 = vpack.c.b16 %v4759, %v4755
    %v6076 = vpack.c.b16 %v4760, %v4756
    %v6077 = vpack.c.b16 %v4761, %v4757
    %v6078 = vpack.c.b16 %v4762, %v4758
    %v6079 = vpack.c.b16 %v4767, %v4763
    %v6080 = vpack.c.b16 %v4768, %v4764
    %v6081 = vpack.c.b16 %v4769, %v4765
    %v6082 = vpack.c.b16 %v4770, %v4766
    %v6083 = vpack.c.b16 %v4775, %v4771
    %v6084 = vpack.c.b16 %v4776, %v4772
    %v6085 = vpack.c.b16 %v4777, %v4773
    %v6086 = vpack.c.b16 %v4778, %v4774
    %v6087 = vpack.c.b16 %v4783, %v4779
    %v6088 = vpack.c.b16 %v4784, %v4780
    %v6089 = vpack.c.b16 %v4785, %v4781
    %v6090 = vpack.c.b16 %v4786, %v4782
    %v6091 = vpack.c.b16 %v4791, %v4787
    %v6092 = vpack.c.b16 %v4792, %v4788
    %v6093 = vpack.c.b16 %v4793, %v4789
    %v6094 = vpack.c.b16 %v4794, %v4790
    %v6095 = vpack.c.b16 %v4799, %v4795
    %v6096 = vpack.c.b16 %v4800, %v4796
    %v6097 = vpack.c.b16 %v4801, %v4797
    %v6098 = vpack.c.b16 %v4802, %v4798
    %v6099 = vpack.c.b16 %v4807, %v4803
    %v6100 = vpack.c.b16 %v4808, %v4804
    %v6101 = vpack.c.b16 %v4809, %v4805
    %v6102 = vpack.c.b16 %v4810, %v4806
    %v6103 = vpack.c.b16 %v4815, %v4811
    %v6104 = vpack.c.b16 %v4816, %v4812
    %v6105 = vpack.c.b16 %v4817, %v4813
    %v6106 = vpack.c.b16 %v4818, %v4814
    %v6107 = vpack.c.b16 %v4823, %v4819
    %v6108 = vpack.c.b16 %v4824, %v4820
    %v6109 = vpack.c.b16 %v4825, %v4821
    %v6110 = vpack.c.b16 %v4826, %v4822
    %v6111 = vpack.c.b16 %v4831, %v4827
    %v6112 = vpack.c.b16 %v4832, %v4828
    %v6113 = vpack.c.b16 %v4833, %v4829
    %v6114 = vpack.c.b16 %v4834, %v4830
    %v6115 = vpack.c.b16 %v4839, %v4835
    %v6116 = vpack.c.b16 %v4840, %v4836
    %v6117 = vpack.c.b16 %v4841, %v4837
    %v6118 = vpack.c.b16 %v4842, %v4838
    %v6119 = vpack.c.b16 %v4847, %v4843
    %v6120 = vpack.c.b16 %v4848, %v4844
    %v6121 = vpack.c.b16 %v4849, %v4845
    %v6122 = vpack.c.b16 %v4850, %v4846
    %v6123 = vpack.c.b16 %v4855, %v4851
    %v6124 = vpack.c.b16 %v4856, %v4852
    %v6125 = vpack.c.b16 %v4857, %v4853
    %v6126 = vpack.c.b16 %v4858, %v4854
    %v6127 = vpack.c.b16 %v4863, %v4859
    %v6128 = vpack.c.b16 %v4864, %v4860
    %v6129 = vpack.c.b16 %v4865, %v4861
    %v6130 = vpack.c.b16 %v4866, %v4862
    %v6131 = vpack.c.b16 %v4871, %v4867
    %v6132 = vpack.c.b16 %v4872, %v4868
    %v6133 = vpack.c.b16 %v4873, %v4869
    %v6134 = vpack.c.b16 %v4874, %v4870
    %v6135 = vpack.c.b16 %v4879, %v4875
    %v6136 = vpack.c.b16 %v4880, %v4876
    %v6137 = vpack.c.b16 %v4881, %v4877
    %v6138 = vpack.c.b16 %v4882, %v4878
    %v6139 = vpack.c.b16 %v4887, %v4883
    %v6140 = vpack.c.b16 %v4888, %v4884
    %v6141 = vpack.c.b16 %v4889, %v4885
    %v6142 = vpack.c.b16 %v4890, %v4886
    %v6143 = vpack.c.b16 %v4895, %v4891
    %v6144 = vpack.c.b16 %v4896, %v4892
    %v6145 = vpack.c.b16 %v4897, %v4893
    %v6146 = vpack.c.b16 %v4898, %v4894
    %v6147 = vpack.c.b16 %v4903, %v4899
    %v6148 = vpack.c.b16 %v4904, %v4900
    %v6149 = vpack.c.b16 %v4905, %v4901
    %v6150 = vpack.c.b16 %v4906, %v4902
    %v6151 = vpack.c.b16 %v4911, %v4907
    %v6152 = vpack.c.b16 %v4912, %v4908
    %v6153 = vpack.c.b16 %v4913, %v4909
    %v6154 = vpack.c.b16 %v4914, %v4910
    %v6155 = vpack.c.b16 %v4919, %v4915
    %v6156 = vpack.c.b16 %v4920, %v4916
    %v6157 = vpack.c.b16 %v4921, %v4917
    %v6158 = vpack.c.b16 %v4922, %v4918
    %v6159 = vpack.c.b16 %v4927, %v4923
    %v6160 = vpack.c.b16 %v4928, %v4924
    %v6161 = vpack.c.b16 %v4929, %v4925
    %v6162 = vpack.c.b16 %v4930, %v4926
    %v6163 = vpack.c.b16 %v4935, %v4931
    %v6164 = vpack.c.b16 %v4936, %v4932
    %v6165 = vpack.c.b16 %v4937, %v4933
    %v6166 = vpack.c.b16 %v4938, %v4934
    %v6167 = vpack.c.b16 %v4943, %v4939
    %v6168 = vpack.c.b16 %v4944, %v4940
    %v6169 = vpack.c.b16 %v4945, %v4941
    %v6170 = vpack.c.b16 %v4946, %v4942
    %v6171 = vpack.c.b16 %v4951, %v4947
    %v6172 = vpack.c.b16 %v4952, %v4948
    %v6173 = vpack.c.b16 %v4953, %v4949
    %v6174 = vpack.c.b16 %v4954, %v4950
    %v6175 = vpack.c.b16 %v4959, %v4955
    %v6176 = vpack.c.b16 %v4960, %v4956
    %v6177 = vpack.c.b16 %v4961, %v4957
    %v6178 = vpack.c.b16 %v4962, %v4958
    %v6179 = vpack.c.b16 %v4967, %v4963
    %v6180 = vpack.c.b16 %v4968, %v4964
    %v6181 = vpack.c.b16 %v4969, %v4965
    %v6182 = vpack.c.b16 %v4970, %v4966
    %v6183 = vpack.c.b16 %v4975, %v4971
    %v6184 = vpack.c.b16 %v4976, %v4972
    %v6185 = vpack.c.b16 %v4977, %v4973
    %v6186 = vpack.c.b16 %v4978, %v4974
    %v6187 = vpack.c.b16 %v4983, %v4979
    %v6188 = vpack.c.b16 %v4984, %v4980
    %v6189 = vpack.c.b16 %v4985, %v4981
    %v6190 = vpack.c.b16 %v4986, %v4982
    %v6191 = vpack.c.b16 %v4991, %v4987
    %v6192 = vpack.c.b16 %v4992, %v4988
    %v6193 = vpack.c.b16 %v4993, %v4989
    %v6194 = vpack.c.b16 %v4994, %v4990
    %v6195 = vpack.c.b16 %v4999, %v4995
    %v6196 = vpack.c.b16 %v5000, %v4996
    %v6197 = vpack.c.b16 %v5001, %v4997
    %v6198 = vpack.c.b16 %v5002, %v4998
    %v6199 = vpack.c.b16 %v5007, %v5003
    %v6200 = vpack.c.b16 %v5008, %v5004
    %v6201 = vpack.c.b16 %v5009, %v5005
    %v6202 = vpack.c.b16 %v5010, %v5006
    %v6203 = vpack.c.b16 %v5015, %v5011
    %v6204 = vpack.c.b16 %v5016, %v5012
    %v6205 = vpack.c.b16 %v5017, %v5013
    %v6206 = vpack.c.b16 %v5018, %v5014
    %v6207 = vpack.c.b16 %v5023, %v5019
    %v6208 = vpack.c.b16 %v5024, %v5020
    %v6209 = vpack.c.b16 %v5025, %v5021
    %v6210 = vpack.c.b16 %v5026, %v5022
    %v6211 = vpack.c.b16 %v5031, %v5027
    %v6212 = vpack.c.b16 %v5032, %v5028
    %v6213 = vpack.c.b16 %v5033, %v5029
    %v6214 = vpack.c.b16 %v5034, %v5030
    %v6215 = vpack.c.b16 %v5039, %v5035
    %v6216 = vpack.c.b16 %v5040, %v5036
    %v6217 = vpack.c.b16 %v5041, %v5037
    %v6218 = vpack.c.b16 %v5042, %v5038
    %v6219 = vpack.c.b16 %v5047, %v5043
    %v6220 = vpack.c.b16 %v5048, %v5044
    %v6221 = vpack.c.b16 %v5049, %v5045
    %v6222 = vpack.c.b16 %v5050, %v5046
    %v6223 = vpack.c.b16 %v5055, %v5051
    %v6224 = vpack.c.b16 %v5056, %v5052
    %v6225 = vpack.c.b16 %v5057, %v5053
    %v6226 = vpack.c.b16 %v5058, %v5054
    %v6227 = vpack.c.b16 %v5063, %v5059
    %v6228 = vpack.c.b16 %v5064, %v5060
    %v6229 = vpack.c.b16 %v5065, %v5061
    %v6230 = vpack.c.b16 %v5066, %v5062
    %v6231 = vpack.c.b16 %v5071, %v5067
    %v6232 = vpack.c.b16 %v5072, %v5068
    %v6233 = vpack.c.b16 %v5073, %v5069
    %v6234 = vpack.c.b16 %v5074, %v5070
    %v6235 = vpack.c.b16 %v5079, %v5075
    %v6236 = vpack.c.b16 %v5080, %v5076
    %v6237 = vpack.c.b16 %v5081, %v5077
    %v6238 = vpack.c.b16 %v5082, %v5078
    %v6239 = vpack.c.b16 %v5087, %v5083
    %v6240 = vpack.c.b16 %v5088, %v5084
    %v6241 = vpack.c.b16 %v5089, %v5085
    %v6242 = vpack.c.b16 %v5090, %v5086
    %v6243 = vpack.c.b16 %v5095, %v5091
    %v6244 = vpack.c.b16 %v5096, %v5092
    %v6245 = vpack.c.b16 %v5097, %v5093
    %v6246 = vpack.c.b16 %v5098, %v5094
    %v6247 = vpack.c.b16 %v5103, %v5099
    %v6248 = vpack.c.b16 %v5104, %v5100
    %v6249 = vpack.c.b16 %v5105, %v5101
    %v6250 = vpack.c.b16 %v5106, %v5102
    %v6251 = vpack.c.b16 %v5111, %v5107
    %v6252 = vpack.c.b16 %v5112, %v5108
    %v6253 = vpack.c.b16 %v5113, %v5109
    %v6254 = vpack.c.b16 %v5114, %v5110
    %v6255 = vpack.c.b16 %v5119, %v5115
    %v6256 = vpack.c.b16 %v5120, %v5116
    %v6257 = vpack.c.b16 %v5121, %v5117
    %v6258 = vpack.c.b16 %v5122, %v5118
    %v6259 = vpack.c.b16 %v5127, %v5123
    %v6260 = vpack.c.b16 %v5128, %v5124
    %v6261 = vpack.c.b16 %v5129, %v5125
    %v6262 = vpack.c.b16 %v5130, %v5126
    %v6263 = vpack.c.b16 %v5135, %v5131
    %v6264 = vpack.c.b16 %v5136, %v5132
    %v6265 = vpack.c.b16 %v5137, %v5133
    %v6266 = vpack.c.b16 %v5138, %v5134
    %v6267 = vpack.c.b16 %v5143, %v5139
    %v6268 = vpack.c.b16 %v5144, %v5140
    %v6269 = vpack.c.b16 %v5145, %v5141
    %v6270 = vpack.c.b16 %v5146, %v5142
    %v6271 = vpack.c.b16 %v5151, %v5147
    %v6272 = vpack.c.b16 %v5152, %v5148
    %v6273 = vpack.c.b16 %v5153, %v5149
    %v6274 = vpack.c.b16 %v5154, %v5150
    %v6275 = vpack.c.b16 %v5159, %v5155
    %v6276 = vpack.c.b16 %v5160, %v5156
    %v6277 = vpack.c.b16 %v5161, %v5157
    %v6278 = vpack.c.b16 %v5162, %v5158
    %v6279 = vpack.c.b16 %v5167, %v5163
    %v6280 = vpack.c.b16 %v5168, %v5164
    %v6281 = vpack.c.b16 %v5169, %v5165
    %v6282 = vpack.c.b16 %v5170, %v5166
    %v6283 = vpack.c.b16 %v5175, %v5171
    %v6284 = vpack.c.b16 %v5176, %v5172
    %v6285 = vpack.c.b16 %v5177, %v5173
    %v6286 = vpack.c.b16 %v5178, %v5174
    %v6287 = vpack.c.b16 %v5183, %v5179
    %v6288 = vpack.c.b16 %v5184, %v5180
    %v6289 = vpack.c.b16 %v5185, %v5181
    %v6290 = vpack.c.b16 %v5186, %v5182
    %v6291 = vpack.c.b16 %v5191, %v5187
    %v6292 = vpack.c.b16 %v5192, %v5188
    %v6293 = vpack.c.b16 %v5193, %v5189
    %v6294 = vpack.c.b16 %v5194, %v5190
    %v6295 = vpack.c.b16 %v5199, %v5195
    %v6296 = vpack.c.b16 %v5200, %v5196
    %v6297 = vpack.c.b16 %v5201, %v5197
    %v6298 = vpack.c.b16 %v5202, %v5198
    %v6299 = vpack.c.b16 %v5207, %v5203
    %v6300 = vpack.c.b16 %v5208, %v5204
    %v6301 = vpack.c.b16 %v5209, %v5205
    %v6302 = vpack.c.b16 %v5210, %v5206
    %v6303 = vpack.c.b16 %v5215, %v5211
    %v6304 = vpack.c.b16 %v5216, %v5212
    %v6305 = vpack.c.b16 %v5217, %v5213
    %v6306 = vpack.c.b16 %v5218, %v5214
    %v6307 = vpack.c.b16 %v5223, %v5219
    %v6308 = vpack.c.b16 %v5224, %v5220
    %v6309 = vpack.c.b16 %v5225, %v5221
    %v6310 = vpack.c.b16 %v5226, %v5222
    %v6311 = vpack.c.b16 %v5231, %v5227
    %v6312 = vpack.c.b16 %v5232, %v5228
    %v6313 = vpack.c.b16 %v5233, %v5229
    %v6314 = vpack.c.b16 %v5234, %v5230
    %v6315 = vpack.c.b16 %v5239, %v5235
    %v6316 = vpack.c.b16 %v5240, %v5236
    %v6317 = vpack.c.b16 %v5241, %v5237
    %v6318 = vpack.c.b16 %v5242, %v5238
    %v6319 = vpack.c.b16 %v5247, %v5243
    %v6320 = vpack.c.b16 %v5248, %v5244
    %v6321 = vpack.c.b16 %v5249, %v5245
    %v6322 = vpack.c.b16 %v5250, %v5246
    %v6323 = vpack.c.b16 %v5255, %v5251
    %v6324 = vpack.c.b16 %v5256, %v5252
    %v6325 = vpack.c.b16 %v5257, %v5253
    %v6326 = vpack.c.b16 %v5258, %v5254
    %v6327 = vpack.c.b16 %v5263, %v5259
    %v6328 = vpack.c.b16 %v5264, %v5260
    %v6329 = vpack.c.b16 %v5265, %v5261
    %v6330 = vpack.c.b16 %v5266, %v5262
    %v6331 = vpack.c.b16 %v5271, %v5267
    %v6332 = vpack.c.b16 %v5272, %v5268
    %v6333 = vpack.c.b16 %v5273, %v5269
    %v6334 = vpack.c.b16 %v5274, %v5270
    %v6335 = vpack.c.b16 %v5279, %v5275
    %v6336 = vpack.c.b16 %v5280, %v5276
    %v6337 = vpack.c.b16 %v5281, %v5277
    %v6338 = vpack.c.b16 %v5282, %v5278
    %v6339 = vpack.c.b16 %v5287, %v5283
    %v6340 = vpack.c.b16 %v5288, %v5284
    %v6341 = vpack.c.b16 %v5289, %v5285
    %v6342 = vpack.c.b16 %v5290, %v5286
    %v6343 = vpack.c.b16 %v5295, %v5291
    %v6344 = vpack.c.b16 %v5296, %v5292
    %v6345 = vpack.c.b16 %v5297, %v5293
    %v6346 = vpack.c.b16 %v5298, %v5294
    %v6347 = vpack.c.b16 %v5303, %v5299
    %v6348 = vpack.c.b16 %v5304, %v5300
    %v6349 = vpack.c.b16 %v5305, %v5301
    %v6350 = vpack.c.b16 %v5306, %v5302
    %v6351 = vpack.c.b16 %v5311, %v5307
    %v6352 = vpack.c.b16 %v5312, %v5308
    %v6353 = vpack.c.b16 %v5313, %v5309
    %v6354 = vpack.c.b16 %v5314, %v5310
    %v6355 = vpack.c.b16 %v5319, %v5315
    %v6356 = vpack.c.b16 %v5320, %v5316
    %v6357 = vpack.c.b16 %v5321, %v5317
    %v6358 = vpack.c.b16 %v5322, %v5318
    %v6359 = vpack.c.b16 %v5327, %v5323
    %v6360 = vpack.c.b16 %v5328, %v5324
    %v6361 = vpack.c.b16 %v5329, %v5325
    %v6362 = vpack.c.b16 %v5330, %v5326
    %v6363 = vpack.c.b16 %v5335, %v5331
    %v6364 = vpack.c.b16 %v5336, %v5332
    %v6365 = vpack.c.b16 %v5337, %v5333
    %v6366 = vpack.c.b16 %v5338, %v5334
    %v6367 = vpack.c.b16 %v5343, %v5339
    %v6368 = vpack.c.b16 %v5344, %v5340
    %v6369 = vpack.c.b16 %v5345, %v5341
    %v6370 = vpack.c.b16 %v5346, %v5342
    %v6371 = vpack.c.b16 %v5351, %v5347
    %v6372 = vpack.c.b16 %v5352, %v5348
    %v6373 = vpack.c.b16 %v5353, %v5349
    %v6374 = vpack.c.b16 %v5354, %v5350
    %v6375 = vpack.c.b16 %v5359, %v5355
    %v6376 = vpack.c.b16 %v5360, %v5356
    %v6377 = vpack.c.b16 %v5361, %v5357
    %v6378 = vpack.c.b16 %v5362, %v5358
    %v6379 = vpack.c.b16 %v5367, %v5363
    %v6380 = vpack.c.b16 %v5368, %v5364
    %v6381 = vpack.c.b16 %v5369, %v5365
    %v6382 = vpack.c.b16 %v5370, %v5366
    %v6383 = vpack.c.b16 %v5375, %v5371
    %v6384 = vpack.c.b16 %v5376, %v5372
    %v6385 = vpack.c.b16 %v5377, %v5373
    %v6386 = vpack.c.b16 %v5378, %v5374
    %v6387 = vpack.c.b16 %v5383, %v5379
    %v6388 = vpack.c.b16 %v5384, %v5380
    %v6389 = vpack.c.b16 %v5385, %v5381
    %v6390 = vpack.c.b16 %v5386, %v5382
    %v6391 = vpack.c.b16 %v5391, %v5387
    %v6392 = vpack.c.b16 %v5392, %v5388
    %v6393 = vpack.c.b16 %v5393, %v5389
    %v6394 = vpack.c.b16 %v5394, %v5390
    %v6395 = vpack.c.b16 %v5399, %v5395
    %v6396 = vpack.c.b16 %v5400, %v5396
    %v6397 = vpack.c.b16 %v5401, %v5397
    %v6398 = vpack.c.b16 %v5402, %v5398
    %v6399 = vpack.c.b16 %v5407, %v5403
    %v6400 = vpack.c.b16 %v5408, %v5404
    %v6401 = vpack.c.b16 %v5409, %v5405
    %v6402 = vpack.c.b16 %v5410, %v5406
    %v6403 = vpack.c.b16 %v5415, %v5411
    %v6404 = vpack.c.b16 %v5416, %v5412
    %v6405 = vpack.c.b16 %v5417, %v5413
    %v6406 = vpack.c.b16 %v5418, %v5414
    %v6407 = vpack.c.b16 %v5423, %v5419
    %v6408 = vpack.c.b16 %v5424, %v5420
    %v6409 = vpack.c.b16 %v5425, %v5421
    %v6410 = vpack.c.b16 %v5426, %v5422
    %v6411 = vpack.c.b16 %v5431, %v5427
    %v6412 = vpack.c.b16 %v5432, %v5428
    %v6413 = vpack.c.b16 %v5433, %v5429
    %v6414 = vpack.c.b16 %v5434, %v5430
    %v6415 = vpack.c.b16 %v5439, %v5435
    %v6416 = vpack.c.b16 %v5440, %v5436
    %v6417 = vpack.c.b16 %v5441, %v5437
    %v6418 = vpack.c.b16 %v5442, %v5438
    %v6419 = vpack.c.b16 %v5447, %v5443
    %v6420 = vpack.c.b16 %v5448, %v5444
    %v6421 = vpack.c.b16 %v5449, %v5445
    %v6422 = vpack.c.b16 %v5450, %v5446
    %v6423 = vpack.c.b16 %v5455, %v5451
    %v6424 = vpack.c.b16 %v5456, %v5452
    %v6425 = vpack.c.b16 %v5457, %v5453
    %v6426 = vpack.c.b16 %v5458, %v5454
    %v6427 = vpack.c.b16 %v5463, %v5459
    %v6428 = vpack.c.b16 %v5464, %v5460
    %v6429 = vpack.c.b16 %v5465, %v5461
    %v6430 = vpack.c.b16 %v5466, %v5462
    %v6431 = vpack.c.b16 %v5471, %v5467
    %v6432 = vpack.c.b16 %v5472, %v5468
    %v6433 = vpack.c.b16 %v5473, %v5469
    %v6434 = vpack.c.b16 %v5474, %v5470
    %v6435 = vpack.c.b16 %v5479, %v5475
    %v6436 = vpack.c.b16 %v5480, %v5476
    %v6437 = vpack.c.b16 %v5481, %v5477
    %v6438 = vpack.c.b16 %v5482, %v5478
    %v6439 = vpack.c.b16 %v5487, %v5483
    %v6440 = vpack.c.b16 %v5488, %v5484
    %v6441 = vpack.c.b16 %v5489, %v5485
    %v6442 = vpack.c.b16 %v5490, %v5486
    %v6443 = vpack.c.b16 %v5495, %v5491
    %v6444 = vpack.c.b16 %v5496, %v5492
    %v6445 = vpack.c.b16 %v5497, %v5493
    %v6446 = vpack.c.b16 %v5498, %v5494
    %v6447 = vpack.c.b16 %v5503, %v5499
    %v6448 = vpack.c.b16 %v5504, %v5500
    %v6449 = vpack.c.b16 %v5505, %v5501
    %v6450 = vpack.c.b16 %v5506, %v5502
    %v6451 = vpack.c.b16 %v5511, %v5507
    %v6452 = vpack.c.b16 %v5512, %v5508
    %v6453 = vpack.c.b16 %v5513, %v5509
    %v6454 = vpack.c.b16 %v5514, %v5510
    %v6455 = vpack.c.b16 %v5519, %v5515
    %v6456 = vpack.c.b16 %v5520, %v5516
    %v6457 = vpack.c.b16 %v5521, %v5517
    %v6458 = vpack.c.b16 %v5522, %v5518
    %v6459 = vpack.c.b16 %v5527, %v5523
    %v6460 = vpack.c.b16 %v5528, %v5524
    %v6461 = vpack.c.b16 %v5529, %v5525
    %v6462 = vpack.c.b16 %v5530, %v5526
    %v6463 = vpack.c.b16 %v5535, %v5531
    %v6464 = vpack.c.b16 %v5536, %v5532
    %v6465 = vpack.c.b16 %v5537, %v5533
    %v6466 = vpack.c.b16 %v5538, %v5534
    %v6467 = vpack.c.b16 %v5543, %v5539
    %v6468 = vpack.c.b16 %v5544, %v5540
    %v6469 = vpack.c.b16 %v5545, %v5541
    %v6470 = vpack.c.b16 %v5546, %v5542
    %v6471 = vpack.c.b16 %v5551, %v5547
    %v6472 = vpack.c.b16 %v5552, %v5548
    %v6473 = vpack.c.b16 %v5553, %v5549
    %v6474 = vpack.c.b16 %v5554, %v5550
    %v6475 = vpack.c.b16 %v5559, %v5555
    %v6476 = vpack.c.b16 %v5560, %v5556
    %v6477 = vpack.c.b16 %v5561, %v5557
    %v6478 = vpack.c.b16 %v5562, %v5558
    %v6479 = vpack.c.b16 %v5567, %v5563
    %v6480 = vpack.c.b16 %v5568, %v5564
    %v6481 = vpack.c.b16 %v5569, %v5565
    %v6482 = vpack.c.b16 %v5570, %v5566
    %v6483 = vpack.c.b16 %v5575, %v5571
    %v6484 = vpack.c.b16 %v5576, %v5572
    %v6485 = vpack.c.b16 %v5577, %v5573
    %v6486 = vpack.c.b16 %v5578, %v5574
    %v6487 = vpack.c.b16 %v5583, %v5579
    %v6488 = vpack.c.b16 %v5584, %v5580
    %v6489 = vpack.c.b16 %v5585, %v5581
    %v6490 = vpack.c.b16 %v5586, %v5582
    %v6491 = vpack.c.b16 %v5591, %v5587
    %v6492 = vpack.c.b16 %v5592, %v5588
    %v6493 = vpack.c.b16 %v5593, %v5589
    %v6494 = vpack.c.b16 %v5594, %v5590
    %v6495 = vpack.c.b16 %v5599, %v5595
    %v6496 = vpack.c.b16 %v5600, %v5596
    %v6497 = vpack.c.b16 %v5601, %v5597
    %v6498 = vpack.c.b16 %v5602, %v5598
    %v6499 = vpack.c.b16 %v5607, %v5603
    %v6500 = vpack.c.b16 %v5608, %v5604
    %v6501 = vpack.c.b16 %v5609, %v5605
    %v6502 = vpack.c.b16 %v5610, %v5606
    %v6503 = vpack.c.b16 %v5615, %v5611
    %v6504 = vpack.c.b16 %v5616, %v5612
    %v6505 = vpack.c.b16 %v5617, %v5613
    %v6506 = vpack.c.b16 %v5618, %v5614
    %v6507 = vpack.c.b16 %v5623, %v5619
    %v6508 = vpack.c.b16 %v5624, %v5620
    %v6509 = vpack.c.b16 %v5625, %v5621
    %v6510 = vpack.c.b16 %v5626, %v5622
    %v6511 = vpack.c.b16 %v5631, %v5627
    %v6512 = vpack.c.b16 %v5632, %v5628
    %v6513 = vpack.c.b16 %v5633, %v5629
    %v6514 = vpack.c.b16 %v5634, %v5630
    %v6515 = vpack.c.b16 %v5639, %v5635
    %v6516 = vpack.c.b16 %v5640, %v5636
    %v6517 = vpack.c.b16 %v5641, %v5637
    %v6518 = vpack.c.b16 %v5642, %v5638
    %v6519 = vpack.c.b16 %v5647, %v5643
    %v6520 = vpack.c.b16 %v5648, %v5644
    %v6521 = vpack.c.b16 %v5649, %v5645
    %v6522 = vpack.c.b16 %v5650, %v5646
    %v6523 = vpack.c.b16 %v5655, %v5651
    %v6524 = vpack.c.b16 %v5656, %v5652
    %v6525 = vpack.c.b16 %v5657, %v5653
    %v6526 = vpack.c.b16 %v5658, %v5654
    %v6527 = vpack.c.b16 %v5663, %v5659
    %v6528 = vpack.c.b16 %v5664, %v5660
    %v6529 = vpack.c.b16 %v5665, %v5661
    %v6530 = vpack.c.b16 %v5666, %v5662
    %v6531 = vpack.c.b16 %v5671, %v5667
    %v6532 = vpack.c.b16 %v5672, %v5668
    %v6533 = vpack.c.b16 %v5673, %v5669
    %v6534 = vpack.c.b16 %v5674, %v5670
    %v6535 = vpack.c.b16 %v5679, %v5675
    %v6536 = vpack.c.b16 %v5680, %v5676
    %v6537 = vpack.c.b16 %v5681, %v5677
    %v6538 = vpack.c.b16 %v5682, %v5678
    %v6539 = vpack.c.b16 %v5687, %v5683
    %v6540 = vpack.c.b16 %v5688, %v5684
    %v6541 = vpack.c.b16 %v5689, %v5685
    %v6542 = vpack.c.b16 %v5690, %v5686
    %v6543 = vpack.c.b16 %v5695, %v5691
    %v6544 = vpack.c.b16 %v5696, %v5692
    %v6545 = vpack.c.b16 %v5697, %v5693
    %v6546 = vpack.c.b16 %v5698, %v5694
    %v6547 = vpack.c.b16 %v5703, %v5699
    %v6548 = vpack.c.b16 %v5704, %v5700
    %v6549 = vpack.c.b16 %v5705, %v5701
    %v6550 = vpack.c.b16 %v5706, %v5702
    %v6551 = vpack.c.b16 %v5711, %v5707
    %v6552 = vpack.c.b16 %v5712, %v5708
    %v6553 = vpack.c.b16 %v5713, %v5709
    %v6554 = vpack.c.b16 %v5714, %v5710
    %v6555 = vpack.c.b16 %v5719, %v5715
    %v6556 = vpack.c.b16 %v5720, %v5716
    %v6557 = vpack.c.b16 %v5721, %v5717
    %v6558 = vpack.c.b16 %v5722, %v5718
    %v6559 = vpack.c.b16 %v5727, %v5723
    %v6560 = vpack.c.b16 %v5728, %v5724
    %v6561 = vpack.c.b16 %v5729, %v5725
    %v6562 = vpack.c.b16 %v5730, %v5726
    %v6563 = vpack.c.b16 %v5735, %v5731
    %v6564 = vpack.c.b16 %v5736, %v5732
    %v6565 = vpack.c.b16 %v5737, %v5733
    %v6566 = vpack.c.b16 %v5738, %v5734
    %v6567 = vpack.c.b16 %v5743, %v5739
    %v6568 = vpack.c.b16 %v5744, %v5740
    %v6569 = vpack.c.b16 %v5745, %v5741
    %v6570 = vpack.c.b16 %v5746, %v5742
    %v6571 = vpack.c.b16 %v5751, %v5747
    %v6572 = vpack.c.b16 %v5752, %v5748
    %v6573 = vpack.c.b16 %v5753, %v5749
    %v6574 = vpack.c.b16 %v5754, %v5750
    %v6575 = vpack.c.b16 %v5759, %v5755
    %v6576 = vpack.c.b16 %v5760, %v5756
    %v6577 = vpack.c.b16 %v5761, %v5757
    %v6578 = vpack.c.b16 %v5762, %v5758
    %v6579 = vpack.c.b16 %v5767, %v5763
    %v6580 = vpack.c.b16 %v5768, %v5764
    %v6581 = vpack.c.b16 %v5769, %v5765
    %v6582 = vpack.c.b16 %v5770, %v5766
    %v6583 = vpack.c.b16 %v5775, %v5771
    %v6584 = vpack.c.b16 %v5776, %v5772
    %v6585 = vpack.c.b16 %v5777, %v5773
    %v6586 = vpack.c.b16 %v5778, %v5774
    %v6587 = vpack.c.b16 %v5783, %v5779
    %v6588 = vpack.c.b16 %v5784, %v5780
    %v6589 = vpack.c.b16 %v5785, %v5781
    %v6590 = vpack.c.b16 %v5786, %v5782
    %v6591 = vpack.c.b16 %v5791, %v5787
    %v6592 = vpack.c.b16 %v5792, %v5788
    %v6593 = vpack.c.b16 %v5793, %v5789
    %v6594 = vpack.c.b16 %v5794, %v5790
    %v6595 = vpack.c.b16 %v5799, %v5795
    %v6596 = vpack.c.b16 %v5800, %v5796
    %v6597 = vpack.c.b16 %v5801, %v5797
    %v6598 = vpack.c.b16 %v5802, %v5798
    %v6599 = vpack.c.b16 %v5807, %v5803
    %v6600 = vpack.c.b16 %v5808, %v5804
    %v6601 = vpack.c.b16 %v5809, %v5805
    %v6602 = vpack.c.b16 %v5810, %v5806
    %v6603 = vpack.c.b16 %v5815, %v5811
    %v6604 = vpack.c.b16 %v5816, %v5812
    %v6605 = vpack.c.b16 %v5817, %v5813
    %v6606 = vpack.c.b16 %v5818, %v5814
    %v6607 = vpack.c.b16 %v5823, %v5819
    %v6608 = vpack.c.b16 %v5824, %v5820
    %v6609 = vpack.c.b16 %v5825, %v5821
    %v6610 = vpack.c.b16 %v5826, %v5822
    %v6611 = vpack.c.b16 %v5831, %v5827
    %v6612 = vpack.c.b16 %v5832, %v5828
    %v6613 = vpack.c.b16 %v5833, %v5829
    %v6614 = vpack.c.b16 %v5834, %v5830
    %v6615 = vpack.c.b16 %v5839, %v5835
    %v6616 = vpack.c.b16 %v5840, %v5836
    %v6617 = vpack.c.b16 %v5841, %v5837
    %v6618 = vpack.c.b16 %v5842, %v5838
    %v6619 = vpack.c.b16 %v5847, %v5843
    %v6620 = vpack.c.b16 %v5848, %v5844
    %v6621 = vpack.c.b16 %v5849, %v5845
    %v6622 = vpack.c.b16 %v5850, %v5846
    %v6623 = vpack.c.b16 %v5855, %v5851
    %v6624 = vpack.c.b16 %v5856, %v5852
    %v6625 = vpack.c.b16 %v5857, %v5853
    %v6626 = vpack.c.b16 %v5858, %v5854
    %7395 = vmatprep.subr.bf16.mxu0 %v5860
    %7396 = vmatpush1.bf16.msra.mxu0 %v5859
    %7397 = vmatprep.subr.bf16.mxu0 %v5864
    %7398 = vmatpush1.bf16.msra.mxu0 %v5863
    %7399 = vmatprep.subr.bf16.mxu0 %v5868
    %7400 = vmatpush1.bf16.msra.mxu0 %v5867
    %7401 = vmatprep.subr.bf16.mxu0 %v5872
    %7402 = vmatpush1.bf16.msra.mxu0 %v5871
    %7403 = vmatprep.subr.bf16.mxu0 %v5876
    %7404 = vmatpush1.bf16.msra.mxu0 %v5875
    %7405 = vmatprep.subr.bf16.mxu0 %v5880
    %7406 = vmatpush1.bf16.msra.mxu0 %v5879
    %7407 = vmatprep.subr.bf16.mxu0 %v5884
    %7408 = vmatpush1.bf16.msra.mxu0 %v5883
    %7409 = vmatprep.subr.bf16.mxu0 %v5888
    %7410 = vmatpush1.bf16.msra.mxu0 %v5887
    %7411 = vmatprep.subr.bf16.mxu0 %v5892
    %7412 = vmatpush1.bf16.msra.mxu0 %v5891
    %7413 = vmatprep.subr.bf16.mxu0 %v5896
    %7414 = vmatpush1.bf16.msra.mxu0 %v5895
    %7415 = vmatprep.subr.bf16.mxu0 %v5900
    %7416 = vmatpush1.bf16.msra.mxu0 %v5899
    %7417 = vmatprep.subr.bf16.mxu0 %v5904
    %7418 = vmatpush1.bf16.msra.mxu0 %v5903
    %7419 = vmatprep.subr.bf16.mxu0 %v5908
    %7420 = vmatpush1.bf16.msra.mxu0 %v5907
    %7421 = vmatprep.subr.bf16.mxu0 %v5912
    %7422 = vmatpush1.bf16.msra.mxu0 %v5911
    %7423 = vmatprep.subr.bf16.mxu0 %v5916
    %7424 = vmatpush1.bf16.msra.mxu0 %v5915
    %7425 = vmatprep.subr.bf16.mxu0 %v5920
    %7426 = vmatpush1.bf16.msra.mxu0 %v5919
    %7427 = vmatprep.mubr.bf16.mxu0 %v2742
    %7428 = vmatmul.mubr.bf16.gmra.mrb[0].mxu0 %v2741
    %v7429 = vpop.f32.mrb[0].mxu0
    %v7430 = vadd.f32 %v3538, %v7429
    %v7431 = vpop.f32.mrb[0].mxu0
    %v7432 = vadd.f32 %v3542, %v7431
    %v7433 = vpop.f32.mrb[0].mxu0
    %v7434 = vpop.f32.mrb[0].mxu0
    %7435 = vdwg.mxu0
    %7436 = vmatprep.subr.bf16.mxu0 %v5924
    %7437 = vmatpush1.bf16.msra.mxu0 %v5923
    %7438 = vmatprep.subr.bf16.mxu0 %v5928
    %7439 = vmatpush1.bf16.msra.mxu0 %v5927
    %7440 = vmatprep.subr.bf16.mxu0 %v5932
    %7441 = vmatpush1.bf16.msra.mxu0 %v5931
    %7442 = vmatprep.subr.bf16.mxu0 %v5936
    %7443 = vmatpush1.bf16.msra.mxu0 %v5935
    %7444 = vmatprep.subr.bf16.mxu0 %v5940
    %7445 = vmatpush1.bf16.msra.mxu0 %v5939
    %7446 = vmatprep.subr.bf16.mxu0 %v5944
    %7447 = vmatpush1.bf16.msra.mxu0 %v5943
    %7448 = vmatprep.subr.bf16.mxu0 %v5948
    %7449 = vmatpush1.bf16.msra.mxu0 %v5947
    %7450 = vmatprep.subr.bf16.mxu0 %v5952
    %7451 = vmatpush1.bf16.msra.mxu0 %v5951
    %7452 = vmatprep.subr.bf16.mxu0 %v5956
    %7453 = vmatpush1.bf16.msra.mxu0 %v5955
    %7454 = vmatprep.subr.bf16.mxu0 %v5960
    %7455 = vmatpush1.bf16.msra.mxu0 %v5959
    %7456 = vmatprep.subr.bf16.mxu0 %v5964
    %7457 = vmatpush1.bf16.msra.mxu0 %v5963
    %7458 = vmatprep.subr.bf16.mxu0 %v5968
    %7459 = vmatpush1.bf16.msra.mxu0 %v5967
    %7460 = vmatprep.subr.bf16.mxu0 %v5972
    %7461 = vmatpush1.bf16.msra.mxu0 %v5971
    %7462 = vmatprep.subr.bf16.mxu0 %v5976
    %7463 = vmatpush1.bf16.msra.mxu0 %v5975
    %7464 = vmatprep.subr.bf16.mxu0 %v5980
    %7465 = vmatpush1.bf16.msra.mxu0 %v5979
    %7466 = vmatprep.subr.bf16.mxu0 %v5984
    %7467 = vmatpush1.bf16.msra.mxu0 %v5983
    %7468 = vmatprep.mubr.bf16.mxu0 %v2744
    %7469 = vmatmul.mubr.bf16.gmra.mrb[0].mxu0 %v2743
    %v7470 = vpop.f32.mrb[0].mxu0
    %v7471 = vadd.f32 %v7430, %v7470
    %v7472 = vpop.f32.mrb[0].mxu0
    %v7473 = vadd.f32 %v7432, %v7472
    %v7474 = vpop.f32.mrb[0].mxu0
    %v7475 = vpop.f32.mrb[0].mxu0
    %7476 = vdwg.mxu0
    %7477 = vmatprep.subr.bf16.mxu0 %v5988
    %7478 = vmatpush1.bf16.msra.mxu0 %v5987
    %7479 = vmatprep.subr.bf16.mxu0 %v5992
    %7480 = vmatpush1.bf16.msra.mxu0 %v5991
    %7481 = vmatprep.subr.bf16.mxu0 %v5996
    %7482 = vmatpush1.bf16.msra.mxu0 %v5995
    %7483 = vmatprep.subr.bf16.mxu0 %v6000
    %7484 = vmatpush1.bf16.msra.mxu0 %v5999
    %7485 = vmatprep.subr.bf16.mxu0 %v6004
    %7486 = vmatpush1.bf16.msra.mxu0 %v6003
    %7487 = vmatprep.subr.bf16.mxu0 %v6008
    %7488 = vmatpush1.bf16.msra.mxu0 %v6007
    %7489 = vmatprep.subr.bf16.mxu0 %v6012
    %7490 = vmatpush1.bf16.msra.mxu0 %v6011
    %7491 = vmatprep.subr.bf16.mxu0 %v6016
    %7492 = vmatpush1.bf16.msra.mxu0 %v6015
    %7493 = vmatprep.subr.bf16.mxu0 %v6020
    %7494 = vmatpush1.bf16.msra.mxu0 %v6019
    %7495 = vmatprep.subr.bf16.mxu0 %v6024
    %7496 = vmatpush1.bf16.msra.mxu0 %v6023
    %7497 = vmatprep.subr.bf16.mxu0 %v6028
    %7498 = vmatpush1.bf16.msra.mxu0 %v6027
    %7499 = vmatprep.subr.bf16.mxu0 %v6032
    %7500 = vmatpush1.bf16.msra.mxu0 %v6031
    %7501 = vmatprep.subr.bf16.mxu0 %v6036
    %7502 = vmatpush1.bf16.msra.mxu0 %v6035
    %7503 = vmatprep.subr.bf16.mxu0 %v6040
    %7504 = vmatpush1.bf16.msra.mxu0 %v6039
    %7505 = vmatprep.subr.bf16.mxu0 %v6044
    %7506 = vmatpush1.bf16.msra.mxu0 %v6043
    %7507 = vmatprep.subr.bf16.mxu0 %v6048
    %7508 = vmatpush1.bf16.msra.mxu0 %v6047
    %7509 = vmatprep.mubr.bf16.mxu0 %v2746
    %7510 = vmatmul.mubr.bf16.gmra.mrb[0].mxu0 %v2745
    %v7511 = vpop.f32.mrb[0].mxu0
    %v7512 = vadd.f32 %v7471, %v7511
    %v7513 = vpop.f32.mrb[0].mxu0
    %v7514 = vadd.f32 %v7473, %v7513
    %v7515 = vpop.f32.mrb[0].mxu0
    %v7516 = vpop.f32.mrb[0].mxu0
    %7517 = vdwg.mxu0
    %7518 = vmatprep.subr.bf16.mxu0 %v6052
    %7519 = vmatpush1.bf16.msra.mxu0 %v6051
    %7520 = vmatprep.subr.bf16.mxu0 %v6056
    %7521 = vmatpush1.bf16.msra.mxu0 %v6055
    %7522 = vmatprep.subr.bf16.mxu0 %v6060
    %7523 = vmatpush1.bf16.msra.mxu0 %v6059
    %7524 = vmatprep.subr.bf16.mxu0 %v6064
    %7525 = vmatpush1.bf16.msra.mxu0 %v6063
    %7526 = vmatprep.subr.bf16.mxu0 %v6068
    %7527 = vmatpush1.bf16.msra.mxu0 %v6067
    %7528 = vmatprep.subr.bf16.mxu0 %v6072
    %7529 = vmatpush1.bf16.msra.mxu0 %v6071
    %7530 = vmatprep.subr.bf16.mxu0 %v6076
    %7531 = vmatpush1.bf16.msra.mxu0 %v6075
    %7532 = vmatprep.subr.bf16.mxu0 %v6080
    %7533 = vmatpush1.bf16.msra.mxu0 %v6079
    %7534 = vmatprep.subr.bf16.mxu0 %v6084
    %7535 = vmatpush1.bf16.msra.mxu0 %v6083
    %7536 = vmatprep.subr.bf16.mxu0 %v6088
    %7537 = vmatpush1.bf16.msra.mxu0 %v6087
    %7538 = vmatprep.subr.bf16.mxu0 %v6092
    %7539 = vmatpush1.bf16.msra.mxu0 %v6091
    %7540 = vmatprep.subr.bf16.mxu0 %v6096
    %7541 = vmatpush1.bf16.msra.mxu0 %v6095
    %7542 = vmatprep.subr.bf16.mxu0 %v6100
    %7543 = vmatpush1.bf16.msra.mxu0 %v6099
    %7544 = vmatprep.subr.bf16.mxu0 %v6104
    %7545 = vmatpush1.bf16.msra.mxu0 %v6103
    %7546 = vmatprep.subr.bf16.mxu0 %v6108
    %7547 = vmatpush1.bf16.msra.mxu0 %v6107
    %7548 = vmatprep.subr.bf16.mxu0 %v6112
    %7549 = vmatpush1.bf16.msra.mxu0 %v6111
    %7550 = vmatprep.mubr.bf16.mxu0 %v2748
    %7551 = vmatmul.mubr.bf16.gmra.mrb[0].mxu0 %v2747
    %v7552 = vpop.f32.mrb[0].mxu0
    %v7553 = vadd.f32 %v7512, %v7552
    %v7554 = vpop.f32.mrb[0].mxu0
    %v7555 = vadd.f32 %v7514, %v7554
    %v7556 = vpop.f32.mrb[0].mxu0
    %v7557 = vpop.f32.mrb[0].mxu0
    %7558 = vdwg.mxu0
    %7559 = vmatprep.subr.bf16.mxu0 %v6116
    %7560 = vmatpush1.bf16.msra.mxu0 %v6115
    %7561 = vmatprep.subr.bf16.mxu0 %v6120
    %7562 = vmatpush1.bf16.msra.mxu0 %v6119
    %7563 = vmatprep.subr.bf16.mxu0 %v6124
    %7564 = vmatpush1.bf16.msra.mxu0 %v6123
    %7565 = vmatprep.subr.bf16.mxu0 %v6128
    %7566 = vmatpush1.bf16.msra.mxu0 %v6127
    %7567 = vmatprep.subr.bf16.mxu0 %v6132
    %7568 = vmatpush1.bf16.msra.mxu0 %v6131
    %7569 = vmatprep.subr.bf16.mxu0 %v6136
    %7570 = vmatpush1.bf16.msra.mxu0 %v6135
    %7571 = vmatprep.subr.bf16.mxu0 %v6140
    %7572 = vmatpush1.bf16.msra.mxu0 %v6139
    %7573 = vmatprep.subr.bf16.mxu0 %v6144
    %7574 = vmatpush1.bf16.msra.mxu0 %v6143
    %7575 = vmatprep.subr.bf16.mxu0 %v6148
    %7576 = vmatpush1.bf16.msra.mxu0 %v6147
    %7577 = vmatprep.subr.bf16.mxu0 %v6152
    %7578 = vmatpush1.bf16.msra.mxu0 %v6151
    %7579 = vmatprep.subr.bf16.mxu0 %v6156
    %7580 = vmatpush1.bf16.msra.mxu0 %v6155
    %7581 = vmatprep.subr.bf16.mxu0 %v6160
    %7582 = vmatpush1.bf16.msra.mxu0 %v6159
    %7583 = vmatprep.subr.bf16.mxu0 %v6164
    %7584 = vmatpush1.bf16.msra.mxu0 %v6163
    %7585 = vmatprep.subr.bf16.mxu0 %v6168
    %7586 = vmatpush1.bf16.msra.mxu0 %v6167
    %7587 = vmatprep.subr.bf16.mxu0 %v6172
    %7588 = vmatpush1.bf16.msra.mxu0 %v6171
    %7589 = vmatprep.subr.bf16.mxu0 %v6176
    %7590 = vmatpush1.bf16.msra.mxu0 %v6175
    %7591 = vmatprep.mubr.bf16.mxu0 %v2750
    %7592 = vmatmul.mubr.bf16.gmra.mrb[0].mxu0 %v2749
    %v7593 = vpop.f32.mrb[0].mxu0
    %v7594 = vadd.f32 %v7553, %v7593
    %v7595 = vpop.f32.mrb[0].mxu0
    %v7596 = vadd.f32 %v7555, %v7595
    %v7597 = vpop.f32.mrb[0].mxu0
    %v7598 = vpop.f32.mrb[0].mxu0
    %7599 = vdwg.mxu0
    %7600 = vmatprep.subr.bf16.mxu0 %v6180
    %7601 = vmatpush1.bf16.msra.mxu0 %v6179
    %7602 = vmatprep.subr.bf16.mxu0 %v6184
    %7603 = vmatpush1.bf16.msra.mxu0 %v6183
    %7604 = vmatprep.subr.bf16.mxu0 %v6188
    %7605 = vmatpush1.bf16.msra.mxu0 %v6187
    %7606 = vmatprep.subr.bf16.mxu0 %v6192
    %7607 = vmatpush1.bf16.msra.mxu0 %v6191
    %7608 = vmatprep.subr.bf16.mxu0 %v6196
    %7609 = vmatpush1.bf16.msra.mxu0 %v6195
    %7610 = vmatprep.subr.bf16.mxu0 %v6200
    %7611 = vmatpush1.bf16.msra.mxu0 %v6199
    %7612 = vmatprep.subr.bf16.mxu0 %v6204
    %7613 = vmatpush1.bf16.msra.mxu0 %v6203
    %7614 = vmatprep.subr.bf16.mxu0 %v6208
    %7615 = vmatpush1.bf16.msra.mxu0 %v6207
    %7616 = vmatprep.subr.bf16.mxu0 %v6212
    %7617 = vmatpush1.bf16.msra.mxu0 %v6211
    %7618 = vmatprep.subr.bf16.mxu0 %v6216
    %7619 = vmatpush1.bf16.msra.mxu0 %v6215
    %7620 = vmatprep.subr.bf16.mxu0 %v6220
    %7621 = vmatpush1.bf16.msra.mxu0 %v6219
    %7622 = vmatprep.subr.bf16.mxu0 %v6224
    %7623 = vmatpush1.bf16.msra.mxu0 %v6223
    %7624 = vmatprep.subr.bf16.mxu0 %v6228
    %7625 = vmatpush1.bf16.msra.mxu0 %v6227
    %7626 = vmatprep.subr.bf16.mxu0 %v6232
    %7627 = vmatpush1.bf16.msra.mxu0 %v6231
    %7628 = vmatprep.subr.bf16.mxu0 %v6236
    %7629 = vmatpush1.bf16.msra.mxu0 %v6235
    %7630 = vmatprep.subr.bf16.mxu0 %v6240
    %7631 = vmatpush1.bf16.msra.mxu0 %v6239
    %7632 = vmatprep.mubr.bf16.mxu0 %v2752
    %7633 = vmatmul.mubr.bf16.gmra.mrb[0].mxu0 %v2751
    %v7634 = vpop.f32.mrb[0].mxu0
    %v7635 = vadd.f32 %v7594, %v7634
    %v7636 = vpop.f32.mrb[0].mxu0
    %v7637 = vadd.f32 %v7596, %v7636
    %v7638 = vpop.f32.mrb[0].mxu0
    %v7639 = vpop.f32.mrb[0].mxu0
    %7640 = vdwg.mxu0
    %7641 = vmatprep.subr.bf16.mxu0 %v6244
    %7642 = vmatpush1.bf16.msra.mxu0 %v6243
    %7643 = vmatprep.subr.bf16.mxu0 %v6248
    %7644 = vmatpush1.bf16.msra.mxu0 %v6247
    %7645 = vmatprep.subr.bf16.mxu0 %v6252
    %7646 = vmatpush1.bf16.msra.mxu0 %v6251
    %7647 = vmatprep.subr.bf16.mxu0 %v6256
    %7648 = vmatpush1.bf16.msra.mxu0 %v6255
    %7649 = vmatprep.subr.bf16.mxu0 %v6260
    %7650 = vmatpush1.bf16.msra.mxu0 %v6259
    %7651 = vmatprep.subr.bf16.mxu0 %v6264
    %7652 = vmatpush1.bf16.msra.mxu0 %v6263
    %7653 = vmatprep.subr.bf16.mxu0 %v6268
    %7654 = vmatpush1.bf16.msra.mxu0 %v6267
    %7655 = vmatprep.subr.bf16.mxu0 %v6272
    %7656 = vmatpush1.bf16.msra.mxu0 %v6271
    %7657 = vmatprep.subr.bf16.mxu0 %v6276
    %7658 = vmatpush1.bf16.msra.mxu0 %v6275
    %7659 = vmatprep.subr.bf16.mxu0 %v6280
    %7660 = vmatpush1.bf16.msra.mxu0 %v6279
    %7661 = vmatprep.subr.bf16.mxu0 %v6284
    %7662 = vmatpush1.bf16.msra.mxu0 %v6283
    %7663 = vmatprep.subr.bf16.mxu0 %v6288
    %7664 = vmatpush1.bf16.msra.mxu0 %v6287
    %7665 = vmatprep.subr.bf16.mxu0 %v6292
    %7666 = vmatpush1.bf16.msra.mxu0 %v6291
    %7667 = vmatprep.subr.bf16.mxu0 %v6296
    %7668 = vmatpush1.bf16.msra.mxu0 %v6295
    %7669 = vmatprep.subr.bf16.mxu0 %v6300
    %7670 = vmatpush1.bf16.msra.mxu0 %v6299
    %7671 = vmatprep.subr.bf16.mxu0 %v6304
    %7672 = vmatpush1.bf16.msra.mxu0 %v6303
    %7673 = vmatprep.mubr.bf16.mxu0 %v2754
    %7674 = vmatmul.mubr.bf16.gmra.mrb[0].mxu0 %v2753
    %v7675 = vpop.f32.mrb[0].mxu0
    %v7676 = vadd.f32 %v7635, %v7675
    %v7677 = vpop.f32.mrb[0].mxu0
    %v7678 = vadd.f32 %v7637, %v7677
    %v7679 = vpop.f32.mrb[0].mxu0
    %v7680 = vpop.f32.mrb[0].mxu0
    %7681 = vdwg.mxu0
    %7682 = vmatprep.subr.bf16.mxu0 %v6308
    %7683 = vmatpush1.bf16.msra.mxu0 %v6307
    %7684 = vmatprep.subr.bf16.mxu0 %v6312
    %7685 = vmatpush1.bf16.msra.mxu0 %v6311
    %7686 = vmatprep.subr.bf16.mxu0 %v6316
    %7687 = vmatpush1.bf16.msra.mxu0 %v6315
    %7688 = vmatprep.subr.bf16.mxu0 %v6320
    %7689 = vmatpush1.bf16.msra.mxu0 %v6319
    %7690 = vmatprep.subr.bf16.mxu0 %v6324
    %7691 = vmatpush1.bf16.msra.mxu0 %v6323
    %7692 = vmatprep.subr.bf16.mxu0 %v6328
    %7693 = vmatpush1.bf16.msra.mxu0 %v6327
    %7694 = vmatprep.subr.bf16.mxu0 %v6332
    %7695 = vmatpush1.bf16.msra.mxu0 %v6331
    %7696 = vmatprep.subr.bf16.mxu0 %v6336
    %7697 = vmatpush1.bf16.msra.mxu0 %v6335
    %7698 = vmatprep.subr.bf16.mxu0 %v6340
    %7699 = vmatpush1.bf16.msra.mxu0 %v6339
    %7700 = vmatprep.subr.bf16.mxu0 %v6344
    %7701 = vmatpush1.bf16.msra.mxu0 %v6343
    %7702 = vmatprep.subr.bf16.mxu0 %v6348
    %7703 = vmatpush1.bf16.msra.mxu0 %v6347
    %7704 = vmatprep.subr.bf16.mxu0 %v6352
    %7705 = vmatpush1.bf16.msra.mxu0 %v6351
    %7706 = vmatprep.subr.bf16.mxu0 %v6356
    %7707 = vmatpush1.bf16.msra.mxu0 %v6355
    %7708 = vmatprep.subr.bf16.mxu0 %v6360
    %7709 = vmatpush1.bf16.msra.mxu0 %v6359
    %7710 = vmatprep.subr.bf16.mxu0 %v6364
    %7711 = vmatpush1.bf16.msra.mxu0 %v6363
    %7712 = vmatprep.subr.bf16.mxu0 %v6368
    %7713 = vmatpush1.bf16.msra.mxu0 %v6367
    %7714 = vmatprep.mubr.bf16.mxu0 %v2756
    %7715 = vmatmul.mubr.bf16.gmra.mrb[0].mxu0 %v2755
    %v7716 = vpop.f32.mrb[0].mxu0
    %v7717 = vadd.f32 %v7676, %v7716
    %v7718 = vpop.f32.mrb[0].mxu0
    %v7719 = vadd.f32 %v7678, %v7718
    %v7720 = vpop.f32.mrb[0].mxu0
    %v7721 = vpop.f32.mrb[0].mxu0
    %7722 = vdwg.mxu0
    %7723 = vmatprep.subr.bf16.mxu0 %v6372
    %7724 = vmatpush1.bf16.msra.mxu0 %v6371
    %7725 = vmatprep.subr.bf16.mxu0 %v6376
    %7726 = vmatpush1.bf16.msra.mxu0 %v6375
    %7727 = vmatprep.subr.bf16.mxu0 %v6380
    %7728 = vmatpush1.bf16.msra.mxu0 %v6379
    %7729 = vmatprep.subr.bf16.mxu0 %v6384
    %7730 = vmatpush1.bf16.msra.mxu0 %v6383
    %7731 = vmatprep.subr.bf16.mxu0 %v6388
    %7732 = vmatpush1.bf16.msra.mxu0 %v6387
    %7733 = vmatprep.subr.bf16.mxu0 %v6392
    %7734 = vmatpush1.bf16.msra.mxu0 %v6391
    %7735 = vmatprep.subr.bf16.mxu0 %v6396
    %7736 = vmatpush1.bf16.msra.mxu0 %v6395
    %7737 = vmatprep.subr.bf16.mxu0 %v6400
    %7738 = vmatpush1.bf16.msra.mxu0 %v6399
    %7739 = vmatprep.subr.bf16.mxu0 %v6404
    %7740 = vmatpush1.bf16.msra.mxu0 %v6403
    %7741 = vmatprep.subr.bf16.mxu0 %v6408
    %7742 = vmatpush1.bf16.msra.mxu0 %v6407
    %7743 = vmatprep.subr.bf16.mxu0 %v6412
    %7744 = vmatpush1.bf16.msra.mxu0 %v6411
    %7745 = vmatprep.subr.bf16.mxu0 %v6416
    %7746 = vmatpush1.bf16.msra.mxu0 %v6415
    %7747 = vmatprep.subr.bf16.mxu0 %v6420
    %7748 = vmatpush1.bf16.msra.mxu0 %v6419
    %7749 = vmatprep.subr.bf16.mxu0 %v6424
    %7750 = vmatpush1.bf16.msra.mxu0 %v6423
    %7751 = vmatprep.subr.bf16.mxu0 %v6428
    %7752 = vmatpush1.bf16.msra.mxu0 %v6427
    %7753 = vmatprep.subr.bf16.mxu0 %v6432
    %7754 = vmatpush1.bf16.msra.mxu0 %v6431
    %7755 = vmatprep.mubr.bf16.mxu0 %v2758
    %7756 = vmatmul.mubr.bf16.gmra.mrb[0].mxu0 %v2757
    %v7757 = vpop.f32.mrb[0].mxu0
    %v7758 = vadd.f32 %v7717, %v7757
    %v7759 = vpop.f32.mrb[0].mxu0
    %v7760 = vadd.f32 %v7719, %v7759
    %v7761 = vpop.f32.mrb[0].mxu0
    %v7762 = vpop.f32.mrb[0].mxu0
    %7763 = vdwg.mxu0
    %7764 = vmatprep.subr.bf16.mxu0 %v6436
    %7765 = vmatpush1.bf16.msra.mxu0 %v6435
    %7766 = vmatprep.subr.bf16.mxu0 %v6440
    %7767 = vmatpush1.bf16.msra.mxu0 %v6439
    %7768 = vmatprep.subr.bf16.mxu0 %v6444
    %7769 = vmatpush1.bf16.msra.mxu0 %v6443
    %7770 = vmatprep.subr.bf16.mxu0 %v6448
    %7771 = vmatpush1.bf16.msra.mxu0 %v6447
    %7772 = vmatprep.subr.bf16.mxu0 %v6452
    %7773 = vmatpush1.bf16.msra.mxu0 %v6451
    %7774 = vmatprep.subr.bf16.mxu0 %v6456
    %7775 = vmatpush1.bf16.msra.mxu0 %v6455
    %7776 = vmatprep.subr.bf16.mxu0 %v6460
    %7777 = vmatpush1.bf16.msra.mxu0 %v6459
    %7778 = vmatprep.subr.bf16.mxu0 %v6464
    %7779 = vmatpush1.bf16.msra.mxu0 %v6463
    %7780 = vmatprep.subr.bf16.mxu0 %v6468
    %7781 = vmatpush1.bf16.msra.mxu0 %v6467
    %7782 = vmatprep.subr.bf16.mxu0 %v6472
    %7783 = vmatpush1.bf16.msra.mxu0 %v6471
    %7784 = vmatprep.subr.bf16.mxu0 %v6476
    %7785 = vmatpush1.bf16.msra.mxu0 %v6475
    %7786 = vmatprep.subr.bf16.mxu0 %v6480
    %7787 = vmatpush1.bf16.msra.mxu0 %v6479
    %7788 = vmatprep.subr.bf16.mxu0 %v6484
    %7789 = vmatpush1.bf16.msra.mxu0 %v6483
    %7790 = vmatprep.subr.bf16.mxu0 %v6488
    %7791 = vmatpush1.bf16.msra.mxu0 %v6487
    %7792 = vmatprep.subr.bf16.mxu0 %v6492
    %7793 = vmatpush1.bf16.msra.mxu0 %v6491
    %7794 = vmatprep.subr.bf16.mxu0 %v6496
    %7795 = vmatpush1.bf16.msra.mxu0 %v6495
    %7796 = vmatprep.mubr.bf16.mxu0 %v2760
    %7797 = vmatmul.mubr.bf16.gmra.mrb[0].mxu0 %v2759
    %v7798 = vpop.f32.mrb[0].mxu0
    %v7799 = vadd.f32 %v7758, %v7798
    %v7800 = vpop.f32.mrb[0].mxu0
    %v7801 = vadd.f32 %v7760, %v7800
    %v7802 = vpop.f32.mrb[0].mxu0
    %v7803 = vpop.f32.mrb[0].mxu0
    %7804 = vdwg.mxu0
    %7805 = vmatprep.subr.bf16.mxu0 %v6500
    %7806 = vmatpush1.bf16.msra.mxu0 %v6499
    %7807 = vmatprep.subr.bf16.mxu0 %v6504
    %7808 = vmatpush1.bf16.msra.mxu0 %v6503
    %7809 = vmatprep.subr.bf16.mxu0 %v6508
    %7810 = vmatpush1.bf16.msra.mxu0 %v6507
    %7811 = vmatprep.subr.bf16.mxu0 %v6512
    %7812 = vmatpush1.bf16.msra.mxu0 %v6511
    %7813 = vmatprep.subr.bf16.mxu0 %v6516
    %7814 = vmatpush1.bf16.msra.mxu0 %v6515
    %7815 = vmatprep.subr.bf16.mxu0 %v6520
    %7816 = vmatpush1.bf16.msra.mxu0 %v6519
    %7817 = vmatprep.subr.bf16.mxu0 %v6524
    %7818 = vmatpush1.bf16.msra.mxu0 %v6523
    %7819 = vmatprep.subr.bf16.mxu0 %v6528
    %7820 = vmatpush1.bf16.msra.mxu0 %v6527
    %7821 = vmatprep.subr.bf16.mxu0 %v6532
    %7822 = vmatpush1.bf16.msra.mxu0 %v6531
    %7823 = vmatprep.subr.bf16.mxu0 %v6536
    %7824 = vmatpush1.bf16.msra.mxu0 %v6535
    %7825 = vmatprep.subr.bf16.mxu0 %v6540
    %7826 = vmatpush1.bf16.msra.mxu0 %v6539
    %7827 = vmatprep.subr.bf16.mxu0 %v6544
    %7828 = vmatpush1.bf16.msra.mxu0 %v6543
    %7829 = vmatprep.subr.bf16.mxu0 %v6548
    %7830 = vmatpush1.bf16.msra.mxu0 %v6547
    %7831 = vmatprep.subr.bf16.mxu0 %v6552
    %7832 = vmatpush1.bf16.msra.mxu0 %v6551
    %7833 = vmatprep.subr.bf16.mxu0 %v6556
    %7834 = vmatpush1.bf16.msra.mxu0 %v6555
    %7835 = vmatprep.subr.bf16.mxu0 %v6560
    %7836 = vmatpush1.bf16.msra.mxu0 %v6559
    %7837 = vmatprep.mubr.bf16.mxu0 %v2762
    %7838 = vmatmul.mubr.bf16.gmra.mrb[0].mxu0 %v2761
    %v7839 = vpop.f32.mrb[0].mxu0
    %v7840 = vadd.f32 %v7799, %v7839
    %v7841 = vpop.f32.mrb[0].mxu0
    %v7842 = vadd.f32 %v7801, %v7841
    %v7843 = vpop.f32.mrb[0].mxu0
    %v7844 = vpop.f32.mrb[0].mxu0
    %7845 = vdwg.mxu0
    %7846 = vmatprep.subr.bf16.mxu0 %v6564
    %7847 = vmatpush1.bf16.msra.mxu0 %v6563
    %7848 = vmatprep.subr.bf16.mxu0 %v6568
    %7849 = vmatpush1.bf16.msra.mxu0 %v6567
    %7850 = vmatprep.subr.bf16.mxu0 %v6572
    %7851 = vmatpush1.bf16.msra.mxu0 %v6571
    %7852 = vmatprep.subr.bf16.mxu0 %v6576
    %7853 = vmatpush1.bf16.msra.mxu0 %v6575
    %7854 = vmatprep.subr.bf16.mxu0 %v6580
    %7855 = vmatpush1.bf16.msra.mxu0 %v6579
    %7856 = vmatprep.subr.bf16.mxu0 %v6584
    %7857 = vmatpush1.bf16.msra.mxu0 %v6583
    %7858 = vmatprep.subr.bf16.mxu0 %v6588
    %7859 = vmatpush1.bf16.msra.mxu0 %v6587
    %7860 = vmatprep.subr.bf16.mxu0 %v6592
    %7861 = vmatpush1.bf16.msra.mxu0 %v6591
    %7862 = vmatprep.subr.bf16.mxu0 %v6596
    %7863 = vmatpush1.bf16.msra.mxu0 %v6595
    %7864 = vmatprep.subr.bf16.mxu0 %v6600
    %7865 = vmatpush1.bf16.msra.mxu0 %v6599
    %7866 = vmatprep.subr.bf16.mxu0 %v6604
    %7867 = vmatpush1.bf16.msra.mxu0 %v6603
    %7868 = vmatprep.subr.bf16.mxu0 %v6608
    %7869 = vmatpush1.bf16.msra.mxu0 %v6607
    %7870 = vmatprep.subr.bf16.mxu0 %v6612
    %7871 = vmatpush1.bf16.msra.mxu0 %v6611
    %7872 = vmatprep.subr.bf16.mxu0 %v6616
    %7873 = vmatpush1.bf16.msra.mxu0 %v6615
    %7874 = vmatprep.subr.bf16.mxu0 %v6620
    %7875 = vmatpush1.bf16.msra.mxu0 %v6619
    %7876 = vmatprep.subr.bf16.mxu0 %v6624
    %7877 = vmatpush1.bf16.msra.mxu0 %v6623
    %7878 = vmatprep.mubr.bf16.mxu0 %v2764
    %7879 = vmatmul.mubr.bf16.gmra.mrb[0].mxu0 %v2763
    %v7880 = vpop.f32.mrb[0].mxu0
    %v7881 = vadd.f32 %v7840, %v7880
    %v7882 = vpop.f32.mrb[0].mxu0
    %v7883 = vadd.f32 %v7842, %v7882
    %v7884 = vpop.f32.mrb[0].mxu0
    %v7885 = vpop.f32.mrb[0].mxu0
    %7886 = vdwg.mxu0
    %7887 = vmatprep.subr.bf16.mxu0 %v5862
    %7888 = vmatpush1.bf16.msra.mxu0 %v5861
    %7889 = vmatprep.subr.bf16.mxu0 %v5866
    %7890 = vmatpush1.bf16.msra.mxu0 %v5865
    %7891 = vmatprep.subr.bf16.mxu0 %v5870
    %7892 = vmatpush1.bf16.msra.mxu0 %v5869
    %7893 = vmatprep.subr.bf16.mxu0 %v5874
    %7894 = vmatpush1.bf16.msra.mxu0 %v5873
    %7895 = vmatprep.subr.bf16.mxu0 %v5878
    %7896 = vmatpush1.bf16.msra.mxu0 %v5877
    %7897 = vmatprep.subr.bf16.mxu0 %v5882
    %7898 = vmatpush1.bf16.msra.mxu0 %v5881
    %7899 = vmatprep.subr.bf16.mxu0 %v5886
    %7900 = vmatpush1.bf16.msra.mxu0 %v5885
    %7901 = vmatprep.subr.bf16.mxu0 %v5890
    %7902 = vmatpush1.bf16.msra.mxu0 %v5889
    %7903 = vmatprep.subr.bf16.mxu0 %v5894
    %7904 = vmatpush1.bf16.msra.mxu0 %v5893
    %7905 = vmatprep.subr.bf16.mxu0 %v5898
    %7906 = vmatpush1.bf16.msra.mxu0 %v5897
    %7907 = vmatprep.subr.bf16.mxu0 %v5902
    %7908 = vmatpush1.bf16.msra.mxu0 %v5901
    %7909 = vmatprep.subr.bf16.mxu0 %v5906
    %7910 = vmatpush1.bf16.msra.mxu0 %v5905
    %7911 = vmatprep.subr.bf16.mxu0 %v5910
    %7912 = vmatpush1.bf16.msra.mxu0 %v5909
    %7913 = vmatprep.subr.bf16.mxu0 %v5914
    %7914 = vmatpush1.bf16.msra.mxu0 %v5913
    %7915 = vmatprep.subr.bf16.mxu0 %v5918
    %7916 = vmatpush1.bf16.msra.mxu0 %v5917
    %7917 = vmatprep.subr.bf16.mxu0 %v5922
    %7918 = vmatpush1.bf16.msra.mxu0 %v5921
    %7919 = vmatprep.mubr.bf16.mxu0 %v2742
    %7920 = vmatmul.mubr.bf16.gmra.mrb[0].mxu0 %v2741
    %v7921 = vpop.f32.mrb[0].mxu0
    %v7922 = vadd.f32 %v3546, %v7921
    %v7923 = vpop.f32.mrb[0].mxu0
    %v7924 = vadd.f32 %v3550, %v7923
    %v7925 = vpop.f32.mrb[0].mxu0
    %v7926 = vpop.f32.mrb[0].mxu0
    %7927 = vdwg.mxu0
    %7928 = vmatprep.subr.bf16.mxu0 %v5926
    %7929 = vmatpush1.bf16.msra.mxu0 %v5925
    %7930 = vmatprep.subr.bf16.mxu0 %v5930
    %7931 = vmatpush1.bf16.msra.mxu0 %v5929
    %7932 = vmatprep.subr.bf16.mxu0 %v5934
    %7933 = vmatpush1.bf16.msra.mxu0 %v5933
    %7934 = vmatprep.subr.bf16.mxu0 %v5938
    %7935 = vmatpush1.bf16.msra.mxu0 %v5937
    %7936 = vmatprep.subr.bf16.mxu0 %v5942
    %7937 = vmatpush1.bf16.msra.mxu0 %v5941
    %7938 = vmatprep.subr.bf16.mxu0 %v5946
    %7939 = vmatpush1.bf16.msra.mxu0 %v5945
    %7940 = vmatprep.subr.bf16.mxu0 %v5950
    %7941 = vmatpush1.bf16.msra.mxu0 %v5949
    %7942 = vmatprep.subr.bf16.mxu0 %v5954
    %7943 = vmatpush1.bf16.msra.mxu0 %v5953
    %7944 = vmatprep.subr.bf16.mxu0 %v5958
    %7945 = vmatpush1.bf16.msra.mxu0 %v5957
    %7946 = vmatprep.subr.bf16.mxu0 %v5962
    %7947 = vmatpush1.bf16.msra.mxu0 %v5961
    %7948 = vmatprep.subr.bf16.mxu0 %v5966
    %7949 = vmatpush1.bf16.msra.mxu0 %v5965
    %7950 = vmatprep.subr.bf16.mxu0 %v5970
    %7951 = vmatpush1.bf16.msra.mxu0 %v5969
    %7952 = vmatprep.subr.bf16.mxu0 %v5974
    %7953 = vmatpush1.bf16.msra.mxu0 %v5973
    %7954 = vmatprep.subr.bf16.mxu0 %v5978
    %7955 = vmatpush1.bf16.msra.mxu0 %v5977
    %7956 = vmatprep.subr.bf16.mxu0 %v5982
    %7957 = vmatpush1.bf16.msra.mxu0 %v5981
    %7958 = vmatprep.subr.bf16.mxu0 %v5986
    %7959 = vmatpush1.bf16.msra.mxu0 %v5985
    %7960 = vmatprep.mubr.bf16.mxu0 %v2744
    %7961 = vmatmul.mubr.bf16.gmra.mrb[0].mxu0 %v2743
    %v7962 = vpop.f32.mrb[0].mxu0
    %v7963 = vadd.f32 %v7922, %v7962
    %v7964 = vpop.f32.mrb[0].mxu0
    %v7965 = vadd.f32 %v7924, %v7964
    %v7966 = vpop.f32.mrb[0].mxu0
    %v7967 = vpop.f32.mrb[0].mxu0
    %7968 = vdwg.mxu0
    %7969 = vmatprep.subr.bf16.mxu0 %v5990
    %7970 = vmatpush1.bf16.msra.mxu0 %v5989
    %7971 = vmatprep.subr.bf16.mxu0 %v5994
    %7972 = vmatpush1.bf16.msra.mxu0 %v5993
    %7973 = vmatprep.subr.bf16.mxu0 %v5998
    %7974 = vmatpush1.bf16.msra.mxu0 %v5997
    %7975 = vmatprep.subr.bf16.mxu0 %v6002
    %7976 = vmatpush1.bf16.msra.mxu0 %v6001
    %7977 = vmatprep.subr.bf16.mxu0 %v6006
    %7978 = vmatpush1.bf16.msra.mxu0 %v6005
    %7979 = vmatprep.subr.bf16.mxu0 %v6010
    %7980 = vmatpush1.bf16.msra.mxu0 %v6009
    %7981 = vmatprep.subr.bf16.mxu0 %v6014
    %7982 = vmatpush1.bf16.msra.mxu0 %v6013
    %7983 = vmatprep.subr.bf16.mxu0 %v6018
    %7984 = vmatpush1.bf16.msra.mxu0 %v6017
    %7985 = vmatprep.subr.bf16.mxu0 %v6022
    %7986 = vmatpush1.bf16.msra.mxu0 %v6021
    %7987 = vmatprep.subr.bf16.mxu0 %v6026
    %7988 = vmatpush1.bf16.msra.mxu0 %v6025
    %7989 = vmatprep.subr.bf16.mxu0 %v6030
    %7990 = vmatpush1.bf16.msra.mxu0 %v6029
    %7991 = vmatprep.subr.bf16.mxu0 %v6034
    %7992 = vmatpush1.bf16.msra.mxu0 %v6033
    %7993 = vmatprep.subr.bf16.mxu0 %v6038
    %7994 = vmatpush1.bf16.msra.mxu0 %v6037
    %7995 = vmatprep.subr.bf16.mxu0 %v6042
    %7996 = vmatpush1.bf16.msra.mxu0 %v6041
    %7997 = vmatprep.subr.bf16.mxu0 %v6046
    %7998 = vmatpush1.bf16.msra.mxu0 %v6045
    %7999 = vmatprep.subr.bf16.mxu0 %v6050
    %8000 = vmatpush1.bf16.msra.mxu0 %v6049
    %8001 = vmatprep.mubr.bf16.mxu0 %v2746
    %8002 = vmatmul.mubr.bf16.gmra.mrb[0].mxu0 %v2745
    %v8003 = vpop.f32.mrb[0].mxu0
    %v8004 = vadd.f32 %v7963, %v8003
    %v8005 = vpop.f32.mrb[0].mxu0
    %v8006 = vadd.f32 %v7965, %v8005
    %v8007 = vpop.f32.mrb[0].mxu0
    %v8008 = vpop.f32.mrb[0].mxu0
    %8009 = vdwg.mxu0
    %8010 = vmatprep.subr.bf16.mxu0 %v6054
    %8011 = vmatpush1.bf16.msra.mxu0 %v6053
    %8012 = vmatprep.subr.bf16.mxu0 %v6058
    %8013 = vmatpush1.bf16.msra.mxu0 %v6057
    %8014 = vmatprep.subr.bf16.mxu0 %v6062
    %8015 = vmatpush1.bf16.msra.mxu0 %v6061
    %8016 = vmatprep.subr.bf16.mxu0 %v6066
    %8017 = vmatpush1.bf16.msra.mxu0 %v6065
    %8018 = vmatprep.subr.bf16.mxu0 %v6070
    %8019 = vmatpush1.bf16.msra.mxu0 %v6069
    %8020 = vmatprep.subr.bf16.mxu0 %v6074
    %8021 = vmatpush1.bf16.msra.mxu0 %v6073
    %8022 = vmatprep.subr.bf16.mxu0 %v6078
    %8023 = vmatpush1.bf16.msra.mxu0 %v6077
    %8024 = vmatprep.subr.bf16.mxu0 %v6082
    %8025 = vmatpush1.bf16.msra.mxu0 %v6081
    %8026 = vmatprep.subr.bf16.mxu0 %v6086
    %8027 = vmatpush1.bf16.msra.mxu0 %v6085
    %8028 = vmatprep.subr.bf16.mxu0 %v6090
    %8029 = vmatpush1.bf16.msra.mxu0 %v6089
    %8030 = vmatprep.subr.bf16.mxu0 %v6094
    %8031 = vmatpush1.bf16.msra.mxu0 %v6093
    %8032 = vmatprep.subr.bf16.mxu0 %v6098
    %8033 = vmatpush1.bf16.msra.mxu0 %v6097
    %8034 = vmatprep.subr.bf16.mxu0 %v6102
    %8035 = vmatpush1.bf16.msra.mxu0 %v6101
    %8036 = vmatprep.subr.bf16.mxu0 %v6106
    %8037 = vmatpush1.bf16.msra.mxu0 %v6105
    %8038 = vmatprep.subr.bf16.mxu0 %v6110
    %8039 = vmatpush1.bf16.msra.mxu0 %v6109
    %8040 = vmatprep.subr.bf16.mxu0 %v6114
    %8041 = vmatpush1.bf16.msra.mxu0 %v6113
    %8042 = vmatprep.mubr.bf16.mxu0 %v2748
    %8043 = vmatmul.mubr.bf16.gmra.mrb[0].mxu0 %v2747
    %v8044 = vpop.f32.mrb[0].mxu0
    %v8045 = vadd.f32 %v8004, %v8044
    %v8046 = vpop.f32.mrb[0].mxu0
    %v8047 = vadd.f32 %v8006, %v8046
    %v8048 = vpop.f32.mrb[0].mxu0
    %v8049 = vpop.f32.mrb[0].mxu0
    %8050 = vdwg.mxu0
    %8051 = vmatprep.subr.bf16.mxu0 %v6118
    %8052 = vmatpush1.bf16.msra.mxu0 %v6117
    %8053 = vmatprep.subr.bf16.mxu0 %v6122
    %8054 = vmatpush1.bf16.msra.mxu0 %v6121
    %8055 = vmatprep.subr.bf16.mxu0 %v6126
    %8056 = vmatpush1.bf16.msra.mxu0 %v6125
    %8057 = vmatprep.subr.bf16.mxu0 %v6130
    %8058 = vmatpush1.bf16.msra.mxu0 %v6129
    %8059 = vmatprep.subr.bf16.mxu0 %v6134
    %8060 = vmatpush1.bf16.msra.mxu0 %v6133
    %8061 = vmatprep.subr.bf16.mxu0 %v6138
    %8062 = vmatpush1.bf16.msra.mxu0 %v6137
    %8063 = vmatprep.subr.bf16.mxu0 %v6142
    %8064 = vmatpush1.bf16.msra.mxu0 %v6141
    %8065 = vmatprep.subr.bf16.mxu0 %v6146
    %8066 = vmatpush1.bf16.msra.mxu0 %v6145
    %8067 = vmatprep.subr.bf16.mxu0 %v6150
    %8068 = vmatpush1.bf16.msra.mxu0 %v6149
    %8069 = vmatprep.subr.bf16.mxu0 %v6154
    %8070 = vmatpush1.bf16.msra.mxu0 %v6153
    %8071 = vmatprep.subr.bf16.mxu0 %v6158
    %8072 = vmatpush1.bf16.msra.mxu0 %v6157
    %8073 = vmatprep.subr.bf16.mxu0 %v6162
    %8074 = vmatpush1.bf16.msra.mxu0 %v6161
    %8075 = vmatprep.subr.bf16.mxu0 %v6166
    %8076 = vmatpush1.bf16.msra.mxu0 %v6165
    %8077 = vmatprep.subr.bf16.mxu0 %v6170
    %8078 = vmatpush1.bf16.msra.mxu0 %v6169
    %8079 = vmatprep.subr.bf16.mxu0 %v6174
    %8080 = vmatpush1.bf16.msra.mxu0 %v6173
    %8081 = vmatprep.subr.bf16.mxu0 %v6178
    %8082 = vmatpush1.bf16.msra.mxu0 %v6177
    %8083 = vmatprep.mubr.bf16.mxu0 %v2750
    %8084 = vmatmul.mubr.bf16.gmra.mrb[0].mxu0 %v2749
    %v8085 = vpop.f32.mrb[0].mxu0
    %v8086 = vadd.f32 %v8045, %v8085
    %v8087 = vpop.f32.mrb[0].mxu0
    %v8088 = vadd.f32 %v8047, %v8087
    %v8089 = vpop.f32.mrb[0].mxu0
    %v8090 = vpop.f32.mrb[0].mxu0
    %8091 = vdwg.mxu0
    %8092 = vmatprep.subr.bf16.mxu0 %v6182
    %8093 = vmatpush1.bf16.msra.mxu0 %v6181
    %8094 = vmatprep.subr.bf16.mxu0 %v6186
    %8095 = vmatpush1.bf16.msra.mxu0 %v6185
    %8096 = vmatprep.subr.bf16.mxu0 %v6190
    %8097 = vmatpush1.bf16.msra.mxu0 %v6189
    %8098 = vmatprep.subr.bf16.mxu0 %v6194
    %8099 = vmatpush1.bf16.msra.mxu0 %v6193
    %8100 = vmatprep.subr.bf16.mxu0 %v6198
    %8101 = vmatpush1.bf16.msra.mxu0 %v6197
    %8102 = vmatprep.subr.bf16.mxu0 %v6202
    %8103 = vmatpush1.bf16.msra.mxu0 %v6201
    %8104 = vmatprep.subr.bf16.mxu0 %v6206
    %8105 = vmatpush1.bf16.msra.mxu0 %v6205
    %8106 = vmatprep.subr.bf16.mxu0 %v6210
    %8107 = vmatpush1.bf16.msra.mxu0 %v6209
    %8108 = vmatprep.subr.bf16.mxu0 %v6214
    %8109 = vmatpush1.bf16.msra.mxu0 %v6213
    %8110 = vmatprep.subr.bf16.mxu0 %v6218
    %8111 = vmatpush1.bf16.msra.mxu0 %v6217
    %8112 = vmatprep.subr.bf16.mxu0 %v6222
    %8113 = vmatpush1.bf16.msra.mxu0 %v6221
    %8114 = vmatprep.subr.bf16.mxu0 %v6226
    %8115 = vmatpush1.bf16.msra.mxu0 %v6225
    %8116 = vmatprep.subr.bf16.mxu0 %v6230
    %8117 = vmatpush1.bf16.msra.mxu0 %v6229
    %8118 = vmatprep.subr.bf16.mxu0 %v6234
    %8119 = vmatpush1.bf16.msra.mxu0 %v6233
    %8120 = vmatprep.subr.bf16.mxu0 %v6238
    %8121 = vmatpush1.bf16.msra.mxu0 %v6237
    %8122 = vmatprep.subr.bf16.mxu0 %v6242
    %8123 = vmatpush1.bf16.msra.mxu0 %v6241
    %8124 = vmatprep.mubr.bf16.mxu0 %v2752
    %8125 = vmatmul.mubr.bf16.gmra.mrb[0].mxu0 %v2751
    %v8126 = vpop.f32.mrb[0].mxu0
    %v8127 = vadd.f32 %v8086, %v8126
    %v8128 = vpop.f32.mrb[0].mxu0
    %v8129 = vadd.f32 %v8088, %v8128
    %v8130 = vpop.f32.mrb[0].mxu0
    %v8131 = vpop.f32.mrb[0].mxu0
    %8132 = vdwg.mxu0
    %8133 = vmatprep.subr.bf16.mxu0 %v6246
    %8134 = vmatpush1.bf16.msra.mxu0 %v6245
    %8135 = vmatprep.subr.bf16.mxu0 %v6250
    %8136 = vmatpush1.bf16.msra.mxu0 %v6249
    %8137 = vmatprep.subr.bf16.mxu0 %v6254
    %8138 = vmatpush1.bf16.msra.mxu0 %v6253
    %8139 = vmatprep.subr.bf16.mxu0 %v6258
    %8140 = vmatpush1.bf16.msra.mxu0 %v6257
    %8141 = vmatprep.subr.bf16.mxu0 %v6262
    %8142 = vmatpush1.bf16.msra.mxu0 %v6261
    %8143 = vmatprep.subr.bf16.mxu0 %v6266
    %8144 = vmatpush1.bf16.msra.mxu0 %v6265
    %8145 = vmatprep.subr.bf16.mxu0 %v6270
    %8146 = vmatpush1.bf16.msra.mxu0 %v6269
    %8147 = vmatprep.subr.bf16.mxu0 %v6274
    %8148 = vmatpush1.bf16.msra.mxu0 %v6273
    %8149 = vmatprep.subr.bf16.mxu0 %v6278
    %8150 = vmatpush1.bf16.msra.mxu0 %v6277
    %8151 = vmatprep.subr.bf16.mxu0 %v6282
    %8152 = vmatpush1.bf16.msra.mxu0 %v6281
    %8153 = vmatprep.subr.bf16.mxu0 %v6286
    %8154 = vmatpush1.bf16.msra.mxu0 %v6285
    %8155 = vmatprep.subr.bf16.mxu0 %v6290
    %8156 = vmatpush1.bf16.msra.mxu0 %v6289
    %8157 = vmatprep.subr.bf16.mxu0 %v6294
    %8158 = vmatpush1.bf16.msra.mxu0 %v6293
    %8159 = vmatprep.subr.bf16.mxu0 %v6298
    %8160 = vmatpush1.bf16.msra.mxu0 %v6297
    %8161 = vmatprep.subr.bf16.mxu0 %v6302
    %8162 = vmatpush1.bf16.msra.mxu0 %v6301
    %8163 = vmatprep.subr.bf16.mxu0 %v6306
    %8164 = vmatpush1.bf16.msra.mxu0 %v6305
    %8165 = vmatprep.mubr.bf16.mxu0 %v2754
    %8166 = vmatmul.mubr.bf16.gmra.mrb[0].mxu0 %v2753
    %v8167 = vpop.f32.mrb[0].mxu0
    %v8168 = vadd.f32 %v8127, %v8167
    %v8169 = vpop.f32.mrb[0].mxu0
    %v8170 = vadd.f32 %v8129, %v8169
    %v8171 = vpop.f32.mrb[0].mxu0
    %v8172 = vpop.f32.mrb[0].mxu0
    %8173 = vdwg.mxu0
    %8174 = vmatprep.subr.bf16.mxu0 %v6310
    %8175 = vmatpush1.bf16.msra.mxu0 %v6309
    %8176 = vmatprep.subr.bf16.mxu0 %v6314
    %8177 = vmatpush1.bf16.msra.mxu0 %v6313
    %8178 = vmatprep.subr.bf16.mxu0 %v6318
    %8179 = vmatpush1.bf16.msra.mxu0 %v6317
    %8180 = vmatprep.subr.bf16.mxu0 %v6322
    %8181 = vmatpush1.bf16.msra.mxu0 %v6321
    %8182 = vmatprep.subr.bf16.mxu0 %v6326
    %8183 = vmatpush1.bf16.msra.mxu0 %v6325
    %8184 = vmatprep.subr.bf16.mxu0 %v6330
    %8185 = vmatpush1.bf16.msra.mxu0 %v6329
    %8186 = vmatprep.subr.bf16.mxu0 %v6334
    %8187 = vmatpush1.bf16.msra.mxu0 %v6333
    %8188 = vmatprep.subr.bf16.mxu0 %v6338
    %8189 = vmatpush1.bf16.msra.mxu0 %v6337
    %8190 = vmatprep.subr.bf16.mxu0 %v6342
    %8191 = vmatpush1.bf16.msra.mxu0 %v6341
    %8192 = vmatprep.subr.bf16.mxu0 %v6346
    %8193 = vmatpush1.bf16.msra.mxu0 %v6345
    %8194 = vmatprep.subr.bf16.mxu0 %v6350
    %8195 = vmatpush1.bf16.msra.mxu0 %v6349
    %8196 = vmatprep.subr.bf16.mxu0 %v6354
    %8197 = vmatpush1.bf16.msra.mxu0 %v6353
    %8198 = vmatprep.subr.bf16.mxu0 %v6358
    %8199 = vmatpush1.bf16.msra.mxu0 %v6357
    %8200 = vmatprep.subr.bf16.mxu0 %v6362
    %8201 = vmatpush1.bf16.msra.mxu0 %v6361
    %8202 = vmatprep.subr.bf16.mxu0 %v6366
    %8203 = vmatpush1.bf16.msra.mxu0 %v6365
    %8204 = vmatprep.subr.bf16.mxu0 %v6370
    %8205 = vmatpush1.bf16.msra.mxu0 %v6369
    %8206 = vmatprep.mubr.bf16.mxu0 %v2756
    %8207 = vmatmul.mubr.bf16.gmra.mrb[0].mxu0 %v2755
    %v8208 = vpop.f32.mrb[0].mxu0
    %v8209 = vadd.f32 %v8168, %v8208
    %v8210 = vpop.f32.mrb[0].mxu0
    %v8211 = vadd.f32 %v8170, %v8210
    %v8212 = vpop.f32.mrb[0].mxu0
    %v8213 = vpop.f32.mrb[0].mxu0
    %8214 = vdwg.mxu0
    %8215 = vmatprep.subr.bf16.mxu0 %v6374
    %8216 = vmatpush1.bf16.msra.mxu0 %v6373
    %8217 = vmatprep.subr.bf16.mxu0 %v6378
    %8218 = vmatpush1.bf16.msra.mxu0 %v6377
    %8219 = vmatprep.subr.bf16.mxu0 %v6382
    %8220 = vmatpush1.bf16.msra.mxu0 %v6381
    %8221 = vmatprep.subr.bf16.mxu0 %v6386
    %8222 = vmatpush1.bf16.msra.mxu0 %v6385
    %8223 = vmatprep.subr.bf16.mxu0 %v6390
    %8224 = vmatpush1.bf16.msra.mxu0 %v6389
    %8225 = vmatprep.subr.bf16.mxu0 %v6394
    %8226 = vmatpush1.bf16.msra.mxu0 %v6393
    %8227 = vmatprep.subr.bf16.mxu0 %v6398
    %8228 = vmatpush1.bf16.msra.mxu0 %v6397
    %8229 = vmatprep.subr.bf16.mxu0 %v6402
    %8230 = vmatpush1.bf16.msra.mxu0 %v6401
    %8231 = vmatprep.subr.bf16.mxu0 %v6406
    %8232 = vmatpush1.bf16.msra.mxu0 %v6405
    %8233 = vmatprep.subr.bf16.mxu0 %v6410
    %8234 = vmatpush1.bf16.msra.mxu0 %v6409
    %8235 = vmatprep.subr.bf16.mxu0 %v6414
    %8236 = vmatpush1.bf16.msra.mxu0 %v6413
    %8237 = vmatprep.subr.bf16.mxu0 %v6418
    %8238 = vmatpush1.bf16.msra.mxu0 %v6417
    %8239 = vmatprep.subr.bf16.mxu0 %v6422
    %8240 = vmatpush1.bf16.msra.mxu0 %v6421
    %8241 = vmatprep.subr.bf16.mxu0 %v6426
    %8242 = vmatpush1.bf16.msra.mxu0 %v6425
    %8243 = vmatprep.subr.bf16.mxu0 %v6430
    %8244 = vmatpush1.bf16.msra.mxu0 %v6429
    %8245 = vmatprep.subr.bf16.mxu0 %v6434
    %8246 = vmatpush1.bf16.msra.mxu0 %v6433
    %8247 = vmatprep.mubr.bf16.mxu0 %v2758
    %8248 = vmatmul.mubr.bf16.gmra.mrb[0].mxu0 %v2757
    %v8249 = vpop.f32.mrb[0].mxu0
    %v8250 = vadd.f32 %v8209, %v8249
    %v8251 = vpop.f32.mrb[0].mxu0
    %v8252 = vadd.f32 %v8211, %v8251
    %v8253 = vpop.f32.mrb[0].mxu0
    %v8254 = vpop.f32.mrb[0].mxu0
    %8255 = vdwg.mxu0
    %8256 = vmatprep.subr.bf16.mxu0 %v6438
    %8257 = vmatpush1.bf16.msra.mxu0 %v6437
    %8258 = vmatprep.subr.bf16.mxu0 %v6442
    %8259 = vmatpush1.bf16.msra.mxu0 %v6441
    %8260 = vmatprep.subr.bf16.mxu0 %v6446
    %8261 = vmatpush1.bf16.msra.mxu0 %v6445
    %8262 = vmatprep.subr.bf16.mxu0 %v6450
    %8263 = vmatpush1.bf16.msra.mxu0 %v6449
    %8264 = vmatprep.subr.bf16.mxu0 %v6454
    %8265 = vmatpush1.bf16.msra.mxu0 %v6453
    %8266 = vmatprep.subr.bf16.mxu0 %v6458
    %8267 = vmatpush1.bf16.msra.mxu0 %v6457
    %8268 = vmatprep.subr.bf16.mxu0 %v6462
    %8269 = vmatpush1.bf16.msra.mxu0 %v6461
    %8270 = vmatprep.subr.bf16.mxu0 %v6466
    %8271 = vmatpush1.bf16.msra.mxu0 %v6465
    %8272 = vmatprep.subr.bf16.mxu0 %v6470
    %8273 = vmatpush1.bf16.msra.mxu0 %v6469
    %8274 = vmatprep.subr.bf16.mxu0 %v6474
    %8275 = vmatpush1.bf16.msra.mxu0 %v6473
    %8276 = vmatprep.subr.bf16.mxu0 %v6478
    %8277 = vmatpush1.bf16.msra.mxu0 %v6477
    %8278 = vmatprep.subr.bf16.mxu0 %v6482
    %8279 = vmatpush1.bf16.msra.mxu0 %v6481
    %8280 = vmatprep.subr.bf16.mxu0 %v6486
    %8281 = vmatpush1.bf16.msra.mxu0 %v6485
    %8282 = vmatprep.subr.bf16.mxu0 %v6490
    %8283 = vmatpush1.bf16.msra.mxu0 %v6489
    %8284 = vmatprep.subr.bf16.mxu0 %v6494
    %8285 = vmatpush1.bf16.msra.mxu0 %v6493
    %8286 = vmatprep.subr.bf16.mxu0 %v6498
    %8287 = vmatpush1.bf16.msra.mxu0 %v6497
    %8288 = vmatprep.mubr.bf16.mxu0 %v2760
    %8289 = vmatmul.mubr.bf16.gmra.mrb[0].mxu0 %v2759
    %v8290 = vpop.f32.mrb[0].mxu0
    %v8291 = vadd.f32 %v8250, %v8290
    %v8292 = vpop.f32.mrb[0].mxu0
    %v8293 = vadd.f32 %v8252, %v8292
    %v8294 = vpop.f32.mrb[0].mxu0
    %v8295 = vpop.f32.mrb[0].mxu0
    %8296 = vdwg.mxu0
    %8297 = vmatprep.subr.bf16.mxu0 %v6502
    %8298 = vmatpush1.bf16.msra.mxu0 %v6501
    %8299 = vmatprep.subr.bf16.mxu0 %v6506
    %8300 = vmatpush1.bf16.msra.mxu0 %v6505
    %8301 = vmatprep.subr.bf16.mxu0 %v6510
    %8302 = vmatpush1.bf16.msra.mxu0 %v6509
    %8303 = vmatprep.subr.bf16.mxu0 %v6514
    %8304 = vmatpush1.bf16.msra.mxu0 %v6513
    %8305 = vmatprep.subr.bf16.mxu0 %v6518
    %8306 = vmatpush1.bf16.msra.mxu0 %v6517
    %8307 = vmatprep.subr.bf16.mxu0 %v6522
    %8308 = vmatpush1.bf16.msra.mxu0 %v6521
    %8309 = vmatprep.subr.bf16.mxu0 %v6526
    %8310 = vmatpush1.bf16.msra.mxu0 %v6525
    %8311 = vmatprep.subr.bf16.mxu0 %v6530
    %8312 = vmatpush1.bf16.msra.mxu0 %v6529
    %8313 = vmatprep.subr.bf16.mxu0 %v6534
    %8314 = vmatpush1.bf16.msra.mxu0 %v6533
    %8315 = vmatprep.subr.bf16.mxu0 %v6538
    %8316 = vmatpush1.bf16.msra.mxu0 %v6537
    %8317 = vmatprep.subr.bf16.mxu0 %v6542
    %8318 = vmatpush1.bf16.msra.mxu0 %v6541
    %8319 = vmatprep.subr.bf16.mxu0 %v6546
    %8320 = vmatpush1.bf16.msra.mxu0 %v6545
    %8321 = vmatprep.subr.bf16.mxu0 %v6550
    %8322 = vmatpush1.bf16.msra.mxu0 %v6549
    %8323 = vmatprep.subr.bf16.mxu0 %v6554
    %8324 = vmatpush1.bf16.msra.mxu0 %v6553
    %8325 = vmatprep.subr.bf16.mxu0 %v6558
    %8326 = vmatpush1.bf16.msra.mxu0 %v6557
    %8327 = vmatprep.subr.bf16.mxu0 %v6562
    %8328 = vmatpush1.bf16.msra.mxu0 %v6561
    %8329 = vmatprep.mubr.bf16.mxu0 %v2762
    %8330 = vmatmul.mubr.bf16.gmra.mrb[0].mxu0 %v2761
    %v8331 = vpop.f32.mrb[0].mxu0
    %v8332 = vadd.f32 %v8291, %v8331
    %v8333 = vpop.f32.mrb[0].mxu0
    %v8334 = vadd.f32 %v8293, %v8333
    %v8335 = vpop.f32.mrb[0].mxu0
    %v8336 = vpop.f32.mrb[0].mxu0
    %8337 = vdwg.mxu0
    %8338 = vmatprep.subr.bf16.mxu0 %v6566
    %8339 = vmatpush1.bf16.msra.mxu0 %v6565
    %8340 = vmatprep.subr.bf16.mxu0 %v6570
    %8341 = vmatpush1.bf16.msra.mxu0 %v6569
    %8342 = vmatprep.subr.bf16.mxu0 %v6574
    %8343 = vmatpush1.bf16.msra.mxu0 %v6573
    %8344 = vmatprep.subr.bf16.mxu0 %v6578
    %8345 = vmatpush1.bf16.msra.mxu0 %v6577
    %8346 = vmatprep.subr.bf16.mxu0 %v6582
    %8347 = vmatpush1.bf16.msra.mxu0 %v6581
    %8348 = vmatprep.subr.bf16.mxu0 %v6586
    %8349 = vmatpush1.bf16.msra.mxu0 %v6585
    %8350 = vmatprep.subr.bf16.mxu0 %v6590
    %8351 = vmatpush1.bf16.msra.mxu0 %v6589
    %8352 = vmatprep.subr.bf16.mxu0 %v6594
    %8353 = vmatpush1.bf16.msra.mxu0 %v6593
    %8354 = vmatprep.subr.bf16.mxu0 %v6598
    %8355 = vmatpush1.bf16.msra.mxu0 %v6597
    %8356 = vmatprep.subr.bf16.mxu0 %v6602
    %8357 = vmatpush1.bf16.msra.mxu0 %v6601
    %8358 = vmatprep.subr.bf16.mxu0 %v6606
    %8359 = vmatpush1.bf16.msra.mxu0 %v6605
    %8360 = vmatprep.subr.bf16.mxu0 %v6610
    %8361 = vmatpush1.bf16.msra.mxu0 %v6609
    %8362 = vmatprep.subr.bf16.mxu0 %v6614
    %8363 = vmatpush1.bf16.msra.mxu0 %v6613
    %8364 = vmatprep.subr.bf16.mxu0 %v6618
    %8365 = vmatpush1.bf16.msra.mxu0 %v6617
    %8366 = vmatprep.subr.bf16.mxu0 %v6622
    %8367 = vmatpush1.bf16.msra.mxu0 %v6621
    %8368 = vmatprep.subr.bf16.mxu0 %v6626
    %8369 = vmatpush1.bf16.msra.mxu0 %v6625
    %8370 = vmatprep.mubr.bf16.mxu0 %v2764
    %8371 = vmatmul.mubr.bf16.gmra.mrb[0].mxu0 %v2763
    %v8372 = vpop.f32.mrb[0].mxu0
    %v8373 = vadd.f32 %v8332, %v8372
    %v8374 = vpop.f32.mrb[0].mxu0
    %v8375 = vadd.f32 %v8334, %v8374
    %v8376 = vpop.f32.mrb[0].mxu0
    %v8377 = vpop.f32.mrb[0].mxu0
    %8378 = vdwg.mxu0
    %v8379 = vpack.c.bf16 %v7881, %v7881
    %v8380 = vpack.c.bf16 %v7883, %v7883
    %v8381 = vpack.c.bf16 %v8373, %v8373
    %v8382 = vpack.c.bf16 %v8375, %v8375
    %v8383 = vld [vmem:[#allocation25] sm:$0xff]
    %v8384 = vld [vmem:[#allocation25 + $0x8] sm:$0xff]
    %v8385 = vld [vmem:[#allocation25 + $0x10] sm:$0xff]
    %v8386 = vld [vmem:[#allocation25 + $0x18] sm:$0xff]
    %v8387 = vld [vmem:[#allocation25 + $0x20] sm:$0xff]
    %v8388 = vld [vmem:[#allocation25 + $0x28] sm:$0xff]
    %v8389 = vld [vmem:[#allocation25 + $0x30] sm:$0xff]
    %v8390 = vld [vmem:[#allocation25 + $0x38] sm:$0xff]
    %v8391 = vld [vmem:[#allocation25 + $0x40] sm:$0xff]
    %v8392 = vld [vmem:[#allocation25 + $0x48] sm:$0xff]
    %v8393 = vld [vmem:[#allocation25 + $0x50] sm:$0xff]
    %v8394 = vld [vmem:[#allocation25 + $0x58] sm:$0xff]
    %v8395 = vld [vmem:[#allocation25 + $0x60] sm:$0xff]
    %v8396 = vld [vmem:[#allocation25 + $0x68] sm:$0xff]
    %v8397 = vld [vmem:[#allocation25 + $0x70] sm:$0xff]
    %v8398 = vld [vmem:[#allocation25 + $0x78] sm:$0xff]
    %v8399 = vld [vmem:[#allocation25 + $0x80] sm:$0xff]
    %v8400 = vld [vmem:[#allocation25 + $0x88] sm:$0xff]
    %v8401 = vld [vmem:[#allocation25 + $0x90] sm:$0xff]
    %v8402 = vld [vmem:[#allocation25 + $0x98] sm:$0xff]
    %v8403 = vld [vmem:[#allocation25 + $0xa0] sm:$0xff]
    %v8404 = vld [vmem:[#allocation25 + $0xa8] sm:$0xff]
    %v8405 = vld [vmem:[#allocation25 + $0xb0] sm:$0xff]
    %v8406 = vld [vmem:[#allocation25 + $0xb8] sm:$0xff]
    %v8407 = vld [vmem:[#allocation25 + $0xc0] sm:$0xff]
    %v8408 = vld [vmem:[#allocation25 + $0xc8] sm:$0xff]
    %v8409 = vld [vmem:[#allocation25 + $0xd0] sm:$0xff]
    %v8410 = vld [vmem:[#allocation25 + $0xd8] sm:$0xff]
    %v8411 = vld [vmem:[#allocation25 + $0xe0] sm:$0xff]
    %v8412 = vld [vmem:[#allocation25 + $0xe8] sm:$0xff]
    %v8413 = vld [vmem:[#allocation25 + $0xf0] sm:$0xff]
    %v8414 = vld [vmem:[#allocation25 + $0xf8] sm:$0xff]
    %v8415 = vld [vmem:[#allocation25 + $0x100] sm:$0xff]
    %v8416 = vld [vmem:[#allocation25 + $0x108] sm:$0xff]
    %v8417 = vld [vmem:[#allocation25 + $0x110] sm:$0xff]
    %v8418 = vld [vmem:[#allocation25 + $0x118] sm:$0xff]
    %v8419 = vld [vmem:[#allocation25 + $0x120] sm:$0xff]
    %v8420 = vld [vmem:[#allocation25 + $0x128] sm:$0xff]
    %v8421 = vld [vmem:[#allocation25 + $0x130] sm:$0xff]
    %v8422 = vld [vmem:[#allocation25 + $0x138] sm:$0xff]
    %v8423 = vld [vmem:[#allocation25 + $0x140] sm:$0xff]
    %v8424 = vld [vmem:[#allocation25 + $0x148] sm:$0xff]
    %v8425 = vld [vmem:[#allocation25 + $0x150] sm:$0xff]
    %v8426 = vld [vmem:[#allocation25 + $0x158] sm:$0xff]
    %v8427 = vld [vmem:[#allocation25 + $0x160] sm:$0xff]
    %v8428 = vld [vmem:[#allocation25 + $0x168] sm:$0xff]
    %v8429 = vld [vmem:[#allocation25 + $0x170] sm:$0xff]
    %v8430 = vld [vmem:[#allocation25 + $0x178] sm:$0xff]
    %v8431 = vld [vmem:[#allocation25 + $0x180] sm:$0xff]
    %v8432 = vld [vmem:[#allocation25 + $0x188] sm:$0xff]
    %v8433 = vld [vmem:[#allocation25 + $0x190] sm:$0xff]
    %v8434 = vld [vmem:[#allocation25 + $0x198] sm:$0xff]
    %v8435 = vld [vmem:[#allocation25 + $0x1a0] sm:$0xff]
    %v8436 = vld [vmem:[#allocation25 + $0x1a8] sm:$0xff]
    %v8437 = vld [vmem:[#allocation25 + $0x1b0] sm:$0xff]
    %v8438 = vld [vmem:[#allocation25 + $0x1b8] sm:$0xff]
    %v8439 = vld [vmem:[#allocation25 + $0x1c0] sm:$0xff]
    %v8440 = vld [vmem:[#allocation25 + $0x1c8] sm:$0xff]
    %v8441 = vld [vmem:[#allocation25 + $0x1d0] sm:$0xff]
    %v8442 = vld [vmem:[#allocation25 + $0x1d8] sm:$0xff]
    %v8443 = vld [vmem:[#allocation25 + $0x1e0] sm:$0xff]
    %v8444 = vld [vmem:[#allocation25 + $0x1e8] sm:$0xff]
    %v8445 = vld [vmem:[#allocation25 + $0x1f0] sm:$0xff]
    %v8446 = vld [vmem:[#allocation25 + $0x1f8] sm:$0xff]
    %v8447 = vld [vmem:[#allocation26] sm:$0x3]
    %v8449 = vlaneseq
    %v8450 = vshrl.u32 %v8449, 7
    %v8451 = vsub.s32 0, %v8450
    %v8452 = vrot.slane %v8447, %v8451
    %v8453 = vlaneseq
    %v8454 = vshrl.u32 %v8453, 7
    %v8455 = vsub.s32 1, %v8454
    %v8456 = vrot.slane %v8447, %v8455
    %v8523 = vunpack.c.l.b16 %v8383
    %v8524 = vunpack.c.h.b16 %v8383
    %v8525 = vunpack.c.l.b16 %v8384
    %v8526 = vunpack.c.h.b16 %v8384
    %v8527 = vunpack.c.l.b16 %v8385
    %v8528 = vunpack.c.h.b16 %v8385
    %v8529 = vunpack.c.l.b16 %v8386
    %v8530 = vunpack.c.h.b16 %v8386
    %v8531 = vunpack.c.l.b16 %v8387
    %v8532 = vunpack.c.h.b16 %v8387
    %v8533 = vunpack.c.l.b16 %v8388
    %v8534 = vunpack.c.h.b16 %v8388
    %v8535 = vunpack.c.l.b16 %v8389
    %v8536 = vunpack.c.h.b16 %v8389
    %v8537 = vunpack.c.l.b16 %v8390
    %v8538 = vunpack.c.h.b16 %v8390
    %v8539 = vunpack.c.l.b16 %v8391
    %v8540 = vunpack.c.h.b16 %v8391
    %v8541 = vunpack.c.l.b16 %v8392
    %v8542 = vunpack.c.h.b16 %v8392
    %v8543 = vunpack.c.l.b16 %v8393
    %v8544 = vunpack.c.h.b16 %v8393
    %v8545 = vunpack.c.l.b16 %v8394
    %v8546 = vunpack.c.h.b16 %v8394
    %v8547 = vunpack.c.l.b16 %v8395
    %v8548 = vunpack.c.h.b16 %v8395
    %v8549 = vunpack.c.l.b16 %v8396
    %v8550 = vunpack.c.h.b16 %v8396
    %v8551 = vunpack.c.l.b16 %v8397
    %v8552 = vunpack.c.h.b16 %v8397
    %v8553 = vunpack.c.l.b16 %v8398
    %v8554 = vunpack.c.h.b16 %v8398
    %v8555 = vunpack.c.l.b16 %v8399
    %v8556 = vunpack.c.h.b16 %v8399
    %v8557 = vunpack.c.l.b16 %v8400
    %v8558 = vunpack.c.h.b16 %v8400
    %v8559 = vunpack.c.l.b16 %v8401
    %v8560 = vunpack.c.h.b16 %v8401
    %v8561 = vunpack.c.l.b16 %v8402
    %v8562 = vunpack.c.h.b16 %v8402
    %v8563 = vunpack.c.l.b16 %v8403
    %v8564 = vunpack.c.h.b16 %v8403
    %v8565 = vunpack.c.l.b16 %v8404
    %v8566 = vunpack.c.h.b16 %v8404
    %v8567 = vunpack.c.l.b16 %v8405
    %v8568 = vunpack.c.h.b16 %v8405
    %v8569 = vunpack.c.l.b16 %v8406
    %v8570 = vunpack.c.h.b16 %v8406
    %v8571 = vunpack.c.l.b16 %v8407
    %v8572 = vunpack.c.h.b16 %v8407
    %v8573 = vunpack.c.l.b16 %v8408
    %v8574 = vunpack.c.h.b16 %v8408
    %v8575 = vunpack.c.l.b16 %v8409
    %v8576 = vunpack.c.h.b16 %v8409
    %v8577 = vunpack.c.l.b16 %v8410
    %v8578 = vunpack.c.h.b16 %v8410
    %v8579 = vunpack.c.l.b16 %v8411
    %v8580 = vunpack.c.h.b16 %v8411
    %v8581 = vunpack.c.l.b16 %v8412
    %v8582 = vunpack.c.h.b16 %v8412
    %v8583 = vunpack.c.l.b16 %v8413
    %v8584 = vunpack.c.h.b16 %v8413
    %v8585 = vunpack.c.l.b16 %v8414
    %v8586 = vunpack.c.h.b16 %v8414
    %v8587 = vunpack.c.l.b16 %v8415
    %v8588 = vunpack.c.h.b16 %v8415
    %v8589 = vunpack.c.l.b16 %v8416
    %v8590 = vunpack.c.h.b16 %v8416
    %v8591 = vunpack.c.l.b16 %v8417
    %v8592 = vunpack.c.h.b16 %v8417
    %v8593 = vunpack.c.l.b16 %v8418
    %v8594 = vunpack.c.h.b16 %v8418
    %v8595 = vunpack.c.l.b16 %v8419
    %v8596 = vunpack.c.h.b16 %v8419
    %v8597 = vunpack.c.l.b16 %v8420
    %v8598 = vunpack.c.h.b16 %v8420
    %v8599 = vunpack.c.l.b16 %v8421
    %v8600 = vunpack.c.h.b16 %v8421
    %v8601 = vunpack.c.l.b16 %v8422
    %v8602 = vunpack.c.h.b16 %v8422
    %v8603 = vunpack.c.l.b16 %v8423
    %v8604 = vunpack.c.h.b16 %v8423
    %v8605 = vunpack.c.l.b16 %v8424
    %v8606 = vunpack.c.h.b16 %v8424
    %v8607 = vunpack.c.l.b16 %v8425
    %v8608 = vunpack.c.h.b16 %v8425
    %v8609 = vunpack.c.l.b16 %v8426
    %v8610 = vunpack.c.h.b16 %v8426
    %v8611 = vunpack.c.l.b16 %v8427
    %v8612 = vunpack.c.h.b16 %v8427
    %v8613 = vunpack.c.l.b16 %v8428
    %v8614 = vunpack.c.h.b16 %v8428
    %v8615 = vunpack.c.l.b16 %v8429
    %v8616 = vunpack.c.h.b16 %v8429
    %v8617 = vunpack.c.l.b16 %v8430
    %v8618 = vunpack.c.h.b16 %v8430
    %v8619 = vunpack.c.l.b16 %v8431
    %v8620 = vunpack.c.h.b16 %v8431
    %v8621 = vunpack.c.l.b16 %v8432
    %v8622 = vunpack.c.h.b16 %v8432
    %v8623 = vunpack.c.l.b16 %v8433
    %v8624 = vunpack.c.h.b16 %v8433
    %v8625 = vunpack.c.l.b16 %v8434
    %v8626 = vunpack.c.h.b16 %v8434
    %v8627 = vunpack.c.l.b16 %v8435
    %v8628 = vunpack.c.h.b16 %v8435
    %v8629 = vunpack.c.l.b16 %v8436
    %v8630 = vunpack.c.h.b16 %v8436
    %v8631 = vunpack.c.l.b16 %v8437
    %v8632 = vunpack.c.h.b16 %v8437
    %v8633 = vunpack.c.l.b16 %v8438
    %v8634 = vunpack.c.h.b16 %v8438
    %v8635 = vunpack.c.l.b16 %v8439
    %v8636 = vunpack.c.h.b16 %v8439
    %v8637 = vunpack.c.l.b16 %v8440
    %v8638 = vunpack.c.h.b16 %v8440
    %v8639 = vunpack.c.l.b16 %v8441
    %v8640 = vunpack.c.h.b16 %v8441
    %v8641 = vunpack.c.l.b16 %v8442
    %v8642 = vunpack.c.h.b16 %v8442
    %v8643 = vunpack.c.l.b16 %v8443
    %v8644 = vunpack.c.h.b16 %v8443
    %v8645 = vunpack.c.l.b16 %v8444
    %v8646 = vunpack.c.h.b16 %v8444
    %v8647 = vunpack.c.l.b16 %v8445
    %v8648 = vunpack.c.h.b16 %v8445
    %v8649 = vunpack.c.l.b16 %v8446
    %v8650 = vunpack.c.h.b16 %v8446
    %v8651 = vpack.c.b16 %v8525, %v8523
    %v8652 = vpack.c.b16 %v8526, %v8524
    %v8653 = vpack.c.b16 %v8529, %v8527
    %v8654 = vpack.c.b16 %v8530, %v8528
    %v8655 = vpack.c.b16 %v8533, %v8531
    %v8656 = vpack.c.b16 %v8534, %v8532
    %v8657 = vpack.c.b16 %v8537, %v8535
    %v8658 = vpack.c.b16 %v8538, %v8536
    %v8659 = vpack.c.b16 %v8541, %v8539
    %v8660 = vpack.c.b16 %v8542, %v8540
    %v8661 = vpack.c.b16 %v8545, %v8543
    %v8662 = vpack.c.b16 %v8546, %v8544
    %v8663 = vpack.c.b16 %v8549, %v8547
    %v8664 = vpack.c.b16 %v8550, %v8548
    %v8665 = vpack.c.b16 %v8553, %v8551
    %v8666 = vpack.c.b16 %v8554, %v8552
    %v8667 = vpack.c.b16 %v8557, %v8555
    %v8668 = vpack.c.b16 %v8558, %v8556
    %v8669 = vpack.c.b16 %v8561, %v8559
    %v8670 = vpack.c.b16 %v8562, %v8560
    %v8671 = vpack.c.b16 %v8565, %v8563
    %v8672 = vpack.c.b16 %v8566, %v8564
    %v8673 = vpack.c.b16 %v8569, %v8567
    %v8674 = vpack.c.b16 %v8570, %v8568
    %v8675 = vpack.c.b16 %v8573, %v8571
    %v8676 = vpack.c.b16 %v8574, %v8572
    %v8677 = vpack.c.b16 %v8577, %v8575
    %v8678 = vpack.c.b16 %v8578, %v8576
    %v8679 = vpack.c.b16 %v8581, %v8579
    %v8680 = vpack.c.b16 %v8582, %v8580
    %v8681 = vpack.c.b16 %v8585, %v8583
    %v8682 = vpack.c.b16 %v8586, %v8584
    %v8683 = vpack.c.b16 %v8589, %v8587
    %v8684 = vpack.c.b16 %v8590, %v8588
    %v8685 = vpack.c.b16 %v8593, %v8591
    %v8686 = vpack.c.b16 %v8594, %v8592
    %v8687 = vpack.c.b16 %v8597, %v8595
    %v8688 = vpack.c.b16 %v8598, %v8596
    %v8689 = vpack.c.b16 %v8601, %v8599
    %v8690 = vpack.c.b16 %v8602, %v8600
    %v8691 = vpack.c.b16 %v8605, %v8603
    %v8692 = vpack.c.b16 %v8606, %v8604
    %v8693 = vpack.c.b16 %v8609, %v8607
    %v8694 = vpack.c.b16 %v8610, %v8608
    %v8695 = vpack.c.b16 %v8613, %v8611
    %v8696 = vpack.c.b16 %v8614, %v8612
    %v8697 = vpack.c.b16 %v8617, %v8615
    %v8698 = vpack.c.b16 %v8618, %v8616
    %v8699 = vpack.c.b16 %v8621, %v8619
    %v8700 = vpack.c.b16 %v8622, %v8620
    %v8701 = vpack.c.b16 %v8625, %v8623
    %v8702 = vpack.c.b16 %v8626, %v8624
    %v8703 = vpack.c.b16 %v8629, %v8627
    %v8704 = vpack.c.b16 %v8630, %v8628
    %v8705 = vpack.c.b16 %v8633, %v8631
    %v8706 = vpack.c.b16 %v8634, %v8632
    %v8707 = vpack.c.b16 %v8637, %v8635
    %v8708 = vpack.c.b16 %v8638, %v8636
    %v8709 = vpack.c.b16 %v8641, %v8639
    %v8710 = vpack.c.b16 %v8642, %v8640
    %v8711 = vpack.c.b16 %v8645, %v8643
    %v8712 = vpack.c.b16 %v8646, %v8644
    %v8713 = vpack.c.b16 %v8649, %v8647
    %v8714 = vpack.c.b16 %v8650, %v8648
    %8779 = vmatprep.subr.bf16.mxu0 %v8652
    %8780 = vmatpush1.bf16.msra.mxu0 %v8651
    %8781 = vmatprep.subr.bf16.mxu0 %v8654
    %8782 = vmatpush1.bf16.msra.mxu0 %v8653
    %8783 = vmatprep.subr.bf16.mxu0 %v8656
    %8784 = vmatpush1.bf16.msra.mxu0 %v8655
    %8785 = vmatprep.subr.bf16.mxu0 %v8658
    %8786 = vmatpush1.bf16.msra.mxu0 %v8657
    %8787 = vmatprep.subr.bf16.mxu0 %v8660
    %8788 = vmatpush1.bf16.msra.mxu0 %v8659
    %8789 = vmatprep.subr.bf16.mxu0 %v8662
    %8790 = vmatpush1.bf16.msra.mxu0 %v8661
    %8791 = vmatprep.subr.bf16.mxu0 %v8664
    %8792 = vmatpush1.bf16.msra.mxu0 %v8663
    %8793 = vmatprep.subr.bf16.mxu0 %v8666
    %8794 = vmatpush1.bf16.msra.mxu0 %v8665
    %8795 = vmatprep.subr.bf16.mxu0 %v8668
    %8796 = vmatpush1.bf16.msra.mxu0 %v8667
    %8797 = vmatprep.subr.bf16.mxu0 %v8670
    %8798 = vmatpush1.bf16.msra.mxu0 %v8669
    %8799 = vmatprep.subr.bf16.mxu0 %v8672
    %8800 = vmatpush1.bf16.msra.mxu0 %v8671
    %8801 = vmatprep.subr.bf16.mxu0 %v8674
    %8802 = vmatpush1.bf16.msra.mxu0 %v8673
    %8803 = vmatprep.subr.bf16.mxu0 %v8676
    %8804 = vmatpush1.bf16.msra.mxu0 %v8675
    %8805 = vmatprep.subr.bf16.mxu0 %v8678
    %8806 = vmatpush1.bf16.msra.mxu0 %v8677
    %8807 = vmatprep.subr.bf16.mxu0 %v8680
    %8808 = vmatpush1.bf16.msra.mxu0 %v8679
    %8809 = vmatprep.subr.bf16.mxu0 %v8682
    %8810 = vmatpush1.bf16.msra.mxu0 %v8681
    %8811 = vmatprep.mubr.bf16.mxu0 %v8380
    %8812 = vmatmul.mubr.bf16.gmra.mrb[0].mxu0 %v8379
    %v8813 = vpop.f32.mrb[0].mxu0
    %v8814 = vadd.f32 %v8452, %v8813
    %v8815 = vpop.f32.mrb[0].mxu0
    %v8816 = vadd.f32 %v8456, %v8815
    %v8817 = vpop.f32.mrb[0].mxu0
    %v8818 = vpop.f32.mrb[0].mxu0
    %8819 = vdwg.mxu0
    %8820 = vmatprep.subr.bf16.mxu0 %v8684
    %8821 = vmatpush1.bf16.msra.mxu0 %v8683
    %8822 = vmatprep.subr.bf16.mxu0 %v8686
    %8823 = vmatpush1.bf16.msra.mxu0 %v8685
    %8824 = vmatprep.subr.bf16.mxu0 %v8688
    %8825 = vmatpush1.bf16.msra.mxu0 %v8687
    %8826 = vmatprep.subr.bf16.mxu0 %v8690
    %8827 = vmatpush1.bf16.msra.mxu0 %v8689
    %8828 = vmatprep.subr.bf16.mxu0 %v8692
    %8829 = vmatpush1.bf16.msra.mxu0 %v8691
    %8830 = vmatprep.subr.bf16.mxu0 %v8694
    %8831 = vmatpush1.bf16.msra.mxu0 %v8693
    %8832 = vmatprep.subr.bf16.mxu0 %v8696
    %8833 = vmatpush1.bf16.msra.mxu0 %v8695
    %8834 = vmatprep.subr.bf16.mxu0 %v8698
    %8835 = vmatpush1.bf16.msra.mxu0 %v8697
    %8836 = vmatprep.subr.bf16.mxu0 %v8700
    %8837 = vmatpush1.bf16.msra.mxu0 %v8699
    %8838 = vmatprep.subr.bf16.mxu0 %v8702
    %8839 = vmatpush1.bf16.msra.mxu0 %v8701
    %8840 = vmatprep.subr.bf16.mxu0 %v8704
    %8841 = vmatpush1.bf16.msra.mxu0 %v8703
    %8842 = vmatprep.subr.bf16.mxu0 %v8706
    %8843 = vmatpush1.bf16.msra.mxu0 %v8705
    %8844 = vmatprep.subr.bf16.mxu0 %v8708
    %8845 = vmatpush1.bf16.msra.mxu0 %v8707
    %8846 = vmatprep.subr.bf16.mxu0 %v8710
    %8847 = vmatpush1.bf16.msra.mxu0 %v8709
    %8848 = vmatprep.subr.bf16.mxu0 %v8712
    %8849 = vmatpush1.bf16.msra.mxu0 %v8711
    %8850 = vmatprep.subr.bf16.mxu0 %v8714
    %8851 = vmatpush1.bf16.msra.mxu0 %v8713
    %8852 = vmatprep.mubr.bf16.mxu0 %v8382
    %8853 = vmatmul.mubr.bf16.gmra.mrb[0].mxu0 %v8381
    %v8854 = vpop.f32.mrb[0].mxu0
    %v8855 = vadd.f32 %v8814, %v8854
    %v8856 = vpop.f32.mrb[0].mxu0
    %v8857 = vadd.f32 %v8816, %v8856
    %v8858 = vpop.f32.mrb[0].mxu0
    %v8859 = vpop.f32.mrb[0].mxu0
    %8860 = vdwg.mxu0
    %v8861 = vmax.f32 %v8855, 0.0
    %v8862 = vmax.f32 %v8857, 0.0
    %v8863 = vpack.c.bf16 %v8861, %v8861
    %v8864 = vpack.c.bf16 %v8862, %v8862
    %v8865 = vld [vmem:[#allocation28] sm:$0xf]
    %v8866 = vld [vmem:[#allocation28 + $0x4] sm:$0xf]
    %v8867 = vld [vmem:[#allocation28 + $0x8] sm:$0xf]
    %v8868 = vld [vmem:[#allocation28 + $0xc] sm:$0xf]
    %v8869 = vld [vmem:[#allocation28 + $0x10] sm:$0xf]
    %v8870 = vld [vmem:[#allocation28 + $0x14] sm:$0xf]
    %v8871 = vld [vmem:[#allocation28 + $0x18] sm:$0xf]
    %v8872 = vld [vmem:[#allocation28 + $0x1c] sm:$0xf]
    %v8873 = vld [vmem:[#allocation28 + $0x20] sm:$0xf]
    %v8874 = vld [vmem:[#allocation28 + $0x24] sm:$0xf]
    %v8875 = vld [vmem:[#allocation28 + $0x28] sm:$0xf]
    %v8876 = vld [vmem:[#allocation28 + $0x2c] sm:$0xf]
    %v8877 = vld [vmem:[#allocation28 + $0x30] sm:$0xf]
    %v8878 = vld [vmem:[#allocation28 + $0x34] sm:$0xf]
    %v8879 = vld [vmem:[#allocation28 + $0x38] sm:$0xf]
    %v8880 = vld [vmem:[#allocation28 + $0x3c] sm:$0xf]
    %v8881 = vld [vmem:[#allocation28 + $0x40] sm:$0xf]
    %v8882 = vld [vmem:[#allocation28 + $0x44] sm:$0xf]
    %v8883 = vld [vmem:[#allocation28 + $0x48] sm:$0xf]
    %v8884 = vld [vmem:[#allocation28 + $0x4c] sm:$0xf]
    %v8885 = vld [vmem:[#allocation28 + $0x50] sm:$0xf]
    %v8886 = vld [vmem:[#allocation28 + $0x54] sm:$0xf]
    %v8887 = vld [vmem:[#allocation28 + $0x58] sm:$0xf]
    %v8888 = vld [vmem:[#allocation28 + $0x5c] sm:$0xf]
    %v8889 = vld [vmem:[#allocation28 + $0x60] sm:$0xf]
    %v8890 = vld [vmem:[#allocation28 + $0x64] sm:$0xf]
    %v8891 = vld [vmem:[#allocation28 + $0x68] sm:$0xf]
    %v8892 = vld [vmem:[#allocation28 + $0x6c] sm:$0xf]
    %v8893 = vld [vmem:[#allocation28 + $0x70] sm:$0xf]
    %v8894 = vld [vmem:[#allocation28 + $0x74] sm:$0xf]
    %v8895 = vld [vmem:[#allocation28 + $0x78] sm:$0xf]
    %v8896 = vld [vmem:[#allocation28 + $0x7c] sm:$0xf]
    %v8897 = vld [vmem:[#allocation29] sm:$0x1]
    %v8899 = vlaneseq
    %v8900 = vshrl.u32 %v8899, 7
    %v8901 = vsub.s32 0, %v8900
    %v8902 = vrot.slane %v8897, %v8901
    %v8936 = vunpack.c.l.b16 %v8865
    %v8937 = vunpack.c.l.b16 %v8866
    %v8938 = vunpack.c.l.b16 %v8867
    %v8939 = vunpack.c.l.b16 %v8868
    %v8940 = vunpack.c.l.b16 %v8869
    %v8941 = vunpack.c.l.b16 %v8870
    %v8942 = vunpack.c.l.b16 %v8871
    %v8943 = vunpack.c.l.b16 %v8872
    %v8944 = vunpack.c.l.b16 %v8873
    %v8945 = vunpack.c.l.b16 %v8874
    %v8946 = vunpack.c.l.b16 %v8875
    %v8947 = vunpack.c.l.b16 %v8876
    %v8948 = vunpack.c.l.b16 %v8877
    %v8949 = vunpack.c.l.b16 %v8878
    %v8950 = vunpack.c.l.b16 %v8879
    %v8951 = vunpack.c.l.b16 %v8880
    %v8952 = vunpack.c.l.b16 %v8881
    %v8953 = vunpack.c.l.b16 %v8882
    %v8954 = vunpack.c.l.b16 %v8883
    %v8955 = vunpack.c.l.b16 %v8884
    %v8956 = vunpack.c.l.b16 %v8885
    %v8957 = vunpack.c.l.b16 %v8886
    %v8958 = vunpack.c.l.b16 %v8887
    %v8959 = vunpack.c.l.b16 %v8888
    %v8960 = vunpack.c.l.b16 %v8889
    %v8961 = vunpack.c.l.b16 %v8890
    %v8962 = vunpack.c.l.b16 %v8891
    %v8963 = vunpack.c.l.b16 %v8892
    %v8964 = vunpack.c.l.b16 %v8893
    %v8965 = vunpack.c.l.b16 %v8894
    %v8966 = vunpack.c.l.b16 %v8895
    %v8967 = vunpack.c.l.b16 %v8896
    %v8968 = vpack.c.b16 %v8937, %v8936
    %v8969 = vpack.c.b16 %v8939, %v8938
    %v8970 = vpack.c.b16 %v8941, %v8940
    %v8971 = vpack.c.b16 %v8943, %v8942
    %v8972 = vpack.c.b16 %v8945, %v8944
    %v8973 = vpack.c.b16 %v8947, %v8946
    %v8974 = vpack.c.b16 %v8949, %v8948
    %v8975 = vpack.c.b16 %v8951, %v8950
    %v8976 = vpack.c.b16 %v8953, %v8952
    %v8977 = vpack.c.b16 %v8955, %v8954
    %v8978 = vpack.c.b16 %v8957, %v8956
    %v8979 = vpack.c.b16 %v8959, %v8958
    %v8980 = vpack.c.b16 %v8961, %v8960
    %v8981 = vpack.c.b16 %v8963, %v8962
    %v8982 = vpack.c.b16 %v8965, %v8964
    %v8983 = vpack.c.b16 %v8967, %v8966
    %9000 = vmatprep.subr.bf16.mxu0 0
    %9001 = vmatpush1.bf16.msra.mxu0 %v8968
    %9002 = vmatprep.subr.bf16.mxu0 0
    %9003 = vmatpush1.bf16.msra.mxu0 %v8969
    %9004 = vmatprep.subr.bf16.mxu0 0
    %9005 = vmatpush1.bf16.msra.mxu0 %v8970
    %9006 = vmatprep.subr.bf16.mxu0 0
    %9007 = vmatpush1.bf16.msra.mxu0 %v8971
    %9008 = vmatprep.subr.bf16.mxu0 0
    %9009 = vmatpush1.bf16.msra.mxu0 %v8972
    %9010 = vmatprep.subr.bf16.mxu0 0
    %9011 = vmatpush1.bf16.msra.mxu0 %v8973
    %9012 = vmatprep.subr.bf16.mxu0 0
    %9013 = vmatpush1.bf16.msra.mxu0 %v8974
    %9014 = vmatprep.subr.bf16.mxu0 0
    %9015 = vmatpush1.bf16.msra.mxu0 %v8975
    %9016 = vmatprep.subr.bf16.mxu0 0
    %9017 = vmatpush1.bf16.msra.mxu0 %v8976
    %9018 = vmatprep.subr.bf16.mxu0 0
    %9019 = vmatpush1.bf16.msra.mxu0 %v8977
    %9020 = vmatprep.subr.bf16.mxu0 0
    %9021 = vmatpush1.bf16.msra.mxu0 %v8978
    %9022 = vmatprep.subr.bf16.mxu0 0
    %9023 = vmatpush1.bf16.msra.mxu0 %v8979
    %9024 = vmatprep.subr.bf16.mxu0 0
    %9025 = vmatpush1.bf16.msra.mxu0 %v8980
    %9026 = vmatprep.subr.bf16.mxu0 0
    %9027 = vmatpush1.bf16.msra.mxu0 %v8981
    %9028 = vmatprep.subr.bf16.mxu0 0
    %9029 = vmatpush1.bf16.msra.mxu0 %v8982
    %9030 = vmatprep.subr.bf16.mxu0 0
    %9031 = vmatpush1.bf16.msra.mxu0 %v8983
    %9032 = vmatprep.mubr.bf16.mxu0 %v8864
    %9033 = vmatmul.mubr.bf16.gmra.mrb[0].mxu0 %v8863
    %v9034 = vpop.f32.mrb[0].mxu0
    %v9035 = vadd.f32 %v8902, %v9034
    %v9036 = vpop.f32.mrb[0].mxu0
    %v9037 = vpop.f32.mrb[0].mxu0
    %v9038 = vpop.f32.mrb[0].mxu0
    %9039 = vdwg.mxu0
    %v9040 = vmax.f32 %v9035, 0.0
    %v9041 = vld [vmem:[#allocation31] sm:$0x1]
    %v9043 = vlaneseq
    %v9044 = vshrl.u32 %v9043, 7
    %v9045 = vsub.s32 0, %v9044
    %v9046 = vrot.slane %v9041, %v9045
    %v9048 = vmul.f32 %v9040, %v9046
    %v9049 = vsel %vm906, %v9048, 0.0
    %9050 = vadd.xlane.f32.xlu0 %v9049
    %v9051 = vpop.xlane.xlu0 %9050
    %v9052 = vld [vmem:[#allocation2] sm:$0x1]
    %v9054 = vlaneseq
    %v9055 = vshrl.u32 %v9054, 7
    %v9056 = vsub.s32 0, %v9055
    %v9057 = vrot.slane %v9052, %v9056
    %v9059 = vadd.f32 %v9051, %v9057
    %v9060 = vsub.f32 0.0, %v9059
    %v9061 = vmul.f32 %v9060, 1.442695
    %v9062 = vpow.pop %v9061
    %v9063 = vadd.f32 %v9062, 1.0
    %v9064 = vrcp.pop %v9063
    %v9065 = vmul.f32 1.0, %v9064
    %vm9066 = vcmask 1024
    %9067 = vst.msk [vmem:[%s23] sm:$0x3] %vm9066, %v9065
    // Predicated region
    $region170: #{dna_forward.1} parent=1 // pred_check
      _
    $region171: #{dna_forward.1} parent=1 // pred_check_branch
      %9069 = sbr.rel (0) target = $region173
    $region172: #{dna_forward.1} parent=1 // pred_region
      _
    $region173: #{dna_forward.1} parent=1 // pred_fallthru
      _
    // Predicated region
    $region174: #{dna_forward.1} parent=1 // pred_check
      _
    $region175: #{dna_forward.1} parent=1 // pred_check_branch
      %9071 = sbr.rel (0) target = $region177
    $region176: #{dna_forward.1} parent=1 // pred_region
      _
    $region177: #{dna_forward.1} parent=1 // pred_fallthru
      _
    %9072 = vsyncpa [#allocation4], 1
    %9073 = vsyncpa [#allocation6], 1
    %9074 = vsyncpa [#allocation9], 1
    %9075 = vsyncpa [#allocation12], 1
    %9076 = vsyncpa [#allocation15], 1
    %9077 = vsyncpa [#allocation18], 1
    %9078 = vsyncpa [#allocation21], 1
    %9079 = vsyncpa [#allocation24], 1
    %9080 = vsyncpa [#allocation27], 1
    %9081 = vsyncpa [#allocation30], 1

</llo_original>
